<compile_context>
chip_gen: v7x
topology: tpu7x:2x2x1
jax: 0.10.0
libtpu: 0.0.40
codegen_flags: <defaults>
</compile_context>

<pallas_src>
import jax
import jax.numpy as jnp
from jax.experimental import pallas as pl
from jax.experimental.pallas import tpu as pltpu

EPS = 1e-5


def residual_block_kernel(x_ref, w1_ref, w2_ref, bnp_ref, o_ref, pad_scr):
    """Single-invocation kernel, everything VMEM-resident.

    x_ref   : (B, H, W, C)      unpadded input, NHWC, f32
    w1_ref  : (9*C, C)          conv1 weight in im2col layout, bf16
    w2_ref  : (9*C, C)          conv2 weight in im2col layout, bf16
    bnp_ref : (4, C)            rows = gamma1, beta1, gamma2, beta2 (f32)
    o_ref   : (B, H, W, C)      output, NHWC, f32
    pad_scr : (B, H+2, W+2, C)  shared zero-halo scratch, f32
    """
    B, H, W, C = x_ref.shape
    N = B * H * W

    # Zero only the 1-pixel halo border once; interiors are fully overwritten.
    pad_scr[:, 0:1, :, :] = jnp.zeros((B, 1, W + 2, C), jnp.float32)
    pad_scr[:, H + 1:H + 2, :, :] = jnp.zeros((B, 1, W + 2, C), jnp.float32)
    pad_scr[:, :, 0:1, :] = jnp.zeros((B, H + 2, 1, C), jnp.float32)
    pad_scr[:, :, W + 1:W + 2, :] = jnp.zeros((B, H + 2, 1, C), jnp.float32)

    def conv3x3(w_mat):
        # Fused im2col: one (N, 9C) @ (9C, C) MXU matmul, bf16 in / f32 acc.
        xp = pad_scr[...]
        cols = [xp[:, dy:dy + H, dx:dx + W, :].reshape(N, C)
                for dy in range(3) for dx in range(3)]
        patches = jnp.concatenate(cols, axis=-1).astype(jnp.bfloat16)   # (N, 9C)
        return jnp.dot(patches, w_mat, preferred_element_type=jnp.float32)

    def bn_train(y, gamma, beta):
        # nn.BatchNorm2d (training mode): one-pass batch stats, biased variance.
        s = jnp.sum(y, axis=0, keepdims=True)            # (1, C)
        ss = jnp.sum(y * y, axis=0, keepdims=True)       # (1, C)
        mean = s * (1.0 / N)
        var = ss * (1.0 / N) - mean * mean
        scale = gamma * jax.lax.rsqrt(var + EPS)
        shift = beta - mean * scale
        return y * scale + shift

    bnp = bnp_ref[...]
    g1, b1, g2, b2 = bnp[0:1], bnp[1:2], bnp[2:3], bnp[3:4]   # each (1, C)

    x = x_ref[...]                                            # aligned residual source
    w1 = w1_ref[...]
    w2 = w2_ref[...]

    # conv1 -> bn1 -> relu
    pad_scr[:, 1:H + 1, 1:W + 1, :] = x
    y1 = jnp.maximum(bn_train(conv3x3(w1), g1, b1), 0.0)      # (N, C) f32

    # conv2 -> bn2
    pad_scr[:, 1:H + 1, 1:W + 1, :] = y1.reshape(B, H, W, C)
    y2 = bn_train(conv3x3(w2), g2, b2)                        # (N, C) f32

    # identity residual add + relu
    y2 = jnp.maximum(y2 + x.reshape(N, C), 0.0)
    o_ref[...] = y2.reshape(B, H, W, C)


def residual_block_forward(x_nchw, conv1_w, conv2_w, bn_params):
    """x_nchw: (B, C, H, W); conv*_w: (C, C, 3, 3) OIHW; bn_params: (4, C)."""
    B, C, H, W = x_nchw.shape
    Cout, Cin, kh, kw = conv1_w.shape
    assert (Cin, Cout, kh, kw) == (C, C, 3, 3), "identity residual path needs Cin == Cout, 3x3"

    x = jnp.transpose(x_nchw, (0, 2, 3, 1)).astype(jnp.float32)                # NHWC
    # OIHW -> (kh, kw, Cin, Cout) -> (9*Cin, Cout); bf16 operands for the MXU.
    w1 = jnp.transpose(conv1_w, (2, 3, 1, 0)).reshape(9 * C, C).astype(jnp.bfloat16)
    w2 = jnp.transpose(conv2_w, (2, 3, 1, 0)).reshape(9 * C, C).astype(jnp.bfloat16)

    flops = 2 * (2 * B * H * W * 9 * C * C)                   # two 3x3 convs
    bytes_accessed = 2 * B * H * W * C * 4 + 2 * 9 * C * C * 2 + 4 * C * 4

    # TODO(synk): downsample=True (stride-2 conv1 + 1x1 stride-2 residual conv) is
    # not implemented; only the default downsample=False path is translated.
    # TODO(synk): at real ResNet shapes add a batch/row-tiled grid with
    # dimension_semantics=("parallel",) (v7x megacore / 64 MiB VMEM); that needs a
    # two-pass (stats, then normalize) BatchNorm since batch statistics are global.
    out_nhwc = pl.pallas_call(
        residual_block_kernel,
        out_shape=jax.ShapeDtypeStruct((B, H, W, C), jnp.float32),
        in_specs=[pl.BlockSpec(memory_space=pltpu.MemorySpace.VMEM)] * 4,
        out_specs=pl.BlockSpec(memory_space=pltpu.MemorySpace.VMEM),
        scratch_shapes=[pltpu.VMEM((B, H + 2, W + 2, C), jnp.float32)],
        compiler_params=pltpu.CompilerParams(vmem_limit_bytes=32 * 1024 * 1024),
        cost_estimate=pl.CostEstimate(flops=flops, transcendentals=2 * C,
                                      bytes_accessed=bytes_accessed),
    )(x, w1, w2, bn_params.astype(jnp.float32))

    return jnp.transpose(out_nhwc, (0, 3, 1, 2))                               # NCHW


def _reference_forward(x_nchw, conv1_w, conv2_w):
    # Pure-JAX f32 reference mirroring PyTorch (fresh BN: gamma=1, beta=0, training mode).
    def conv(x, w):
        return jax.lax.conv_general_dilated(
            x, w, window_strides=(1, 1), padding=((1, 1), (1, 1)),
            dimension_numbers=("NCHW", "OIHW", "NCHW"))

    def bn(y):
        mean = y.mean(axis=(0, 2, 3), keepdims=True)
        var = ((y - mean) ** 2).mean(axis=(0, 2, 3), keepdims=True)
        return (y - mean) / jnp.sqrt(var + EPS)

    out = jnp.maximum(bn(conv(x_nchw, conv1_w)), 0.0)
    out = bn(conv(out, conv2_w)) + x_nchw
    return jnp.maximum(out, 0.0)


if __name__ == "__main__":
    B, C, H, W = 2, 16, 16, 16        # in_size == out_size == 16, downsample=False
    key = jax.random.PRNGKey(0)
    kx, k1, k2 = jax.random.split(key, 3)

    x = jax.random.normal(kx, (B, C, H, W), dtype=jnp.float32)
    conv1_w = jax.random.normal(k1, (C, C, 3, 3), dtype=jnp.float32) * 0.1
    conv2_w = jax.random.normal(k2, (C, C, 3, 3), dtype=jnp.float32) * 0.1

    # BatchNorm2d default init: weight=1, bias=0 (rows: gamma1, beta1, gamma2, beta2)
    bn_params = jnp.stack([jnp.ones((C,)), jnp.zeros((C,)),
                           jnp.ones((C,)), jnp.zeros((C,))]).astype(jnp.float32)

    out = residual_block_forward(x, conv1_w, conv2_w, bn_params)
    out = jax.block_until_ready(out)

    ref = _reference_forward(x, conv1_w, conv2_w)
    assert out.shape == (B, C, H, W)
    # bf16 MXU operands (f32 accumulation) -> tolerance loosened vs the f32 reference.
    assert jnp.allclose(out, ref, rtol=5e-2, atol=5e-2), float(jnp.max(jnp.abs(out - ref)))

    print("KERNEL_OK")
</pallas_src>

<mosaic_0001>
module attributes {stable_mosaic.version = 11 : i64} {
  func.func @residual_block_kernel(%arg0: memref<2x16x16x16xf32, #tpu.memory_space<vmem>>, %arg1: memref<144x16xbf16, #tpu.memory_space<vmem>>, %arg2: memref<144x16xbf16, #tpu.memory_space<vmem>>, %arg3: memref<4x16xf32, #tpu.memory_space<vmem>>, %arg4: memref<2x16x16x16xf32, #tpu.memory_space<vmem>>, %arg5: memref<2x18x18x16xf32, #tpu.memory_space<vmem>>) attributes {dimension_semantics = [], scalar_prefetch = 0 : i64, scratch_operands = 1 : i64, tpu.core_type = #tpu.core_type<tc>} {
    %cst = arith.constant 0.000000e+00 : f32
    %0 = vector.broadcast %cst : f32 to vector<2x1x18x16xf32>
    %c0 = arith.constant 0 : index
    %c0_0 = arith.constant 0 : index
    %c0_1 = arith.constant 0 : index
    %c0_2 = arith.constant 0 : index
    %1 = vector.load %arg5[%c0, %c0_0, %c0_1, %c0_2] : memref<2x18x18x16xf32, #tpu.memory_space<vmem>>, vector<2x1x18x16xf32>
    tpu.vector_store %arg5[%c0, %c0_0, %c0_1, %c0_2], %0 {strides = array<i32>} : memref<2x18x18x16xf32, #tpu.memory_space<vmem>>, vector<2x1x18x16xf32>,
    %cst_3 = arith.constant 0.000000e+00 : f32
    %2 = vector.broadcast %cst_3 : f32 to vector<2x1x18x16xf32>
    %c0_4 = arith.constant 0 : index
    %c17 = arith.constant 17 : index
    %c0_5 = arith.constant 0 : index
    %c0_6 = arith.constant 0 : index
    %3 = vector.load %arg5[%c0_4, %c17, %c0_5, %c0_6] : memref<2x18x18x16xf32, #tpu.memory_space<vmem>>, vector<2x1x18x16xf32>
    tpu.vector_store %arg5[%c0_4, %c17, %c0_5, %c0_6], %2 {strides = array<i32>} : memref<2x18x18x16xf32, #tpu.memory_space<vmem>>, vector<2x1x18x16xf32>,
    %cst_7 = arith.constant 0.000000e+00 : f32
    %4 = vector.broadcast %cst_7 : f32 to vector<2x18x1x16xf32>
    %c0_8 = arith.constant 0 : index
    %c0_9 = arith.constant 0 : index
    %c0_10 = arith.constant 0 : index
    %c0_11 = arith.constant 0 : index
    %5 = vector.load %arg5[%c0_8, %c0_9, %c0_10, %c0_11] : memref<2x18x18x16xf32, #tpu.memory_space<vmem>>, vector<2x18x1x16xf32>
    tpu.vector_store %arg5[%c0_8, %c0_9, %c0_10, %c0_11], %4 {strides = array<i32>} : memref<2x18x18x16xf32, #tpu.memory_space<vmem>>, vector<2x18x1x16xf32>,
    %cst_12 = arith.constant 0.000000e+00 : f32
    %6 = vector.broadcast %cst_12 : f32 to vector<2x18x1x16xf32>
    %c0_13 = arith.constant 0 : index
    %c0_14 = arith.constant 0 : index
    %c17_15 = arith.constant 17 : index
    %c0_16 = arith.constant 0 : index
    %7 = vector.load %arg5[%c0_13, %c0_14, %c17_15, %c0_16] : memref<2x18x18x16xf32, #tpu.memory_space<vmem>>, vector<2x18x1x16xf32>
    tpu.vector_store %arg5[%c0_13, %c0_14, %c17_15, %c0_16], %6 {strides = array<i32>} : memref<2x18x18x16xf32, #tpu.memory_space<vmem>>, vector<2x18x1x16xf32>,
    %c0_17 = arith.constant 0 : index
    %c0_18 = arith.constant 0 : index
    %8 = vector.load %arg3[%c0_17, %c0_18] : memref<4x16xf32, #tpu.memory_space<vmem>>, vector<4x16xf32>
    %9 = vector.extract_strided_slice %8 {offsets = [0, 0], sizes = [1, 16], strides = [1, 1]} : vector<4x16xf32> to vector<1x16xf32>
    %10 = vector.extract_strided_slice %8 {offsets = [1, 0], sizes = [1, 16], strides = [1, 1]} : vector<4x16xf32> to vector<1x16xf32>
    %11 = vector.extract_strided_slice %8 {offsets = [2, 0], sizes = [1, 16], strides = [1, 1]} : vector<4x16xf32> to vector<1x16xf32>
    %12 = vector.extract_strided_slice %8 {offsets = [3, 0], sizes = [1, 16], strides = [1, 1]} : vector<4x16xf32> to vector<1x16xf32>
    %c0_19 = arith.constant 0 : index
    %c0_20 = arith.constant 0 : index
    %c0_21 = arith.constant 0 : index
    %c0_22 = arith.constant 0 : index
    %13 = vector.load %arg0[%c0_19, %c0_20, %c0_21, %c0_22] : memref<2x16x16x16xf32, #tpu.memory_space<vmem>>, vector<2x16x16x16xf32>
    %c0_23 = arith.constant 0 : index
    %c0_24 = arith.constant 0 : index
    %14 = vector.load %arg1[%c0_23, %c0_24] : memref<144x16xbf16, #tpu.memory_space<vmem>>, vector<144x16xbf16>
    %c0_25 = arith.constant 0 : index
    %c0_26 = arith.constant 0 : index
    %15 = vector.load %arg2[%c0_25, %c0_26] : memref<144x16xbf16, #tpu.memory_space<vmem>>, vector<144x16xbf16>
    %c0_27 = arith.constant 0 : index
    %c1 = arith.constant 1 : index
    %c1_28 = arith.constant 1 : index
    %c0_29 = arith.constant 0 : index
    %16 = vector.load %arg5[%c0_27, %c1, %c1_28, %c0_29] : memref<2x18x18x16xf32, #tpu.memory_space<vmem>>, vector<2x16x16x16xf32>
    tpu.vector_store %arg5[%c0_27, %c1, %c1_28, %c0_29], %13 {strides = array<i32>} : memref<2x18x18x16xf32, #tpu.memory_space<vmem>>, vector<2x16x16x16xf32>,
    %c0_30 = arith.constant 0 : index
    %c0_31 = arith.constant 0 : index
    %c0_32 = arith.constant 0 : index
    %c0_33 = arith.constant 0 : index
    %17 = vector.load %arg5[%c0_30, %c0_31, %c0_32, %c0_33] : memref<2x18x18x16xf32, #tpu.memory_space<vmem>>, vector<2x18x18x16xf32>
    %18 = vector.extract_strided_slice %17 {offsets = [0, 0, 0, 0], sizes = [2, 16, 16, 16], strides = [1, 1, 1, 1]} : vector<2x18x18x16xf32> to vector<2x16x16x16xf32>
    %19 = vector.shape_cast %18 : vector<2x16x16x16xf32> to vector<512x16xf32>
    %20 = vector.extract_strided_slice %17 {offsets = [0, 0, 1, 0], sizes = [2, 16, 16, 16], strides = [1, 1, 1, 1]} : vector<2x18x18x16xf32> to vector<2x16x16x16xf32>
    %21 = vector.shape_cast %20 : vector<2x16x16x16xf32> to vector<512x16xf32>
    %22 = vector.extract_strided_slice %17 {offsets = [0, 0, 2, 0], sizes = [2, 16, 16, 16], strides = [1, 1, 1, 1]} : vector<2x18x18x16xf32> to vector<2x16x16x16xf32>
    %23 = vector.shape_cast %22 : vector<2x16x16x16xf32> to vector<512x16xf32>
    %24 = vector.extract_strided_slice %17 {offsets = [0, 1, 0, 0], sizes = [2, 16, 16, 16], strides = [1, 1, 1, 1]} : vector<2x18x18x16xf32> to vector<2x16x16x16xf32>
    %25 = vector.shape_cast %24 : vector<2x16x16x16xf32> to vector<512x16xf32>
    %26 = vector.extract_strided_slice %17 {offsets = [0, 1, 1, 0], sizes = [2, 16, 16, 16], strides = [1, 1, 1, 1]} : vector<2x18x18x16xf32> to vector<2x16x16x16xf32>
    %27 = vector.shape_cast %26 : vector<2x16x16x16xf32> to vector<512x16xf32>
    %28 = vector.extract_strided_slice %17 {offsets = [0, 1, 2, 0], sizes = [2, 16, 16, 16], strides = [1, 1, 1, 1]} : vector<2x18x18x16xf32> to vector<2x16x16x16xf32>
    %29 = vector.shape_cast %28 : vector<2x16x16x16xf32> to vector<512x16xf32>
    %30 = vector.extract_strided_slice %17 {offsets = [0, 2, 0, 0], sizes = [2, 16, 16, 16], strides = [1, 1, 1, 1]} : vector<2x18x18x16xf32> to vector<2x16x16x16xf32>
    %31 = vector.shape_cast %30 : vector<2x16x16x16xf32> to vector<512x16xf32>
    %32 = vector.extract_strided_slice %17 {offsets = [0, 2, 1, 0], sizes = [2, 16, 16, 16], strides = [1, 1, 1, 1]} : vector<2x18x18x16xf32> to vector<2x16x16x16xf32>
    %33 = vector.shape_cast %32 : vector<2x16x16x16xf32> to vector<512x16xf32>
    %34 = vector.extract_strided_slice %17 {offsets = [0, 2, 2, 0], sizes = [2, 16, 16, 16], strides = [1, 1, 1, 1]} : vector<2x18x18x16xf32> to vector<2x16x16x16xf32>
    %35 = vector.shape_cast %34 : vector<2x16x16x16xf32> to vector<512x16xf32>
    %36 = tpu.concatenate %19, %21, %23, %25, %27, %29, %31, %33, %35 in 1 : vector<512x16xf32>, vector<512x16xf32>, vector<512x16xf32>, vector<512x16xf32>, vector<512x16xf32>, vector<512x16xf32>, vector<512x16xf32>, vector<512x16xf32>, vector<512x16xf32> -> vector<512x144xf32>
    %37 = arith.truncf %36 : vector<512x144xf32> to vector<512x144xbf16>
    %cst_34 = arith.constant dense<0.000000e+00> : vector<512x16xf32>
    %38 = tpu.matmul %37, %14, %cst_34 {dimension_numbers = #tpu.dot_dimension_numbers<[1], [0], [0], [1], [0, 0, 1, 1], [], []>} : vector<512x144xbf16>, vector<144x16xbf16>, vector<512x16xf32> -> vector<512x16xf32>
    %cst_35 = arith.constant dense<0.000000e+00> : vector<16xf32>
    %39 = vector.multi_reduction <add>, %38, %cst_35 [0] : vector<512x16xf32> to vector<16xf32>
    %40 = vector.shape_cast %39 : vector<16xf32> to vector<1x16xf32>
    %41 = arith.mulf %38, %38 : vector<512x16xf32>
    %cst_36 = arith.constant dense<0.000000e+00> : vector<16xf32>
    %42 = vector.multi_reduction <add>, %41, %cst_36 [0] : vector<512x16xf32> to vector<16xf32>
    %43 = vector.shape_cast %42 : vector<16xf32> to vector<1x16xf32>
    %cst_37 = arith.constant 0.001953125 : f32
    %44 = vector.broadcast %cst_37 : f32 to vector<1x16xf32>
    %45 = arith.mulf %40, %44 : vector<1x16xf32>
    %cst_38 = arith.constant 0.001953125 : f32
    %46 = vector.broadcast %cst_38 : f32 to vector<1x16xf32>
    %47 = arith.mulf %43, %46 : vector<1x16xf32>
    %48 = arith.mulf %45, %45 : vector<1x16xf32>
    %49 = arith.subf %47, %48 : vector<1x16xf32>
    %cst_39 = arith.constant 9.99999974E-6 : f32
    %50 = vector.broadcast %cst_39 : f32 to vector<1x16xf32>
    %51 = arith.addf %49, %50 : vector<1x16xf32>
    %52 = math.rsqrt %51 : vector<1x16xf32>
    %53 = arith.mulf %9, %52 : vector<1x16xf32>
    %54 = arith.mulf %45, %53 : vector<1x16xf32>
    %55 = arith.subf %10, %54 : vector<1x16xf32>
    %56 = vector.broadcast %53 : vector<1x16xf32> to vector<512x16xf32>
    %57 = arith.mulf %38, %56 : vector<512x16xf32>
    %58 = vector.broadcast %55 : vector<1x16xf32> to vector<512x16xf32>
    %59 = arith.addf %57, %58 : vector<512x16xf32>
    %cst_40 = arith.constant 0.000000e+00 : f32
    %60 = vector.broadcast %cst_40 : f32 to vector<512x16xf32>
    %61 = arith.maximumf %59, %60 : vector<512x16xf32>
    %62 = vector.shape_cast %61 : vector<512x16xf32> to vector<2x16x16x16xf32>
    %c0_41 = arith.constant 0 : index
    %c1_42 = arith.constant 1 : index
    %c1_43 = arith.constant 1 : index
    %c0_44 = arith.constant 0 : index
    %63 = vector.load %arg5[%c0_41, %c1_42, %c1_43, %c0_44] : memref<2x18x18x16xf32, #tpu.memory_space<vmem>>, vector<2x16x16x16xf32>
    tpu.vector_store %arg5[%c0_41, %c1_42, %c1_43, %c0_44], %62 {strides = array<i32>} : memref<2x18x18x16xf32, #tpu.memory_space<vmem>>, vector<2x16x16x16xf32>,
    %c0_45 = arith.constant 0 : index
    %c0_46 = arith.constant 0 : index
    %c0_47 = arith.constant 0 : index
    %c0_48 = arith.constant 0 : index
    %64 = vector.load %arg5[%c0_45, %c0_46, %c0_47, %c0_48] : memref<2x18x18x16xf32, #tpu.memory_space<vmem>>, vector<2x18x18x16xf32>
    %65 = vector.extract_strided_slice %64 {offsets = [0, 0, 0, 0], sizes = [2, 16, 16, 16], strides = [1, 1, 1, 1]} : vector<2x18x18x16xf32> to vector<2x16x16x16xf32>
    %66 = vector.shape_cast %65 : vector<2x16x16x16xf32> to vector<512x16xf32>
    %67 = vector.extract_strided_slice %64 {offsets = [0, 0, 1, 0], sizes = [2, 16, 16, 16], strides = [1, 1, 1, 1]} : vector<2x18x18x16xf32> to vector<2x16x16x16xf32>
    %68 = vector.shape_cast %67 : vector<2x16x16x16xf32> to vector<512x16xf32>
    %69 = vector.extract_strided_slice %64 {offsets = [0, 0, 2, 0], sizes = [2, 16, 16, 16], strides = [1, 1, 1, 1]} : vector<2x18x18x16xf32> to vector<2x16x16x16xf32>
    %70 = vector.shape_cast %69 : vector<2x16x16x16xf32> to vector<512x16xf32>
    %71 = vector.extract_strided_slice %64 {offsets = [0, 1, 0, 0], sizes = [2, 16, 16, 16], strides = [1, 1, 1, 1]} : vector<2x18x18x16xf32> to vector<2x16x16x16xf32>
    %72 = vector.shape_cast %71 : vector<2x16x16x16xf32> to vector<512x16xf32>
    %73 = vector.extract_strided_slice %64 {offsets = [0, 1, 1, 0], sizes = [2, 16, 16, 16], strides = [1, 1, 1, 1]} : vector<2x18x18x16xf32> to vector<2x16x16x16xf32>
    %74 = vector.shape_cast %73 : vector<2x16x16x16xf32> to vector<512x16xf32>
    %75 = vector.extract_strided_slice %64 {offsets = [0, 1, 2, 0], sizes = [2, 16, 16, 16], strides = [1, 1, 1, 1]} : vector<2x18x18x16xf32> to vector<2x16x16x16xf32>
    %76 = vector.shape_cast %75 : vector<2x16x16x16xf32> to vector<512x16xf32>
    %77 = vector.extract_strided_slice %64 {offsets = [0, 2, 0, 0], sizes = [2, 16, 16, 16], strides = [1, 1, 1, 1]} : vector<2x18x18x16xf32> to vector<2x16x16x16xf32>
    %78 = vector.shape_cast %77 : vector<2x16x16x16xf32> to vector<512x16xf32>
    %79 = vector.extract_strided_slice %64 {offsets = [0, 2, 1, 0], sizes = [2, 16, 16, 16], strides = [1, 1, 1, 1]} : vector<2x18x18x16xf32> to vector<2x16x16x16xf32>
    %80 = vector.shape_cast %79 : vector<2x16x16x16xf32> to vector<512x16xf32>
    %81 = vector.extract_strided_slice %64 {offsets = [0, 2, 2, 0], sizes = [2, 16, 16, 16], strides = [1, 1, 1, 1]} : vector<2x18x18x16xf32> to vector<2x16x16x16xf32>
    %82 = vector.shape_cast %81 : vector<2x16x16x16xf32> to vector<512x16xf32>
    %83 = tpu.concatenate %66, %68, %70, %72, %74, %76, %78, %80, %82 in 1 : vector<512x16xf32>, vector<512x16xf32>, vector<512x16xf32>, vector<512x16xf32>, vector<512x16xf32>, vector<512x16xf32>, vector<512x16xf32>, vector<512x16xf32>, vector<512x16xf32> -> vector<512x144xf32>
    %84 = arith.truncf %83 : vector<512x144xf32> to vector<512x144xbf16>
    %cst_49 = arith.constant dense<0.000000e+00> : vector<512x16xf32>
    %85 = tpu.matmul %84, %15, %cst_49 {dimension_numbers = #tpu.dot_dimension_numbers<[1], [0], [0], [1], [0, 0, 1, 1], [], []>} : vector<512x144xbf16>, vector<144x16xbf16>, vector<512x16xf32> -> vector<512x16xf32>
    %cst_50 = arith.constant dense<0.000000e+00> : vector<16xf32>
    %86 = vector.multi_reduction <add>, %85, %cst_50 [0] : vector<512x16xf32> to vector<16xf32>
    %87 = vector.shape_cast %86 : vector<16xf32> to vector<1x16xf32>
    %88 = arith.mulf %85, %85 : vector<512x16xf32>
    %cst_51 = arith.constant dense<0.000000e+00> : vector<16xf32>
    %89 = vector.multi_reduction <add>, %88, %cst_51 [0] : vector<512x16xf32> to vector<16xf32>
    %90 = vector.shape_cast %89 : vector<16xf32> to vector<1x16xf32>
    %cst_52 = arith.constant 0.001953125 : f32
    %91 = vector.broadcast %cst_52 : f32 to vector<1x16xf32>
    %92 = arith.mulf %87, %91 : vector<1x16xf32>
    %cst_53 = arith.constant 0.001953125 : f32
    %93 = vector.broadcast %cst_53 : f32 to vector<1x16xf32>
    %94 = arith.mulf %90, %93 : vector<1x16xf32>
    %95 = arith.mulf %92, %92 : vector<1x16xf32>
    %96 = arith.subf %94, %95 : vector<1x16xf32>
    %cst_54 = arith.constant 9.99999974E-6 : f32
    %97 = vector.broadcast %cst_54 : f32 to vector<1x16xf32>
    %98 = arith.addf %96, %97 : vector<1x16xf32>
    %99 = math.rsqrt %98 : vector<1x16xf32>
    %100 = arith.mulf %11, %99 : vector<1x16xf32>
    %101 = arith.mulf %92, %100 : vector<1x16xf32>
    %102 = arith.subf %12, %101 : vector<1x16xf32>
    %103 = vector.broadcast %100 : vector<1x16xf32> to vector<512x16xf32>
    %104 = arith.mulf %85, %103 : vector<512x16xf32>
    %105 = vector.broadcast %102 : vector<1x16xf32> to vector<512x16xf32>
    %106 = arith.addf %104, %105 : vector<512x16xf32>
    %107 = vector.shape_cast %13 : vector<2x16x16x16xf32> to vector<512x16xf32>
    %108 = arith.addf %106, %107 : vector<512x16xf32>
    %cst_55 = arith.constant 0.000000e+00 : f32
    %109 = vector.broadcast %cst_55 : f32 to vector<512x16xf32>
    %110 = arith.maximumf %108, %109 : vector<512x16xf32>
    %111 = vector.shape_cast %110 : vector<512x16xf32> to vector<2x16x16x16xf32>
    %c0_56 = arith.constant 0 : index
    %c0_57 = arith.constant 0 : index
    %c0_58 = arith.constant 0 : index
    %c0_59 = arith.constant 0 : index
    %112 = vector.load %arg4[%c0_56, %c0_57, %c0_58, %c0_59] : memref<2x16x16x16xf32, #tpu.memory_space<vmem>>, vector<2x16x16x16xf32>
    tpu.vector_store %arg4[%c0_56, %c0_57, %c0_58, %c0_59], %111 {strides = array<i32>} : memref<2x16x16x16xf32, #tpu.memory_space<vmem>>, vector<2x16x16x16xf32>,
    return
  }
}

</mosaic_0001>

<llo_original>
// kernel: tpu_custom_call.1
$region0: #{tpu_custom_call.1}
  #allocation0 [shape = 'u32[]', space=smem, size = 0x4, offset = 0x4, fixed_abs, tag = 'smem constant byte address 0x4 - core index']
  #allocation1 [shape = 'u32[144,128]{1,0:T(1,128)}', space=vmem, size = 0x12000, scoped, tag = 'internal scratch']
  #allocation2 [shape = 'f32[2,18,18,16]{3,2,1,0:T(8,128)}', space=vmem, size = 0x6c000, scoped, tag = 'scratch operand']
  %s0 = inlined_call_operand.hbm [shape: f32[2,16,16,16], index: 0, kind: input, shape index: {}]
  %s1 = inlined_call_operand.vmem [shape: bf16[144,16], index: 1, kind: input, shape index: {}]
  %s2 = inlined_call_operand.vmem [shape: bf16[144,16], index: 2, kind: input, shape index: {}]
  %s3 = inlined_call_operand.vmem [shape: f32[4,16], index: 3, kind: input, shape index: {}]
  %s4 = inlined_call_operand.hbm [shape: f32[2,16,16,16], index: 4, kind: output, shape index: {}]
  %s5 = sld [smem:[#allocation0]]
  $region30: #{tpu_custom_call.1} parent=0
    _
  %s7 = ssub.s32 1, %s5
  %s8 = scalar_select 0, %s7, %s5
  $region1: #{tpu_custom_call.1} parent=0
    #allocation3 [shape = 'u8[262144]{0}', space=vmem, size = 0x40000, scoped, tag = 'input window, operand 0, single buffered']
    #allocation4 [shape = 's32[1]{0}', space=sflag, size = 0x4, scoped, tag = 'scoped memory for tpu_custom_call.1']
    #allocation5 [shape = 's32[1]{0}', space=sflag, size = 0x4, scoped, tag = 'scoped memory for tpu_custom_call.1']
    #allocation6 [shape = 'u8[262144]{0}', space=vmem, size = 0x40000, scoped, tag = 'output window, operand 0, single buffered']
    %9 = vsyncpa [#allocation4], 0
    %10 = vsyncpa [#allocation5], 0
    // Predicated region
    $region2: #{tpu_custom_call.1} parent=1 // pred_check
      _
    $region3: #{tpu_custom_call.1} parent=1 // pred_check_branch
      %12 = sbr.rel (0) target = $region5
    $region4: #{tpu_custom_call.1} parent=1 // pred_region
      %s14 = ssub.s32 8192, 8192
      %15 = vsyncadd [#allocation4], %s14
      %s16 = sshll.u32 [#allocation3], 4
      %s17 = int_to_ptr.vmem [resolvable:$true] %s16
      %22 = dma.hbm_to_vmem [thread:$0]  %s0, 8192, %s17, [#allocation4], 128, 128, 8
    $region5: #{tpu_custom_call.1} parent=1 // pred_fallthru
      _
    // Predicated region
    $region6: #{tpu_custom_call.1} parent=1 // pred_check
      _
    $region7: #{tpu_custom_call.1} parent=1 // pred_check_branch
      %24 = sbr.rel (0) target = $region9
    $region8: #{tpu_custom_call.1} parent=1 // pred_region
      _
    $region9: #{tpu_custom_call.1} parent=1 // pred_fallthru
      _
    // Predicated region
    $region10: #{tpu_custom_call.1} parent=1 // pred_check
      _
    $region11: #{tpu_custom_call.1} parent=1 // pred_check_branch
      %26 = sbr.rel (0) target = $region13
    $region12: #{tpu_custom_call.1} parent=1 // pred_region
      _
    $region13: #{tpu_custom_call.1} parent=1 // pred_fallthru
      _
    // Predicated region
    $region14: #{tpu_custom_call.1} parent=1 // pred_check
      _
    $region15: #{tpu_custom_call.1} parent=1 // pred_check_branch
      %28 = sbr.rel (0) target = $region17
    $region16: #{tpu_custom_call.1} parent=1 // pred_region
      _
    $region17: #{tpu_custom_call.1} parent=1 // pred_fallthru
      _
    // Predicated region
    $region18: #{tpu_custom_call.1} parent=1 // pred_check
      _
    $region19: #{tpu_custom_call.1} parent=1 // pred_check_branch
      %30 = sbr.rel (0) target = $region21
    $region20: #{tpu_custom_call.1} parent=1 // pred_region
      %31 = dma.done [#allocation4], 8192
    $region21: #{tpu_custom_call.1} parent=1 // pred_fallthru
      _
    %vm33 = vcmask 130048
    %34 = vst.msk [vmem:[#allocation2] sm:$0xff] %vm33, 0.0
    %35 = vst.msk [vmem:[#allocation2 + $0x8] sm:$0xff] %vm33, 0.0
    %vm36 = vcmask 123904
    %37 = vst.msk [vmem:[#allocation2 + $0x10] sm:$0x3] %vm36, 0.0
    %38 = vst.msk [vmem:[#allocation2 + $0x1b0] sm:$0xff] %vm33, 0.0
    %39 = vst.msk [vmem:[#allocation2 + $0x1b8] sm:$0xff] %vm33, 0.0
    %40 = vst.msk [vmem:[#allocation2 + $0x1c0] sm:$0x3] %vm36, 0.0
    %s41 = scalar_lea.vmem [#allocation2], 408
    %42 = vst.msk [vmem:[%s41] sm:$0xff] %vm33, 0.0
    %43 = vst.msk [vmem:[%s41 + $0x8] sm:$0xff] %vm33, 0.0
    %44 = vst.msk [vmem:[%s41 + $0x10] sm:$0x3] %vm36, 0.0
    %45 = vst.msk [vmem:[%s41 + $0x1b0] sm:$0xff] %vm33, 0.0
    %46 = vst.msk [vmem:[%s41 + $0x1b8] sm:$0xff] %vm33, 0.0
    %47 = vst.msk [vmem:[%s41 + $0x1c0] sm:$0x3] %vm36, 0.0
    %vm48 = vcmask 122880
    %49 = vst.msk [vmem:[#allocation2] sm:$0x1] %vm48, 0.0
    %50 = vst.msk [vmem:[#allocation2 + $0x18] sm:$0x1] %vm48, 0.0
    %51 = vst.msk [vmem:[#allocation2 + $0x30] sm:$0x1] %vm48, 0.0
    %52 = vst.msk [vmem:[#allocation2 + $0x48] sm:$0x1] %vm48, 0.0
    %53 = vst.msk [vmem:[#allocation2 + $0x60] sm:$0x1] %vm48, 0.0
    %54 = vst.msk [vmem:[#allocation2 + $0x78] sm:$0x1] %vm48, 0.0
    %55 = vst.msk [vmem:[#allocation2 + $0x90] sm:$0x1] %vm48, 0.0
    %56 = vst.msk [vmem:[#allocation2 + $0xa8] sm:$0x1] %vm48, 0.0
    %57 = vst.msk [vmem:[#allocation2 + $0xc0] sm:$0x1] %vm48, 0.0
    %58 = vst.msk [vmem:[#allocation2 + $0xd8] sm:$0x1] %vm48, 0.0
    %59 = vst.msk [vmem:[#allocation2 + $0xf0] sm:$0x1] %vm48, 0.0
    %60 = vst.msk [vmem:[#allocation2 + $0x108] sm:$0x1] %vm48, 0.0
    %61 = vst.msk [vmem:[#allocation2 + $0x120] sm:$0x1] %vm48, 0.0
    %62 = vst.msk [vmem:[#allocation2 + $0x138] sm:$0x1] %vm48, 0.0
    %63 = vst.msk [vmem:[#allocation2 + $0x150] sm:$0x1] %vm48, 0.0
    %64 = vst.msk [vmem:[#allocation2 + $0x168] sm:$0x1] %vm48, 0.0
    %65 = vst.msk [vmem:[#allocation2 + $0x180] sm:$0x1] %vm48, 0.0
    %66 = vst.msk [vmem:[#allocation2 + $0x198] sm:$0x1] %vm48, 0.0
    %67 = vst.msk [vmem:[#allocation2 + $0x1b0] sm:$0x1] %vm48, 0.0
    %68 = vst.msk [vmem:[#allocation2 + $0x1c8] sm:$0x1] %vm48, 0.0
    %69 = vst.msk [vmem:[#allocation2 + $0x1e0] sm:$0x1] %vm48, 0.0
    %70 = vst.msk [vmem:[#allocation2 + $0x1f8] sm:$0x1] %vm48, 0.0
    %71 = vst.msk [vmem:[#allocation2 + $0x210] sm:$0x1] %vm48, 0.0
    %72 = vst.msk [vmem:[#allocation2 + $0x228] sm:$0x1] %vm48, 0.0
    %73 = vst.msk [vmem:[#allocation2 + $0x240] sm:$0x1] %vm48, 0.0
    %74 = vst.msk [vmem:[#allocation2 + $0x258] sm:$0x1] %vm48, 0.0
    %75 = vst.msk [vmem:[#allocation2 + $0x270] sm:$0x1] %vm48, 0.0
    %76 = vst.msk [vmem:[#allocation2 + $0x288] sm:$0x1] %vm48, 0.0
    %77 = vst.msk [vmem:[#allocation2 + $0x2a0] sm:$0x1] %vm48, 0.0
    %78 = vst.msk [vmem:[#allocation2 + $0x2b8] sm:$0x1] %vm48, 0.0
    %79 = vst.msk [vmem:[#allocation2 + $0x2d0] sm:$0x1] %vm48, 0.0
    %80 = vst.msk [vmem:[#allocation2 + $0x2e8] sm:$0x1] %vm48, 0.0
    %81 = vst.msk [vmem:[#allocation2 + $0x300] sm:$0x1] %vm48, 0.0
    %82 = vst.msk [vmem:[#allocation2 + $0x318] sm:$0x1] %vm48, 0.0
    %83 = vst.msk [vmem:[#allocation2 + $0x330] sm:$0x1] %vm48, 0.0
    %84 = vst.msk [vmem:[#allocation2 + $0x348] sm:$0x1] %vm48, 0.0
    %85 = vst.msk [vmem:[#allocation2 + $0x11] sm:$0x1] %vm48, 0.0
    %86 = vst.msk [vmem:[#allocation2 + $0x29] sm:$0x1] %vm48, 0.0
    %87 = vst.msk [vmem:[#allocation2 + $0x41] sm:$0x1] %vm48, 0.0
    %88 = vst.msk [vmem:[#allocation2 + $0x59] sm:$0x1] %vm48, 0.0
    %89 = vst.msk [vmem:[#allocation2 + $0x71] sm:$0x1] %vm48, 0.0
    %90 = vst.msk [vmem:[#allocation2 + $0x89] sm:$0x1] %vm48, 0.0
    %91 = vst.msk [vmem:[#allocation2 + $0xa1] sm:$0x1] %vm48, 0.0
    %92 = vst.msk [vmem:[#allocation2 + $0xb9] sm:$0x1] %vm48, 0.0
    %93 = vst.msk [vmem:[#allocation2 + $0xd1] sm:$0x1] %vm48, 0.0
    %94 = vst.msk [vmem:[#allocation2 + $0xe9] sm:$0x1] %vm48, 0.0
    %95 = vst.msk [vmem:[#allocation2 + $0x101] sm:$0x1] %vm48, 0.0
    %96 = vst.msk [vmem:[#allocation2 + $0x119] sm:$0x1] %vm48, 0.0
    %97 = vst.msk [vmem:[#allocation2 + $0x131] sm:$0x1] %vm48, 0.0
    %98 = vst.msk [vmem:[#allocation2 + $0x149] sm:$0x1] %vm48, 0.0
    %99 = vst.msk [vmem:[#allocation2 + $0x161] sm:$0x1] %vm48, 0.0
    %100 = vst.msk [vmem:[#allocation2 + $0x179] sm:$0x1] %vm48, 0.0
    %101 = vst.msk [vmem:[#allocation2 + $0x191] sm:$0x1] %vm48, 0.0
    %102 = vst.msk [vmem:[#allocation2 + $0x1a9] sm:$0x1] %vm48, 0.0
    %103 = vst.msk [vmem:[#allocation2 + $0x1c1] sm:$0x1] %vm48, 0.0
    %104 = vst.msk [vmem:[#allocation2 + $0x1d9] sm:$0x1] %vm48, 0.0
    %105 = vst.msk [vmem:[#allocation2 + $0x1f1] sm:$0x1] %vm48, 0.0
    %106 = vst.msk [vmem:[#allocation2 + $0x209] sm:$0x1] %vm48, 0.0
    %107 = vst.msk [vmem:[#allocation2 + $0x221] sm:$0x1] %vm48, 0.0
    %108 = vst.msk [vmem:[#allocation2 + $0x239] sm:$0x1] %vm48, 0.0
    %109 = vst.msk [vmem:[#allocation2 + $0x251] sm:$0x1] %vm48, 0.0
    %110 = vst.msk [vmem:[#allocation2 + $0x269] sm:$0x1] %vm48, 0.0
    %111 = vst.msk [vmem:[#allocation2 + $0x281] sm:$0x1] %vm48, 0.0
    %112 = vst.msk [vmem:[#allocation2 + $0x299] sm:$0x1] %vm48, 0.0
    %113 = vst.msk [vmem:[#allocation2 + $0x2b1] sm:$0x1] %vm48, 0.0
    %114 = vst.msk [vmem:[#allocation2 + $0x2c9] sm:$0x1] %vm48, 0.0
    %115 = vst.msk [vmem:[#allocation2 + $0x2e1] sm:$0x1] %vm48, 0.0
    %116 = vst.msk [vmem:[#allocation2 + $0x2f9] sm:$0x1] %vm48, 0.0
    %117 = vst.msk [vmem:[#allocation2 + $0x311] sm:$0x1] %vm48, 0.0
    %118 = vst.msk [vmem:[#allocation2 + $0x329] sm:$0x1] %vm48, 0.0
    %119 = vst.msk [vmem:[#allocation2 + $0x341] sm:$0x1] %vm48, 0.0
    %120 = vst.msk [vmem:[#allocation2 + $0x359] sm:$0x1] %vm48, 0.0
    %v121 = vld [vmem:[%s3] sm:$0xf]
    %v122 = vld [vmem:[#allocation3] sm:$0xff]
    %v123 = vld [vmem:[#allocation3 + $0x8] sm:$0xff]
    %v124 = vld [vmem:[#allocation3 + $0x10] sm:$0xff]
    %v125 = vld [vmem:[#allocation3 + $0x18] sm:$0xff]
    %v126 = vld [vmem:[#allocation3 + $0x20] sm:$0xff]
    %v127 = vld [vmem:[#allocation3 + $0x28] sm:$0xff]
    %v128 = vld [vmem:[#allocation3 + $0x30] sm:$0xff]
    %v129 = vld [vmem:[#allocation3 + $0x38] sm:$0xff]
    %v130 = vld [vmem:[#allocation3 + $0x40] sm:$0xff]
    %v131 = vld [vmem:[#allocation3 + $0x48] sm:$0xff]
    %v132 = vld [vmem:[#allocation3 + $0x50] sm:$0xff]
    %v133 = vld [vmem:[#allocation3 + $0x58] sm:$0xff]
    %v134 = vld [vmem:[#allocation3 + $0x60] sm:$0xff]
    %v135 = vld [vmem:[#allocation3 + $0x68] sm:$0xff]
    %v136 = vld [vmem:[#allocation3 + $0x70] sm:$0xff]
    %v137 = vld [vmem:[#allocation3 + $0x78] sm:$0xff]
    %v138 = vld [vmem:[#allocation3 + $0x80] sm:$0xff]
    %v139 = vld [vmem:[#allocation3 + $0x88] sm:$0xff]
    %v140 = vld [vmem:[#allocation3 + $0x90] sm:$0xff]
    %v141 = vld [vmem:[#allocation3 + $0x98] sm:$0xff]
    %v142 = vld [vmem:[#allocation3 + $0xa0] sm:$0xff]
    %v143 = vld [vmem:[#allocation3 + $0xa8] sm:$0xff]
    %v144 = vld [vmem:[#allocation3 + $0xb0] sm:$0xff]
    %v145 = vld [vmem:[#allocation3 + $0xb8] sm:$0xff]
    %v146 = vld [vmem:[#allocation3 + $0xc0] sm:$0xff]
    %v147 = vld [vmem:[#allocation3 + $0xc8] sm:$0xff]
    %v148 = vld [vmem:[#allocation3 + $0xd0] sm:$0xff]
    %v149 = vld [vmem:[#allocation3 + $0xd8] sm:$0xff]
    %v150 = vld [vmem:[#allocation3 + $0xe0] sm:$0xff]
    %v151 = vld [vmem:[#allocation3 + $0xe8] sm:$0xff]
    %v152 = vld [vmem:[#allocation3 + $0xf0] sm:$0xff]
    %v153 = vld [vmem:[#allocation3 + $0xf8] sm:$0xff]
    %v154 = vld [vmem:[#allocation3 + $0x100] sm:$0xff]
    %v155 = vld [vmem:[#allocation3 + $0x108] sm:$0xff]
    %v156 = vld [vmem:[#allocation3 + $0x110] sm:$0xff]
    %v157 = vld [vmem:[#allocation3 + $0x118] sm:$0xff]
    %v158 = vld [vmem:[#allocation3 + $0x120] sm:$0xff]
    %v159 = vld [vmem:[#allocation3 + $0x128] sm:$0xff]
    %v160 = vld [vmem:[#allocation3 + $0x130] sm:$0xff]
    %v161 = vld [vmem:[#allocation3 + $0x138] sm:$0xff]
    %v162 = vld [vmem:[#allocation3 + $0x140] sm:$0xff]
    %v163 = vld [vmem:[#allocation3 + $0x148] sm:$0xff]
    %v164 = vld [vmem:[#allocation3 + $0x150] sm:$0xff]
    %v165 = vld [vmem:[#allocation3 + $0x158] sm:$0xff]
    %v166 = vld [vmem:[#allocation3 + $0x160] sm:$0xff]
    %v167 = vld [vmem:[#allocation3 + $0x168] sm:$0xff]
    %v168 = vld [vmem:[#allocation3 + $0x170] sm:$0xff]
    %v169 = vld [vmem:[#allocation3 + $0x178] sm:$0xff]
    %v170 = vld [vmem:[#allocation3 + $0x180] sm:$0xff]
    %v171 = vld [vmem:[#allocation3 + $0x188] sm:$0xff]
    %v172 = vld [vmem:[#allocation3 + $0x190] sm:$0xff]
    %v173 = vld [vmem:[#allocation3 + $0x198] sm:$0xff]
    %v174 = vld [vmem:[#allocation3 + $0x1a0] sm:$0xff]
    %v175 = vld [vmem:[#allocation3 + $0x1a8] sm:$0xff]
    %v176 = vld [vmem:[#allocation3 + $0x1b0] sm:$0xff]
    %v177 = vld [vmem:[#allocation3 + $0x1b8] sm:$0xff]
    %v178 = vld [vmem:[#allocation3 + $0x1c0] sm:$0xff]
    %v179 = vld [vmem:[#allocation3 + $0x1c8] sm:$0xff]
    %v180 = vld [vmem:[#allocation3 + $0x1d0] sm:$0xff]
    %v181 = vld [vmem:[#allocation3 + $0x1d8] sm:$0xff]
    %v182 = vld [vmem:[#allocation3 + $0x1e0] sm:$0xff]
    %v183 = vld [vmem:[#allocation3 + $0x1e8] sm:$0xff]
    %v184 = vld [vmem:[#allocation3 + $0x1f0] sm:$0xff]
    %v185 = vld [vmem:[#allocation3 + $0x1f8] sm:$0xff]
    %v186 = vld [vmem:[%s1] sm:$0xf]
    %v187 = vld [vmem:[%s1 + $0x4] sm:$0xf]
    %v188 = vld [vmem:[%s1 + $0x8] sm:$0xf]
    %v189 = vld [vmem:[%s1 + $0xc] sm:$0xf]
    %v190 = vld [vmem:[%s1 + $0x10] sm:$0xf]
    %v191 = vld [vmem:[%s1 + $0x14] sm:$0xf]
    %v192 = vld [vmem:[%s1 + $0x18] sm:$0xf]
    %v193 = vld [vmem:[%s1 + $0x1c] sm:$0xf]
    %v194 = vld [vmem:[%s1 + $0x20] sm:$0xf]
    %v195 = vld [vmem:[%s1 + $0x24] sm:$0xf]
    %v196 = vld [vmem:[%s1 + $0x28] sm:$0xf]
    %v197 = vld [vmem:[%s1 + $0x2c] sm:$0xf]
    %v198 = vld [vmem:[%s1 + $0x30] sm:$0xf]
    %v199 = vld [vmem:[%s1 + $0x34] sm:$0xf]
    %v200 = vld [vmem:[%s1 + $0x38] sm:$0xf]
    %v201 = vld [vmem:[%s1 + $0x3c] sm:$0xf]
    %v202 = vld [vmem:[%s1 + $0x40] sm:$0xf]
    %v203 = vld [vmem:[%s1 + $0x44] sm:$0xf]
    %v204 = vld [vmem:[%s2] sm:$0xf]
    %v205 = vld [vmem:[%s2 + $0x4] sm:$0xf]
    %v206 = vld [vmem:[%s2 + $0x8] sm:$0xf]
    %v207 = vld [vmem:[%s2 + $0xc] sm:$0xf]
    %v208 = vld [vmem:[%s2 + $0x10] sm:$0xf]
    %v209 = vld [vmem:[%s2 + $0x14] sm:$0xf]
    %v210 = vld [vmem:[%s2 + $0x18] sm:$0xf]
    %v211 = vld [vmem:[%s2 + $0x1c] sm:$0xf]
    %v212 = vld [vmem:[%s2 + $0x20] sm:$0xf]
    %v213 = vld [vmem:[%s2 + $0x24] sm:$0xf]
    %v214 = vld [vmem:[%s2 + $0x28] sm:$0xf]
    %v215 = vld [vmem:[%s2 + $0x2c] sm:$0xf]
    %v216 = vld [vmem:[%s2 + $0x30] sm:$0xf]
    %v217 = vld [vmem:[%s2 + $0x34] sm:$0xf]
    %v218 = vld [vmem:[%s2 + $0x38] sm:$0xf]
    %v219 = vld [vmem:[%s2 + $0x3c] sm:$0xf]
    %v220 = vld [vmem:[%s2 + $0x40] sm:$0xf]
    %v221 = vld [vmem:[%s2 + $0x44] sm:$0xf]
    %s222 = scalar_lea.vmem [#allocation2], 24
    %223 = vst.msk [vmem:[%s222 + $0x1] sm:$0xff] %vm33, %v122
    %224 = vst.msk [vmem:[%s222 + $0x9] sm:$0xff] %vm33, %v123
    %225 = vst.msk [vmem:[%s222 + $0x19] sm:$0xff] %vm33, %v124
    %226 = vst.msk [vmem:[%s222 + $0x21] sm:$0xff] %vm33, %v125
    %227 = vst.msk [vmem:[%s222 + $0x31] sm:$0xff] %vm33, %v126
    %228 = vst.msk [vmem:[%s222 + $0x39] sm:$0xff] %vm33, %v127
    %229 = vst.msk [vmem:[%s222 + $0x49] sm:$0xff] %vm33, %v128
    %230 = vst.msk [vmem:[%s222 + $0x51] sm:$0xff] %vm33, %v129
    %231 = vst.msk [vmem:[%s222 + $0x61] sm:$0xff] %vm33, %v130
    %232 = vst.msk [vmem:[%s222 + $0x69] sm:$0xff] %vm33, %v131
    %233 = vst.msk [vmem:[%s222 + $0x79] sm:$0xff] %vm33, %v132
    %234 = vst.msk [vmem:[%s222 + $0x81] sm:$0xff] %vm33, %v133
    %235 = vst.msk [vmem:[%s222 + $0x91] sm:$0xff] %vm33, %v134
    %236 = vst.msk [vmem:[%s222 + $0x99] sm:$0xff] %vm33, %v135
    %237 = vst.msk [vmem:[%s222 + $0xa9] sm:$0xff] %vm33, %v136
    %238 = vst.msk [vmem:[%s222 + $0xb1] sm:$0xff] %vm33, %v137
    %239 = vst.msk [vmem:[%s222 + $0xc1] sm:$0xff] %vm33, %v138
    %240 = vst.msk [vmem:[%s222 + $0xc9] sm:$0xff] %vm33, %v139
    %241 = vst.msk [vmem:[%s222 + $0xd9] sm:$0xff] %vm33, %v140
    %242 = vst.msk [vmem:[%s222 + $0xe1] sm:$0xff] %vm33, %v141
    %243 = vst.msk [vmem:[%s222 + $0xf1] sm:$0xff] %vm33, %v142
    %244 = vst.msk [vmem:[%s222 + $0xf9] sm:$0xff] %vm33, %v143
    %245 = vst.msk [vmem:[%s222 + $0x109] sm:$0xff] %vm33, %v144
    %246 = vst.msk [vmem:[%s222 + $0x111] sm:$0xff] %vm33, %v145
    %247 = vst.msk [vmem:[%s222 + $0x121] sm:$0xff] %vm33, %v146
    %248 = vst.msk [vmem:[%s222 + $0x129] sm:$0xff] %vm33, %v147
    %249 = vst.msk [vmem:[%s222 + $0x139] sm:$0xff] %vm33, %v148
    %250 = vst.msk [vmem:[%s222 + $0x141] sm:$0xff] %vm33, %v149
    %251 = vst.msk [vmem:[%s222 + $0x151] sm:$0xff] %vm33, %v150
    %252 = vst.msk [vmem:[%s222 + $0x159] sm:$0xff] %vm33, %v151
    %253 = vst.msk [vmem:[%s222 + $0x169] sm:$0xff] %vm33, %v152
    %254 = vst.msk [vmem:[%s222 + $0x171] sm:$0xff] %vm33, %v153
    %255 = vst.msk [vmem:[%s222 + $0x1b1] sm:$0xff] %vm33, %v154
    %256 = vst.msk [vmem:[%s222 + $0x1b9] sm:$0xff] %vm33, %v155
    %257 = vst.msk [vmem:[%s222 + $0x1c9] sm:$0xff] %vm33, %v156
    %258 = vst.msk [vmem:[%s222 + $0x1d1] sm:$0xff] %vm33, %v157
    %259 = vst.msk [vmem:[%s222 + $0x1e1] sm:$0xff] %vm33, %v158
    %260 = vst.msk [vmem:[%s222 + $0x1e9] sm:$0xff] %vm33, %v159
    %261 = vst.msk [vmem:[%s222 + $0x1f9] sm:$0xff] %vm33, %v160
    %262 = vst.msk [vmem:[%s222 + $0x201] sm:$0xff] %vm33, %v161
    %263 = vst.msk [vmem:[%s222 + $0x211] sm:$0xff] %vm33, %v162
    %264 = vst.msk [vmem:[%s222 + $0x219] sm:$0xff] %vm33, %v163
    %265 = vst.msk [vmem:[%s222 + $0x229] sm:$0xff] %vm33, %v164
    %266 = vst.msk [vmem:[%s222 + $0x231] sm:$0xff] %vm33, %v165
    %267 = vst.msk [vmem:[%s222 + $0x241] sm:$0xff] %vm33, %v166
    %268 = vst.msk [vmem:[%s222 + $0x249] sm:$0xff] %vm33, %v167
    %269 = vst.msk [vmem:[%s222 + $0x259] sm:$0xff] %vm33, %v168
    %270 = vst.msk [vmem:[%s222 + $0x261] sm:$0xff] %vm33, %v169
    %271 = vst.msk [vmem:[%s222 + $0x271] sm:$0xff] %vm33, %v170
    %272 = vst.msk [vmem:[%s222 + $0x279] sm:$0xff] %vm33, %v171
    %273 = vst.msk [vmem:[%s222 + $0x289] sm:$0xff] %vm33, %v172
    %274 = vst.msk [vmem:[%s222 + $0x291] sm:$0xff] %vm33, %v173
    %275 = vst.msk [vmem:[%s222 + $0x2a1] sm:$0xff] %vm33, %v174
    %276 = vst.msk [vmem:[%s222 + $0x2a9] sm:$0xff] %vm33, %v175
    %277 = vst.msk [vmem:[%s222 + $0x2b9] sm:$0xff] %vm33, %v176
    %278 = vst.msk [vmem:[%s222 + $0x2c1] sm:$0xff] %vm33, %v177
    %279 = vst.msk [vmem:[%s222 + $0x2d1] sm:$0xff] %vm33, %v178
    %280 = vst.msk [vmem:[%s222 + $0x2d9] sm:$0xff] %vm33, %v179
    %281 = vst.msk [vmem:[%s222 + $0x2e9] sm:$0xff] %vm33, %v180
    %282 = vst.msk [vmem:[%s222 + $0x2f1] sm:$0xff] %vm33, %v181
    %283 = vst.msk [vmem:[%s222 + $0x301] sm:$0xff] %vm33, %v182
    %284 = vst.msk [vmem:[%s222 + $0x309] sm:$0xff] %vm33, %v183
    %285 = vst.msk [vmem:[%s222 + $0x319] sm:$0xff] %vm33, %v184
    %286 = vst.msk [vmem:[%s222 + $0x321] sm:$0xff] %vm33, %v185
    %v287 = vld [vmem:[#allocation2] sm:$0xff]
    %v288 = vld [vmem:[#allocation2 + $0x8] sm:$0xff]
    %v289 = vld [vmem:[#allocation2 + $0x10] sm:$0x3]
    %v290 = vld [vmem:[#allocation2 + $0x18] sm:$0xff]
    %v291 = vld [vmem:[#allocation2 + $0x20] sm:$0xff]
    %v292 = vld [vmem:[#allocation2 + $0x28] sm:$0x3]
    %v293 = vld [vmem:[#allocation2 + $0x30] sm:$0xff]
    %v294 = vld [vmem:[#allocation2 + $0x38] sm:$0xff]
    %v295 = vld [vmem:[#allocation2 + $0x40] sm:$0x3]
    %v296 = vld [vmem:[#allocation2 + $0x48] sm:$0xff]
    %v297 = vld [vmem:[#allocation2 + $0x50] sm:$0xff]
    %v298 = vld [vmem:[#allocation2 + $0x58] sm:$0x3]
    %v299 = vld [vmem:[#allocation2 + $0x60] sm:$0xff]
    %v300 = vld [vmem:[#allocation2 + $0x68] sm:$0xff]
    %v301 = vld [vmem:[#allocation2 + $0x70] sm:$0x3]
    %v302 = vld [vmem:[#allocation2 + $0x78] sm:$0xff]
    %v303 = vld [vmem:[#allocation2 + $0x80] sm:$0xff]
    %v304 = vld [vmem:[#allocation2 + $0x88] sm:$0x3]
    %v305 = vld [vmem:[#allocation2 + $0x90] sm:$0xff]
    %v306 = vld [vmem:[#allocation2 + $0x98] sm:$0xff]
    %v307 = vld [vmem:[#allocation2 + $0xa0] sm:$0x3]
    %v308 = vld [vmem:[#allocation2 + $0xa8] sm:$0xff]
    %v309 = vld [vmem:[#allocation2 + $0xb0] sm:$0xff]
    %v310 = vld [vmem:[#allocation2 + $0xb8] sm:$0x3]
    %v311 = vld [vmem:[#allocation2 + $0xc0] sm:$0xff]
    %v312 = vld [vmem:[#allocation2 + $0xc8] sm:$0xff]
    %v313 = vld [vmem:[#allocation2 + $0xd0] sm:$0x3]
    %v314 = vld [vmem:[#allocation2 + $0xd8] sm:$0xff]
    %v315 = vld [vmem:[#allocation2 + $0xe0] sm:$0xff]
    %v316 = vld [vmem:[#allocation2 + $0xe8] sm:$0x3]
    %v317 = vld [vmem:[#allocation2 + $0xf0] sm:$0xff]
    %v318 = vld [vmem:[#allocation2 + $0xf8] sm:$0xff]
    %v319 = vld [vmem:[#allocation2 + $0x100] sm:$0x3]
    %v320 = vld [vmem:[#allocation2 + $0x108] sm:$0xff]
    %v321 = vld [vmem:[#allocation2 + $0x110] sm:$0xff]
    %v322 = vld [vmem:[#allocation2 + $0x118] sm:$0x3]
    %v323 = vld [vmem:[#allocation2 + $0x120] sm:$0xff]
    %v324 = vld [vmem:[#allocation2 + $0x128] sm:$0xff]
    %v325 = vld [vmem:[#allocation2 + $0x130] sm:$0x3]
    %v326 = vld [vmem:[#allocation2 + $0x138] sm:$0xff]
    %v327 = vld [vmem:[#allocation2 + $0x140] sm:$0xff]
    %v328 = vld [vmem:[#allocation2 + $0x148] sm:$0x3]
    %v329 = vld [vmem:[#allocation2 + $0x150] sm:$0xff]
    %v330 = vld [vmem:[#allocation2 + $0x158] sm:$0xff]
    %v331 = vld [vmem:[#allocation2 + $0x160] sm:$0x3]
    %v332 = vld [vmem:[#allocation2 + $0x168] sm:$0xff]
    %v333 = vld [vmem:[#allocation2 + $0x170] sm:$0xff]
    %v334 = vld [vmem:[#allocation2 + $0x178] sm:$0x3]
    %v335 = vld [vmem:[#allocation2 + $0x180] sm:$0xff]
    %v336 = vld [vmem:[#allocation2 + $0x188] sm:$0xff]
    %v337 = vld [vmem:[#allocation2 + $0x190] sm:$0x3]
    %v338 = vld [vmem:[#allocation2 + $0x198] sm:$0xff]
    %v339 = vld [vmem:[#allocation2 + $0x1a0] sm:$0xff]
    %v340 = vld [vmem:[#allocation2 + $0x1a8] sm:$0x3]
    %v341 = vld [vmem:[#allocation2 + $0x1b0] sm:$0xff]
    %v342 = vld [vmem:[#allocation2 + $0x1b8] sm:$0xff]
    %v343 = vld [vmem:[#allocation2 + $0x1c0] sm:$0x3]
    %v344 = vld [vmem:[#allocation2 + $0x1c8] sm:$0xff]
    %v345 = vld [vmem:[#allocation2 + $0x1d0] sm:$0xff]
    %v346 = vld [vmem:[#allocation2 + $0x1d8] sm:$0x3]
    %v347 = vld [vmem:[#allocation2 + $0x1e0] sm:$0xff]
    %v348 = vld [vmem:[#allocation2 + $0x1e8] sm:$0xff]
    %v349 = vld [vmem:[#allocation2 + $0x1f0] sm:$0x3]
    %v350 = vld [vmem:[#allocation2 + $0x1f8] sm:$0xff]
    %v351 = vld [vmem:[#allocation2 + $0x200] sm:$0xff]
    %v352 = vld [vmem:[#allocation2 + $0x208] sm:$0x3]
    %v353 = vld [vmem:[#allocation2 + $0x210] sm:$0xff]
    %v354 = vld [vmem:[#allocation2 + $0x218] sm:$0xff]
    %v355 = vld [vmem:[#allocation2 + $0x220] sm:$0x3]
    %v356 = vld [vmem:[#allocation2 + $0x228] sm:$0xff]
    %v357 = vld [vmem:[#allocation2 + $0x230] sm:$0xff]
    %v358 = vld [vmem:[#allocation2 + $0x238] sm:$0x3]
    %v359 = vld [vmem:[#allocation2 + $0x240] sm:$0xff]
    %v360 = vld [vmem:[#allocation2 + $0x248] sm:$0xff]
    %v361 = vld [vmem:[#allocation2 + $0x250] sm:$0x3]
    %v362 = vld [vmem:[#allocation2 + $0x258] sm:$0xff]
    %v363 = vld [vmem:[#allocation2 + $0x260] sm:$0xff]
    %v364 = vld [vmem:[#allocation2 + $0x268] sm:$0x3]
    %v365 = vld [vmem:[#allocation2 + $0x270] sm:$0xff]
    %v366 = vld [vmem:[#allocation2 + $0x278] sm:$0xff]
    %v367 = vld [vmem:[#allocation2 + $0x280] sm:$0x3]
    %v368 = vld [vmem:[#allocation2 + $0x288] sm:$0xff]
    %v369 = vld [vmem:[#allocation2 + $0x290] sm:$0xff]
    %v370 = vld [vmem:[#allocation2 + $0x298] sm:$0x3]
    %v371 = vld [vmem:[#allocation2 + $0x2a0] sm:$0xff]
    %v372 = vld [vmem:[#allocation2 + $0x2a8] sm:$0xff]
    %v373 = vld [vmem:[#allocation2 + $0x2b0] sm:$0x3]
    %v374 = vld [vmem:[#allocation2 + $0x2b8] sm:$0xff]
    %v375 = vld [vmem:[#allocation2 + $0x2c0] sm:$0xff]
    %v376 = vld [vmem:[#allocation2 + $0x2c8] sm:$0x3]
    %v377 = vld [vmem:[#allocation2 + $0x2d0] sm:$0xff]
    %v378 = vld [vmem:[#allocation2 + $0x2d8] sm:$0xff]
    %v379 = vld [vmem:[#allocation2 + $0x2e0] sm:$0x3]
    %v380 = vld [vmem:[#allocation2 + $0x2e8] sm:$0xff]
    %v381 = vld [vmem:[#allocation2 + $0x2f0] sm:$0xff]
    %v382 = vld [vmem:[#allocation2 + $0x2f8] sm:$0x3]
    %v383 = vld [vmem:[#allocation2 + $0x300] sm:$0xff]
    %v384 = vld [vmem:[#allocation2 + $0x308] sm:$0xff]
    %v385 = vld [vmem:[#allocation2 + $0x310] sm:$0x3]
    %v386 = vld [vmem:[#allocation2 + $0x318] sm:$0xff]
    %v387 = vld [vmem:[#allocation2 + $0x320] sm:$0xff]
    %v388 = vld [vmem:[#allocation2 + $0x328] sm:$0x3]
    %v389 = vld [vmem:[#allocation2 + $0x330] sm:$0xff]
    %v390 = vld [vmem:[#allocation2 + $0x338] sm:$0xff]
    %v391 = vld [vmem:[#allocation2 + $0x340] sm:$0x3]
    %v392 = vld [vmem:[#allocation2 + $0x348] sm:$0xff]
    %v393 = vld [vmem:[#allocation2 + $0x350] sm:$0xff]
    %v394 = vld [vmem:[#allocation2 + $0x358] sm:$0x3]
    %vm491 = vcmask 1046528
    %v492 = vrot.slane %v287, 1
    %v493 = vrot.slane %v288, 1
    %v494 = vsel %vm491, %v492, %v493
    %v495 = vrot.slane %v289, 1
    %v496 = vsel %vm491, %v493, %v495
    %v497 = vrot.slane %v290, 1
    %v498 = vrot.slane %v291, 1
    %v499 = vsel %vm491, %v497, %v498
    %v500 = vrot.slane %v292, 1
    %v501 = vsel %vm491, %v498, %v500
    %v502 = vrot.slane %v293, 1
    %v503 = vrot.slane %v294, 1
    %v504 = vsel %vm491, %v502, %v503
    %v505 = vrot.slane %v295, 1
    %v506 = vsel %vm491, %v503, %v505
    %v507 = vrot.slane %v296, 1
    %v508 = vrot.slane %v297, 1
    %v509 = vsel %vm491, %v507, %v508
    %v510 = vrot.slane %v298, 1
    %v511 = vsel %vm491, %v508, %v510
    %v512 = vrot.slane %v299, 1
    %v513 = vrot.slane %v300, 1
    %v514 = vsel %vm491, %v512, %v513
    %v515 = vrot.slane %v301, 1
    %v516 = vsel %vm491, %v513, %v515
    %v517 = vrot.slane %v302, 1
    %v518 = vrot.slane %v303, 1
    %v519 = vsel %vm491, %v517, %v518
    %v520 = vrot.slane %v304, 1
    %v521 = vsel %vm491, %v518, %v520
    %v522 = vrot.slane %v305, 1
    %v523 = vrot.slane %v306, 1
    %v524 = vsel %vm491, %v522, %v523
    %v525 = vrot.slane %v307, 1
    %v526 = vsel %vm491, %v523, %v525
    %v527 = vrot.slane %v308, 1
    %v528 = vrot.slane %v309, 1
    %v529 = vsel %vm491, %v527, %v528
    %v530 = vrot.slane %v310, 1
    %v531 = vsel %vm491, %v528, %v530
    %v532 = vrot.slane %v311, 1
    %v533 = vrot.slane %v312, 1
    %v534 = vsel %vm491, %v532, %v533
    %v535 = vrot.slane %v313, 1
    %v536 = vsel %vm491, %v533, %v535
    %v537 = vrot.slane %v314, 1
    %v538 = vrot.slane %v315, 1
    %v539 = vsel %vm491, %v537, %v538
    %v540 = vrot.slane %v316, 1
    %v541 = vsel %vm491, %v538, %v540
    %v542 = vrot.slane %v317, 1
    %v543 = vrot.slane %v318, 1
    %v544 = vsel %vm491, %v542, %v543
    %v545 = vrot.slane %v319, 1
    %v546 = vsel %vm491, %v543, %v545
    %v547 = vrot.slane %v320, 1
    %v548 = vrot.slane %v321, 1
    %v549 = vsel %vm491, %v547, %v548
    %v550 = vrot.slane %v322, 1
    %v551 = vsel %vm491, %v548, %v550
    %v552 = vrot.slane %v323, 1
    %v553 = vrot.slane %v324, 1
    %v554 = vsel %vm491, %v552, %v553
    %v555 = vrot.slane %v325, 1
    %v556 = vsel %vm491, %v553, %v555
    %v557 = vrot.slane %v326, 1
    %v558 = vrot.slane %v327, 1
    %v559 = vsel %vm491, %v557, %v558
    %v560 = vrot.slane %v328, 1
    %v561 = vsel %vm491, %v558, %v560
    %v562 = vrot.slane %v329, 1
    %v563 = vrot.slane %v330, 1
    %v564 = vsel %vm491, %v562, %v563
    %v565 = vrot.slane %v331, 1
    %v566 = vsel %vm491, %v563, %v565
    %v567 = vrot.slane %v332, 1
    %v568 = vrot.slane %v333, 1
    %v569 = vsel %vm491, %v567, %v568
    %v570 = vrot.slane %v334, 1
    %v571 = vsel %vm491, %v568, %v570
    %v572 = vrot.slane %v341, 1
    %v573 = vrot.slane %v342, 1
    %v574 = vsel %vm491, %v572, %v573
    %v575 = vrot.slane %v343, 1
    %v576 = vsel %vm491, %v573, %v575
    %v577 = vrot.slane %v344, 1
    %v578 = vrot.slane %v345, 1
    %v579 = vsel %vm491, %v577, %v578
    %v580 = vrot.slane %v346, 1
    %v581 = vsel %vm491, %v578, %v580
    %v582 = vrot.slane %v347, 1
    %v583 = vrot.slane %v348, 1
    %v584 = vsel %vm491, %v582, %v583
    %v585 = vrot.slane %v349, 1
    %v586 = vsel %vm491, %v583, %v585
    %v587 = vrot.slane %v350, 1
    %v588 = vrot.slane %v351, 1
    %v589 = vsel %vm491, %v587, %v588
    %v590 = vrot.slane %v352, 1
    %v591 = vsel %vm491, %v588, %v590
    %v592 = vrot.slane %v353, 1
    %v593 = vrot.slane %v354, 1
    %v594 = vsel %vm491, %v592, %v593
    %v595 = vrot.slane %v355, 1
    %v596 = vsel %vm491, %v593, %v595
    %v597 = vrot.slane %v356, 1
    %v598 = vrot.slane %v357, 1
    %v599 = vsel %vm491, %v597, %v598
    %v600 = vrot.slane %v358, 1
    %v601 = vsel %vm491, %v598, %v600
    %v602 = vrot.slane %v359, 1
    %v603 = vrot.slane %v360, 1
    %v604 = vsel %vm491, %v602, %v603
    %v605 = vrot.slane %v361, 1
    %v606 = vsel %vm491, %v603, %v605
    %v607 = vrot.slane %v362, 1
    %v608 = vrot.slane %v363, 1
    %v609 = vsel %vm491, %v607, %v608
    %v610 = vrot.slane %v364, 1
    %v611 = vsel %vm491, %v608, %v610
    %v612 = vrot.slane %v365, 1
    %v613 = vrot.slane %v366, 1
    %v614 = vsel %vm491, %v612, %v613
    %v615 = vrot.slane %v367, 1
    %v616 = vsel %vm491, %v613, %v615
    %v617 = vrot.slane %v368, 1
    %v618 = vrot.slane %v369, 1
    %v619 = vsel %vm491, %v617, %v618
    %v620 = vrot.slane %v370, 1
    %v621 = vsel %vm491, %v618, %v620
    %v622 = vrot.slane %v371, 1
    %v623 = vrot.slane %v372, 1
    %v624 = vsel %vm491, %v622, %v623
    %v625 = vrot.slane %v373, 1
    %v626 = vsel %vm491, %v623, %v625
    %v627 = vrot.slane %v374, 1
    %v628 = vrot.slane %v375, 1
    %v629 = vsel %vm491, %v627, %v628
    %v630 = vrot.slane %v376, 1
    %v631 = vsel %vm491, %v628, %v630
    %v632 = vrot.slane %v377, 1
    %v633 = vrot.slane %v378, 1
    %v634 = vsel %vm491, %v632, %v633
    %v635 = vrot.slane %v379, 1
    %v636 = vsel %vm491, %v633, %v635
    %v637 = vrot.slane %v380, 1
    %v638 = vrot.slane %v381, 1
    %v639 = vsel %vm491, %v637, %v638
    %v640 = vrot.slane %v382, 1
    %v641 = vsel %vm491, %v638, %v640
    %v642 = vrot.slane %v383, 1
    %v643 = vrot.slane %v384, 1
    %v644 = vsel %vm491, %v642, %v643
    %v645 = vrot.slane %v385, 1
    %v646 = vsel %vm491, %v643, %v645
    %v647 = vrot.slane %v386, 1
    %v648 = vrot.slane %v387, 1
    %v649 = vsel %vm491, %v647, %v648
    %v650 = vrot.slane %v388, 1
    %v651 = vsel %vm491, %v648, %v650
    %vm652 = vcmask 1045504
    %v653 = vrot.slane %v287, 2
    %v654 = vrot.slane %v288, 2
    %v655 = vsel %vm652, %v653, %v654
    %v656 = vrot.slane %v289, 2
    %v657 = vsel %vm652, %v654, %v656
    %v658 = vrot.slane %v290, 2
    %v659 = vrot.slane %v291, 2
    %v660 = vsel %vm652, %v658, %v659
    %v661 = vrot.slane %v292, 2
    %v662 = vsel %vm652, %v659, %v661
    %v663 = vrot.slane %v293, 2
    %v664 = vrot.slane %v294, 2
    %v665 = vsel %vm652, %v663, %v664
    %v666 = vrot.slane %v295, 2
    %v667 = vsel %vm652, %v664, %v666
    %v668 = vrot.slane %v296, 2
    %v669 = vrot.slane %v297, 2
    %v670 = vsel %vm652, %v668, %v669
    %v671 = vrot.slane %v298, 2
    %v672 = vsel %vm652, %v669, %v671
    %v673 = vrot.slane %v299, 2
    %v674 = vrot.slane %v300, 2
    %v675 = vsel %vm652, %v673, %v674
    %v676 = vrot.slane %v301, 2
    %v677 = vsel %vm652, %v674, %v676
    %v678 = vrot.slane %v302, 2
    %v679 = vrot.slane %v303, 2
    %v680 = vsel %vm652, %v678, %v679
    %v681 = vrot.slane %v304, 2
    %v682 = vsel %vm652, %v679, %v681
    %v683 = vrot.slane %v305, 2
    %v684 = vrot.slane %v306, 2
    %v685 = vsel %vm652, %v683, %v684
    %v686 = vrot.slane %v307, 2
    %v687 = vsel %vm652, %v684, %v686
    %v688 = vrot.slane %v308, 2
    %v689 = vrot.slane %v309, 2
    %v690 = vsel %vm652, %v688, %v689
    %v691 = vrot.slane %v310, 2
    %v692 = vsel %vm652, %v689, %v691
    %v693 = vrot.slane %v311, 2
    %v694 = vrot.slane %v312, 2
    %v695 = vsel %vm652, %v693, %v694
    %v696 = vrot.slane %v313, 2
    %v697 = vsel %vm652, %v694, %v696
    %v698 = vrot.slane %v314, 2
    %v699 = vrot.slane %v315, 2
    %v700 = vsel %vm652, %v698, %v699
    %v701 = vrot.slane %v316, 2
    %v702 = vsel %vm652, %v699, %v701
    %v703 = vrot.slane %v317, 2
    %v704 = vrot.slane %v318, 2
    %v705 = vsel %vm652, %v703, %v704
    %v706 = vrot.slane %v319, 2
    %v707 = vsel %vm652, %v704, %v706
    %v708 = vrot.slane %v320, 2
    %v709 = vrot.slane %v321, 2
    %v710 = vsel %vm652, %v708, %v709
    %v711 = vrot.slane %v322, 2
    %v712 = vsel %vm652, %v709, %v711
    %v713 = vrot.slane %v323, 2
    %v714 = vrot.slane %v324, 2
    %v715 = vsel %vm652, %v713, %v714
    %v716 = vrot.slane %v325, 2
    %v717 = vsel %vm652, %v714, %v716
    %v718 = vrot.slane %v326, 2
    %v719 = vrot.slane %v327, 2
    %v720 = vsel %vm652, %v718, %v719
    %v721 = vrot.slane %v328, 2
    %v722 = vsel %vm652, %v719, %v721
    %v723 = vrot.slane %v329, 2
    %v724 = vrot.slane %v330, 2
    %v725 = vsel %vm652, %v723, %v724
    %v726 = vrot.slane %v331, 2
    %v727 = vsel %vm652, %v724, %v726
    %v728 = vrot.slane %v332, 2
    %v729 = vrot.slane %v333, 2
    %v730 = vsel %vm652, %v728, %v729
    %v731 = vrot.slane %v334, 2
    %v732 = vsel %vm652, %v729, %v731
    %v733 = vrot.slane %v341, 2
    %v734 = vrot.slane %v342, 2
    %v735 = vsel %vm652, %v733, %v734
    %v736 = vrot.slane %v343, 2
    %v737 = vsel %vm652, %v734, %v736
    %v738 = vrot.slane %v344, 2
    %v739 = vrot.slane %v345, 2
    %v740 = vsel %vm652, %v738, %v739
    %v741 = vrot.slane %v346, 2
    %v742 = vsel %vm652, %v739, %v741
    %v743 = vrot.slane %v347, 2
    %v744 = vrot.slane %v348, 2
    %v745 = vsel %vm652, %v743, %v744
    %v746 = vrot.slane %v349, 2
    %v747 = vsel %vm652, %v744, %v746
    %v748 = vrot.slane %v350, 2
    %v749 = vrot.slane %v351, 2
    %v750 = vsel %vm652, %v748, %v749
    %v751 = vrot.slane %v352, 2
    %v752 = vsel %vm652, %v749, %v751
    %v753 = vrot.slane %v353, 2
    %v754 = vrot.slane %v354, 2
    %v755 = vsel %vm652, %v753, %v754
    %v756 = vrot.slane %v355, 2
    %v757 = vsel %vm652, %v754, %v756
    %v758 = vrot.slane %v356, 2
    %v759 = vrot.slane %v357, 2
    %v760 = vsel %vm652, %v758, %v759
    %v761 = vrot.slane %v358, 2
    %v762 = vsel %vm652, %v759, %v761
    %v763 = vrot.slane %v359, 2
    %v764 = vrot.slane %v360, 2
    %v765 = vsel %vm652, %v763, %v764
    %v766 = vrot.slane %v361, 2
    %v767 = vsel %vm652, %v764, %v766
    %v768 = vrot.slane %v362, 2
    %v769 = vrot.slane %v363, 2
    %v770 = vsel %vm652, %v768, %v769
    %v771 = vrot.slane %v364, 2
    %v772 = vsel %vm652, %v769, %v771
    %v773 = vrot.slane %v365, 2
    %v774 = vrot.slane %v366, 2
    %v775 = vsel %vm652, %v773, %v774
    %v776 = vrot.slane %v367, 2
    %v777 = vsel %vm652, %v774, %v776
    %v778 = vrot.slane %v368, 2
    %v779 = vrot.slane %v369, 2
    %v780 = vsel %vm652, %v778, %v779
    %v781 = vrot.slane %v370, 2
    %v782 = vsel %vm652, %v779, %v781
    %v783 = vrot.slane %v371, 2
    %v784 = vrot.slane %v372, 2
    %v785 = vsel %vm652, %v783, %v784
    %v786 = vrot.slane %v373, 2
    %v787 = vsel %vm652, %v784, %v786
    %v788 = vrot.slane %v374, 2
    %v789 = vrot.slane %v375, 2
    %v790 = vsel %vm652, %v788, %v789
    %v791 = vrot.slane %v376, 2
    %v792 = vsel %vm652, %v789, %v791
    %v793 = vrot.slane %v377, 2
    %v794 = vrot.slane %v378, 2
    %v795 = vsel %vm652, %v793, %v794
    %v796 = vrot.slane %v379, 2
    %v797 = vsel %vm652, %v794, %v796
    %v798 = vrot.slane %v380, 2
    %v799 = vrot.slane %v381, 2
    %v800 = vsel %vm652, %v798, %v799
    %v801 = vrot.slane %v382, 2
    %v802 = vsel %vm652, %v799, %v801
    %v803 = vrot.slane %v383, 2
    %v804 = vrot.slane %v384, 2
    %v805 = vsel %vm652, %v803, %v804
    %v806 = vrot.slane %v385, 2
    %v807 = vsel %vm652, %v804, %v806
    %v808 = vrot.slane %v386, 2
    %v809 = vrot.slane %v387, 2
    %v810 = vsel %vm652, %v808, %v809
    %v811 = vrot.slane %v388, 2
    %v812 = vsel %vm652, %v809, %v811
    %v819 = vrot.slane %v335, 1
    %v820 = vrot.slane %v336, 1
    %v821 = vsel %vm491, %v819, %v820
    %v822 = vrot.slane %v337, 1
    %v823 = vsel %vm491, %v820, %v822
    %v824 = vrot.slane %v389, 1
    %v825 = vrot.slane %v390, 1
    %v826 = vsel %vm491, %v824, %v825
    %v827 = vrot.slane %v391, 1
    %v828 = vsel %vm491, %v825, %v827
    %v829 = vrot.slane %v335, 2
    %v830 = vrot.slane %v336, 2
    %v831 = vsel %vm652, %v829, %v830
    %v832 = vrot.slane %v337, 2
    %v833 = vsel %vm652, %v830, %v832
    %v834 = vrot.slane %v389, 2
    %v835 = vrot.slane %v390, 2
    %v836 = vsel %vm652, %v834, %v835
    %v837 = vrot.slane %v391, 2
    %v838 = vsel %vm652, %v835, %v837
    %v845 = vrot.slane %v338, 1
    %v846 = vrot.slane %v339, 1
    %v847 = vsel %vm491, %v845, %v846
    %v848 = vrot.slane %v340, 1
    %v849 = vsel %vm491, %v846, %v848
    %v850 = vrot.slane %v392, 1
    %v851 = vrot.slane %v393, 1
    %v852 = vsel %vm491, %v850, %v851
    %v853 = vrot.slane %v394, 1
    %v854 = vsel %vm491, %v851, %v853
    %v855 = vrot.slane %v338, 2
    %v856 = vrot.slane %v339, 2
    %v857 = vsel %vm652, %v855, %v856
    %v858 = vrot.slane %v340, 2
    %v859 = vsel %vm652, %v856, %v858
    %v860 = vrot.slane %v392, 2
    %v861 = vrot.slane %v393, 2
    %v862 = vsel %vm652, %v860, %v861
    %v863 = vrot.slane %v394, 2
    %v864 = vsel %vm652, %v861, %v863
    %929 = vrot.lane.b32.xlu0 %v494, 16
    %v930 = vpop.permute.xlu0 %929
    %931 = vrot.lane.b32.xlu0 %v496, 16
    %v932 = vpop.permute.xlu0 %931
    %933 = vrot.lane.b32.xlu0 %v499, 16
    %v934 = vpop.permute.xlu0 %933
    %935 = vrot.lane.b32.xlu0 %v501, 16
    %v936 = vpop.permute.xlu0 %935
    %937 = vrot.lane.b32.xlu0 %v504, 16
    %v938 = vpop.permute.xlu0 %937
    %939 = vrot.lane.b32.xlu0 %v506, 16
    %v940 = vpop.permute.xlu0 %939
    %941 = vrot.lane.b32.xlu0 %v509, 16
    %v942 = vpop.permute.xlu0 %941
    %943 = vrot.lane.b32.xlu0 %v511, 16
    %v944 = vpop.permute.xlu0 %943
    %945 = vrot.lane.b32.xlu0 %v514, 16
    %v946 = vpop.permute.xlu0 %945
    %947 = vrot.lane.b32.xlu0 %v516, 16
    %v948 = vpop.permute.xlu0 %947
    %949 = vrot.lane.b32.xlu0 %v519, 16
    %v950 = vpop.permute.xlu0 %949
    %951 = vrot.lane.b32.xlu0 %v521, 16
    %v952 = vpop.permute.xlu0 %951
    %953 = vrot.lane.b32.xlu0 %v524, 16
    %v954 = vpop.permute.xlu0 %953
    %955 = vrot.lane.b32.xlu0 %v526, 16
    %v956 = vpop.permute.xlu0 %955
    %957 = vrot.lane.b32.xlu0 %v529, 16
    %v958 = vpop.permute.xlu0 %957
    %959 = vrot.lane.b32.xlu0 %v531, 16
    %v960 = vpop.permute.xlu0 %959
    %961 = vrot.lane.b32.xlu0 %v534, 16
    %v962 = vpop.permute.xlu0 %961
    %963 = vrot.lane.b32.xlu0 %v536, 16
    %v964 = vpop.permute.xlu0 %963
    %965 = vrot.lane.b32.xlu0 %v539, 16
    %v966 = vpop.permute.xlu0 %965
    %967 = vrot.lane.b32.xlu0 %v541, 16
    %v968 = vpop.permute.xlu0 %967
    %969 = vrot.lane.b32.xlu0 %v544, 16
    %v970 = vpop.permute.xlu0 %969
    %971 = vrot.lane.b32.xlu0 %v546, 16
    %v972 = vpop.permute.xlu0 %971
    %973 = vrot.lane.b32.xlu0 %v549, 16
    %v974 = vpop.permute.xlu0 %973
    %975 = vrot.lane.b32.xlu0 %v551, 16
    %v976 = vpop.permute.xlu0 %975
    %977 = vrot.lane.b32.xlu0 %v554, 16
    %v978 = vpop.permute.xlu0 %977
    %979 = vrot.lane.b32.xlu0 %v556, 16
    %v980 = vpop.permute.xlu0 %979
    %981 = vrot.lane.b32.xlu0 %v559, 16
    %v982 = vpop.permute.xlu0 %981
    %983 = vrot.lane.b32.xlu0 %v561, 16
    %v984 = vpop.permute.xlu0 %983
    %985 = vrot.lane.b32.xlu0 %v564, 16
    %v986 = vpop.permute.xlu0 %985
    %987 = vrot.lane.b32.xlu0 %v566, 16
    %v988 = vpop.permute.xlu0 %987
    %989 = vrot.lane.b32.xlu0 %v569, 16
    %v990 = vpop.permute.xlu0 %989
    %991 = vrot.lane.b32.xlu0 %v571, 16
    %v992 = vpop.permute.xlu0 %991
    %993 = vrot.lane.b32.xlu0 %v574, 16
    %v994 = vpop.permute.xlu0 %993
    %995 = vrot.lane.b32.xlu0 %v576, 16
    %v996 = vpop.permute.xlu0 %995
    %997 = vrot.lane.b32.xlu0 %v579, 16
    %v998 = vpop.permute.xlu0 %997
    %999 = vrot.lane.b32.xlu0 %v581, 16
    %v1000 = vpop.permute.xlu0 %999
    %1001 = vrot.lane.b32.xlu0 %v584, 16
    %v1002 = vpop.permute.xlu0 %1001
    %1003 = vrot.lane.b32.xlu0 %v586, 16
    %v1004 = vpop.permute.xlu0 %1003
    %1005 = vrot.lane.b32.xlu0 %v589, 16
    %v1006 = vpop.permute.xlu0 %1005
    %1007 = vrot.lane.b32.xlu0 %v591, 16
    %v1008 = vpop.permute.xlu0 %1007
    %1009 = vrot.lane.b32.xlu0 %v594, 16
    %v1010 = vpop.permute.xlu0 %1009
    %1011 = vrot.lane.b32.xlu0 %v596, 16
    %v1012 = vpop.permute.xlu0 %1011
    %1013 = vrot.lane.b32.xlu0 %v599, 16
    %v1014 = vpop.permute.xlu0 %1013
    %1015 = vrot.lane.b32.xlu0 %v601, 16
    %v1016 = vpop.permute.xlu0 %1015
    %1017 = vrot.lane.b32.xlu0 %v604, 16
    %v1018 = vpop.permute.xlu0 %1017
    %1019 = vrot.lane.b32.xlu0 %v606, 16
    %v1020 = vpop.permute.xlu0 %1019
    %1021 = vrot.lane.b32.xlu0 %v609, 16
    %v1022 = vpop.permute.xlu0 %1021
    %1023 = vrot.lane.b32.xlu0 %v611, 16
    %v1024 = vpop.permute.xlu0 %1023
    %1025 = vrot.lane.b32.xlu0 %v614, 16
    %v1026 = vpop.permute.xlu0 %1025
    %1027 = vrot.lane.b32.xlu0 %v616, 16
    %v1028 = vpop.permute.xlu0 %1027
    %1029 = vrot.lane.b32.xlu0 %v619, 16
    %v1030 = vpop.permute.xlu0 %1029
    %1031 = vrot.lane.b32.xlu0 %v621, 16
    %v1032 = vpop.permute.xlu0 %1031
    %1033 = vrot.lane.b32.xlu0 %v624, 16
    %v1034 = vpop.permute.xlu0 %1033
    %1035 = vrot.lane.b32.xlu0 %v626, 16
    %v1036 = vpop.permute.xlu0 %1035
    %1037 = vrot.lane.b32.xlu0 %v629, 16
    %v1038 = vpop.permute.xlu0 %1037
    %1039 = vrot.lane.b32.xlu0 %v631, 16
    %v1040 = vpop.permute.xlu0 %1039
    %1041 = vrot.lane.b32.xlu0 %v634, 16
    %v1042 = vpop.permute.xlu0 %1041
    %1043 = vrot.lane.b32.xlu0 %v636, 16
    %v1044 = vpop.permute.xlu0 %1043
    %1045 = vrot.lane.b32.xlu0 %v639, 16
    %v1046 = vpop.permute.xlu0 %1045
    %1047 = vrot.lane.b32.xlu0 %v641, 16
    %v1048 = vpop.permute.xlu0 %1047
    %1049 = vrot.lane.b32.xlu0 %v644, 16
    %v1050 = vpop.permute.xlu0 %1049
    %1051 = vrot.lane.b32.xlu0 %v646, 16
    %v1052 = vpop.permute.xlu0 %1051
    %1053 = vrot.lane.b32.xlu0 %v649, 16
    %v1054 = vpop.permute.xlu0 %1053
    %1055 = vrot.lane.b32.xlu0 %v651, 16
    %v1056 = vpop.permute.xlu0 %1055
    %1121 = vrot.lane.b32.xlu0 %v655, 32
    %v1122 = vpop.permute.xlu0 %1121
    %1123 = vrot.lane.b32.xlu0 %v657, 32
    %v1124 = vpop.permute.xlu0 %1123
    %1125 = vrot.lane.b32.xlu0 %v660, 32
    %v1126 = vpop.permute.xlu0 %1125
    %1127 = vrot.lane.b32.xlu0 %v662, 32
    %v1128 = vpop.permute.xlu0 %1127
    %1129 = vrot.lane.b32.xlu0 %v665, 32
    %v1130 = vpop.permute.xlu0 %1129
    %1131 = vrot.lane.b32.xlu0 %v667, 32
    %v1132 = vpop.permute.xlu0 %1131
    %1133 = vrot.lane.b32.xlu0 %v670, 32
    %v1134 = vpop.permute.xlu0 %1133
    %1135 = vrot.lane.b32.xlu0 %v672, 32
    %v1136 = vpop.permute.xlu0 %1135
    %1137 = vrot.lane.b32.xlu0 %v675, 32
    %v1138 = vpop.permute.xlu0 %1137
    %1139 = vrot.lane.b32.xlu0 %v677, 32
    %v1140 = vpop.permute.xlu0 %1139
    %1141 = vrot.lane.b32.xlu0 %v680, 32
    %v1142 = vpop.permute.xlu0 %1141
    %1143 = vrot.lane.b32.xlu0 %v682, 32
    %v1144 = vpop.permute.xlu0 %1143
    %1145 = vrot.lane.b32.xlu0 %v685, 32
    %v1146 = vpop.permute.xlu0 %1145
    %1147 = vrot.lane.b32.xlu0 %v687, 32
    %v1148 = vpop.permute.xlu0 %1147
    %1149 = vrot.lane.b32.xlu0 %v690, 32
    %v1150 = vpop.permute.xlu0 %1149
    %1151 = vrot.lane.b32.xlu0 %v692, 32
    %v1152 = vpop.permute.xlu0 %1151
    %1153 = vrot.lane.b32.xlu0 %v695, 32
    %v1154 = vpop.permute.xlu0 %1153
    %1155 = vrot.lane.b32.xlu0 %v697, 32
    %v1156 = vpop.permute.xlu0 %1155
    %1157 = vrot.lane.b32.xlu0 %v700, 32
    %v1158 = vpop.permute.xlu0 %1157
    %1159 = vrot.lane.b32.xlu0 %v702, 32
    %v1160 = vpop.permute.xlu0 %1159
    %1161 = vrot.lane.b32.xlu0 %v705, 32
    %v1162 = vpop.permute.xlu0 %1161
    %1163 = vrot.lane.b32.xlu0 %v707, 32
    %v1164 = vpop.permute.xlu0 %1163
    %1165 = vrot.lane.b32.xlu0 %v710, 32
    %v1166 = vpop.permute.xlu0 %1165
    %1167 = vrot.lane.b32.xlu0 %v712, 32
    %v1168 = vpop.permute.xlu0 %1167
    %1169 = vrot.lane.b32.xlu0 %v715, 32
    %v1170 = vpop.permute.xlu0 %1169
    %1171 = vrot.lane.b32.xlu0 %v717, 32
    %v1172 = vpop.permute.xlu0 %1171
    %1173 = vrot.lane.b32.xlu0 %v720, 32
    %v1174 = vpop.permute.xlu0 %1173
    %1175 = vrot.lane.b32.xlu0 %v722, 32
    %v1176 = vpop.permute.xlu0 %1175
    %1177 = vrot.lane.b32.xlu0 %v725, 32
    %v1178 = vpop.permute.xlu0 %1177
    %1179 = vrot.lane.b32.xlu0 %v727, 32
    %v1180 = vpop.permute.xlu0 %1179
    %1181 = vrot.lane.b32.xlu0 %v730, 32
    %v1182 = vpop.permute.xlu0 %1181
    %1183 = vrot.lane.b32.xlu0 %v732, 32
    %v1184 = vpop.permute.xlu0 %1183
    %1185 = vrot.lane.b32.xlu0 %v735, 32
    %v1186 = vpop.permute.xlu0 %1185
    %1187 = vrot.lane.b32.xlu0 %v737, 32
    %v1188 = vpop.permute.xlu0 %1187
    %1189 = vrot.lane.b32.xlu0 %v740, 32
    %v1190 = vpop.permute.xlu0 %1189
    %1191 = vrot.lane.b32.xlu0 %v742, 32
    %v1192 = vpop.permute.xlu0 %1191
    %1193 = vrot.lane.b32.xlu0 %v745, 32
    %v1194 = vpop.permute.xlu0 %1193
    %1195 = vrot.lane.b32.xlu0 %v747, 32
    %v1196 = vpop.permute.xlu0 %1195
    %1197 = vrot.lane.b32.xlu0 %v750, 32
    %v1198 = vpop.permute.xlu0 %1197
    %1199 = vrot.lane.b32.xlu0 %v752, 32
    %v1200 = vpop.permute.xlu0 %1199
    %1201 = vrot.lane.b32.xlu0 %v755, 32
    %v1202 = vpop.permute.xlu0 %1201
    %1203 = vrot.lane.b32.xlu0 %v757, 32
    %v1204 = vpop.permute.xlu0 %1203
    %1205 = vrot.lane.b32.xlu0 %v760, 32
    %v1206 = vpop.permute.xlu0 %1205
    %1207 = vrot.lane.b32.xlu0 %v762, 32
    %v1208 = vpop.permute.xlu0 %1207
    %1209 = vrot.lane.b32.xlu0 %v765, 32
    %v1210 = vpop.permute.xlu0 %1209
    %1211 = vrot.lane.b32.xlu0 %v767, 32
    %v1212 = vpop.permute.xlu0 %1211
    %1213 = vrot.lane.b32.xlu0 %v770, 32
    %v1214 = vpop.permute.xlu0 %1213
    %1215 = vrot.lane.b32.xlu0 %v772, 32
    %v1216 = vpop.permute.xlu0 %1215
    %1217 = vrot.lane.b32.xlu0 %v775, 32
    %v1218 = vpop.permute.xlu0 %1217
    %1219 = vrot.lane.b32.xlu0 %v777, 32
    %v1220 = vpop.permute.xlu0 %1219
    %1221 = vrot.lane.b32.xlu0 %v780, 32
    %v1222 = vpop.permute.xlu0 %1221
    %1223 = vrot.lane.b32.xlu0 %v782, 32
    %v1224 = vpop.permute.xlu0 %1223
    %1225 = vrot.lane.b32.xlu0 %v785, 32
    %v1226 = vpop.permute.xlu0 %1225
    %1227 = vrot.lane.b32.xlu0 %v787, 32
    %v1228 = vpop.permute.xlu0 %1227
    %1229 = vrot.lane.b32.xlu0 %v790, 32
    %v1230 = vpop.permute.xlu0 %1229
    %1231 = vrot.lane.b32.xlu0 %v792, 32
    %v1232 = vpop.permute.xlu0 %1231
    %1233 = vrot.lane.b32.xlu0 %v795, 32
    %v1234 = vpop.permute.xlu0 %1233
    %1235 = vrot.lane.b32.xlu0 %v797, 32
    %v1236 = vpop.permute.xlu0 %1235
    %1237 = vrot.lane.b32.xlu0 %v800, 32
    %v1238 = vpop.permute.xlu0 %1237
    %1239 = vrot.lane.b32.xlu0 %v802, 32
    %v1240 = vpop.permute.xlu0 %1239
    %1241 = vrot.lane.b32.xlu0 %v805, 32
    %v1242 = vpop.permute.xlu0 %1241
    %1243 = vrot.lane.b32.xlu0 %v807, 32
    %v1244 = vpop.permute.xlu0 %1243
    %1245 = vrot.lane.b32.xlu0 %v810, 32
    %v1246 = vpop.permute.xlu0 %1245
    %1247 = vrot.lane.b32.xlu0 %v812, 32
    %v1248 = vpop.permute.xlu0 %1247
    %1313 = vrot.lane.b32.xlu0 %v290, 48
    %v1314 = vpop.permute.xlu0 %1313
    %1315 = vrot.lane.b32.xlu0 %v291, 48
    %v1316 = vpop.permute.xlu0 %1315
    %1317 = vrot.lane.b32.xlu0 %v293, 48
    %v1318 = vpop.permute.xlu0 %1317
    %1319 = vrot.lane.b32.xlu0 %v294, 48
    %v1320 = vpop.permute.xlu0 %1319
    %1321 = vrot.lane.b32.xlu0 %v296, 48
    %v1322 = vpop.permute.xlu0 %1321
    %1323 = vrot.lane.b32.xlu0 %v297, 48
    %v1324 = vpop.permute.xlu0 %1323
    %1325 = vrot.lane.b32.xlu0 %v299, 48
    %v1326 = vpop.permute.xlu0 %1325
    %1327 = vrot.lane.b32.xlu0 %v300, 48
    %v1328 = vpop.permute.xlu0 %1327
    %1329 = vrot.lane.b32.xlu0 %v302, 48
    %v1330 = vpop.permute.xlu0 %1329
    %1331 = vrot.lane.b32.xlu0 %v303, 48
    %v1332 = vpop.permute.xlu0 %1331
    %1333 = vrot.lane.b32.xlu0 %v305, 48
    %v1334 = vpop.permute.xlu0 %1333
    %1335 = vrot.lane.b32.xlu0 %v306, 48
    %v1336 = vpop.permute.xlu0 %1335
    %1337 = vrot.lane.b32.xlu0 %v308, 48
    %v1338 = vpop.permute.xlu0 %1337
    %1339 = vrot.lane.b32.xlu0 %v309, 48
    %v1340 = vpop.permute.xlu0 %1339
    %1341 = vrot.lane.b32.xlu0 %v311, 48
    %v1342 = vpop.permute.xlu0 %1341
    %1343 = vrot.lane.b32.xlu0 %v312, 48
    %v1344 = vpop.permute.xlu0 %1343
    %1345 = vrot.lane.b32.xlu0 %v314, 48
    %v1346 = vpop.permute.xlu0 %1345
    %1347 = vrot.lane.b32.xlu0 %v315, 48
    %v1348 = vpop.permute.xlu0 %1347
    %1349 = vrot.lane.b32.xlu0 %v317, 48
    %v1350 = vpop.permute.xlu0 %1349
    %1351 = vrot.lane.b32.xlu0 %v318, 48
    %v1352 = vpop.permute.xlu0 %1351
    %1353 = vrot.lane.b32.xlu0 %v320, 48
    %v1354 = vpop.permute.xlu0 %1353
    %1355 = vrot.lane.b32.xlu0 %v321, 48
    %v1356 = vpop.permute.xlu0 %1355
    %1357 = vrot.lane.b32.xlu0 %v323, 48
    %v1358 = vpop.permute.xlu0 %1357
    %1359 = vrot.lane.b32.xlu0 %v324, 48
    %v1360 = vpop.permute.xlu0 %1359
    %1361 = vrot.lane.b32.xlu0 %v326, 48
    %v1362 = vpop.permute.xlu0 %1361
    %1363 = vrot.lane.b32.xlu0 %v327, 48
    %v1364 = vpop.permute.xlu0 %1363
    %1365 = vrot.lane.b32.xlu0 %v329, 48
    %v1366 = vpop.permute.xlu0 %1365
    %1367 = vrot.lane.b32.xlu0 %v330, 48
    %v1368 = vpop.permute.xlu0 %1367
    %1369 = vrot.lane.b32.xlu0 %v332, 48
    %v1370 = vpop.permute.xlu0 %1369
    %1371 = vrot.lane.b32.xlu0 %v333, 48
    %v1372 = vpop.permute.xlu0 %1371
    %1373 = vrot.lane.b32.xlu0 %v335, 48
    %v1374 = vpop.permute.xlu0 %1373
    %1375 = vrot.lane.b32.xlu0 %v336, 48
    %v1376 = vpop.permute.xlu0 %1375
    %1377 = vrot.lane.b32.xlu0 %v344, 48
    %v1378 = vpop.permute.xlu0 %1377
    %1379 = vrot.lane.b32.xlu0 %v345, 48
    %v1380 = vpop.permute.xlu0 %1379
    %1381 = vrot.lane.b32.xlu0 %v347, 48
    %v1382 = vpop.permute.xlu0 %1381
    %1383 = vrot.lane.b32.xlu0 %v348, 48
    %v1384 = vpop.permute.xlu0 %1383
    %1385 = vrot.lane.b32.xlu0 %v350, 48
    %v1386 = vpop.permute.xlu0 %1385
    %1387 = vrot.lane.b32.xlu0 %v351, 48
    %v1388 = vpop.permute.xlu0 %1387
    %1389 = vrot.lane.b32.xlu0 %v353, 48
    %v1390 = vpop.permute.xlu0 %1389
    %1391 = vrot.lane.b32.xlu0 %v354, 48
    %v1392 = vpop.permute.xlu0 %1391
    %1393 = vrot.lane.b32.xlu0 %v356, 48
    %v1394 = vpop.permute.xlu0 %1393
    %1395 = vrot.lane.b32.xlu0 %v357, 48
    %v1396 = vpop.permute.xlu0 %1395
    %1397 = vrot.lane.b32.xlu0 %v359, 48
    %v1398 = vpop.permute.xlu0 %1397
    %1399 = vrot.lane.b32.xlu0 %v360, 48
    %v1400 = vpop.permute.xlu0 %1399
    %1401 = vrot.lane.b32.xlu0 %v362, 48
    %v1402 = vpop.permute.xlu0 %1401
    %1403 = vrot.lane.b32.xlu0 %v363, 48
    %v1404 = vpop.permute.xlu0 %1403
    %1405 = vrot.lane.b32.xlu0 %v365, 48
    %v1406 = vpop.permute.xlu0 %1405
    %1407 = vrot.lane.b32.xlu0 %v366, 48
    %v1408 = vpop.permute.xlu0 %1407
    %1409 = vrot.lane.b32.xlu0 %v368, 48
    %v1410 = vpop.permute.xlu0 %1409
    %1411 = vrot.lane.b32.xlu0 %v369, 48
    %v1412 = vpop.permute.xlu0 %1411
    %1413 = vrot.lane.b32.xlu0 %v371, 48
    %v1414 = vpop.permute.xlu0 %1413
    %1415 = vrot.lane.b32.xlu0 %v372, 48
    %v1416 = vpop.permute.xlu0 %1415
    %1417 = vrot.lane.b32.xlu0 %v374, 48
    %v1418 = vpop.permute.xlu0 %1417
    %1419 = vrot.lane.b32.xlu0 %v375, 48
    %v1420 = vpop.permute.xlu0 %1419
    %1421 = vrot.lane.b32.xlu0 %v377, 48
    %v1422 = vpop.permute.xlu0 %1421
    %1423 = vrot.lane.b32.xlu0 %v378, 48
    %v1424 = vpop.permute.xlu0 %1423
    %1425 = vrot.lane.b32.xlu0 %v380, 48
    %v1426 = vpop.permute.xlu0 %1425
    %1427 = vrot.lane.b32.xlu0 %v381, 48
    %v1428 = vpop.permute.xlu0 %1427
    %1429 = vrot.lane.b32.xlu0 %v383, 48
    %v1430 = vpop.permute.xlu0 %1429
    %1431 = vrot.lane.b32.xlu0 %v384, 48
    %v1432 = vpop.permute.xlu0 %1431
    %1433 = vrot.lane.b32.xlu0 %v386, 48
    %v1434 = vpop.permute.xlu0 %1433
    %1435 = vrot.lane.b32.xlu0 %v387, 48
    %v1436 = vpop.permute.xlu0 %1435
    %1437 = vrot.lane.b32.xlu0 %v389, 48
    %v1438 = vpop.permute.xlu0 %1437
    %1439 = vrot.lane.b32.xlu0 %v390, 48
    %v1440 = vpop.permute.xlu0 %1439
    %1505 = vrot.lane.b32.xlu0 %v499, 64
    %v1506 = vpop.permute.xlu0 %1505
    %1507 = vrot.lane.b32.xlu0 %v501, 64
    %v1508 = vpop.permute.xlu0 %1507
    %1509 = vrot.lane.b32.xlu0 %v504, 64
    %v1510 = vpop.permute.xlu0 %1509
    %1511 = vrot.lane.b32.xlu0 %v506, 64
    %v1512 = vpop.permute.xlu0 %1511
    %1513 = vrot.lane.b32.xlu0 %v509, 64
    %v1514 = vpop.permute.xlu0 %1513
    %1515 = vrot.lane.b32.xlu0 %v511, 64
    %v1516 = vpop.permute.xlu0 %1515
    %1517 = vrot.lane.b32.xlu0 %v514, 64
    %v1518 = vpop.permute.xlu0 %1517
    %1519 = vrot.lane.b32.xlu0 %v516, 64
    %v1520 = vpop.permute.xlu0 %1519
    %1521 = vrot.lane.b32.xlu0 %v519, 64
    %v1522 = vpop.permute.xlu0 %1521
    %1523 = vrot.lane.b32.xlu0 %v521, 64
    %v1524 = vpop.permute.xlu0 %1523
    %1525 = vrot.lane.b32.xlu0 %v524, 64
    %v1526 = vpop.permute.xlu0 %1525
    %1527 = vrot.lane.b32.xlu0 %v526, 64
    %v1528 = vpop.permute.xlu0 %1527
    %1529 = vrot.lane.b32.xlu0 %v529, 64
    %v1530 = vpop.permute.xlu0 %1529
    %1531 = vrot.lane.b32.xlu0 %v531, 64
    %v1532 = vpop.permute.xlu0 %1531
    %1533 = vrot.lane.b32.xlu0 %v534, 64
    %v1534 = vpop.permute.xlu0 %1533
    %1535 = vrot.lane.b32.xlu0 %v536, 64
    %v1536 = vpop.permute.xlu0 %1535
    %1537 = vrot.lane.b32.xlu0 %v539, 64
    %v1538 = vpop.permute.xlu0 %1537
    %1539 = vrot.lane.b32.xlu0 %v541, 64
    %v1540 = vpop.permute.xlu0 %1539
    %1541 = vrot.lane.b32.xlu0 %v544, 64
    %v1542 = vpop.permute.xlu0 %1541
    %1543 = vrot.lane.b32.xlu0 %v546, 64
    %v1544 = vpop.permute.xlu0 %1543
    %1545 = vrot.lane.b32.xlu0 %v549, 64
    %v1546 = vpop.permute.xlu0 %1545
    %1547 = vrot.lane.b32.xlu0 %v551, 64
    %v1548 = vpop.permute.xlu0 %1547
    %1549 = vrot.lane.b32.xlu0 %v554, 64
    %v1550 = vpop.permute.xlu0 %1549
    %1551 = vrot.lane.b32.xlu0 %v556, 64
    %v1552 = vpop.permute.xlu0 %1551
    %1553 = vrot.lane.b32.xlu0 %v559, 64
    %v1554 = vpop.permute.xlu0 %1553
    %1555 = vrot.lane.b32.xlu0 %v561, 64
    %v1556 = vpop.permute.xlu0 %1555
    %1557 = vrot.lane.b32.xlu0 %v564, 64
    %v1558 = vpop.permute.xlu0 %1557
    %1559 = vrot.lane.b32.xlu0 %v566, 64
    %v1560 = vpop.permute.xlu0 %1559
    %1561 = vrot.lane.b32.xlu0 %v569, 64
    %v1562 = vpop.permute.xlu0 %1561
    %1563 = vrot.lane.b32.xlu0 %v571, 64
    %v1564 = vpop.permute.xlu0 %1563
    %1565 = vrot.lane.b32.xlu0 %v821, 64
    %v1566 = vpop.permute.xlu0 %1565
    %1567 = vrot.lane.b32.xlu0 %v823, 64
    %v1568 = vpop.permute.xlu0 %1567
    %1569 = vrot.lane.b32.xlu0 %v579, 64
    %v1570 = vpop.permute.xlu0 %1569
    %1571 = vrot.lane.b32.xlu0 %v581, 64
    %v1572 = vpop.permute.xlu0 %1571
    %1573 = vrot.lane.b32.xlu0 %v584, 64
    %v1574 = vpop.permute.xlu0 %1573
    %1575 = vrot.lane.b32.xlu0 %v586, 64
    %v1576 = vpop.permute.xlu0 %1575
    %1577 = vrot.lane.b32.xlu0 %v589, 64
    %v1578 = vpop.permute.xlu0 %1577
    %1579 = vrot.lane.b32.xlu0 %v591, 64
    %v1580 = vpop.permute.xlu0 %1579
    %1581 = vrot.lane.b32.xlu0 %v594, 64
    %v1582 = vpop.permute.xlu0 %1581
    %1583 = vrot.lane.b32.xlu0 %v596, 64
    %v1584 = vpop.permute.xlu0 %1583
    %1585 = vrot.lane.b32.xlu0 %v599, 64
    %v1586 = vpop.permute.xlu0 %1585
    %1587 = vrot.lane.b32.xlu0 %v601, 64
    %v1588 = vpop.permute.xlu0 %1587
    %1589 = vrot.lane.b32.xlu0 %v604, 64
    %v1590 = vpop.permute.xlu0 %1589
    %1591 = vrot.lane.b32.xlu0 %v606, 64
    %v1592 = vpop.permute.xlu0 %1591
    %1593 = vrot.lane.b32.xlu0 %v609, 64
    %v1594 = vpop.permute.xlu0 %1593
    %1595 = vrot.lane.b32.xlu0 %v611, 64
    %v1596 = vpop.permute.xlu0 %1595
    %1597 = vrot.lane.b32.xlu0 %v614, 64
    %v1598 = vpop.permute.xlu0 %1597
    %1599 = vrot.lane.b32.xlu0 %v616, 64
    %v1600 = vpop.permute.xlu0 %1599
    %1601 = vrot.lane.b32.xlu0 %v619, 64
    %v1602 = vpop.permute.xlu0 %1601
    %1603 = vrot.lane.b32.xlu0 %v621, 64
    %v1604 = vpop.permute.xlu0 %1603
    %1605 = vrot.lane.b32.xlu0 %v624, 64
    %v1606 = vpop.permute.xlu0 %1605
    %1607 = vrot.lane.b32.xlu0 %v626, 64
    %v1608 = vpop.permute.xlu0 %1607
    %1609 = vrot.lane.b32.xlu0 %v629, 64
    %v1610 = vpop.permute.xlu0 %1609
    %1611 = vrot.lane.b32.xlu0 %v631, 64
    %v1612 = vpop.permute.xlu0 %1611
    %1613 = vrot.lane.b32.xlu0 %v634, 64
    %v1614 = vpop.permute.xlu0 %1613
    %1615 = vrot.lane.b32.xlu0 %v636, 64
    %v1616 = vpop.permute.xlu0 %1615
    %1617 = vrot.lane.b32.xlu0 %v639, 64
    %v1618 = vpop.permute.xlu0 %1617
    %1619 = vrot.lane.b32.xlu0 %v641, 64
    %v1620 = vpop.permute.xlu0 %1619
    %1621 = vrot.lane.b32.xlu0 %v644, 64
    %v1622 = vpop.permute.xlu0 %1621
    %1623 = vrot.lane.b32.xlu0 %v646, 64
    %v1624 = vpop.permute.xlu0 %1623
    %1625 = vrot.lane.b32.xlu0 %v649, 64
    %v1626 = vpop.permute.xlu0 %1625
    %1627 = vrot.lane.b32.xlu0 %v651, 64
    %v1628 = vpop.permute.xlu0 %1627
    %1629 = vrot.lane.b32.xlu0 %v826, 64
    %v1630 = vpop.permute.xlu0 %1629
    %1631 = vrot.lane.b32.xlu0 %v828, 64
    %v1632 = vpop.permute.xlu0 %1631
    %1697 = vrot.lane.b32.xlu0 %v660, 80
    %v1698 = vpop.permute.xlu0 %1697
    %1699 = vrot.lane.b32.xlu0 %v662, 80
    %v1700 = vpop.permute.xlu0 %1699
    %1701 = vrot.lane.b32.xlu0 %v665, 80
    %v1702 = vpop.permute.xlu0 %1701
    %1703 = vrot.lane.b32.xlu0 %v667, 80
    %v1704 = vpop.permute.xlu0 %1703
    %1705 = vrot.lane.b32.xlu0 %v670, 80
    %v1706 = vpop.permute.xlu0 %1705
    %1707 = vrot.lane.b32.xlu0 %v672, 80
    %v1708 = vpop.permute.xlu0 %1707
    %1709 = vrot.lane.b32.xlu0 %v675, 80
    %v1710 = vpop.permute.xlu0 %1709
    %1711 = vrot.lane.b32.xlu0 %v677, 80
    %v1712 = vpop.permute.xlu0 %1711
    %1713 = vrot.lane.b32.xlu0 %v680, 80
    %v1714 = vpop.permute.xlu0 %1713
    %1715 = vrot.lane.b32.xlu0 %v682, 80
    %v1716 = vpop.permute.xlu0 %1715
    %1717 = vrot.lane.b32.xlu0 %v685, 80
    %v1718 = vpop.permute.xlu0 %1717
    %1719 = vrot.lane.b32.xlu0 %v687, 80
    %v1720 = vpop.permute.xlu0 %1719
    %1721 = vrot.lane.b32.xlu0 %v690, 80
    %v1722 = vpop.permute.xlu0 %1721
    %1723 = vrot.lane.b32.xlu0 %v692, 80
    %v1724 = vpop.permute.xlu0 %1723
    %1725 = vrot.lane.b32.xlu0 %v695, 80
    %v1726 = vpop.permute.xlu0 %1725
    %1727 = vrot.lane.b32.xlu0 %v697, 80
    %v1728 = vpop.permute.xlu0 %1727
    %1729 = vrot.lane.b32.xlu0 %v700, 80
    %v1730 = vpop.permute.xlu0 %1729
    %1731 = vrot.lane.b32.xlu0 %v702, 80
    %v1732 = vpop.permute.xlu0 %1731
    %1733 = vrot.lane.b32.xlu0 %v705, 80
    %v1734 = vpop.permute.xlu0 %1733
    %1735 = vrot.lane.b32.xlu0 %v707, 80
    %v1736 = vpop.permute.xlu0 %1735
    %1737 = vrot.lane.b32.xlu0 %v710, 80
    %v1738 = vpop.permute.xlu0 %1737
    %1739 = vrot.lane.b32.xlu0 %v712, 80
    %v1740 = vpop.permute.xlu0 %1739
    %1741 = vrot.lane.b32.xlu0 %v715, 80
    %v1742 = vpop.permute.xlu0 %1741
    %1743 = vrot.lane.b32.xlu0 %v717, 80
    %v1744 = vpop.permute.xlu0 %1743
    %1745 = vrot.lane.b32.xlu0 %v720, 80
    %v1746 = vpop.permute.xlu0 %1745
    %1747 = vrot.lane.b32.xlu0 %v722, 80
    %v1748 = vpop.permute.xlu0 %1747
    %1749 = vrot.lane.b32.xlu0 %v725, 80
    %v1750 = vpop.permute.xlu0 %1749
    %1751 = vrot.lane.b32.xlu0 %v727, 80
    %v1752 = vpop.permute.xlu0 %1751
    %1753 = vrot.lane.b32.xlu0 %v730, 80
    %v1754 = vpop.permute.xlu0 %1753
    %1755 = vrot.lane.b32.xlu0 %v732, 80
    %v1756 = vpop.permute.xlu0 %1755
    %1757 = vrot.lane.b32.xlu0 %v831, 80
    %v1758 = vpop.permute.xlu0 %1757
    %1759 = vrot.lane.b32.xlu0 %v833, 80
    %v1760 = vpop.permute.xlu0 %1759
    %1761 = vrot.lane.b32.xlu0 %v740, 80
    %v1762 = vpop.permute.xlu0 %1761
    %1763 = vrot.lane.b32.xlu0 %v742, 80
    %v1764 = vpop.permute.xlu0 %1763
    %1765 = vrot.lane.b32.xlu0 %v745, 80
    %v1766 = vpop.permute.xlu0 %1765
    %1767 = vrot.lane.b32.xlu0 %v747, 80
    %v1768 = vpop.permute.xlu0 %1767
    %1769 = vrot.lane.b32.xlu0 %v750, 80
    %v1770 = vpop.permute.xlu0 %1769
    %1771 = vrot.lane.b32.xlu0 %v752, 80
    %v1772 = vpop.permute.xlu0 %1771
    %1773 = vrot.lane.b32.xlu0 %v755, 80
    %v1774 = vpop.permute.xlu0 %1773
    %1775 = vrot.lane.b32.xlu0 %v757, 80
    %v1776 = vpop.permute.xlu0 %1775
    %1777 = vrot.lane.b32.xlu0 %v760, 80
    %v1778 = vpop.permute.xlu0 %1777
    %1779 = vrot.lane.b32.xlu0 %v762, 80
    %v1780 = vpop.permute.xlu0 %1779
    %1781 = vrot.lane.b32.xlu0 %v765, 80
    %v1782 = vpop.permute.xlu0 %1781
    %1783 = vrot.lane.b32.xlu0 %v767, 80
    %v1784 = vpop.permute.xlu0 %1783
    %1785 = vrot.lane.b32.xlu0 %v770, 80
    %v1786 = vpop.permute.xlu0 %1785
    %1787 = vrot.lane.b32.xlu0 %v772, 80
    %v1788 = vpop.permute.xlu0 %1787
    %1789 = vrot.lane.b32.xlu0 %v775, 80
    %v1790 = vpop.permute.xlu0 %1789
    %1791 = vrot.lane.b32.xlu0 %v777, 80
    %v1792 = vpop.permute.xlu0 %1791
    %1793 = vrot.lane.b32.xlu0 %v780, 80
    %v1794 = vpop.permute.xlu0 %1793
    %1795 = vrot.lane.b32.xlu0 %v782, 80
    %v1796 = vpop.permute.xlu0 %1795
    %1797 = vrot.lane.b32.xlu0 %v785, 80
    %v1798 = vpop.permute.xlu0 %1797
    %1799 = vrot.lane.b32.xlu0 %v787, 80
    %v1800 = vpop.permute.xlu0 %1799
    %1801 = vrot.lane.b32.xlu0 %v790, 80
    %v1802 = vpop.permute.xlu0 %1801
    %1803 = vrot.lane.b32.xlu0 %v792, 80
    %v1804 = vpop.permute.xlu0 %1803
    %1805 = vrot.lane.b32.xlu0 %v795, 80
    %v1806 = vpop.permute.xlu0 %1805
    %1807 = vrot.lane.b32.xlu0 %v797, 80
    %v1808 = vpop.permute.xlu0 %1807
    %1809 = vrot.lane.b32.xlu0 %v800, 80
    %v1810 = vpop.permute.xlu0 %1809
    %1811 = vrot.lane.b32.xlu0 %v802, 80
    %v1812 = vpop.permute.xlu0 %1811
    %1813 = vrot.lane.b32.xlu0 %v805, 80
    %v1814 = vpop.permute.xlu0 %1813
    %1815 = vrot.lane.b32.xlu0 %v807, 80
    %v1816 = vpop.permute.xlu0 %1815
    %1817 = vrot.lane.b32.xlu0 %v810, 80
    %v1818 = vpop.permute.xlu0 %1817
    %1819 = vrot.lane.b32.xlu0 %v812, 80
    %v1820 = vpop.permute.xlu0 %1819
    %1821 = vrot.lane.b32.xlu0 %v836, 80
    %v1822 = vpop.permute.xlu0 %1821
    %1823 = vrot.lane.b32.xlu0 %v838, 80
    %v1824 = vpop.permute.xlu0 %1823
    %1889 = vrot.lane.b32.xlu0 %v293, 96
    %v1890 = vpop.permute.xlu0 %1889
    %1891 = vrot.lane.b32.xlu0 %v294, 96
    %v1892 = vpop.permute.xlu0 %1891
    %1893 = vrot.lane.b32.xlu0 %v296, 96
    %v1894 = vpop.permute.xlu0 %1893
    %1895 = vrot.lane.b32.xlu0 %v297, 96
    %v1896 = vpop.permute.xlu0 %1895
    %1897 = vrot.lane.b32.xlu0 %v299, 96
    %v1898 = vpop.permute.xlu0 %1897
    %1899 = vrot.lane.b32.xlu0 %v300, 96
    %v1900 = vpop.permute.xlu0 %1899
    %1901 = vrot.lane.b32.xlu0 %v302, 96
    %v1902 = vpop.permute.xlu0 %1901
    %1903 = vrot.lane.b32.xlu0 %v303, 96
    %v1904 = vpop.permute.xlu0 %1903
    %1905 = vrot.lane.b32.xlu0 %v305, 96
    %v1906 = vpop.permute.xlu0 %1905
    %1907 = vrot.lane.b32.xlu0 %v306, 96
    %v1908 = vpop.permute.xlu0 %1907
    %1909 = vrot.lane.b32.xlu0 %v308, 96
    %v1910 = vpop.permute.xlu0 %1909
    %1911 = vrot.lane.b32.xlu0 %v309, 96
    %v1912 = vpop.permute.xlu0 %1911
    %1913 = vrot.lane.b32.xlu0 %v311, 96
    %v1914 = vpop.permute.xlu0 %1913
    %1915 = vrot.lane.b32.xlu0 %v312, 96
    %v1916 = vpop.permute.xlu0 %1915
    %1917 = vrot.lane.b32.xlu0 %v314, 96
    %v1918 = vpop.permute.xlu0 %1917
    %1919 = vrot.lane.b32.xlu0 %v315, 96
    %v1920 = vpop.permute.xlu0 %1919
    %1921 = vrot.lane.b32.xlu0 %v317, 96
    %v1922 = vpop.permute.xlu0 %1921
    %1923 = vrot.lane.b32.xlu0 %v318, 96
    %v1924 = vpop.permute.xlu0 %1923
    %1925 = vrot.lane.b32.xlu0 %v320, 96
    %v1926 = vpop.permute.xlu0 %1925
    %1927 = vrot.lane.b32.xlu0 %v321, 96
    %v1928 = vpop.permute.xlu0 %1927
    %1929 = vrot.lane.b32.xlu0 %v323, 96
    %v1930 = vpop.permute.xlu0 %1929
    %1931 = vrot.lane.b32.xlu0 %v324, 96
    %v1932 = vpop.permute.xlu0 %1931
    %1933 = vrot.lane.b32.xlu0 %v326, 96
    %v1934 = vpop.permute.xlu0 %1933
    %1935 = vrot.lane.b32.xlu0 %v327, 96
    %v1936 = vpop.permute.xlu0 %1935
    %1937 = vrot.lane.b32.xlu0 %v329, 96
    %v1938 = vpop.permute.xlu0 %1937
    %1939 = vrot.lane.b32.xlu0 %v330, 96
    %v1940 = vpop.permute.xlu0 %1939
    %1941 = vrot.lane.b32.xlu0 %v332, 96
    %v1942 = vpop.permute.xlu0 %1941
    %1943 = vrot.lane.b32.xlu0 %v333, 96
    %v1944 = vpop.permute.xlu0 %1943
    %1945 = vrot.lane.b32.xlu0 %v335, 96
    %v1946 = vpop.permute.xlu0 %1945
    %1947 = vrot.lane.b32.xlu0 %v336, 96
    %v1948 = vpop.permute.xlu0 %1947
    %1949 = vrot.lane.b32.xlu0 %v338, 96
    %v1950 = vpop.permute.xlu0 %1949
    %1951 = vrot.lane.b32.xlu0 %v339, 96
    %v1952 = vpop.permute.xlu0 %1951
    %1953 = vrot.lane.b32.xlu0 %v347, 96
    %v1954 = vpop.permute.xlu0 %1953
    %1955 = vrot.lane.b32.xlu0 %v348, 96
    %v1956 = vpop.permute.xlu0 %1955
    %1957 = vrot.lane.b32.xlu0 %v350, 96
    %v1958 = vpop.permute.xlu0 %1957
    %1959 = vrot.lane.b32.xlu0 %v351, 96
    %v1960 = vpop.permute.xlu0 %1959
    %1961 = vrot.lane.b32.xlu0 %v353, 96
    %v1962 = vpop.permute.xlu0 %1961
    %1963 = vrot.lane.b32.xlu0 %v354, 96
    %v1964 = vpop.permute.xlu0 %1963
    %1965 = vrot.lane.b32.xlu0 %v356, 96
    %v1966 = vpop.permute.xlu0 %1965
    %1967 = vrot.lane.b32.xlu0 %v357, 96
    %v1968 = vpop.permute.xlu0 %1967
    %1969 = vrot.lane.b32.xlu0 %v359, 96
    %v1970 = vpop.permute.xlu0 %1969
    %1971 = vrot.lane.b32.xlu0 %v360, 96
    %v1972 = vpop.permute.xlu0 %1971
    %1973 = vrot.lane.b32.xlu0 %v362, 96
    %v1974 = vpop.permute.xlu0 %1973
    %1975 = vrot.lane.b32.xlu0 %v363, 96
    %v1976 = vpop.permute.xlu0 %1975
    %1977 = vrot.lane.b32.xlu0 %v365, 96
    %v1978 = vpop.permute.xlu0 %1977
    %1979 = vrot.lane.b32.xlu0 %v366, 96
    %v1980 = vpop.permute.xlu0 %1979
    %1981 = vrot.lane.b32.xlu0 %v368, 96
    %v1982 = vpop.permute.xlu0 %1981
    %1983 = vrot.lane.b32.xlu0 %v369, 96
    %v1984 = vpop.permute.xlu0 %1983
    %1985 = vrot.lane.b32.xlu0 %v371, 96
    %v1986 = vpop.permute.xlu0 %1985
    %1987 = vrot.lane.b32.xlu0 %v372, 96
    %v1988 = vpop.permute.xlu0 %1987
    %1989 = vrot.lane.b32.xlu0 %v374, 96
    %v1990 = vpop.permute.xlu0 %1989
    %1991 = vrot.lane.b32.xlu0 %v375, 96
    %v1992 = vpop.permute.xlu0 %1991
    %1993 = vrot.lane.b32.xlu0 %v377, 96
    %v1994 = vpop.permute.xlu0 %1993
    %1995 = vrot.lane.b32.xlu0 %v378, 96
    %v1996 = vpop.permute.xlu0 %1995
    %1997 = vrot.lane.b32.xlu0 %v380, 96
    %v1998 = vpop.permute.xlu0 %1997
    %1999 = vrot.lane.b32.xlu0 %v381, 96
    %v2000 = vpop.permute.xlu0 %1999
    %2001 = vrot.lane.b32.xlu0 %v383, 96
    %v2002 = vpop.permute.xlu0 %2001
    %2003 = vrot.lane.b32.xlu0 %v384, 96
    %v2004 = vpop.permute.xlu0 %2003
    %2005 = vrot.lane.b32.xlu0 %v386, 96
    %v2006 = vpop.permute.xlu0 %2005
    %2007 = vrot.lane.b32.xlu0 %v387, 96
    %v2008 = vpop.permute.xlu0 %2007
    %2009 = vrot.lane.b32.xlu0 %v389, 96
    %v2010 = vpop.permute.xlu0 %2009
    %2011 = vrot.lane.b32.xlu0 %v390, 96
    %v2012 = vpop.permute.xlu0 %2011
    %2013 = vrot.lane.b32.xlu0 %v392, 96
    %v2014 = vpop.permute.xlu0 %2013
    %2015 = vrot.lane.b32.xlu0 %v393, 96
    %v2016 = vpop.permute.xlu0 %2015
    %2081 = vrot.lane.b32.xlu0 %v504, 112
    %v2082 = vpop.permute.xlu0 %2081
    %2083 = vrot.lane.b32.xlu0 %v506, 112
    %v2084 = vpop.permute.xlu0 %2083
    %2085 = vrot.lane.b32.xlu0 %v509, 112
    %v2086 = vpop.permute.xlu0 %2085
    %2087 = vrot.lane.b32.xlu0 %v511, 112
    %v2088 = vpop.permute.xlu0 %2087
    %2089 = vrot.lane.b32.xlu0 %v514, 112
    %v2090 = vpop.permute.xlu0 %2089
    %2091 = vrot.lane.b32.xlu0 %v516, 112
    %v2092 = vpop.permute.xlu0 %2091
    %2093 = vrot.lane.b32.xlu0 %v519, 112
    %v2094 = vpop.permute.xlu0 %2093
    %2095 = vrot.lane.b32.xlu0 %v521, 112
    %v2096 = vpop.permute.xlu0 %2095
    %2097 = vrot.lane.b32.xlu0 %v524, 112
    %v2098 = vpop.permute.xlu0 %2097
    %2099 = vrot.lane.b32.xlu0 %v526, 112
    %v2100 = vpop.permute.xlu0 %2099
    %2101 = vrot.lane.b32.xlu0 %v529, 112
    %v2102 = vpop.permute.xlu0 %2101
    %2103 = vrot.lane.b32.xlu0 %v531, 112
    %v2104 = vpop.permute.xlu0 %2103
    %2105 = vrot.lane.b32.xlu0 %v534, 112
    %v2106 = vpop.permute.xlu0 %2105
    %2107 = vrot.lane.b32.xlu0 %v536, 112
    %v2108 = vpop.permute.xlu0 %2107
    %2109 = vrot.lane.b32.xlu0 %v539, 112
    %v2110 = vpop.permute.xlu0 %2109
    %2111 = vrot.lane.b32.xlu0 %v541, 112
    %v2112 = vpop.permute.xlu0 %2111
    %2113 = vrot.lane.b32.xlu0 %v544, 112
    %v2114 = vpop.permute.xlu0 %2113
    %2115 = vrot.lane.b32.xlu0 %v546, 112
    %v2116 = vpop.permute.xlu0 %2115
    %2117 = vrot.lane.b32.xlu0 %v549, 112
    %v2118 = vpop.permute.xlu0 %2117
    %2119 = vrot.lane.b32.xlu0 %v551, 112
    %v2120 = vpop.permute.xlu0 %2119
    %2121 = vrot.lane.b32.xlu0 %v554, 112
    %v2122 = vpop.permute.xlu0 %2121
    %2123 = vrot.lane.b32.xlu0 %v556, 112
    %v2124 = vpop.permute.xlu0 %2123
    %2125 = vrot.lane.b32.xlu0 %v559, 112
    %v2126 = vpop.permute.xlu0 %2125
    %2127 = vrot.lane.b32.xlu0 %v561, 112
    %v2128 = vpop.permute.xlu0 %2127
    %2129 = vrot.lane.b32.xlu0 %v564, 112
    %v2130 = vpop.permute.xlu0 %2129
    %2131 = vrot.lane.b32.xlu0 %v566, 112
    %v2132 = vpop.permute.xlu0 %2131
    %2133 = vrot.lane.b32.xlu0 %v569, 112
    %v2134 = vpop.permute.xlu0 %2133
    %2135 = vrot.lane.b32.xlu0 %v571, 112
    %v2136 = vpop.permute.xlu0 %2135
    %2137 = vrot.lane.b32.xlu0 %v821, 112
    %v2138 = vpop.permute.xlu0 %2137
    %2139 = vrot.lane.b32.xlu0 %v823, 112
    %v2140 = vpop.permute.xlu0 %2139
    %2141 = vrot.lane.b32.xlu0 %v847, 112
    %v2142 = vpop.permute.xlu0 %2141
    %2143 = vrot.lane.b32.xlu0 %v849, 112
    %v2144 = vpop.permute.xlu0 %2143
    %2145 = vrot.lane.b32.xlu0 %v584, 112
    %v2146 = vpop.permute.xlu0 %2145
    %2147 = vrot.lane.b32.xlu0 %v586, 112
    %v2148 = vpop.permute.xlu0 %2147
    %2149 = vrot.lane.b32.xlu0 %v589, 112
    %v2150 = vpop.permute.xlu0 %2149
    %2151 = vrot.lane.b32.xlu0 %v591, 112
    %v2152 = vpop.permute.xlu0 %2151
    %2153 = vrot.lane.b32.xlu0 %v594, 112
    %v2154 = vpop.permute.xlu0 %2153
    %2155 = vrot.lane.b32.xlu0 %v596, 112
    %v2156 = vpop.permute.xlu0 %2155
    %2157 = vrot.lane.b32.xlu0 %v599, 112
    %v2158 = vpop.permute.xlu0 %2157
    %2159 = vrot.lane.b32.xlu0 %v601, 112
    %v2160 = vpop.permute.xlu0 %2159
    %2161 = vrot.lane.b32.xlu0 %v604, 112
    %v2162 = vpop.permute.xlu0 %2161
    %2163 = vrot.lane.b32.xlu0 %v606, 112
    %v2164 = vpop.permute.xlu0 %2163
    %2165 = vrot.lane.b32.xlu0 %v609, 112
    %v2166 = vpop.permute.xlu0 %2165
    %2167 = vrot.lane.b32.xlu0 %v611, 112
    %v2168 = vpop.permute.xlu0 %2167
    %2169 = vrot.lane.b32.xlu0 %v614, 112
    %v2170 = vpop.permute.xlu0 %2169
    %2171 = vrot.lane.b32.xlu0 %v616, 112
    %v2172 = vpop.permute.xlu0 %2171
    %2173 = vrot.lane.b32.xlu0 %v619, 112
    %v2174 = vpop.permute.xlu0 %2173
    %2175 = vrot.lane.b32.xlu0 %v621, 112
    %v2176 = vpop.permute.xlu0 %2175
    %2177 = vrot.lane.b32.xlu0 %v624, 112
    %v2178 = vpop.permute.xlu0 %2177
    %2179 = vrot.lane.b32.xlu0 %v626, 112
    %v2180 = vpop.permute.xlu0 %2179
    %2181 = vrot.lane.b32.xlu0 %v629, 112
    %v2182 = vpop.permute.xlu0 %2181
    %2183 = vrot.lane.b32.xlu0 %v631, 112
    %v2184 = vpop.permute.xlu0 %2183
    %2185 = vrot.lane.b32.xlu0 %v634, 112
    %v2186 = vpop.permute.xlu0 %2185
    %2187 = vrot.lane.b32.xlu0 %v636, 112
    %v2188 = vpop.permute.xlu0 %2187
    %2189 = vrot.lane.b32.xlu0 %v639, 112
    %v2190 = vpop.permute.xlu0 %2189
    %2191 = vrot.lane.b32.xlu0 %v641, 112
    %v2192 = vpop.permute.xlu0 %2191
    %2193 = vrot.lane.b32.xlu0 %v644, 112
    %v2194 = vpop.permute.xlu0 %2193
    %2195 = vrot.lane.b32.xlu0 %v646, 112
    %v2196 = vpop.permute.xlu0 %2195
    %2197 = vrot.lane.b32.xlu0 %v649, 112
    %v2198 = vpop.permute.xlu0 %2197
    %2199 = vrot.lane.b32.xlu0 %v651, 112
    %v2200 = vpop.permute.xlu0 %2199
    %2201 = vrot.lane.b32.xlu0 %v826, 112
    %v2202 = vpop.permute.xlu0 %2201
    %2203 = vrot.lane.b32.xlu0 %v828, 112
    %v2204 = vpop.permute.xlu0 %2203
    %2205 = vrot.lane.b32.xlu0 %v852, 112
    %v2206 = vpop.permute.xlu0 %2205
    %2207 = vrot.lane.b32.xlu0 %v854, 112
    %v2208 = vpop.permute.xlu0 %2207
    %v2273 = vsel %vm33, %v287, %v930
    %v2274 = vsel %vm33, %v288, %v932
    %v2275 = vsel %vm33, %v290, %v934
    %v2276 = vsel %vm33, %v291, %v936
    %v2277 = vsel %vm33, %v293, %v938
    %v2278 = vsel %vm33, %v294, %v940
    %v2279 = vsel %vm33, %v296, %v942
    %v2280 = vsel %vm33, %v297, %v944
    %v2281 = vsel %vm33, %v299, %v946
    %v2282 = vsel %vm33, %v300, %v948
    %v2283 = vsel %vm33, %v302, %v950
    %v2284 = vsel %vm33, %v303, %v952
    %v2285 = vsel %vm33, %v305, %v954
    %v2286 = vsel %vm33, %v306, %v956
    %v2287 = vsel %vm33, %v308, %v958
    %v2288 = vsel %vm33, %v309, %v960
    %v2289 = vsel %vm33, %v311, %v962
    %v2290 = vsel %vm33, %v312, %v964
    %v2291 = vsel %vm33, %v314, %v966
    %v2292 = vsel %vm33, %v315, %v968
    %v2293 = vsel %vm33, %v317, %v970
    %v2294 = vsel %vm33, %v318, %v972
    %v2295 = vsel %vm33, %v320, %v974
    %v2296 = vsel %vm33, %v321, %v976
    %v2297 = vsel %vm33, %v323, %v978
    %v2298 = vsel %vm33, %v324, %v980
    %v2299 = vsel %vm33, %v326, %v982
    %v2300 = vsel %vm33, %v327, %v984
    %v2301 = vsel %vm33, %v329, %v986
    %v2302 = vsel %vm33, %v330, %v988
    %v2303 = vsel %vm33, %v332, %v990
    %v2304 = vsel %vm33, %v333, %v992
    %v2305 = vsel %vm33, %v341, %v994
    %v2306 = vsel %vm33, %v342, %v996
    %v2307 = vsel %vm33, %v344, %v998
    %v2308 = vsel %vm33, %v345, %v1000
    %v2309 = vsel %vm33, %v347, %v1002
    %v2310 = vsel %vm33, %v348, %v1004
    %v2311 = vsel %vm33, %v350, %v1006
    %v2312 = vsel %vm33, %v351, %v1008
    %v2313 = vsel %vm33, %v353, %v1010
    %v2314 = vsel %vm33, %v354, %v1012
    %v2315 = vsel %vm33, %v356, %v1014
    %v2316 = vsel %vm33, %v357, %v1016
    %v2317 = vsel %vm33, %v359, %v1018
    %v2318 = vsel %vm33, %v360, %v1020
    %v2319 = vsel %vm33, %v362, %v1022
    %v2320 = vsel %vm33, %v363, %v1024
    %v2321 = vsel %vm33, %v365, %v1026
    %v2322 = vsel %vm33, %v366, %v1028
    %v2323 = vsel %vm33, %v368, %v1030
    %v2324 = vsel %vm33, %v369, %v1032
    %v2325 = vsel %vm33, %v371, %v1034
    %v2326 = vsel %vm33, %v372, %v1036
    %v2327 = vsel %vm33, %v374, %v1038
    %v2328 = vsel %vm33, %v375, %v1040
    %v2329 = vsel %vm33, %v377, %v1042
    %v2330 = vsel %vm33, %v378, %v1044
    %v2331 = vsel %vm33, %v380, %v1046
    %v2332 = vsel %vm33, %v381, %v1048
    %v2333 = vsel %vm33, %v383, %v1050
    %v2334 = vsel %vm33, %v384, %v1052
    %v2335 = vsel %vm33, %v386, %v1054
    %v2336 = vsel %vm33, %v387, %v1056
    %vm2337 = vcmask 261120
    %v2338 = vsel %vm2337, %v2273, %v1122
    %v2339 = vsel %vm2337, %v2274, %v1124
    %v2340 = vsel %vm2337, %v2275, %v1126
    %v2341 = vsel %vm2337, %v2276, %v1128
    %v2342 = vsel %vm2337, %v2277, %v1130
    %v2343 = vsel %vm2337, %v2278, %v1132
    %v2344 = vsel %vm2337, %v2279, %v1134
    %v2345 = vsel %vm2337, %v2280, %v1136
    %v2346 = vsel %vm2337, %v2281, %v1138
    %v2347 = vsel %vm2337, %v2282, %v1140
    %v2348 = vsel %vm2337, %v2283, %v1142
    %v2349 = vsel %vm2337, %v2284, %v1144
    %v2350 = vsel %vm2337, %v2285, %v1146
    %v2351 = vsel %vm2337, %v2286, %v1148
    %v2352 = vsel %vm2337, %v2287, %v1150
    %v2353 = vsel %vm2337, %v2288, %v1152
    %v2354 = vsel %vm2337, %v2289, %v1154
    %v2355 = vsel %vm2337, %v2290, %v1156
    %v2356 = vsel %vm2337, %v2291, %v1158
    %v2357 = vsel %vm2337, %v2292, %v1160
    %v2358 = vsel %vm2337, %v2293, %v1162
    %v2359 = vsel %vm2337, %v2294, %v1164
    %v2360 = vsel %vm2337, %v2295, %v1166
    %v2361 = vsel %vm2337, %v2296, %v1168
    %v2362 = vsel %vm2337, %v2297, %v1170
    %v2363 = vsel %vm2337, %v2298, %v1172
    %v2364 = vsel %vm2337, %v2299, %v1174
    %v2365 = vsel %vm2337, %v2300, %v1176
    %v2366 = vsel %vm2337, %v2301, %v1178
    %v2367 = vsel %vm2337, %v2302, %v1180
    %v2368 = vsel %vm2337, %v2303, %v1182
    %v2369 = vsel %vm2337, %v2304, %v1184
    %v2370 = vsel %vm2337, %v2305, %v1186
    %v2371 = vsel %vm2337, %v2306, %v1188
    %v2372 = vsel %vm2337, %v2307, %v1190
    %v2373 = vsel %vm2337, %v2308, %v1192
    %v2374 = vsel %vm2337, %v2309, %v1194
    %v2375 = vsel %vm2337, %v2310, %v1196
    %v2376 = vsel %vm2337, %v2311, %v1198
    %v2377 = vsel %vm2337, %v2312, %v1200
    %v2378 = vsel %vm2337, %v2313, %v1202
    %v2379 = vsel %vm2337, %v2314, %v1204
    %v2380 = vsel %vm2337, %v2315, %v1206
    %v2381 = vsel %vm2337, %v2316, %v1208
    %v2382 = vsel %vm2337, %v2317, %v1210
    %v2383 = vsel %vm2337, %v2318, %v1212
    %v2384 = vsel %vm2337, %v2319, %v1214
    %v2385 = vsel %vm2337, %v2320, %v1216
    %v2386 = vsel %vm2337, %v2321, %v1218
    %v2387 = vsel %vm2337, %v2322, %v1220
    %v2388 = vsel %vm2337, %v2323, %v1222
    %v2389 = vsel %vm2337, %v2324, %v1224
    %v2390 = vsel %vm2337, %v2325, %v1226
    %v2391 = vsel %vm2337, %v2326, %v1228
    %v2392 = vsel %vm2337, %v2327, %v1230
    %v2393 = vsel %vm2337, %v2328, %v1232
    %v2394 = vsel %vm2337, %v2329, %v1234
    %v2395 = vsel %vm2337, %v2330, %v1236
    %v2396 = vsel %vm2337, %v2331, %v1238
    %v2397 = vsel %vm2337, %v2332, %v1240
    %v2398 = vsel %vm2337, %v2333, %v1242
    %v2399 = vsel %vm2337, %v2334, %v1244
    %v2400 = vsel %vm2337, %v2335, %v1246
    %v2401 = vsel %vm2337, %v2336, %v1248
    %vm2402 = vcmask 392192
    %v2403 = vsel %vm2402, %v2338, %v1314
    %v2404 = vsel %vm2402, %v2339, %v1316
    %v2405 = vsel %vm2402, %v2340, %v1318
    %v2406 = vsel %vm2402, %v2341, %v1320
    %v2407 = vsel %vm2402, %v2342, %v1322
    %v2408 = vsel %vm2402, %v2343, %v1324
    %v2409 = vsel %vm2402, %v2344, %v1326
    %v2410 = vsel %vm2402, %v2345, %v1328
    %v2411 = vsel %vm2402, %v2346, %v1330
    %v2412 = vsel %vm2402, %v2347, %v1332
    %v2413 = vsel %vm2402, %v2348, %v1334
    %v2414 = vsel %vm2402, %v2349, %v1336
    %v2415 = vsel %vm2402, %v2350, %v1338
    %v2416 = vsel %vm2402, %v2351, %v1340
    %v2417 = vsel %vm2402, %v2352, %v1342
    %v2418 = vsel %vm2402, %v2353, %v1344
    %v2419 = vsel %vm2402, %v2354, %v1346
    %v2420 = vsel %vm2402, %v2355, %v1348
    %v2421 = vsel %vm2402, %v2356, %v1350
    %v2422 = vsel %vm2402, %v2357, %v1352
    %v2423 = vsel %vm2402, %v2358, %v1354
    %v2424 = vsel %vm2402, %v2359, %v1356
    %v2425 = vsel %vm2402, %v2360, %v1358
    %v2426 = vsel %vm2402, %v2361, %v1360
    %v2427 = vsel %vm2402, %v2362, %v1362
    %v2428 = vsel %vm2402, %v2363, %v1364
    %v2429 = vsel %vm2402, %v2364, %v1366
    %v2430 = vsel %vm2402, %v2365, %v1368
    %v2431 = vsel %vm2402, %v2366, %v1370
    %v2432 = vsel %vm2402, %v2367, %v1372
    %v2433 = vsel %vm2402, %v2368, %v1374
    %v2434 = vsel %vm2402, %v2369, %v1376
    %v2435 = vsel %vm2402, %v2370, %v1378
    %v2436 = vsel %vm2402, %v2371, %v1380
    %v2437 = vsel %vm2402, %v2372, %v1382
    %v2438 = vsel %vm2402, %v2373, %v1384
    %v2439 = vsel %vm2402, %v2374, %v1386
    %v2440 = vsel %vm2402, %v2375, %v1388
    %v2441 = vsel %vm2402, %v2376, %v1390
    %v2442 = vsel %vm2402, %v2377, %v1392
    %v2443 = vsel %vm2402, %v2378, %v1394
    %v2444 = vsel %vm2402, %v2379, %v1396
    %v2445 = vsel %vm2402, %v2380, %v1398
    %v2446 = vsel %vm2402, %v2381, %v1400
    %v2447 = vsel %vm2402, %v2382, %v1402
    %v2448 = vsel %vm2402, %v2383, %v1404
    %v2449 = vsel %vm2402, %v2384, %v1406
    %v2450 = vsel %vm2402, %v2385, %v1408
    %v2451 = vsel %vm2402, %v2386, %v1410
    %v2452 = vsel %vm2402, %v2387, %v1412
    %v2453 = vsel %vm2402, %v2388, %v1414
    %v2454 = vsel %vm2402, %v2389, %v1416
    %v2455 = vsel %vm2402, %v2390, %v1418
    %v2456 = vsel %vm2402, %v2391, %v1420
    %v2457 = vsel %vm2402, %v2392, %v1422
    %v2458 = vsel %vm2402, %v2393, %v1424
    %v2459 = vsel %vm2402, %v2394, %v1426
    %v2460 = vsel %vm2402, %v2395, %v1428
    %v2461 = vsel %vm2402, %v2396, %v1430
    %v2462 = vsel %vm2402, %v2397, %v1432
    %v2463 = vsel %vm2402, %v2398, %v1434
    %v2464 = vsel %vm2402, %v2399, %v1436
    %v2465 = vsel %vm2402, %v2400, %v1438
    %v2466 = vsel %vm2402, %v2401, %v1440
    %vm2467 = vcmask 523264
    %v2468 = vsel %vm2467, %v2403, %v1506
    %v2469 = vsel %vm2467, %v2404, %v1508
    %v2470 = vsel %vm2467, %v2405, %v1510
    %v2471 = vsel %vm2467, %v2406, %v1512
    %v2472 = vsel %vm2467, %v2407, %v1514
    %v2473 = vsel %vm2467, %v2408, %v1516
    %v2474 = vsel %vm2467, %v2409, %v1518
    %v2475 = vsel %vm2467, %v2410, %v1520
    %v2476 = vsel %vm2467, %v2411, %v1522
    %v2477 = vsel %vm2467, %v2412, %v1524
    %v2478 = vsel %vm2467, %v2413, %v1526
    %v2479 = vsel %vm2467, %v2414, %v1528
    %v2480 = vsel %vm2467, %v2415, %v1530
    %v2481 = vsel %vm2467, %v2416, %v1532
    %v2482 = vsel %vm2467, %v2417, %v1534
    %v2483 = vsel %vm2467, %v2418, %v1536
    %v2484 = vsel %vm2467, %v2419, %v1538
    %v2485 = vsel %vm2467, %v2420, %v1540
    %v2486 = vsel %vm2467, %v2421, %v1542
    %v2487 = vsel %vm2467, %v2422, %v1544
    %v2488 = vsel %vm2467, %v2423, %v1546
    %v2489 = vsel %vm2467, %v2424, %v1548
    %v2490 = vsel %vm2467, %v2425, %v1550
    %v2491 = vsel %vm2467, %v2426, %v1552
    %v2492 = vsel %vm2467, %v2427, %v1554
    %v2493 = vsel %vm2467, %v2428, %v1556
    %v2494 = vsel %vm2467, %v2429, %v1558
    %v2495 = vsel %vm2467, %v2430, %v1560
    %v2496 = vsel %vm2467, %v2431, %v1562
    %v2497 = vsel %vm2467, %v2432, %v1564
    %v2498 = vsel %vm2467, %v2433, %v1566
    %v2499 = vsel %vm2467, %v2434, %v1568
    %v2500 = vsel %vm2467, %v2435, %v1570
    %v2501 = vsel %vm2467, %v2436, %v1572
    %v2502 = vsel %vm2467, %v2437, %v1574
    %v2503 = vsel %vm2467, %v2438, %v1576
    %v2504 = vsel %vm2467, %v2439, %v1578
    %v2505 = vsel %vm2467, %v2440, %v1580
    %v2506 = vsel %vm2467, %v2441, %v1582
    %v2507 = vsel %vm2467, %v2442, %v1584
    %v2508 = vsel %vm2467, %v2443, %v1586
    %v2509 = vsel %vm2467, %v2444, %v1588
    %v2510 = vsel %vm2467, %v2445, %v1590
    %v2511 = vsel %vm2467, %v2446, %v1592
    %v2512 = vsel %vm2467, %v2447, %v1594
    %v2513 = vsel %vm2467, %v2448, %v1596
    %v2514 = vsel %vm2467, %v2449, %v1598
    %v2515 = vsel %vm2467, %v2450, %v1600
    %v2516 = vsel %vm2467, %v2451, %v1602
    %v2517 = vsel %vm2467, %v2452, %v1604
    %v2518 = vsel %vm2467, %v2453, %v1606
    %v2519 = vsel %vm2467, %v2454, %v1608
    %v2520 = vsel %vm2467, %v2455, %v1610
    %v2521 = vsel %vm2467, %v2456, %v1612
    %v2522 = vsel %vm2467, %v2457, %v1614
    %v2523 = vsel %vm2467, %v2458, %v1616
    %v2524 = vsel %vm2467, %v2459, %v1618
    %v2525 = vsel %vm2467, %v2460, %v1620
    %v2526 = vsel %vm2467, %v2461, %v1622
    %v2527 = vsel %vm2467, %v2462, %v1624
    %v2528 = vsel %vm2467, %v2463, %v1626
    %v2529 = vsel %vm2467, %v2464, %v1628
    %v2530 = vsel %vm2467, %v2465, %v1630
    %v2531 = vsel %vm2467, %v2466, %v1632
    %vm2532 = vcmask 654336
    %v2533 = vsel %vm2532, %v2468, %v1698
    %v2534 = vsel %vm2532, %v2469, %v1700
    %v2535 = vsel %vm2532, %v2470, %v1702
    %v2536 = vsel %vm2532, %v2471, %v1704
    %v2537 = vsel %vm2532, %v2472, %v1706
    %v2538 = vsel %vm2532, %v2473, %v1708
    %v2539 = vsel %vm2532, %v2474, %v1710
    %v2540 = vsel %vm2532, %v2475, %v1712
    %v2541 = vsel %vm2532, %v2476, %v1714
    %v2542 = vsel %vm2532, %v2477, %v1716
    %v2543 = vsel %vm2532, %v2478, %v1718
    %v2544 = vsel %vm2532, %v2479, %v1720
    %v2545 = vsel %vm2532, %v2480, %v1722
    %v2546 = vsel %vm2532, %v2481, %v1724
    %v2547 = vsel %vm2532, %v2482, %v1726
    %v2548 = vsel %vm2532, %v2483, %v1728
    %v2549 = vsel %vm2532, %v2484, %v1730
    %v2550 = vsel %vm2532, %v2485, %v1732
    %v2551 = vsel %vm2532, %v2486, %v1734
    %v2552 = vsel %vm2532, %v2487, %v1736
    %v2553 = vsel %vm2532, %v2488, %v1738
    %v2554 = vsel %vm2532, %v2489, %v1740
    %v2555 = vsel %vm2532, %v2490, %v1742
    %v2556 = vsel %vm2532, %v2491, %v1744
    %v2557 = vsel %vm2532, %v2492, %v1746
    %v2558 = vsel %vm2532, %v2493, %v1748
    %v2559 = vsel %vm2532, %v2494, %v1750
    %v2560 = vsel %vm2532, %v2495, %v1752
    %v2561 = vsel %vm2532, %v2496, %v1754
    %v2562 = vsel %vm2532, %v2497, %v1756
    %v2563 = vsel %vm2532, %v2498, %v1758
    %v2564 = vsel %vm2532, %v2499, %v1760
    %v2565 = vsel %vm2532, %v2500, %v1762
    %v2566 = vsel %vm2532, %v2501, %v1764
    %v2567 = vsel %vm2532, %v2502, %v1766
    %v2568 = vsel %vm2532, %v2503, %v1768
    %v2569 = vsel %vm2532, %v2504, %v1770
    %v2570 = vsel %vm2532, %v2505, %v1772
    %v2571 = vsel %vm2532, %v2506, %v1774
    %v2572 = vsel %vm2532, %v2507, %v1776
    %v2573 = vsel %vm2532, %v2508, %v1778
    %v2574 = vsel %vm2532, %v2509, %v1780
    %v2575 = vsel %vm2532, %v2510, %v1782
    %v2576 = vsel %vm2532, %v2511, %v1784
    %v2577 = vsel %vm2532, %v2512, %v1786
    %v2578 = vsel %vm2532, %v2513, %v1788
    %v2579 = vsel %vm2532, %v2514, %v1790
    %v2580 = vsel %vm2532, %v2515, %v1792
    %v2581 = vsel %vm2532, %v2516, %v1794
    %v2582 = vsel %vm2532, %v2517, %v1796
    %v2583 = vsel %vm2532, %v2518, %v1798
    %v2584 = vsel %vm2532, %v2519, %v1800
    %v2585 = vsel %vm2532, %v2520, %v1802
    %v2586 = vsel %vm2532, %v2521, %v1804
    %v2587 = vsel %vm2532, %v2522, %v1806
    %v2588 = vsel %vm2532, %v2523, %v1808
    %v2589 = vsel %vm2532, %v2524, %v1810
    %v2590 = vsel %vm2532, %v2525, %v1812
    %v2591 = vsel %vm2532, %v2526, %v1814
    %v2592 = vsel %vm2532, %v2527, %v1816
    %v2593 = vsel %vm2532, %v2528, %v1818
    %v2594 = vsel %vm2532, %v2529, %v1820
    %v2595 = vsel %vm2532, %v2530, %v1822
    %v2596 = vsel %vm2532, %v2531, %v1824
    %vm2597 = vcmask 785408
    %v2598 = vsel %vm2597, %v2533, %v1890
    %v2599 = vsel %vm2597, %v2534, %v1892
    %v2600 = vsel %vm2597, %v2535, %v1894
    %v2601 = vsel %vm2597, %v2536, %v1896
    %v2602 = vsel %vm2597, %v2537, %v1898
    %v2603 = vsel %vm2597, %v2538, %v1900
    %v2604 = vsel %vm2597, %v2539, %v1902
    %v2605 = vsel %vm2597, %v2540, %v1904
    %v2606 = vsel %vm2597, %v2541, %v1906
    %v2607 = vsel %vm2597, %v2542, %v1908
    %v2608 = vsel %vm2597, %v2543, %v1910
    %v2609 = vsel %vm2597, %v2544, %v1912
    %v2610 = vsel %vm2597, %v2545, %v1914
    %v2611 = vsel %vm2597, %v2546, %v1916
    %v2612 = vsel %vm2597, %v2547, %v1918
    %v2613 = vsel %vm2597, %v2548, %v1920
    %v2614 = vsel %vm2597, %v2549, %v1922
    %v2615 = vsel %vm2597, %v2550, %v1924
    %v2616 = vsel %vm2597, %v2551, %v1926
    %v2617 = vsel %vm2597, %v2552, %v1928
    %v2618 = vsel %vm2597, %v2553, %v1930
    %v2619 = vsel %vm2597, %v2554, %v1932
    %v2620 = vsel %vm2597, %v2555, %v1934
    %v2621 = vsel %vm2597, %v2556, %v1936
    %v2622 = vsel %vm2597, %v2557, %v1938
    %v2623 = vsel %vm2597, %v2558, %v1940
    %v2624 = vsel %vm2597, %v2559, %v1942
    %v2625 = vsel %vm2597, %v2560, %v1944
    %v2626 = vsel %vm2597, %v2561, %v1946
    %v2627 = vsel %vm2597, %v2562, %v1948
    %v2628 = vsel %vm2597, %v2563, %v1950
    %v2629 = vsel %vm2597, %v2564, %v1952
    %v2630 = vsel %vm2597, %v2565, %v1954
    %v2631 = vsel %vm2597, %v2566, %v1956
    %v2632 = vsel %vm2597, %v2567, %v1958
    %v2633 = vsel %vm2597, %v2568, %v1960
    %v2634 = vsel %vm2597, %v2569, %v1962
    %v2635 = vsel %vm2597, %v2570, %v1964
    %v2636 = vsel %vm2597, %v2571, %v1966
    %v2637 = vsel %vm2597, %v2572, %v1968
    %v2638 = vsel %vm2597, %v2573, %v1970
    %v2639 = vsel %vm2597, %v2574, %v1972
    %v2640 = vsel %vm2597, %v2575, %v1974
    %v2641 = vsel %vm2597, %v2576, %v1976
    %v2642 = vsel %vm2597, %v2577, %v1978
    %v2643 = vsel %vm2597, %v2578, %v1980
    %v2644 = vsel %vm2597, %v2579, %v1982
    %v2645 = vsel %vm2597, %v2580, %v1984
    %v2646 = vsel %vm2597, %v2581, %v1986
    %v2647 = vsel %vm2597, %v2582, %v1988
    %v2648 = vsel %vm2597, %v2583, %v1990
    %v2649 = vsel %vm2597, %v2584, %v1992
    %v2650 = vsel %vm2597, %v2585, %v1994
    %v2651 = vsel %vm2597, %v2586, %v1996
    %v2652 = vsel %vm2597, %v2587, %v1998
    %v2653 = vsel %vm2597, %v2588, %v2000
    %v2654 = vsel %vm2597, %v2589, %v2002
    %v2655 = vsel %vm2597, %v2590, %v2004
    %v2656 = vsel %vm2597, %v2591, %v2006
    %v2657 = vsel %vm2597, %v2592, %v2008
    %v2658 = vsel %vm2597, %v2593, %v2010
    %v2659 = vsel %vm2597, %v2594, %v2012
    %v2660 = vsel %vm2597, %v2595, %v2014
    %v2661 = vsel %vm2597, %v2596, %v2016
    %vm2662 = vcmask 916480
    %v2663 = vsel %vm2662, %v2598, %v2082
    %v2664 = vsel %vm2662, %v2599, %v2084
    %v2665 = vsel %vm2662, %v2600, %v2086
    %v2666 = vsel %vm2662, %v2601, %v2088
    %v2667 = vsel %vm2662, %v2602, %v2090
    %v2668 = vsel %vm2662, %v2603, %v2092
    %v2669 = vsel %vm2662, %v2604, %v2094
    %v2670 = vsel %vm2662, %v2605, %v2096
    %v2671 = vsel %vm2662, %v2606, %v2098
    %v2672 = vsel %vm2662, %v2607, %v2100
    %v2673 = vsel %vm2662, %v2608, %v2102
    %v2674 = vsel %vm2662, %v2609, %v2104
    %v2675 = vsel %vm2662, %v2610, %v2106
    %v2676 = vsel %vm2662, %v2611, %v2108
    %v2677 = vsel %vm2662, %v2612, %v2110
    %v2678 = vsel %vm2662, %v2613, %v2112
    %v2679 = vsel %vm2662, %v2614, %v2114
    %v2680 = vsel %vm2662, %v2615, %v2116
    %v2681 = vsel %vm2662, %v2616, %v2118
    %v2682 = vsel %vm2662, %v2617, %v2120
    %v2683 = vsel %vm2662, %v2618, %v2122
    %v2684 = vsel %vm2662, %v2619, %v2124
    %v2685 = vsel %vm2662, %v2620, %v2126
    %v2686 = vsel %vm2662, %v2621, %v2128
    %v2687 = vsel %vm2662, %v2622, %v2130
    %v2688 = vsel %vm2662, %v2623, %v2132
    %v2689 = vsel %vm2662, %v2624, %v2134
    %v2690 = vsel %vm2662, %v2625, %v2136
    %v2691 = vsel %vm2662, %v2626, %v2138
    %v2692 = vsel %vm2662, %v2627, %v2140
    %v2693 = vsel %vm2662, %v2628, %v2142
    %v2694 = vsel %vm2662, %v2629, %v2144
    %v2695 = vsel %vm2662, %v2630, %v2146
    %v2696 = vsel %vm2662, %v2631, %v2148
    %v2697 = vsel %vm2662, %v2632, %v2150
    %v2698 = vsel %vm2662, %v2633, %v2152
    %v2699 = vsel %vm2662, %v2634, %v2154
    %v2700 = vsel %vm2662, %v2635, %v2156
    %v2701 = vsel %vm2662, %v2636, %v2158
    %v2702 = vsel %vm2662, %v2637, %v2160
    %v2703 = vsel %vm2662, %v2638, %v2162
    %v2704 = vsel %vm2662, %v2639, %v2164
    %v2705 = vsel %vm2662, %v2640, %v2166
    %v2706 = vsel %vm2662, %v2641, %v2168
    %v2707 = vsel %vm2662, %v2642, %v2170
    %v2708 = vsel %vm2662, %v2643, %v2172
    %v2709 = vsel %vm2662, %v2644, %v2174
    %v2710 = vsel %vm2662, %v2645, %v2176
    %v2711 = vsel %vm2662, %v2646, %v2178
    %v2712 = vsel %vm2662, %v2647, %v2180
    %v2713 = vsel %vm2662, %v2648, %v2182
    %v2714 = vsel %vm2662, %v2649, %v2184
    %v2715 = vsel %vm2662, %v2650, %v2186
    %v2716 = vsel %vm2662, %v2651, %v2188
    %v2717 = vsel %vm2662, %v2652, %v2190
    %v2718 = vsel %vm2662, %v2653, %v2192
    %v2719 = vsel %vm2662, %v2654, %v2194
    %v2720 = vsel %vm2662, %v2655, %v2196
    %v2721 = vsel %vm2662, %v2656, %v2198
    %v2722 = vsel %vm2662, %v2657, %v2200
    %v2723 = vsel %vm2662, %v2658, %v2202
    %v2724 = vsel %vm2662, %v2659, %v2204
    %v2725 = vsel %vm2662, %v2660, %v2206
    %v2726 = vsel %vm2662, %v2661, %v2208
    %v2727 = vpack.c.bf16 %v2664, %v2663
    %v2728 = vpack.c.bf16 %v667, %v665
    %v2729 = vpack.c.bf16 %v2666, %v2665
    %v2730 = vpack.c.bf16 %v672, %v670
    %v2731 = vpack.c.bf16 %v2668, %v2667
    %v2732 = vpack.c.bf16 %v677, %v675
    %v2733 = vpack.c.bf16 %v2670, %v2669
    %v2734 = vpack.c.bf16 %v682, %v680
    %v2735 = vpack.c.bf16 %v2672, %v2671
    %v2736 = vpack.c.bf16 %v687, %v685
    %v2737 = vpack.c.bf16 %v2674, %v2673
    %v2738 = vpack.c.bf16 %v692, %v690
    %v2739 = vpack.c.bf16 %v2676, %v2675
    %v2740 = vpack.c.bf16 %v697, %v695
    %v2741 = vpack.c.bf16 %v2678, %v2677
    %v2742 = vpack.c.bf16 %v702, %v700
    %v2743 = vpack.c.bf16 %v2680, %v2679
    %v2744 = vpack.c.bf16 %v707, %v705
    %v2745 = vpack.c.bf16 %v2682, %v2681
    %v2746 = vpack.c.bf16 %v712, %v710
    %v2747 = vpack.c.bf16 %v2684, %v2683
    %v2748 = vpack.c.bf16 %v717, %v715
    %v2749 = vpack.c.bf16 %v2686, %v2685
    %v2750 = vpack.c.bf16 %v722, %v720
    %v2751 = vpack.c.bf16 %v2688, %v2687
    %v2752 = vpack.c.bf16 %v727, %v725
    %v2753 = vpack.c.bf16 %v2690, %v2689
    %v2754 = vpack.c.bf16 %v732, %v730
    %v2755 = vpack.c.bf16 %v2692, %v2691
    %v2756 = vpack.c.bf16 %v833, %v831
    %v2757 = vpack.c.bf16 %v2694, %v2693
    %v2758 = vpack.c.bf16 %v859, %v857
    %v2759 = vpack.c.bf16 %v2696, %v2695
    %v2760 = vpack.c.bf16 %v747, %v745
    %v2761 = vpack.c.bf16 %v2698, %v2697
    %v2762 = vpack.c.bf16 %v752, %v750
    %v2763 = vpack.c.bf16 %v2700, %v2699
    %v2764 = vpack.c.bf16 %v757, %v755
    %v2765 = vpack.c.bf16 %v2702, %v2701
    %v2766 = vpack.c.bf16 %v762, %v760
    %v2767 = vpack.c.bf16 %v2704, %v2703
    %v2768 = vpack.c.bf16 %v767, %v765
    %v2769 = vpack.c.bf16 %v2706, %v2705
    %v2770 = vpack.c.bf16 %v772, %v770
    %v2771 = vpack.c.bf16 %v2708, %v2707
    %v2772 = vpack.c.bf16 %v777, %v775
    %v2773 = vpack.c.bf16 %v2710, %v2709
    %v2774 = vpack.c.bf16 %v782, %v780
    %v2775 = vpack.c.bf16 %v2712, %v2711
    %v2776 = vpack.c.bf16 %v787, %v785
    %v2777 = vpack.c.bf16 %v2714, %v2713
    %v2778 = vpack.c.bf16 %v792, %v790
    %v2779 = vpack.c.bf16 %v2716, %v2715
    %v2780 = vpack.c.bf16 %v797, %v795
    %v2781 = vpack.c.bf16 %v2718, %v2717
    %v2782 = vpack.c.bf16 %v802, %v800
    %v2783 = vpack.c.bf16 %v2720, %v2719
    %v2784 = vpack.c.bf16 %v807, %v805
    %v2785 = vpack.c.bf16 %v2722, %v2721
    %v2786 = vpack.c.bf16 %v812, %v810
    %v2787 = vpack.c.bf16 %v2724, %v2723
    %v2788 = vpack.c.bf16 %v838, %v836
    %v2789 = vpack.c.bf16 %v2726, %v2725
    %v2790 = vpack.c.bf16 %v864, %v862
    %v2809 = vunpack.c.l.b16 %v186
    %v2810 = vunpack.c.l.b16 %v187
    %v2811 = vunpack.c.l.b16 %v188
    %v2812 = vunpack.c.l.b16 %v189
    %v2813 = vunpack.c.l.b16 %v190
    %v2814 = vunpack.c.l.b16 %v191
    %v2815 = vunpack.c.l.b16 %v192
    %v2816 = vunpack.c.l.b16 %v193
    %v2817 = vunpack.c.l.b16 %v194
    %v2818 = vunpack.c.l.b16 %v195
    %v2819 = vunpack.c.l.b16 %v196
    %v2820 = vunpack.c.l.b16 %v197
    %v2821 = vunpack.c.l.b16 %v198
    %v2822 = vunpack.c.l.b16 %v199
    %v2823 = vunpack.c.l.b16 %v200
    %v2824 = vunpack.c.l.b16 %v201
    %v2825 = vunpack.c.l.b16 %v202
    %v2826 = vunpack.c.l.b16 %v203
    %v2827 = vpack.c.b16 %v2810, %v2809
    %v2828 = vpack.c.b16 %v2812, %v2811
    %v2829 = vpack.c.b16 %v2814, %v2813
    %v2830 = vpack.c.b16 %v2816, %v2815
    %v2831 = vpack.c.b16 %v2818, %v2817
    %v2832 = vpack.c.b16 %v2820, %v2819
    %v2833 = vpack.c.b16 %v2822, %v2821
    %v2834 = vpack.c.b16 %v2824, %v2823
    %v2835 = vpack.c.b16 %v2826, %v2825
    %v2846 = vsel %vm33, %v2728, 0
    %v2849 = vsel %vm33, %v2730, 0
    %v2852 = vsel %vm33, %v2732, 0
    %v2855 = vsel %vm33, %v2734, 0
    %v2858 = vsel %vm33, %v2736, 0
    %v2861 = vsel %vm33, %v2738, 0
    %v2864 = vsel %vm33, %v2740, 0
    %v2867 = vsel %vm33, %v2742, 0
    %v2870 = vsel %vm33, %v2744, 0
    %v2873 = vsel %vm33, %v2746, 0
    %v2876 = vsel %vm33, %v2748, 0
    %v2879 = vsel %vm33, %v2750, 0
    %v2882 = vsel %vm33, %v2752, 0
    %v2885 = vsel %vm33, %v2754, 0
    %v2888 = vsel %vm33, %v2756, 0
    %v2891 = vsel %vm33, %v2758, 0
    %v2894 = vsel %vm33, %v2760, 0
    %v2897 = vsel %vm33, %v2762, 0
    %v2900 = vsel %vm33, %v2764, 0
    %v2903 = vsel %vm33, %v2766, 0
    %v2906 = vsel %vm33, %v2768, 0
    %v2909 = vsel %vm33, %v2770, 0
    %v2912 = vsel %vm33, %v2772, 0
    %v2915 = vsel %vm33, %v2774, 0
    %v2918 = vsel %vm33, %v2776, 0
    %v2921 = vsel %vm33, %v2778, 0
    %v2924 = vsel %vm33, %v2780, 0
    %v2927 = vsel %vm33, %v2782, 0
    %v2930 = vsel %vm33, %v2784, 0
    %v2933 = vsel %vm33, %v2786, 0
    %v2936 = vsel %vm33, %v2788, 0
    %v2939 = vsel %vm33, %v2790, 0
    %2941 = vmatprep.subr.bf16.mxu0 0
    %2942 = vmatpush1.bf16.msra.mxu0 %v2827
    %2943 = vmatprep.subr.bf16.mxu0 0
    %2944 = vmatpush1.bf16.msra.mxu0 %v2828
    %2945 = vmatprep.subr.bf16.mxu0 0
    %2946 = vmatpush1.bf16.msra.mxu0 %v2829
    %2947 = vmatprep.subr.bf16.mxu0 0
    %2948 = vmatpush1.bf16.msra.mxu0 %v2830
    %2949 = vmatprep.subr.bf16.mxu0 0
    %2950 = vmatpush1.bf16.msra.mxu0 %v2831
    %2951 = vmatprep.subr.bf16.mxu0 0
    %2952 = vmatpush1.bf16.msra.mxu0 %v2832
    %2953 = vmatprep.subr.bf16.mxu0 0
    %2954 = vmatpush1.bf16.msra.mxu0 %v2833
    %2955 = vmatprep.subr.bf16.mxu0 0
    %2956 = vmatpush1.bf16.msra.mxu0 %v2834
    %2957 = vmatprep.subr.bf16.mxu0 0
    %2958 = vmatpush1.bf16.msra.mxu0 %v2835
    %2959 = vmatprep.subr.bf16.mxu0 0
    %2960 = vmatpush1.bf16.msra.mxu0 0
    %2961 = vmatprep.subr.bf16.mxu0 0
    %2962 = vmatpush1.bf16.msra.mxu0 0
    %2963 = vmatprep.subr.bf16.mxu0 0
    %2964 = vmatpush1.bf16.msra.mxu0 0
    %2965 = vmatprep.subr.bf16.mxu0 0
    %2966 = vmatpush1.bf16.msra.mxu0 0
    %2967 = vmatprep.subr.bf16.mxu0 0
    %2968 = vmatpush1.bf16.msra.mxu0 0
    %2969 = vmatprep.subr.bf16.mxu0 0
    %2970 = vmatpush1.bf16.msra.mxu0 0
    %2971 = vmatprep.subr.bf16.mxu0 0
    %2972 = vmatpush1.bf16.msra.mxu0 0
    %2973 = vmatprep.mubr.bf16.mxu0 %v2846
    %2974 = vmatmul.mubr.bf16.gmra.mrb[0].mxu0 %v2727
    %v2975 = vpop.f32.mrb[0].mxu0
    %v2976 = vadd.f32 0.0, %v2975
    %v2977 = vpop.f32.mrb[0].mxu0
    %v2978 = vpop.f32.mrb[0].mxu0
    %v2979 = vadd.f32 0.0, %v2978
    %v2980 = vpop.f32.mrb[0].mxu0
    %2981 = vmatprep.mubr.bf16.mxu0 %v2849
    %2982 = vmatmul.mubr.bf16.gmra.mrb[0].mxu0 %v2729
    %v2983 = vpop.f32.mrb[0].mxu0
    %v2984 = vadd.f32 0.0, %v2983
    %v2985 = vpop.f32.mrb[0].mxu0
    %v2986 = vpop.f32.mrb[0].mxu0
    %v2987 = vadd.f32 0.0, %v2986
    %v2988 = vpop.f32.mrb[0].mxu0
    %2989 = vmatprep.mubr.bf16.mxu0 %v2852
    %2990 = vmatmul.mubr.bf16.gmra.mrb[0].mxu0 %v2731
    %v2991 = vpop.f32.mrb[0].mxu0
    %v2992 = vadd.f32 0.0, %v2991
    %v2993 = vpop.f32.mrb[0].mxu0
    %v2994 = vpop.f32.mrb[0].mxu0
    %v2995 = vadd.f32 0.0, %v2994
    %v2996 = vpop.f32.mrb[0].mxu0
    %2997 = vmatprep.mubr.bf16.mxu0 %v2855
    %2998 = vmatmul.mubr.bf16.gmra.mrb[0].mxu0 %v2733
    %v2999 = vpop.f32.mrb[0].mxu0
    %v3000 = vadd.f32 0.0, %v2999
    %v3001 = vpop.f32.mrb[0].mxu0
    %v3002 = vpop.f32.mrb[0].mxu0
    %v3003 = vadd.f32 0.0, %v3002
    %v3004 = vpop.f32.mrb[0].mxu0
    %3005 = vmatprep.mubr.bf16.mxu0 %v2858
    %3006 = vmatmul.mubr.bf16.gmra.mrb[0].mxu0 %v2735
    %v3007 = vpop.f32.mrb[0].mxu0
    %v3008 = vadd.f32 0.0, %v3007
    %v3009 = vpop.f32.mrb[0].mxu0
    %v3010 = vpop.f32.mrb[0].mxu0
    %v3011 = vadd.f32 0.0, %v3010
    %v3012 = vpop.f32.mrb[0].mxu0
    %3013 = vmatprep.mubr.bf16.mxu0 %v2861
    %3014 = vmatmul.mubr.bf16.gmra.mrb[0].mxu0 %v2737
    %v3015 = vpop.f32.mrb[0].mxu0
    %v3016 = vadd.f32 0.0, %v3015
    %v3017 = vpop.f32.mrb[0].mxu0
    %v3018 = vpop.f32.mrb[0].mxu0
    %v3019 = vadd.f32 0.0, %v3018
    %v3020 = vpop.f32.mrb[0].mxu0
    %3021 = vmatprep.mubr.bf16.mxu0 %v2864
    %3022 = vmatmul.mubr.bf16.gmra.mrb[0].mxu0 %v2739
    %v3023 = vpop.f32.mrb[0].mxu0
    %v3024 = vadd.f32 0.0, %v3023
    %v3025 = vpop.f32.mrb[0].mxu0
    %v3026 = vpop.f32.mrb[0].mxu0
    %v3027 = vadd.f32 0.0, %v3026
    %v3028 = vpop.f32.mrb[0].mxu0
    %3029 = vmatprep.mubr.bf16.mxu0 %v2867
    %3030 = vmatmul.mubr.bf16.gmra.mrb[0].mxu0 %v2741
    %v3031 = vpop.f32.mrb[0].mxu0
    %v3032 = vadd.f32 0.0, %v3031
    %v3033 = vpop.f32.mrb[0].mxu0
    %v3034 = vpop.f32.mrb[0].mxu0
    %v3035 = vadd.f32 0.0, %v3034
    %v3036 = vpop.f32.mrb[0].mxu0
    %3037 = vmatprep.mubr.bf16.mxu0 %v2870
    %3038 = vmatmul.mubr.bf16.gmra.mrb[0].mxu0 %v2743
    %v3039 = vpop.f32.mrb[0].mxu0
    %v3040 = vadd.f32 0.0, %v3039
    %v3041 = vpop.f32.mrb[0].mxu0
    %v3042 = vpop.f32.mrb[0].mxu0
    %v3043 = vadd.f32 0.0, %v3042
    %v3044 = vpop.f32.mrb[0].mxu0
    %3045 = vmatprep.mubr.bf16.mxu0 %v2873
    %3046 = vmatmul.mubr.bf16.gmra.mrb[0].mxu0 %v2745
    %v3047 = vpop.f32.mrb[0].mxu0
    %v3048 = vadd.f32 0.0, %v3047
    %v3049 = vpop.f32.mrb[0].mxu0
    %v3050 = vpop.f32.mrb[0].mxu0
    %v3051 = vadd.f32 0.0, %v3050
    %v3052 = vpop.f32.mrb[0].mxu0
    %3053 = vmatprep.mubr.bf16.mxu0 %v2876
    %3054 = vmatmul.mubr.bf16.gmra.mrb[0].mxu0 %v2747
    %v3055 = vpop.f32.mrb[0].mxu0
    %v3056 = vadd.f32 0.0, %v3055
    %v3057 = vpop.f32.mrb[0].mxu0
    %v3058 = vpop.f32.mrb[0].mxu0
    %v3059 = vadd.f32 0.0, %v3058
    %v3060 = vpop.f32.mrb[0].mxu0
    %3061 = vmatprep.mubr.bf16.mxu0 %v2879
    %3062 = vmatmul.mubr.bf16.gmra.mrb[0].mxu0 %v2749
    %v3063 = vpop.f32.mrb[0].mxu0
    %v3064 = vadd.f32 0.0, %v3063
    %v3065 = vpop.f32.mrb[0].mxu0
    %v3066 = vpop.f32.mrb[0].mxu0
    %v3067 = vadd.f32 0.0, %v3066
    %v3068 = vpop.f32.mrb[0].mxu0
    %3069 = vmatprep.mubr.bf16.mxu0 %v2882
    %3070 = vmatmul.mubr.bf16.gmra.mrb[0].mxu0 %v2751
    %v3071 = vpop.f32.mrb[0].mxu0
    %v3072 = vadd.f32 0.0, %v3071
    %v3073 = vpop.f32.mrb[0].mxu0
    %v3074 = vpop.f32.mrb[0].mxu0
    %v3075 = vadd.f32 0.0, %v3074
    %v3076 = vpop.f32.mrb[0].mxu0
    %3077 = vmatprep.mubr.bf16.mxu0 %v2885
    %3078 = vmatmul.mubr.bf16.gmra.mrb[0].mxu0 %v2753
    %v3079 = vpop.f32.mrb[0].mxu0
    %v3080 = vadd.f32 0.0, %v3079
    %v3081 = vpop.f32.mrb[0].mxu0
    %v3082 = vpop.f32.mrb[0].mxu0
    %v3083 = vadd.f32 0.0, %v3082
    %v3084 = vpop.f32.mrb[0].mxu0
    %3085 = vmatprep.mubr.bf16.mxu0 %v2888
    %3086 = vmatmul.mubr.bf16.gmra.mrb[0].mxu0 %v2755
    %v3087 = vpop.f32.mrb[0].mxu0
    %v3088 = vadd.f32 0.0, %v3087
    %v3089 = vpop.f32.mrb[0].mxu0
    %v3090 = vpop.f32.mrb[0].mxu0
    %v3091 = vadd.f32 0.0, %v3090
    %v3092 = vpop.f32.mrb[0].mxu0
    %3093 = vmatprep.mubr.bf16.mxu0 %v2891
    %3094 = vmatmul.mubr.bf16.gmra.mrb[0].mxu0 %v2757
    %v3095 = vpop.f32.mrb[0].mxu0
    %v3096 = vadd.f32 0.0, %v3095
    %v3097 = vpop.f32.mrb[0].mxu0
    %v3098 = vpop.f32.mrb[0].mxu0
    %v3099 = vadd.f32 0.0, %v3098
    %v3100 = vpop.f32.mrb[0].mxu0
    %3101 = vmatprep.mubr.bf16.mxu0 %v2894
    %3102 = vmatmul.mubr.bf16.gmra.mrb[0].mxu0 %v2759
    %v3103 = vpop.f32.mrb[0].mxu0
    %v3104 = vadd.f32 0.0, %v3103
    %v3105 = vpop.f32.mrb[0].mxu0
    %v3106 = vpop.f32.mrb[0].mxu0
    %v3107 = vadd.f32 0.0, %v3106
    %v3108 = vpop.f32.mrb[0].mxu0
    %3109 = vmatprep.mubr.bf16.mxu0 %v2897
    %3110 = vmatmul.mubr.bf16.gmra.mrb[0].mxu0 %v2761
    %v3111 = vpop.f32.mrb[0].mxu0
    %v3112 = vadd.f32 0.0, %v3111
    %v3113 = vpop.f32.mrb[0].mxu0
    %v3114 = vpop.f32.mrb[0].mxu0
    %v3115 = vadd.f32 0.0, %v3114
    %v3116 = vpop.f32.mrb[0].mxu0
    %3117 = vmatprep.mubr.bf16.mxu0 %v2900
    %3118 = vmatmul.mubr.bf16.gmra.mrb[0].mxu0 %v2763
    %v3119 = vpop.f32.mrb[0].mxu0
    %v3120 = vadd.f32 0.0, %v3119
    %v3121 = vpop.f32.mrb[0].mxu0
    %v3122 = vpop.f32.mrb[0].mxu0
    %v3123 = vadd.f32 0.0, %v3122
    %v3124 = vpop.f32.mrb[0].mxu0
    %3125 = vmatprep.mubr.bf16.mxu0 %v2903
    %3126 = vmatmul.mubr.bf16.gmra.mrb[0].mxu0 %v2765
    %v3127 = vpop.f32.mrb[0].mxu0
    %v3128 = vadd.f32 0.0, %v3127
    %v3129 = vpop.f32.mrb[0].mxu0
    %v3130 = vpop.f32.mrb[0].mxu0
    %v3131 = vadd.f32 0.0, %v3130
    %v3132 = vpop.f32.mrb[0].mxu0
    %3133 = vmatprep.mubr.bf16.mxu0 %v2906
    %3134 = vmatmul.mubr.bf16.gmra.mrb[0].mxu0 %v2767
    %v3135 = vpop.f32.mrb[0].mxu0
    %v3136 = vadd.f32 0.0, %v3135
    %v3137 = vpop.f32.mrb[0].mxu0
    %v3138 = vpop.f32.mrb[0].mxu0
    %v3139 = vadd.f32 0.0, %v3138
    %v3140 = vpop.f32.mrb[0].mxu0
    %3141 = vmatprep.mubr.bf16.mxu0 %v2909
    %3142 = vmatmul.mubr.bf16.gmra.mrb[0].mxu0 %v2769
    %v3143 = vpop.f32.mrb[0].mxu0
    %v3144 = vadd.f32 0.0, %v3143
    %v3145 = vpop.f32.mrb[0].mxu0
    %v3146 = vpop.f32.mrb[0].mxu0
    %v3147 = vadd.f32 0.0, %v3146
    %v3148 = vpop.f32.mrb[0].mxu0
    %3149 = vmatprep.mubr.bf16.mxu0 %v2912
    %3150 = vmatmul.mubr.bf16.gmra.mrb[0].mxu0 %v2771
    %v3151 = vpop.f32.mrb[0].mxu0
    %v3152 = vadd.f32 0.0, %v3151
    %v3153 = vpop.f32.mrb[0].mxu0
    %v3154 = vpop.f32.mrb[0].mxu0
    %v3155 = vadd.f32 0.0, %v3154
    %v3156 = vpop.f32.mrb[0].mxu0
    %3157 = vmatprep.mubr.bf16.mxu0 %v2915
    %3158 = vmatmul.mubr.bf16.gmra.mrb[0].mxu0 %v2773
    %v3159 = vpop.f32.mrb[0].mxu0
    %v3160 = vadd.f32 0.0, %v3159
    %v3161 = vpop.f32.mrb[0].mxu0
    %v3162 = vpop.f32.mrb[0].mxu0
    %v3163 = vadd.f32 0.0, %v3162
    %v3164 = vpop.f32.mrb[0].mxu0
    %3165 = vmatprep.mubr.bf16.mxu0 %v2918
    %3166 = vmatmul.mubr.bf16.gmra.mrb[0].mxu0 %v2775
    %v3167 = vpop.f32.mrb[0].mxu0
    %v3168 = vadd.f32 0.0, %v3167
    %v3169 = vpop.f32.mrb[0].mxu0
    %v3170 = vpop.f32.mrb[0].mxu0
    %v3171 = vadd.f32 0.0, %v3170
    %v3172 = vpop.f32.mrb[0].mxu0
    %3173 = vmatprep.mubr.bf16.mxu0 %v2921
    %3174 = vmatmul.mubr.bf16.gmra.mrb[0].mxu0 %v2777
    %v3175 = vpop.f32.mrb[0].mxu0
    %v3176 = vadd.f32 0.0, %v3175
    %v3177 = vpop.f32.mrb[0].mxu0
    %v3178 = vpop.f32.mrb[0].mxu0
    %v3179 = vadd.f32 0.0, %v3178
    %v3180 = vpop.f32.mrb[0].mxu0
    %3181 = vmatprep.mubr.bf16.mxu0 %v2924
    %3182 = vmatmul.mubr.bf16.gmra.mrb[0].mxu0 %v2779
    %v3183 = vpop.f32.mrb[0].mxu0
    %v3184 = vadd.f32 0.0, %v3183
    %v3185 = vpop.f32.mrb[0].mxu0
    %v3186 = vpop.f32.mrb[0].mxu0
    %v3187 = vadd.f32 0.0, %v3186
    %v3188 = vpop.f32.mrb[0].mxu0
    %3189 = vmatprep.mubr.bf16.mxu0 %v2927
    %3190 = vmatmul.mubr.bf16.gmra.mrb[0].mxu0 %v2781
    %v3191 = vpop.f32.mrb[0].mxu0
    %v3192 = vadd.f32 0.0, %v3191
    %v3193 = vpop.f32.mrb[0].mxu0
    %v3194 = vpop.f32.mrb[0].mxu0
    %v3195 = vadd.f32 0.0, %v3194
    %v3196 = vpop.f32.mrb[0].mxu0
    %3197 = vmatprep.mubr.bf16.mxu0 %v2930
    %3198 = vmatmul.mubr.bf16.gmra.mrb[0].mxu0 %v2783
    %v3199 = vpop.f32.mrb[0].mxu0
    %v3200 = vadd.f32 0.0, %v3199
    %v3201 = vpop.f32.mrb[0].mxu0
    %v3202 = vpop.f32.mrb[0].mxu0
    %v3203 = vadd.f32 0.0, %v3202
    %v3204 = vpop.f32.mrb[0].mxu0
    %3205 = vmatprep.mubr.bf16.mxu0 %v2933
    %3206 = vmatmul.mubr.bf16.gmra.mrb[0].mxu0 %v2785
    %v3207 = vpop.f32.mrb[0].mxu0
    %v3208 = vadd.f32 0.0, %v3207
    %v3209 = vpop.f32.mrb[0].mxu0
    %v3210 = vpop.f32.mrb[0].mxu0
    %v3211 = vadd.f32 0.0, %v3210
    %v3212 = vpop.f32.mrb[0].mxu0
    %3213 = vmatprep.mubr.bf16.mxu0 %v2936
    %3214 = vmatmul.mubr.bf16.gmra.mrb[0].mxu0 %v2787
    %v3215 = vpop.f32.mrb[0].mxu0
    %v3216 = vadd.f32 0.0, %v3215
    %v3217 = vpop.f32.mrb[0].mxu0
    %v3218 = vpop.f32.mrb[0].mxu0
    %v3219 = vadd.f32 0.0, %v3218
    %v3220 = vpop.f32.mrb[0].mxu0
    %3221 = vmatprep.mubr.bf16.mxu0 %v2939
    %3222 = vmatmul.mubr.bf16.gmra.mrb[0].mxu0 %v2789
    %v3223 = vpop.f32.mrb[0].mxu0
    %v3224 = vadd.f32 0.0, %v3223
    %v3225 = vpop.f32.mrb[0].mxu0
    %v3226 = vpop.f32.mrb[0].mxu0
    %v3227 = vadd.f32 0.0, %v3226
    %v3228 = vpop.f32.mrb[0].mxu0
    %3229 = vdwg.mxu0
    %v3230 = vsel %vm33, %v2976, 0.0
    %v3231 = vsel %vm33, %v2979, 0.0
    %v3232 = vadd.f32 %v3230, %v3231
    %v3233 = vsel %vm33, %v2984, 0.0
    %v3234 = vadd.f32 %v3232, %v3233
    %v3235 = vsel %vm33, %v2987, 0.0
    %v3236 = vadd.f32 %v3234, %v3235
    %v3237 = vsel %vm33, %v2992, 0.0
    %v3238 = vadd.f32 %v3236, %v3237
    %v3239 = vsel %vm33, %v2995, 0.0
    %v3240 = vadd.f32 %v3238, %v3239
    %v3241 = vsel %vm33, %v3000, 0.0
    %v3242 = vadd.f32 %v3240, %v3241
    %v3243 = vsel %vm33, %v3003, 0.0
    %v3244 = vadd.f32 %v3242, %v3243
    %v3245 = vsel %vm33, %v3008, 0.0
    %v3246 = vadd.f32 %v3244, %v3245
    %v3247 = vsel %vm33, %v3011, 0.0
    %v3248 = vadd.f32 %v3246, %v3247
    %v3249 = vsel %vm33, %v3016, 0.0
    %v3250 = vadd.f32 %v3248, %v3249
    %v3251 = vsel %vm33, %v3019, 0.0
    %v3252 = vadd.f32 %v3250, %v3251
    %v3253 = vsel %vm33, %v3024, 0.0
    %v3254 = vadd.f32 %v3252, %v3253
    %v3255 = vsel %vm33, %v3027, 0.0
    %v3256 = vadd.f32 %v3254, %v3255
    %v3257 = vsel %vm33, %v3032, 0.0
    %v3258 = vadd.f32 %v3256, %v3257
    %v3259 = vsel %vm33, %v3035, 0.0
    %v3260 = vadd.f32 %v3258, %v3259
    %v3261 = vsel %vm33, %v3040, 0.0
    %v3262 = vadd.f32 %v3260, %v3261
    %v3263 = vsel %vm33, %v3043, 0.0
    %v3264 = vadd.f32 %v3262, %v3263
    %v3265 = vsel %vm33, %v3048, 0.0
    %v3266 = vadd.f32 %v3264, %v3265
    %v3267 = vsel %vm33, %v3051, 0.0
    %v3268 = vadd.f32 %v3266, %v3267
    %v3269 = vsel %vm33, %v3056, 0.0
    %v3270 = vadd.f32 %v3268, %v3269
    %v3271 = vsel %vm33, %v3059, 0.0
    %v3272 = vadd.f32 %v3270, %v3271
    %v3273 = vsel %vm33, %v3064, 0.0
    %v3274 = vadd.f32 %v3272, %v3273
    %v3275 = vsel %vm33, %v3067, 0.0
    %v3276 = vadd.f32 %v3274, %v3275
    %v3277 = vsel %vm33, %v3072, 0.0
    %v3278 = vadd.f32 %v3276, %v3277
    %v3279 = vsel %vm33, %v3075, 0.0
    %v3280 = vadd.f32 %v3278, %v3279
    %v3281 = vsel %vm33, %v3080, 0.0
    %v3282 = vadd.f32 %v3280, %v3281
    %v3283 = vsel %vm33, %v3083, 0.0
    %v3284 = vadd.f32 %v3282, %v3283
    %v3285 = vsel %vm33, %v3088, 0.0
    %v3286 = vadd.f32 %v3284, %v3285
    %v3287 = vsel %vm33, %v3091, 0.0
    %v3288 = vadd.f32 %v3286, %v3287
    %v3289 = vsel %vm33, %v3096, 0.0
    %v3290 = vadd.f32 %v3288, %v3289
    %v3291 = vsel %vm33, %v3099, 0.0
    %v3292 = vadd.f32 %v3290, %v3291
    %v3293 = vsel %vm33, %v3104, 0.0
    %v3294 = vadd.f32 %v3292, %v3293
    %v3295 = vsel %vm33, %v3107, 0.0
    %v3296 = vadd.f32 %v3294, %v3295
    %v3297 = vsel %vm33, %v3112, 0.0
    %v3298 = vadd.f32 %v3296, %v3297
    %v3299 = vsel %vm33, %v3115, 0.0
    %v3300 = vadd.f32 %v3298, %v3299
    %v3301 = vsel %vm33, %v3120, 0.0
    %v3302 = vadd.f32 %v3300, %v3301
    %v3303 = vsel %vm33, %v3123, 0.0
    %v3304 = vadd.f32 %v3302, %v3303
    %v3305 = vsel %vm33, %v3128, 0.0
    %v3306 = vadd.f32 %v3304, %v3305
    %v3307 = vsel %vm33, %v3131, 0.0
    %v3308 = vadd.f32 %v3306, %v3307
    %v3309 = vsel %vm33, %v3136, 0.0
    %v3310 = vadd.f32 %v3308, %v3309
    %v3311 = vsel %vm33, %v3139, 0.0
    %v3312 = vadd.f32 %v3310, %v3311
    %v3313 = vsel %vm33, %v3144, 0.0
    %v3314 = vadd.f32 %v3312, %v3313
    %v3315 = vsel %vm33, %v3147, 0.0
    %v3316 = vadd.f32 %v3314, %v3315
    %v3317 = vsel %vm33, %v3152, 0.0
    %v3318 = vadd.f32 %v3316, %v3317
    %v3319 = vsel %vm33, %v3155, 0.0
    %v3320 = vadd.f32 %v3318, %v3319
    %v3321 = vsel %vm33, %v3160, 0.0
    %v3322 = vadd.f32 %v3320, %v3321
    %v3323 = vsel %vm33, %v3163, 0.0
    %v3324 = vadd.f32 %v3322, %v3323
    %v3325 = vsel %vm33, %v3168, 0.0
    %v3326 = vadd.f32 %v3324, %v3325
    %v3327 = vsel %vm33, %v3171, 0.0
    %v3328 = vadd.f32 %v3326, %v3327
    %v3329 = vsel %vm33, %v3176, 0.0
    %v3330 = vadd.f32 %v3328, %v3329
    %v3331 = vsel %vm33, %v3179, 0.0
    %v3332 = vadd.f32 %v3330, %v3331
    %v3333 = vsel %vm33, %v3184, 0.0
    %v3334 = vadd.f32 %v3332, %v3333
    %v3335 = vsel %vm33, %v3187, 0.0
    %v3336 = vadd.f32 %v3334, %v3335
    %v3337 = vsel %vm33, %v3192, 0.0
    %v3338 = vadd.f32 %v3336, %v3337
    %v3339 = vsel %vm33, %v3195, 0.0
    %v3340 = vadd.f32 %v3338, %v3339
    %v3341 = vsel %vm33, %v3200, 0.0
    %v3342 = vadd.f32 %v3340, %v3341
    %v3343 = vsel %vm33, %v3203, 0.0
    %v3344 = vadd.f32 %v3342, %v3343
    %v3345 = vsel %vm33, %v3208, 0.0
    %v3346 = vadd.f32 %v3344, %v3345
    %v3347 = vsel %vm33, %v3211, 0.0
    %v3348 = vadd.f32 %v3346, %v3347
    %v3349 = vsel %vm33, %v3216, 0.0
    %v3350 = vadd.f32 %v3348, %v3349
    %v3351 = vsel %vm33, %v3219, 0.0
    %v3352 = vadd.f32 %v3350, %v3351
    %v3353 = vsel %vm33, %v3224, 0.0
    %v3354 = vadd.f32 %v3352, %v3353
    %v3355 = vsel %vm33, %v3227, 0.0
    %v3356 = vadd.f32 %v3354, %v3355
    %v3357 = vrot.slane %v3356, 4
    %v3358 = vadd.f32 %v3356, %v3357
    %v3359 = vrot.slane %v3358, 2
    %v3360 = vadd.f32 %v3358, %v3359
    %v3361 = vrot.slane %v3360, 1
    %v3362 = vadd.f32 %v3360, %v3361
    %v3363 = vmul.f32 %v2976, %v2976
    %v3364 = vmul.f32 %v2979, %v2979
    %v3365 = vmul.f32 %v2984, %v2984
    %v3366 = vmul.f32 %v2987, %v2987
    %v3367 = vmul.f32 %v2992, %v2992
    %v3368 = vmul.f32 %v2995, %v2995
    %v3369 = vmul.f32 %v3000, %v3000
    %v3370 = vmul.f32 %v3003, %v3003
    %v3371 = vmul.f32 %v3008, %v3008
    %v3372 = vmul.f32 %v3011, %v3011
    %v3373 = vmul.f32 %v3016, %v3016
    %v3374 = vmul.f32 %v3019, %v3019
    %v3375 = vmul.f32 %v3024, %v3024
    %v3376 = vmul.f32 %v3027, %v3027
    %v3377 = vmul.f32 %v3032, %v3032
    %v3378 = vmul.f32 %v3035, %v3035
    %v3379 = vmul.f32 %v3040, %v3040
    %v3380 = vmul.f32 %v3043, %v3043
    %v3381 = vmul.f32 %v3048, %v3048
    %v3382 = vmul.f32 %v3051, %v3051
    %v3383 = vmul.f32 %v3056, %v3056
    %v3384 = vmul.f32 %v3059, %v3059
    %v3385 = vmul.f32 %v3064, %v3064
    %v3386 = vmul.f32 %v3067, %v3067
    %v3387 = vmul.f32 %v3072, %v3072
    %v3388 = vmul.f32 %v3075, %v3075
    %v3389 = vmul.f32 %v3080, %v3080
    %v3390 = vmul.f32 %v3083, %v3083
    %v3391 = vmul.f32 %v3088, %v3088
    %v3392 = vmul.f32 %v3091, %v3091
    %v3393 = vmul.f32 %v3096, %v3096
    %v3394 = vmul.f32 %v3099, %v3099
    %v3395 = vmul.f32 %v3104, %v3104
    %v3396 = vmul.f32 %v3107, %v3107
    %v3397 = vmul.f32 %v3112, %v3112
    %v3398 = vmul.f32 %v3115, %v3115
    %v3399 = vmul.f32 %v3120, %v3120
    %v3400 = vmul.f32 %v3123, %v3123
    %v3401 = vmul.f32 %v3128, %v3128
    %v3402 = vmul.f32 %v3131, %v3131
    %v3403 = vmul.f32 %v3136, %v3136
    %v3404 = vmul.f32 %v3139, %v3139
    %v3405 = vmul.f32 %v3144, %v3144
    %v3406 = vmul.f32 %v3147, %v3147
    %v3407 = vmul.f32 %v3152, %v3152
    %v3408 = vmul.f32 %v3155, %v3155
    %v3409 = vmul.f32 %v3160, %v3160
    %v3410 = vmul.f32 %v3163, %v3163
    %v3411 = vmul.f32 %v3168, %v3168
    %v3412 = vmul.f32 %v3171, %v3171
    %v3413 = vmul.f32 %v3176, %v3176
    %v3414 = vmul.f32 %v3179, %v3179
    %v3415 = vmul.f32 %v3184, %v3184
    %v3416 = vmul.f32 %v3187, %v3187
    %v3417 = vmul.f32 %v3192, %v3192
    %v3418 = vmul.f32 %v3195, %v3195
    %v3419 = vmul.f32 %v3200, %v3200
    %v3420 = vmul.f32 %v3203, %v3203
    %v3421 = vmul.f32 %v3208, %v3208
    %v3422 = vmul.f32 %v3211, %v3211
    %v3423 = vmul.f32 %v3216, %v3216
    %v3424 = vmul.f32 %v3219, %v3219
    %v3425 = vmul.f32 %v3224, %v3224
    %v3426 = vmul.f32 %v3227, %v3227
    %v3427 = vsel %vm33, %v3363, 0.0
    %v3428 = vsel %vm33, %v3364, 0.0
    %v3429 = vadd.f32 %v3427, %v3428
    %v3430 = vsel %vm33, %v3365, 0.0
    %v3431 = vadd.f32 %v3429, %v3430
    %v3432 = vsel %vm33, %v3366, 0.0
    %v3433 = vadd.f32 %v3431, %v3432
    %v3434 = vsel %vm33, %v3367, 0.0
    %v3435 = vadd.f32 %v3433, %v3434
    %v3436 = vsel %vm33, %v3368, 0.0
    %v3437 = vadd.f32 %v3435, %v3436
    %v3438 = vsel %vm33, %v3369, 0.0
    %v3439 = vadd.f32 %v3437, %v3438
    %v3440 = vsel %vm33, %v3370, 0.0
    %v3441 = vadd.f32 %v3439, %v3440
    %v3442 = vsel %vm33, %v3371, 0.0
    %v3443 = vadd.f32 %v3441, %v3442
    %v3444 = vsel %vm33, %v3372, 0.0
    %v3445 = vadd.f32 %v3443, %v3444
    %v3446 = vsel %vm33, %v3373, 0.0
    %v3447 = vadd.f32 %v3445, %v3446
    %v3448 = vsel %vm33, %v3374, 0.0
    %v3449 = vadd.f32 %v3447, %v3448
    %v3450 = vsel %vm33, %v3375, 0.0
    %v3451 = vadd.f32 %v3449, %v3450
    %v3452 = vsel %vm33, %v3376, 0.0
    %v3453 = vadd.f32 %v3451, %v3452
    %v3454 = vsel %vm33, %v3377, 0.0
    %v3455 = vadd.f32 %v3453, %v3454
    %v3456 = vsel %vm33, %v3378, 0.0
    %v3457 = vadd.f32 %v3455, %v3456
    %v3458 = vsel %vm33, %v3379, 0.0
    %v3459 = vadd.f32 %v3457, %v3458
    %v3460 = vsel %vm33, %v3380, 0.0
    %v3461 = vadd.f32 %v3459, %v3460
    %v3462 = vsel %vm33, %v3381, 0.0
    %v3463 = vadd.f32 %v3461, %v3462
    %v3464 = vsel %vm33, %v3382, 0.0
    %v3465 = vadd.f32 %v3463, %v3464
    %v3466 = vsel %vm33, %v3383, 0.0
    %v3467 = vadd.f32 %v3465, %v3466
    %v3468 = vsel %vm33, %v3384, 0.0
    %v3469 = vadd.f32 %v3467, %v3468
    %v3470 = vsel %vm33, %v3385, 0.0
    %v3471 = vadd.f32 %v3469, %v3470
    %v3472 = vsel %vm33, %v3386, 0.0
    %v3473 = vadd.f32 %v3471, %v3472
    %v3474 = vsel %vm33, %v3387, 0.0
    %v3475 = vadd.f32 %v3473, %v3474
    %v3476 = vsel %vm33, %v3388, 0.0
    %v3477 = vadd.f32 %v3475, %v3476
    %v3478 = vsel %vm33, %v3389, 0.0
    %v3479 = vadd.f32 %v3477, %v3478
    %v3480 = vsel %vm33, %v3390, 0.0
    %v3481 = vadd.f32 %v3479, %v3480
    %v3482 = vsel %vm33, %v3391, 0.0
    %v3483 = vadd.f32 %v3481, %v3482
    %v3484 = vsel %vm33, %v3392, 0.0
    %v3485 = vadd.f32 %v3483, %v3484
    %v3486 = vsel %vm33, %v3393, 0.0
    %v3487 = vadd.f32 %v3485, %v3486
    %v3488 = vsel %vm33, %v3394, 0.0
    %v3489 = vadd.f32 %v3487, %v3488
    %v3490 = vsel %vm33, %v3395, 0.0
    %v3491 = vadd.f32 %v3489, %v3490
    %v3492 = vsel %vm33, %v3396, 0.0
    %v3493 = vadd.f32 %v3491, %v3492
    %v3494 = vsel %vm33, %v3397, 0.0
    %v3495 = vadd.f32 %v3493, %v3494
    %v3496 = vsel %vm33, %v3398, 0.0
    %v3497 = vadd.f32 %v3495, %v3496
    %v3498 = vsel %vm33, %v3399, 0.0
    %v3499 = vadd.f32 %v3497, %v3498
    %v3500 = vsel %vm33, %v3400, 0.0
    %v3501 = vadd.f32 %v3499, %v3500
    %v3502 = vsel %vm33, %v3401, 0.0
    %v3503 = vadd.f32 %v3501, %v3502
    %v3504 = vsel %vm33, %v3402, 0.0
    %v3505 = vadd.f32 %v3503, %v3504
    %v3506 = vsel %vm33, %v3403, 0.0
    %v3507 = vadd.f32 %v3505, %v3506
    %v3508 = vsel %vm33, %v3404, 0.0
    %v3509 = vadd.f32 %v3507, %v3508
    %v3510 = vsel %vm33, %v3405, 0.0
    %v3511 = vadd.f32 %v3509, %v3510
    %v3512 = vsel %vm33, %v3406, 0.0
    %v3513 = vadd.f32 %v3511, %v3512
    %v3514 = vsel %vm33, %v3407, 0.0
    %v3515 = vadd.f32 %v3513, %v3514
    %v3516 = vsel %vm33, %v3408, 0.0
    %v3517 = vadd.f32 %v3515, %v3516
    %v3518 = vsel %vm33, %v3409, 0.0
    %v3519 = vadd.f32 %v3517, %v3518
    %v3520 = vsel %vm33, %v3410, 0.0
    %v3521 = vadd.f32 %v3519, %v3520
    %v3522 = vsel %vm33, %v3411, 0.0
    %v3523 = vadd.f32 %v3521, %v3522
    %v3524 = vsel %vm33, %v3412, 0.0
    %v3525 = vadd.f32 %v3523, %v3524
    %v3526 = vsel %vm33, %v3413, 0.0
    %v3527 = vadd.f32 %v3525, %v3526
    %v3528 = vsel %vm33, %v3414, 0.0
    %v3529 = vadd.f32 %v3527, %v3528
    %v3530 = vsel %vm33, %v3415, 0.0
    %v3531 = vadd.f32 %v3529, %v3530
    %v3532 = vsel %vm33, %v3416, 0.0
    %v3533 = vadd.f32 %v3531, %v3532
    %v3534 = vsel %vm33, %v3417, 0.0
    %v3535 = vadd.f32 %v3533, %v3534
    %v3536 = vsel %vm33, %v3418, 0.0
    %v3537 = vadd.f32 %v3535, %v3536
    %v3538 = vsel %vm33, %v3419, 0.0
    %v3539 = vadd.f32 %v3537, %v3538
    %v3540 = vsel %vm33, %v3420, 0.0
    %v3541 = vadd.f32 %v3539, %v3540
    %v3542 = vsel %vm33, %v3421, 0.0
    %v3543 = vadd.f32 %v3541, %v3542
    %v3544 = vsel %vm33, %v3422, 0.0
    %v3545 = vadd.f32 %v3543, %v3544
    %v3546 = vsel %vm33, %v3423, 0.0
    %v3547 = vadd.f32 %v3545, %v3546
    %v3548 = vsel %vm33, %v3424, 0.0
    %v3549 = vadd.f32 %v3547, %v3548
    %v3550 = vsel %vm33, %v3425, 0.0
    %v3551 = vadd.f32 %v3549, %v3550
    %v3552 = vsel %vm33, %v3426, 0.0
    %v3553 = vadd.f32 %v3551, %v3552
    %v3554 = vrot.slane %v3553, 4
    %v3555 = vadd.f32 %v3553, %v3554
    %v3556 = vrot.slane %v3555, 2
    %v3557 = vadd.f32 %v3555, %v3556
    %v3558 = vrot.slane %v3557, 1
    %v3559 = vadd.f32 %v3557, %v3558
    %v3560 = vmul.f32 %v3362, 0.001953125
    %v3561 = vmul.f32 %v3559, 0.001953125
    %v3562 = vmul.f32 %v3560, %v3560
    %v3563 = vsub.f32 %v3561, %v3562
    %v3564 = vadd.f32 %v3563, 1e-05
    %v3565 = vrsqrt.pop %v3564
    %v3566 = vmul.f32 %v121, %v3565
    %v3567 = vmul.f32 %v3560, %v3566
    %v3569 = vrot.slane %v3567, 7
    %v3571 = vsub.f32 %v121, %v3569
    %v3572 = vlaneseq
    %v3573 = vshrl.u32 %v3572, 7
    %v3574 = vsub.s32 0, %v3573
    %v3575 = vrot.slane %v3566, %v3574
    %v3576 = vmul.f32 %v2976, %v3575
    %v3577 = vmul.f32 %v2979, %v3575
    %v3578 = vmul.f32 %v2984, %v3575
    %v3579 = vmul.f32 %v2987, %v3575
    %v3580 = vmul.f32 %v2992, %v3575
    %v3581 = vmul.f32 %v2995, %v3575
    %v3582 = vmul.f32 %v3000, %v3575
    %v3583 = vmul.f32 %v3003, %v3575
    %v3584 = vmul.f32 %v3008, %v3575
    %v3585 = vmul.f32 %v3011, %v3575
    %v3586 = vmul.f32 %v3016, %v3575
    %v3587 = vmul.f32 %v3019, %v3575
    %v3588 = vmul.f32 %v3024, %v3575
    %v3589 = vmul.f32 %v3027, %v3575
    %v3590 = vmul.f32 %v3032, %v3575
    %v3591 = vmul.f32 %v3035, %v3575
    %v3592 = vmul.f32 %v3040, %v3575
    %v3593 = vmul.f32 %v3043, %v3575
    %v3594 = vmul.f32 %v3048, %v3575
    %v3595 = vmul.f32 %v3051, %v3575
    %v3596 = vmul.f32 %v3056, %v3575
    %v3597 = vmul.f32 %v3059, %v3575
    %v3598 = vmul.f32 %v3064, %v3575
    %v3599 = vmul.f32 %v3067, %v3575
    %v3600 = vmul.f32 %v3072, %v3575
    %v3601 = vmul.f32 %v3075, %v3575
    %v3602 = vmul.f32 %v3080, %v3575
    %v3603 = vmul.f32 %v3083, %v3575
    %v3604 = vmul.f32 %v3088, %v3575
    %v3605 = vmul.f32 %v3091, %v3575
    %v3606 = vmul.f32 %v3096, %v3575
    %v3607 = vmul.f32 %v3099, %v3575
    %v3608 = vmul.f32 %v3104, %v3575
    %v3609 = vmul.f32 %v3107, %v3575
    %v3610 = vmul.f32 %v3112, %v3575
    %v3611 = vmul.f32 %v3115, %v3575
    %v3612 = vmul.f32 %v3120, %v3575
    %v3613 = vmul.f32 %v3123, %v3575
    %v3614 = vmul.f32 %v3128, %v3575
    %v3615 = vmul.f32 %v3131, %v3575
    %v3616 = vmul.f32 %v3136, %v3575
    %v3617 = vmul.f32 %v3139, %v3575
    %v3618 = vmul.f32 %v3144, %v3575
    %v3619 = vmul.f32 %v3147, %v3575
    %v3620 = vmul.f32 %v3152, %v3575
    %v3621 = vmul.f32 %v3155, %v3575
    %v3622 = vmul.f32 %v3160, %v3575
    %v3623 = vmul.f32 %v3163, %v3575
    %v3624 = vmul.f32 %v3168, %v3575
    %v3625 = vmul.f32 %v3171, %v3575
    %v3626 = vmul.f32 %v3176, %v3575
    %v3627 = vmul.f32 %v3179, %v3575
    %v3628 = vmul.f32 %v3184, %v3575
    %v3629 = vmul.f32 %v3187, %v3575
    %v3630 = vmul.f32 %v3192, %v3575
    %v3631 = vmul.f32 %v3195, %v3575
    %v3632 = vmul.f32 %v3200, %v3575
    %v3633 = vmul.f32 %v3203, %v3575
    %v3634 = vmul.f32 %v3208, %v3575
    %v3635 = vmul.f32 %v3211, %v3575
    %v3636 = vmul.f32 %v3216, %v3575
    %v3637 = vmul.f32 %v3219, %v3575
    %v3638 = vmul.f32 %v3224, %v3575
    %v3639 = vmul.f32 %v3227, %v3575
    %v3640 = vlaneseq
    %v3641 = vshrl.u32 %v3640, 7
    %v3642 = vsub.s32 1, %v3641
    %v3643 = vrot.slane %v3571, %v3642
    %v3644 = vadd.f32 %v3576, %v3643
    %v3645 = vadd.f32 %v3577, %v3643
    %v3646 = vadd.f32 %v3578, %v3643
    %v3647 = vadd.f32 %v3579, %v3643
    %v3648 = vadd.f32 %v3580, %v3643
    %v3649 = vadd.f32 %v3581, %v3643
    %v3650 = vadd.f32 %v3582, %v3643
    %v3651 = vadd.f32 %v3583, %v3643
    %v3652 = vadd.f32 %v3584, %v3643
    %v3653 = vadd.f32 %v3585, %v3643
    %v3654 = vadd.f32 %v3586, %v3643
    %v3655 = vadd.f32 %v3587, %v3643
    %v3656 = vadd.f32 %v3588, %v3643
    %v3657 = vadd.f32 %v3589, %v3643
    %v3658 = vadd.f32 %v3590, %v3643
    %v3659 = vadd.f32 %v3591, %v3643
    %v3660 = vadd.f32 %v3592, %v3643
    %v3661 = vadd.f32 %v3593, %v3643
    %v3662 = vadd.f32 %v3594, %v3643
    %v3663 = vadd.f32 %v3595, %v3643
    %v3664 = vadd.f32 %v3596, %v3643
    %v3665 = vadd.f32 %v3597, %v3643
    %v3666 = vadd.f32 %v3598, %v3643
    %v3667 = vadd.f32 %v3599, %v3643
    %v3668 = vadd.f32 %v3600, %v3643
    %v3669 = vadd.f32 %v3601, %v3643
    %v3670 = vadd.f32 %v3602, %v3643
    %v3671 = vadd.f32 %v3603, %v3643
    %v3672 = vadd.f32 %v3604, %v3643
    %v3673 = vadd.f32 %v3605, %v3643
    %v3674 = vadd.f32 %v3606, %v3643
    %v3675 = vadd.f32 %v3607, %v3643
    %v3676 = vadd.f32 %v3608, %v3643
    %v3677 = vadd.f32 %v3609, %v3643
    %v3678 = vadd.f32 %v3610, %v3643
    %v3679 = vadd.f32 %v3611, %v3643
    %v3680 = vadd.f32 %v3612, %v3643
    %v3681 = vadd.f32 %v3613, %v3643
    %v3682 = vadd.f32 %v3614, %v3643
    %v3683 = vadd.f32 %v3615, %v3643
    %v3684 = vadd.f32 %v3616, %v3643
    %v3685 = vadd.f32 %v3617, %v3643
    %v3686 = vadd.f32 %v3618, %v3643
    %v3687 = vadd.f32 %v3619, %v3643
    %v3688 = vadd.f32 %v3620, %v3643
    %v3689 = vadd.f32 %v3621, %v3643
    %v3690 = vadd.f32 %v3622, %v3643
    %v3691 = vadd.f32 %v3623, %v3643
    %v3692 = vadd.f32 %v3624, %v3643
    %v3693 = vadd.f32 %v3625, %v3643
    %v3694 = vadd.f32 %v3626, %v3643
    %v3695 = vadd.f32 %v3627, %v3643
    %v3696 = vadd.f32 %v3628, %v3643
    %v3697 = vadd.f32 %v3629, %v3643
    %v3698 = vadd.f32 %v3630, %v3643
    %v3699 = vadd.f32 %v3631, %v3643
    %v3700 = vadd.f32 %v3632, %v3643
    %v3701 = vadd.f32 %v3633, %v3643
    %v3702 = vadd.f32 %v3634, %v3643
    %v3703 = vadd.f32 %v3635, %v3643
    %v3704 = vadd.f32 %v3636, %v3643
    %v3705 = vadd.f32 %v3637, %v3643
    %v3706 = vadd.f32 %v3638, %v3643
    %v3707 = vadd.f32 %v3639, %v3643
    %v3708 = vmax.f32 %v3644, 0.0
    %v3709 = vmax.f32 %v3645, 0.0
    %v3710 = vmax.f32 %v3646, 0.0
    %v3711 = vmax.f32 %v3647, 0.0
    %v3712 = vmax.f32 %v3648, 0.0
    %v3713 = vmax.f32 %v3649, 0.0
    %v3714 = vmax.f32 %v3650, 0.0
    %v3715 = vmax.f32 %v3651, 0.0
    %v3716 = vmax.f32 %v3652, 0.0
    %v3717 = vmax.f32 %v3653, 0.0
    %v3718 = vmax.f32 %v3654, 0.0
    %v3719 = vmax.f32 %v3655, 0.0
    %v3720 = vmax.f32 %v3656, 0.0
    %v3721 = vmax.f32 %v3657, 0.0
    %v3722 = vmax.f32 %v3658, 0.0
    %v3723 = vmax.f32 %v3659, 0.0
    %v3724 = vmax.f32 %v3660, 0.0
    %v3725 = vmax.f32 %v3661, 0.0
    %v3726 = vmax.f32 %v3662, 0.0
    %v3727 = vmax.f32 %v3663, 0.0
    %v3728 = vmax.f32 %v3664, 0.0
    %v3729 = vmax.f32 %v3665, 0.0
    %v3730 = vmax.f32 %v3666, 0.0
    %v3731 = vmax.f32 %v3667, 0.0
    %v3732 = vmax.f32 %v3668, 0.0
    %v3733 = vmax.f32 %v3669, 0.0
    %v3734 = vmax.f32 %v3670, 0.0
    %v3735 = vmax.f32 %v3671, 0.0
    %v3736 = vmax.f32 %v3672, 0.0
    %v3737 = vmax.f32 %v3673, 0.0
    %v3738 = vmax.f32 %v3674, 0.0
    %v3739 = vmax.f32 %v3675, 0.0
    %v3740 = vmax.f32 %v3676, 0.0
    %v3741 = vmax.f32 %v3677, 0.0
    %v3742 = vmax.f32 %v3678, 0.0
    %v3743 = vmax.f32 %v3679, 0.0
    %v3744 = vmax.f32 %v3680, 0.0
    %v3745 = vmax.f32 %v3681, 0.0
    %v3746 = vmax.f32 %v3682, 0.0
    %v3747 = vmax.f32 %v3683, 0.0
    %v3748 = vmax.f32 %v3684, 0.0
    %v3749 = vmax.f32 %v3685, 0.0
    %v3750 = vmax.f32 %v3686, 0.0
    %v3751 = vmax.f32 %v3687, 0.0
    %v3752 = vmax.f32 %v3688, 0.0
    %v3753 = vmax.f32 %v3689, 0.0
    %v3754 = vmax.f32 %v3690, 0.0
    %v3755 = vmax.f32 %v3691, 0.0
    %v3756 = vmax.f32 %v3692, 0.0
    %v3757 = vmax.f32 %v3693, 0.0
    %v3758 = vmax.f32 %v3694, 0.0
    %v3759 = vmax.f32 %v3695, 0.0
    %v3760 = vmax.f32 %v3696, 0.0
    %v3761 = vmax.f32 %v3697, 0.0
    %v3762 = vmax.f32 %v3698, 0.0
    %v3763 = vmax.f32 %v3699, 0.0
    %v3764 = vmax.f32 %v3700, 0.0
    %v3765 = vmax.f32 %v3701, 0.0
    %v3766 = vmax.f32 %v3702, 0.0
    %v3767 = vmax.f32 %v3703, 0.0
    %v3768 = vmax.f32 %v3704, 0.0
    %v3769 = vmax.f32 %v3705, 0.0
    %v3770 = vmax.f32 %v3706, 0.0
    %v3771 = vmax.f32 %v3707, 0.0
    %3772 = vst.msk [vmem:[%s222 + $0x1] sm:$0xff] %vm33, %v3708
    %3773 = vst.msk [vmem:[%s222 + $0x9] sm:$0xff] %vm33, %v3709
    %3774 = vst.msk [vmem:[%s222 + $0x19] sm:$0xff] %vm33, %v3710
    %3775 = vst.msk [vmem:[%s222 + $0x21] sm:$0xff] %vm33, %v3711
    %3776 = vst.msk [vmem:[%s222 + $0x31] sm:$0xff] %vm33, %v3712
    %3777 = vst.msk [vmem:[%s222 + $0x39] sm:$0xff] %vm33, %v3713
    %3778 = vst.msk [vmem:[%s222 + $0x49] sm:$0xff] %vm33, %v3714
    %3779 = vst.msk [vmem:[%s222 + $0x51] sm:$0xff] %vm33, %v3715
    %3780 = vst.msk [vmem:[%s222 + $0x61] sm:$0xff] %vm33, %v3716
    %3781 = vst.msk [vmem:[%s222 + $0x69] sm:$0xff] %vm33, %v3717
    %3782 = vst.msk [vmem:[%s222 + $0x79] sm:$0xff] %vm33, %v3718
    %3783 = vst.msk [vmem:[%s222 + $0x81] sm:$0xff] %vm33, %v3719
    %3784 = vst.msk [vmem:[%s222 + $0x91] sm:$0xff] %vm33, %v3720
    %3785 = vst.msk [vmem:[%s222 + $0x99] sm:$0xff] %vm33, %v3721
    %3786 = vst.msk [vmem:[%s222 + $0xa9] sm:$0xff] %vm33, %v3722
    %3787 = vst.msk [vmem:[%s222 + $0xb1] sm:$0xff] %vm33, %v3723
    %3788 = vst.msk [vmem:[%s222 + $0xc1] sm:$0xff] %vm33, %v3724
    %3789 = vst.msk [vmem:[%s222 + $0xc9] sm:$0xff] %vm33, %v3725
    %3790 = vst.msk [vmem:[%s222 + $0xd9] sm:$0xff] %vm33, %v3726
    %3791 = vst.msk [vmem:[%s222 + $0xe1] sm:$0xff] %vm33, %v3727
    %3792 = vst.msk [vmem:[%s222 + $0xf1] sm:$0xff] %vm33, %v3728
    %3793 = vst.msk [vmem:[%s222 + $0xf9] sm:$0xff] %vm33, %v3729
    %3794 = vst.msk [vmem:[%s222 + $0x109] sm:$0xff] %vm33, %v3730
    %3795 = vst.msk [vmem:[%s222 + $0x111] sm:$0xff] %vm33, %v3731
    %3796 = vst.msk [vmem:[%s222 + $0x121] sm:$0xff] %vm33, %v3732
    %3797 = vst.msk [vmem:[%s222 + $0x129] sm:$0xff] %vm33, %v3733
    %3798 = vst.msk [vmem:[%s222 + $0x139] sm:$0xff] %vm33, %v3734
    %3799 = vst.msk [vmem:[%s222 + $0x141] sm:$0xff] %vm33, %v3735
    %3800 = vst.msk [vmem:[%s222 + $0x151] sm:$0xff] %vm33, %v3736
    %3801 = vst.msk [vmem:[%s222 + $0x159] sm:$0xff] %vm33, %v3737
    %3802 = vst.msk [vmem:[%s222 + $0x169] sm:$0xff] %vm33, %v3738
    %3803 = vst.msk [vmem:[%s222 + $0x171] sm:$0xff] %vm33, %v3739
    %3804 = vst.msk [vmem:[%s222 + $0x1b1] sm:$0xff] %vm33, %v3740
    %3805 = vst.msk [vmem:[%s222 + $0x1b9] sm:$0xff] %vm33, %v3741
    %3806 = vst.msk [vmem:[%s222 + $0x1c9] sm:$0xff] %vm33, %v3742
    %3807 = vst.msk [vmem:[%s222 + $0x1d1] sm:$0xff] %vm33, %v3743
    %3808 = vst.msk [vmem:[%s222 + $0x1e1] sm:$0xff] %vm33, %v3744
    %3809 = vst.msk [vmem:[%s222 + $0x1e9] sm:$0xff] %vm33, %v3745
    %3810 = vst.msk [vmem:[%s222 + $0x1f9] sm:$0xff] %vm33, %v3746
    %3811 = vst.msk [vmem:[%s222 + $0x201] sm:$0xff] %vm33, %v3747
    %3812 = vst.msk [vmem:[%s222 + $0x211] sm:$0xff] %vm33, %v3748
    %3813 = vst.msk [vmem:[%s222 + $0x219] sm:$0xff] %vm33, %v3749
    %3814 = vst.msk [vmem:[%s222 + $0x229] sm:$0xff] %vm33, %v3750
    %3815 = vst.msk [vmem:[%s222 + $0x231] sm:$0xff] %vm33, %v3751
    %3816 = vst.msk [vmem:[%s222 + $0x241] sm:$0xff] %vm33, %v3752
    %3817 = vst.msk [vmem:[%s222 + $0x249] sm:$0xff] %vm33, %v3753
    %3818 = vst.msk [vmem:[%s222 + $0x259] sm:$0xff] %vm33, %v3754
    %3819 = vst.msk [vmem:[%s222 + $0x261] sm:$0xff] %vm33, %v3755
    %3820 = vst.msk [vmem:[%s222 + $0x271] sm:$0xff] %vm33, %v3756
    %3821 = vst.msk [vmem:[%s222 + $0x279] sm:$0xff] %vm33, %v3757
    %3822 = vst.msk [vmem:[%s222 + $0x289] sm:$0xff] %vm33, %v3758
    %3823 = vst.msk [vmem:[%s222 + $0x291] sm:$0xff] %vm33, %v3759
    %3824 = vst.msk [vmem:[%s222 + $0x2a1] sm:$0xff] %vm33, %v3760
    %3825 = vst.msk [vmem:[%s222 + $0x2a9] sm:$0xff] %vm33, %v3761
    %3826 = vst.msk [vmem:[%s222 + $0x2b9] sm:$0xff] %vm33, %v3762
    %3827 = vst.msk [vmem:[%s222 + $0x2c1] sm:$0xff] %vm33, %v3763
    %3828 = vst.msk [vmem:[%s222 + $0x2d1] sm:$0xff] %vm33, %v3764
    %3829 = vst.msk [vmem:[%s222 + $0x2d9] sm:$0xff] %vm33, %v3765
    %3830 = vst.msk [vmem:[%s222 + $0x2e9] sm:$0xff] %vm33, %v3766
    %3831 = vst.msk [vmem:[%s222 + $0x2f1] sm:$0xff] %vm33, %v3767
    %3832 = vst.msk [vmem:[%s222 + $0x301] sm:$0xff] %vm33, %v3768
    %3833 = vst.msk [vmem:[%s222 + $0x309] sm:$0xff] %vm33, %v3769
    %3834 = vst.msk [vmem:[%s222 + $0x319] sm:$0xff] %vm33, %v3770
    %3835 = vst.msk [vmem:[%s222 + $0x321] sm:$0xff] %vm33, %v3771
    %v3836 = vld [vmem:[#allocation2] sm:$0xff]
    %v3837 = vld [vmem:[#allocation2 + $0x8] sm:$0xff]
    %v3838 = vld [vmem:[#allocation2 + $0x10] sm:$0x3]
    %v3839 = vld [vmem:[#allocation2 + $0x18] sm:$0xff]
    %v3840 = vld [vmem:[#allocation2 + $0x20] sm:$0xff]
    %v3841 = vld [vmem:[#allocation2 + $0x28] sm:$0x3]
    %v3842 = vld [vmem:[#allocation2 + $0x30] sm:$0xff]
    %v3843 = vld [vmem:[#allocation2 + $0x38] sm:$0xff]
    %v3844 = vld [vmem:[#allocation2 + $0x40] sm:$0x3]
    %v3845 = vld [vmem:[#allocation2 + $0x48] sm:$0xff]
    %v3846 = vld [vmem:[#allocation2 + $0x50] sm:$0xff]
    %v3847 = vld [vmem:[#allocation2 + $0x58] sm:$0x3]
    %v3848 = vld [vmem:[#allocation2 + $0x60] sm:$0xff]
    %v3849 = vld [vmem:[#allocation2 + $0x68] sm:$0xff]
    %v3850 = vld [vmem:[#allocation2 + $0x70] sm:$0x3]
    %v3851 = vld [vmem:[#allocation2 + $0x78] sm:$0xff]
    %v3852 = vld [vmem:[#allocation2 + $0x80] sm:$0xff]
    %v3853 = vld [vmem:[#allocation2 + $0x88] sm:$0x3]
    %v3854 = vld [vmem:[#allocation2 + $0x90] sm:$0xff]
    %v3855 = vld [vmem:[#allocation2 + $0x98] sm:$0xff]
    %v3856 = vld [vmem:[#allocation2 + $0xa0] sm:$0x3]
    %v3857 = vld [vmem:[#allocation2 + $0xa8] sm:$0xff]
    %v3858 = vld [vmem:[#allocation2 + $0xb0] sm:$0xff]
    %v3859 = vld [vmem:[#allocation2 + $0xb8] sm:$0x3]
    %v3860 = vld [vmem:[#allocation2 + $0xc0] sm:$0xff]
    %v3861 = vld [vmem:[#allocation2 + $0xc8] sm:$0xff]
    %v3862 = vld [vmem:[#allocation2 + $0xd0] sm:$0x3]
    %v3863 = vld [vmem:[#allocation2 + $0xd8] sm:$0xff]
    %v3864 = vld [vmem:[#allocation2 + $0xe0] sm:$0xff]
    %v3865 = vld [vmem:[#allocation2 + $0xe8] sm:$0x3]
    %v3866 = vld [vmem:[#allocation2 + $0xf0] sm:$0xff]
    %v3867 = vld [vmem:[#allocation2 + $0xf8] sm:$0xff]
    %v3868 = vld [vmem:[#allocation2 + $0x100] sm:$0x3]
    %v3869 = vld [vmem:[#allocation2 + $0x108] sm:$0xff]
    %v3870 = vld [vmem:[#allocation2 + $0x110] sm:$0xff]
    %v3871 = vld [vmem:[#allocation2 + $0x118] sm:$0x3]
    %v3872 = vld [vmem:[#allocation2 + $0x120] sm:$0xff]
    %v3873 = vld [vmem:[#allocation2 + $0x128] sm:$0xff]
    %v3874 = vld [vmem:[#allocation2 + $0x130] sm:$0x3]
    %v3875 = vld [vmem:[#allocation2 + $0x138] sm:$0xff]
    %v3876 = vld [vmem:[#allocation2 + $0x140] sm:$0xff]
    %v3877 = vld [vmem:[#allocation2 + $0x148] sm:$0x3]
    %v3878 = vld [vmem:[#allocation2 + $0x150] sm:$0xff]
    %v3879 = vld [vmem:[#allocation2 + $0x158] sm:$0xff]
    %v3880 = vld [vmem:[#allocation2 + $0x160] sm:$0x3]
    %v3881 = vld [vmem:[#allocation2 + $0x168] sm:$0xff]
    %v3882 = vld [vmem:[#allocation2 + $0x170] sm:$0xff]
    %v3883 = vld [vmem:[#allocation2 + $0x178] sm:$0x3]
    %v3884 = vld [vmem:[#allocation2 + $0x180] sm:$0xff]
    %v3885 = vld [vmem:[#allocation2 + $0x188] sm:$0xff]
    %v3886 = vld [vmem:[#allocation2 + $0x190] sm:$0x3]
    %v3887 = vld [vmem:[#allocation2 + $0x198] sm:$0xff]
    %v3888 = vld [vmem:[#allocation2 + $0x1a0] sm:$0xff]
    %v3889 = vld [vmem:[#allocation2 + $0x1a8] sm:$0x3]
    %v3890 = vld [vmem:[#allocation2 + $0x1b0] sm:$0xff]
    %v3891 = vld [vmem:[#allocation2 + $0x1b8] sm:$0xff]
    %v3892 = vld [vmem:[#allocation2 + $0x1c0] sm:$0x3]
    %v3893 = vld [vmem:[#allocation2 + $0x1c8] sm:$0xff]
    %v3894 = vld [vmem:[#allocation2 + $0x1d0] sm:$0xff]
    %v3895 = vld [vmem:[#allocation2 + $0x1d8] sm:$0x3]
    %v3896 = vld [vmem:[#allocation2 + $0x1e0] sm:$0xff]
    %v3897 = vld [vmem:[#allocation2 + $0x1e8] sm:$0xff]
    %v3898 = vld [vmem:[#allocation2 + $0x1f0] sm:$0x3]
    %v3899 = vld [vmem:[#allocation2 + $0x1f8] sm:$0xff]
    %v3900 = vld [vmem:[#allocation2 + $0x200] sm:$0xff]
    %v3901 = vld [vmem:[#allocation2 + $0x208] sm:$0x3]
    %v3902 = vld [vmem:[#allocation2 + $0x210] sm:$0xff]
    %v3903 = vld [vmem:[#allocation2 + $0x218] sm:$0xff]
    %v3904 = vld [vmem:[#allocation2 + $0x220] sm:$0x3]
    %v3905 = vld [vmem:[#allocation2 + $0x228] sm:$0xff]
    %v3906 = vld [vmem:[#allocation2 + $0x230] sm:$0xff]
    %v3907 = vld [vmem:[#allocation2 + $0x238] sm:$0x3]
    %v3908 = vld [vmem:[#allocation2 + $0x240] sm:$0xff]
    %v3909 = vld [vmem:[#allocation2 + $0x248] sm:$0xff]
    %v3910 = vld [vmem:[#allocation2 + $0x250] sm:$0x3]
    %v3911 = vld [vmem:[#allocation2 + $0x258] sm:$0xff]
    %v3912 = vld [vmem:[#allocation2 + $0x260] sm:$0xff]
    %v3913 = vld [vmem:[#allocation2 + $0x268] sm:$0x3]
    %v3914 = vld [vmem:[#allocation2 + $0x270] sm:$0xff]
    %v3915 = vld [vmem:[#allocation2 + $0x278] sm:$0xff]
    %v3916 = vld [vmem:[#allocation2 + $0x280] sm:$0x3]
    %v3917 = vld [vmem:[#allocation2 + $0x288] sm:$0xff]
    %v3918 = vld [vmem:[#allocation2 + $0x290] sm:$0xff]
    %v3919 = vld [vmem:[#allocation2 + $0x298] sm:$0x3]
    %v3920 = vld [vmem:[#allocation2 + $0x2a0] sm:$0xff]
    %v3921 = vld [vmem:[#allocation2 + $0x2a8] sm:$0xff]
    %v3922 = vld [vmem:[#allocation2 + $0x2b0] sm:$0x3]
    %v3923 = vld [vmem:[#allocation2 + $0x2b8] sm:$0xff]
    %v3924 = vld [vmem:[#allocation2 + $0x2c0] sm:$0xff]
    %v3925 = vld [vmem:[#allocation2 + $0x2c8] sm:$0x3]
    %v3926 = vld [vmem:[#allocation2 + $0x2d0] sm:$0xff]
    %v3927 = vld [vmem:[#allocation2 + $0x2d8] sm:$0xff]
    %v3928 = vld [vmem:[#allocation2 + $0x2e0] sm:$0x3]
    %v3929 = vld [vmem:[#allocation2 + $0x2e8] sm:$0xff]
    %v3930 = vld [vmem:[#allocation2 + $0x2f0] sm:$0xff]
    %v3931 = vld [vmem:[#allocation2 + $0x2f8] sm:$0x3]
    %v3932 = vld [vmem:[#allocation2 + $0x300] sm:$0xff]
    %v3933 = vld [vmem:[#allocation2 + $0x308] sm:$0xff]
    %v3934 = vld [vmem:[#allocation2 + $0x310] sm:$0x3]
    %v3935 = vld [vmem:[#allocation2 + $0x318] sm:$0xff]
    %v3936 = vld [vmem:[#allocation2 + $0x320] sm:$0xff]
    %v3937 = vld [vmem:[#allocation2 + $0x328] sm:$0x3]
    %v3938 = vld [vmem:[#allocation2 + $0x330] sm:$0xff]
    %v3939 = vld [vmem:[#allocation2 + $0x338] sm:$0xff]
    %v3940 = vld [vmem:[#allocation2 + $0x340] sm:$0x3]
    %v3941 = vld [vmem:[#allocation2 + $0x348] sm:$0xff]
    %v3942 = vld [vmem:[#allocation2 + $0x350] sm:$0xff]
    %v3943 = vld [vmem:[#allocation2 + $0x358] sm:$0x3]
    %v4040 = vrot.slane %v3836, 1
    %v4041 = vrot.slane %v3837, 1
    %v4042 = vsel %vm491, %v4040, %v4041
    %v4043 = vrot.slane %v3838, 1
    %v4044 = vsel %vm491, %v4041, %v4043
    %v4045 = vrot.slane %v3839, 1
    %v4046 = vrot.slane %v3840, 1
    %v4047 = vsel %vm491, %v4045, %v4046
    %v4048 = vrot.slane %v3841, 1
    %v4049 = vsel %vm491, %v4046, %v4048
    %v4050 = vrot.slane %v3842, 1
    %v4051 = vrot.slane %v3843, 1
    %v4052 = vsel %vm491, %v4050, %v4051
    %v4053 = vrot.slane %v3844, 1
    %v4054 = vsel %vm491, %v4051, %v4053
    %v4055 = vrot.slane %v3845, 1
    %v4056 = vrot.slane %v3846, 1
    %v4057 = vsel %vm491, %v4055, %v4056
    %v4058 = vrot.slane %v3847, 1
    %v4059 = vsel %vm491, %v4056, %v4058
    %v4060 = vrot.slane %v3848, 1
    %v4061 = vrot.slane %v3849, 1
    %v4062 = vsel %vm491, %v4060, %v4061
    %v4063 = vrot.slane %v3850, 1
    %v4064 = vsel %vm491, %v4061, %v4063
    %v4065 = vrot.slane %v3851, 1
    %v4066 = vrot.slane %v3852, 1
    %v4067 = vsel %vm491, %v4065, %v4066
    %v4068 = vrot.slane %v3853, 1
    %v4069 = vsel %vm491, %v4066, %v4068
    %v4070 = vrot.slane %v3854, 1
    %v4071 = vrot.slane %v3855, 1
    %v4072 = vsel %vm491, %v4070, %v4071
    %v4073 = vrot.slane %v3856, 1
    %v4074 = vsel %vm491, %v4071, %v4073
    %v4075 = vrot.slane %v3857, 1
    %v4076 = vrot.slane %v3858, 1
    %v4077 = vsel %vm491, %v4075, %v4076
    %v4078 = vrot.slane %v3859, 1
    %v4079 = vsel %vm491, %v4076, %v4078
    %v4080 = vrot.slane %v3860, 1
    %v4081 = vrot.slane %v3861, 1
    %v4082 = vsel %vm491, %v4080, %v4081
    %v4083 = vrot.slane %v3862, 1
    %v4084 = vsel %vm491, %v4081, %v4083
    %v4085 = vrot.slane %v3863, 1
    %v4086 = vrot.slane %v3864, 1
    %v4087 = vsel %vm491, %v4085, %v4086
    %v4088 = vrot.slane %v3865, 1
    %v4089 = vsel %vm491, %v4086, %v4088
    %v4090 = vrot.slane %v3866, 1
    %v4091 = vrot.slane %v3867, 1
    %v4092 = vsel %vm491, %v4090, %v4091
    %v4093 = vrot.slane %v3868, 1
    %v4094 = vsel %vm491, %v4091, %v4093
    %v4095 = vrot.slane %v3869, 1
    %v4096 = vrot.slane %v3870, 1
    %v4097 = vsel %vm491, %v4095, %v4096
    %v4098 = vrot.slane %v3871, 1
    %v4099 = vsel %vm491, %v4096, %v4098
    %v4100 = vrot.slane %v3872, 1
    %v4101 = vrot.slane %v3873, 1
    %v4102 = vsel %vm491, %v4100, %v4101
    %v4103 = vrot.slane %v3874, 1
    %v4104 = vsel %vm491, %v4101, %v4103
    %v4105 = vrot.slane %v3875, 1
    %v4106 = vrot.slane %v3876, 1
    %v4107 = vsel %vm491, %v4105, %v4106
    %v4108 = vrot.slane %v3877, 1
    %v4109 = vsel %vm491, %v4106, %v4108
    %v4110 = vrot.slane %v3878, 1
    %v4111 = vrot.slane %v3879, 1
    %v4112 = vsel %vm491, %v4110, %v4111
    %v4113 = vrot.slane %v3880, 1
    %v4114 = vsel %vm491, %v4111, %v4113
    %v4115 = vrot.slane %v3881, 1
    %v4116 = vrot.slane %v3882, 1
    %v4117 = vsel %vm491, %v4115, %v4116
    %v4118 = vrot.slane %v3883, 1
    %v4119 = vsel %vm491, %v4116, %v4118
    %v4120 = vrot.slane %v3890, 1
    %v4121 = vrot.slane %v3891, 1
    %v4122 = vsel %vm491, %v4120, %v4121
    %v4123 = vrot.slane %v3892, 1
    %v4124 = vsel %vm491, %v4121, %v4123
    %v4125 = vrot.slane %v3893, 1
    %v4126 = vrot.slane %v3894, 1
    %v4127 = vsel %vm491, %v4125, %v4126
    %v4128 = vrot.slane %v3895, 1
    %v4129 = vsel %vm491, %v4126, %v4128
    %v4130 = vrot.slane %v3896, 1
    %v4131 = vrot.slane %v3897, 1
    %v4132 = vsel %vm491, %v4130, %v4131
    %v4133 = vrot.slane %v3898, 1
    %v4134 = vsel %vm491, %v4131, %v4133
    %v4135 = vrot.slane %v3899, 1
    %v4136 = vrot.slane %v3900, 1
    %v4137 = vsel %vm491, %v4135, %v4136
    %v4138 = vrot.slane %v3901, 1
    %v4139 = vsel %vm491, %v4136, %v4138
    %v4140 = vrot.slane %v3902, 1
    %v4141 = vrot.slane %v3903, 1
    %v4142 = vsel %vm491, %v4140, %v4141
    %v4143 = vrot.slane %v3904, 1
    %v4144 = vsel %vm491, %v4141, %v4143
    %v4145 = vrot.slane %v3905, 1
    %v4146 = vrot.slane %v3906, 1
    %v4147 = vsel %vm491, %v4145, %v4146
    %v4148 = vrot.slane %v3907, 1
    %v4149 = vsel %vm491, %v4146, %v4148
    %v4150 = vrot.slane %v3908, 1
    %v4151 = vrot.slane %v3909, 1
    %v4152 = vsel %vm491, %v4150, %v4151
    %v4153 = vrot.slane %v3910, 1
    %v4154 = vsel %vm491, %v4151, %v4153
    %v4155 = vrot.slane %v3911, 1
    %v4156 = vrot.slane %v3912, 1
    %v4157 = vsel %vm491, %v4155, %v4156
    %v4158 = vrot.slane %v3913, 1
    %v4159 = vsel %vm491, %v4156, %v4158
    %v4160 = vrot.slane %v3914, 1
    %v4161 = vrot.slane %v3915, 1
    %v4162 = vsel %vm491, %v4160, %v4161
    %v4163 = vrot.slane %v3916, 1
    %v4164 = vsel %vm491, %v4161, %v4163
    %v4165 = vrot.slane %v3917, 1
    %v4166 = vrot.slane %v3918, 1
    %v4167 = vsel %vm491, %v4165, %v4166
    %v4168 = vrot.slane %v3919, 1
    %v4169 = vsel %vm491, %v4166, %v4168
    %v4170 = vrot.slane %v3920, 1
    %v4171 = vrot.slane %v3921, 1
    %v4172 = vsel %vm491, %v4170, %v4171
    %v4173 = vrot.slane %v3922, 1
    %v4174 = vsel %vm491, %v4171, %v4173
    %v4175 = vrot.slane %v3923, 1
    %v4176 = vrot.slane %v3924, 1
    %v4177 = vsel %vm491, %v4175, %v4176
    %v4178 = vrot.slane %v3925, 1
    %v4179 = vsel %vm491, %v4176, %v4178
    %v4180 = vrot.slane %v3926, 1
    %v4181 = vrot.slane %v3927, 1
    %v4182 = vsel %vm491, %v4180, %v4181
    %v4183 = vrot.slane %v3928, 1
    %v4184 = vsel %vm491, %v4181, %v4183
    %v4185 = vrot.slane %v3929, 1
    %v4186 = vrot.slane %v3930, 1
    %v4187 = vsel %vm491, %v4185, %v4186
    %v4188 = vrot.slane %v3931, 1
    %v4189 = vsel %vm491, %v4186, %v4188
    %v4190 = vrot.slane %v3932, 1
    %v4191 = vrot.slane %v3933, 1
    %v4192 = vsel %vm491, %v4190, %v4191
    %v4193 = vrot.slane %v3934, 1
    %v4194 = vsel %vm491, %v4191, %v4193
    %v4195 = vrot.slane %v3935, 1
    %v4196 = vrot.slane %v3936, 1
    %v4197 = vsel %vm491, %v4195, %v4196
    %v4198 = vrot.slane %v3937, 1
    %v4199 = vsel %vm491, %v4196, %v4198
    %v4200 = vrot.slane %v3836, 2
    %v4201 = vrot.slane %v3837, 2
    %v4202 = vsel %vm652, %v4200, %v4201
    %v4203 = vrot.slane %v3838, 2
    %v4204 = vsel %vm652, %v4201, %v4203
    %v4205 = vrot.slane %v3839, 2
    %v4206 = vrot.slane %v3840, 2
    %v4207 = vsel %vm652, %v4205, %v4206
    %v4208 = vrot.slane %v3841, 2
    %v4209 = vsel %vm652, %v4206, %v4208
    %v4210 = vrot.slane %v3842, 2
    %v4211 = vrot.slane %v3843, 2
    %v4212 = vsel %vm652, %v4210, %v4211
    %v4213 = vrot.slane %v3844, 2
    %v4214 = vsel %vm652, %v4211, %v4213
    %v4215 = vrot.slane %v3845, 2
    %v4216 = vrot.slane %v3846, 2
    %v4217 = vsel %vm652, %v4215, %v4216
    %v4218 = vrot.slane %v3847, 2
    %v4219 = vsel %vm652, %v4216, %v4218
    %v4220 = vrot.slane %v3848, 2
    %v4221 = vrot.slane %v3849, 2
    %v4222 = vsel %vm652, %v4220, %v4221
    %v4223 = vrot.slane %v3850, 2
    %v4224 = vsel %vm652, %v4221, %v4223
    %v4225 = vrot.slane %v3851, 2
    %v4226 = vrot.slane %v3852, 2
    %v4227 = vsel %vm652, %v4225, %v4226
    %v4228 = vrot.slane %v3853, 2
    %v4229 = vsel %vm652, %v4226, %v4228
    %v4230 = vrot.slane %v3854, 2
    %v4231 = vrot.slane %v3855, 2
    %v4232 = vsel %vm652, %v4230, %v4231
    %v4233 = vrot.slane %v3856, 2
    %v4234 = vsel %vm652, %v4231, %v4233
    %v4235 = vrot.slane %v3857, 2
    %v4236 = vrot.slane %v3858, 2
    %v4237 = vsel %vm652, %v4235, %v4236
    %v4238 = vrot.slane %v3859, 2
    %v4239 = vsel %vm652, %v4236, %v4238
    %v4240 = vrot.slane %v3860, 2
    %v4241 = vrot.slane %v3861, 2
    %v4242 = vsel %vm652, %v4240, %v4241
    %v4243 = vrot.slane %v3862, 2
    %v4244 = vsel %vm652, %v4241, %v4243
    %v4245 = vrot.slane %v3863, 2
    %v4246 = vrot.slane %v3864, 2
    %v4247 = vsel %vm652, %v4245, %v4246
    %v4248 = vrot.slane %v3865, 2
    %v4249 = vsel %vm652, %v4246, %v4248
    %v4250 = vrot.slane %v3866, 2
    %v4251 = vrot.slane %v3867, 2
    %v4252 = vsel %vm652, %v4250, %v4251
    %v4253 = vrot.slane %v3868, 2
    %v4254 = vsel %vm652, %v4251, %v4253
    %v4255 = vrot.slane %v3869, 2
    %v4256 = vrot.slane %v3870, 2
    %v4257 = vsel %vm652, %v4255, %v4256
    %v4258 = vrot.slane %v3871, 2
    %v4259 = vsel %vm652, %v4256, %v4258
    %v4260 = vrot.slane %v3872, 2
    %v4261 = vrot.slane %v3873, 2
    %v4262 = vsel %vm652, %v4260, %v4261
    %v4263 = vrot.slane %v3874, 2
    %v4264 = vsel %vm652, %v4261, %v4263
    %v4265 = vrot.slane %v3875, 2
    %v4266 = vrot.slane %v3876, 2
    %v4267 = vsel %vm652, %v4265, %v4266
    %v4268 = vrot.slane %v3877, 2
    %v4269 = vsel %vm652, %v4266, %v4268
    %v4270 = vrot.slane %v3878, 2
    %v4271 = vrot.slane %v3879, 2
    %v4272 = vsel %vm652, %v4270, %v4271
    %v4273 = vrot.slane %v3880, 2
    %v4274 = vsel %vm652, %v4271, %v4273
    %v4275 = vrot.slane %v3881, 2
    %v4276 = vrot.slane %v3882, 2
    %v4277 = vsel %vm652, %v4275, %v4276
    %v4278 = vrot.slane %v3883, 2
    %v4279 = vsel %vm652, %v4276, %v4278
    %v4280 = vrot.slane %v3890, 2
    %v4281 = vrot.slane %v3891, 2
    %v4282 = vsel %vm652, %v4280, %v4281
    %v4283 = vrot.slane %v3892, 2
    %v4284 = vsel %vm652, %v4281, %v4283
    %v4285 = vrot.slane %v3893, 2
    %v4286 = vrot.slane %v3894, 2
    %v4287 = vsel %vm652, %v4285, %v4286
    %v4288 = vrot.slane %v3895, 2
    %v4289 = vsel %vm652, %v4286, %v4288
    %v4290 = vrot.slane %v3896, 2
    %v4291 = vrot.slane %v3897, 2
    %v4292 = vsel %vm652, %v4290, %v4291
    %v4293 = vrot.slane %v3898, 2
    %v4294 = vsel %vm652, %v4291, %v4293
    %v4295 = vrot.slane %v3899, 2
    %v4296 = vrot.slane %v3900, 2
    %v4297 = vsel %vm652, %v4295, %v4296
    %v4298 = vrot.slane %v3901, 2
    %v4299 = vsel %vm652, %v4296, %v4298
    %v4300 = vrot.slane %v3902, 2
    %v4301 = vrot.slane %v3903, 2
    %v4302 = vsel %vm652, %v4300, %v4301
    %v4303 = vrot.slane %v3904, 2
    %v4304 = vsel %vm652, %v4301, %v4303
    %v4305 = vrot.slane %v3905, 2
    %v4306 = vrot.slane %v3906, 2
    %v4307 = vsel %vm652, %v4305, %v4306
    %v4308 = vrot.slane %v3907, 2
    %v4309 = vsel %vm652, %v4306, %v4308
    %v4310 = vrot.slane %v3908, 2
    %v4311 = vrot.slane %v3909, 2
    %v4312 = vsel %vm652, %v4310, %v4311
    %v4313 = vrot.slane %v3910, 2
    %v4314 = vsel %vm652, %v4311, %v4313
    %v4315 = vrot.slane %v3911, 2
    %v4316 = vrot.slane %v3912, 2
    %v4317 = vsel %vm652, %v4315, %v4316
    %v4318 = vrot.slane %v3913, 2
    %v4319 = vsel %vm652, %v4316, %v4318
    %v4320 = vrot.slane %v3914, 2
    %v4321 = vrot.slane %v3915, 2
    %v4322 = vsel %vm652, %v4320, %v4321
    %v4323 = vrot.slane %v3916, 2
    %v4324 = vsel %vm652, %v4321, %v4323
    %v4325 = vrot.slane %v3917, 2
    %v4326 = vrot.slane %v3918, 2
    %v4327 = vsel %vm652, %v4325, %v4326
    %v4328 = vrot.slane %v3919, 2
    %v4329 = vsel %vm652, %v4326, %v4328
    %v4330 = vrot.slane %v3920, 2
    %v4331 = vrot.slane %v3921, 2
    %v4332 = vsel %vm652, %v4330, %v4331
    %v4333 = vrot.slane %v3922, 2
    %v4334 = vsel %vm652, %v4331, %v4333
    %v4335 = vrot.slane %v3923, 2
    %v4336 = vrot.slane %v3924, 2
    %v4337 = vsel %vm652, %v4335, %v4336
    %v4338 = vrot.slane %v3925, 2
    %v4339 = vsel %vm652, %v4336, %v4338
    %v4340 = vrot.slane %v3926, 2
    %v4341 = vrot.slane %v3927, 2
    %v4342 = vsel %vm652, %v4340, %v4341
    %v4343 = vrot.slane %v3928, 2
    %v4344 = vsel %vm652, %v4341, %v4343
    %v4345 = vrot.slane %v3929, 2
    %v4346 = vrot.slane %v3930, 2
    %v4347 = vsel %vm652, %v4345, %v4346
    %v4348 = vrot.slane %v3931, 2
    %v4349 = vsel %vm652, %v4346, %v4348
    %v4350 = vrot.slane %v3932, 2
    %v4351 = vrot.slane %v3933, 2
    %v4352 = vsel %vm652, %v4350, %v4351
    %v4353 = vrot.slane %v3934, 2
    %v4354 = vsel %vm652, %v4351, %v4353
    %v4355 = vrot.slane %v3935, 2
    %v4356 = vrot.slane %v3936, 2
    %v4357 = vsel %vm652, %v4355, %v4356
    %v4358 = vrot.slane %v3937, 2
    %v4359 = vsel %vm652, %v4356, %v4358
    %v4366 = vrot.slane %v3884, 1
    %v4367 = vrot.slane %v3885, 1
    %v4368 = vsel %vm491, %v4366, %v4367
    %v4369 = vrot.slane %v3886, 1
    %v4370 = vsel %vm491, %v4367, %v4369
    %v4371 = vrot.slane %v3938, 1
    %v4372 = vrot.slane %v3939, 1
    %v4373 = vsel %vm491, %v4371, %v4372
    %v4374 = vrot.slane %v3940, 1
    %v4375 = vsel %vm491, %v4372, %v4374
    %v4376 = vrot.slane %v3884, 2
    %v4377 = vrot.slane %v3885, 2
    %v4378 = vsel %vm652, %v4376, %v4377
    %v4379 = vrot.slane %v3886, 2
    %v4380 = vsel %vm652, %v4377, %v4379
    %v4381 = vrot.slane %v3938, 2
    %v4382 = vrot.slane %v3939, 2
    %v4383 = vsel %vm652, %v4381, %v4382
    %v4384 = vrot.slane %v3940, 2
    %v4385 = vsel %vm652, %v4382, %v4384
    %v4392 = vrot.slane %v3887, 1
    %v4393 = vrot.slane %v3888, 1
    %v4394 = vsel %vm491, %v4392, %v4393
    %v4395 = vrot.slane %v3889, 1
    %v4396 = vsel %vm491, %v4393, %v4395
    %v4397 = vrot.slane %v3941, 1
    %v4398 = vrot.slane %v3942, 1
    %v4399 = vsel %vm491, %v4397, %v4398
    %v4400 = vrot.slane %v3943, 1
    %v4401 = vsel %vm491, %v4398, %v4400
    %v4402 = vrot.slane %v3887, 2
    %v4403 = vrot.slane %v3888, 2
    %v4404 = vsel %vm652, %v4402, %v4403
    %v4405 = vrot.slane %v3889, 2
    %v4406 = vsel %vm652, %v4403, %v4405
    %v4407 = vrot.slane %v3941, 2
    %v4408 = vrot.slane %v3942, 2
    %v4409 = vsel %vm652, %v4407, %v4408
    %v4410 = vrot.slane %v3943, 2
    %v4411 = vsel %vm652, %v4408, %v4410
    %4476 = vrot.lane.b32.xlu0 %v4042, 16
    %v4477 = vpop.permute.xlu0 %4476
    %4478 = vrot.lane.b32.xlu0 %v4044, 16
    %v4479 = vpop.permute.xlu0 %4478
    %4480 = vrot.lane.b32.xlu0 %v4047, 16
    %v4481 = vpop.permute.xlu0 %4480
    %4482 = vrot.lane.b32.xlu0 %v4049, 16
    %v4483 = vpop.permute.xlu0 %4482
    %4484 = vrot.lane.b32.xlu0 %v4052, 16
    %v4485 = vpop.permute.xlu0 %4484
    %4486 = vrot.lane.b32.xlu0 %v4054, 16
    %v4487 = vpop.permute.xlu0 %4486
    %4488 = vrot.lane.b32.xlu0 %v4057, 16
    %v4489 = vpop.permute.xlu0 %4488
    %4490 = vrot.lane.b32.xlu0 %v4059, 16
    %v4491 = vpop.permute.xlu0 %4490
    %4492 = vrot.lane.b32.xlu0 %v4062, 16
    %v4493 = vpop.permute.xlu0 %4492
    %4494 = vrot.lane.b32.xlu0 %v4064, 16
    %v4495 = vpop.permute.xlu0 %4494
    %4496 = vrot.lane.b32.xlu0 %v4067, 16
    %v4497 = vpop.permute.xlu0 %4496
    %4498 = vrot.lane.b32.xlu0 %v4069, 16
    %v4499 = vpop.permute.xlu0 %4498
    %4500 = vrot.lane.b32.xlu0 %v4072, 16
    %v4501 = vpop.permute.xlu0 %4500
    %4502 = vrot.lane.b32.xlu0 %v4074, 16
    %v4503 = vpop.permute.xlu0 %4502
    %4504 = vrot.lane.b32.xlu0 %v4077, 16
    %v4505 = vpop.permute.xlu0 %4504
    %4506 = vrot.lane.b32.xlu0 %v4079, 16
    %v4507 = vpop.permute.xlu0 %4506
    %4508 = vrot.lane.b32.xlu0 %v4082, 16
    %v4509 = vpop.permute.xlu0 %4508
    %4510 = vrot.lane.b32.xlu0 %v4084, 16
    %v4511 = vpop.permute.xlu0 %4510
    %4512 = vrot.lane.b32.xlu0 %v4087, 16
    %v4513 = vpop.permute.xlu0 %4512
    %4514 = vrot.lane.b32.xlu0 %v4089, 16
    %v4515 = vpop.permute.xlu0 %4514
    %4516 = vrot.lane.b32.xlu0 %v4092, 16
    %v4517 = vpop.permute.xlu0 %4516
    %4518 = vrot.lane.b32.xlu0 %v4094, 16
    %v4519 = vpop.permute.xlu0 %4518
    %4520 = vrot.lane.b32.xlu0 %v4097, 16
    %v4521 = vpop.permute.xlu0 %4520
    %4522 = vrot.lane.b32.xlu0 %v4099, 16
    %v4523 = vpop.permute.xlu0 %4522
    %4524 = vrot.lane.b32.xlu0 %v4102, 16
    %v4525 = vpop.permute.xlu0 %4524
    %4526 = vrot.lane.b32.xlu0 %v4104, 16
    %v4527 = vpop.permute.xlu0 %4526
    %4528 = vrot.lane.b32.xlu0 %v4107, 16
    %v4529 = vpop.permute.xlu0 %4528
    %4530 = vrot.lane.b32.xlu0 %v4109, 16
    %v4531 = vpop.permute.xlu0 %4530
    %4532 = vrot.lane.b32.xlu0 %v4112, 16
    %v4533 = vpop.permute.xlu0 %4532
    %4534 = vrot.lane.b32.xlu0 %v4114, 16
    %v4535 = vpop.permute.xlu0 %4534
    %4536 = vrot.lane.b32.xlu0 %v4117, 16
    %v4537 = vpop.permute.xlu0 %4536
    %4538 = vrot.lane.b32.xlu0 %v4119, 16
    %v4539 = vpop.permute.xlu0 %4538
    %4540 = vrot.lane.b32.xlu0 %v4122, 16
    %v4541 = vpop.permute.xlu0 %4540
    %4542 = vrot.lane.b32.xlu0 %v4124, 16
    %v4543 = vpop.permute.xlu0 %4542
    %4544 = vrot.lane.b32.xlu0 %v4127, 16
    %v4545 = vpop.permute.xlu0 %4544
    %4546 = vrot.lane.b32.xlu0 %v4129, 16
    %v4547 = vpop.permute.xlu0 %4546
    %4548 = vrot.lane.b32.xlu0 %v4132, 16
    %v4549 = vpop.permute.xlu0 %4548
    %4550 = vrot.lane.b32.xlu0 %v4134, 16
    %v4551 = vpop.permute.xlu0 %4550
    %4552 = vrot.lane.b32.xlu0 %v4137, 16
    %v4553 = vpop.permute.xlu0 %4552
    %4554 = vrot.lane.b32.xlu0 %v4139, 16
    %v4555 = vpop.permute.xlu0 %4554
    %4556 = vrot.lane.b32.xlu0 %v4142, 16
    %v4557 = vpop.permute.xlu0 %4556
    %4558 = vrot.lane.b32.xlu0 %v4144, 16
    %v4559 = vpop.permute.xlu0 %4558
    %4560 = vrot.lane.b32.xlu0 %v4147, 16
    %v4561 = vpop.permute.xlu0 %4560
    %4562 = vrot.lane.b32.xlu0 %v4149, 16
    %v4563 = vpop.permute.xlu0 %4562
    %4564 = vrot.lane.b32.xlu0 %v4152, 16
    %v4565 = vpop.permute.xlu0 %4564
    %4566 = vrot.lane.b32.xlu0 %v4154, 16
    %v4567 = vpop.permute.xlu0 %4566
    %4568 = vrot.lane.b32.xlu0 %v4157, 16
    %v4569 = vpop.permute.xlu0 %4568
    %4570 = vrot.lane.b32.xlu0 %v4159, 16
    %v4571 = vpop.permute.xlu0 %4570
    %4572 = vrot.lane.b32.xlu0 %v4162, 16
    %v4573 = vpop.permute.xlu0 %4572
    %4574 = vrot.lane.b32.xlu0 %v4164, 16
    %v4575 = vpop.permute.xlu0 %4574
    %4576 = vrot.lane.b32.xlu0 %v4167, 16
    %v4577 = vpop.permute.xlu0 %4576
    %4578 = vrot.lane.b32.xlu0 %v4169, 16
    %v4579 = vpop.permute.xlu0 %4578
    %4580 = vrot.lane.b32.xlu0 %v4172, 16
    %v4581 = vpop.permute.xlu0 %4580
    %4582 = vrot.lane.b32.xlu0 %v4174, 16
    %v4583 = vpop.permute.xlu0 %4582
    %4584 = vrot.lane.b32.xlu0 %v4177, 16
    %v4585 = vpop.permute.xlu0 %4584
    %4586 = vrot.lane.b32.xlu0 %v4179, 16
    %v4587 = vpop.permute.xlu0 %4586
    %4588 = vrot.lane.b32.xlu0 %v4182, 16
    %v4589 = vpop.permute.xlu0 %4588
    %4590 = vrot.lane.b32.xlu0 %v4184, 16
    %v4591 = vpop.permute.xlu0 %4590
    %4592 = vrot.lane.b32.xlu0 %v4187, 16
    %v4593 = vpop.permute.xlu0 %4592
    %4594 = vrot.lane.b32.xlu0 %v4189, 16
    %v4595 = vpop.permute.xlu0 %4594
    %4596 = vrot.lane.b32.xlu0 %v4192, 16
    %v4597 = vpop.permute.xlu0 %4596
    %4598 = vrot.lane.b32.xlu0 %v4194, 16
    %v4599 = vpop.permute.xlu0 %4598
    %4600 = vrot.lane.b32.xlu0 %v4197, 16
    %v4601 = vpop.permute.xlu0 %4600
    %4602 = vrot.lane.b32.xlu0 %v4199, 16
    %v4603 = vpop.permute.xlu0 %4602
    %4668 = vrot.lane.b32.xlu0 %v4202, 32
    %v4669 = vpop.permute.xlu0 %4668
    %4670 = vrot.lane.b32.xlu0 %v4204, 32
    %v4671 = vpop.permute.xlu0 %4670
    %4672 = vrot.lane.b32.xlu0 %v4207, 32
    %v4673 = vpop.permute.xlu0 %4672
    %4674 = vrot.lane.b32.xlu0 %v4209, 32
    %v4675 = vpop.permute.xlu0 %4674
    %4676 = vrot.lane.b32.xlu0 %v4212, 32
    %v4677 = vpop.permute.xlu0 %4676
    %4678 = vrot.lane.b32.xlu0 %v4214, 32
    %v4679 = vpop.permute.xlu0 %4678
    %4680 = vrot.lane.b32.xlu0 %v4217, 32
    %v4681 = vpop.permute.xlu0 %4680
    %4682 = vrot.lane.b32.xlu0 %v4219, 32
    %v4683 = vpop.permute.xlu0 %4682
    %4684 = vrot.lane.b32.xlu0 %v4222, 32
    %v4685 = vpop.permute.xlu0 %4684
    %4686 = vrot.lane.b32.xlu0 %v4224, 32
    %v4687 = vpop.permute.xlu0 %4686
    %4688 = vrot.lane.b32.xlu0 %v4227, 32
    %v4689 = vpop.permute.xlu0 %4688
    %4690 = vrot.lane.b32.xlu0 %v4229, 32
    %v4691 = vpop.permute.xlu0 %4690
    %4692 = vrot.lane.b32.xlu0 %v4232, 32
    %v4693 = vpop.permute.xlu0 %4692
    %4694 = vrot.lane.b32.xlu0 %v4234, 32
    %v4695 = vpop.permute.xlu0 %4694
    %4696 = vrot.lane.b32.xlu0 %v4237, 32
    %v4697 = vpop.permute.xlu0 %4696
    %4698 = vrot.lane.b32.xlu0 %v4239, 32
    %v4699 = vpop.permute.xlu0 %4698
    %4700 = vrot.lane.b32.xlu0 %v4242, 32
    %v4701 = vpop.permute.xlu0 %4700
    %4702 = vrot.lane.b32.xlu0 %v4244, 32
    %v4703 = vpop.permute.xlu0 %4702
    %4704 = vrot.lane.b32.xlu0 %v4247, 32
    %v4705 = vpop.permute.xlu0 %4704
    %4706 = vrot.lane.b32.xlu0 %v4249, 32
    %v4707 = vpop.permute.xlu0 %4706
    %4708 = vrot.lane.b32.xlu0 %v4252, 32
    %v4709 = vpop.permute.xlu0 %4708
    %4710 = vrot.lane.b32.xlu0 %v4254, 32
    %v4711 = vpop.permute.xlu0 %4710
    %4712 = vrot.lane.b32.xlu0 %v4257, 32
    %v4713 = vpop.permute.xlu0 %4712
    %4714 = vrot.lane.b32.xlu0 %v4259, 32
    %v4715 = vpop.permute.xlu0 %4714
    %4716 = vrot.lane.b32.xlu0 %v4262, 32
    %v4717 = vpop.permute.xlu0 %4716
    %4718 = vrot.lane.b32.xlu0 %v4264, 32
    %v4719 = vpop.permute.xlu0 %4718
    %4720 = vrot.lane.b32.xlu0 %v4267, 32
    %v4721 = vpop.permute.xlu0 %4720
    %4722 = vrot.lane.b32.xlu0 %v4269, 32
    %v4723 = vpop.permute.xlu0 %4722
    %4724 = vrot.lane.b32.xlu0 %v4272, 32
    %v4725 = vpop.permute.xlu0 %4724
    %4726 = vrot.lane.b32.xlu0 %v4274, 32
    %v4727 = vpop.permute.xlu0 %4726
    %4728 = vrot.lane.b32.xlu0 %v4277, 32
    %v4729 = vpop.permute.xlu0 %4728
    %4730 = vrot.lane.b32.xlu0 %v4279, 32
    %v4731 = vpop.permute.xlu0 %4730
    %4732 = vrot.lane.b32.xlu0 %v4282, 32
    %v4733 = vpop.permute.xlu0 %4732
    %4734 = vrot.lane.b32.xlu0 %v4284, 32
    %v4735 = vpop.permute.xlu0 %4734
    %4736 = vrot.lane.b32.xlu0 %v4287, 32
    %v4737 = vpop.permute.xlu0 %4736
    %4738 = vrot.lane.b32.xlu0 %v4289, 32
    %v4739 = vpop.permute.xlu0 %4738
    %4740 = vrot.lane.b32.xlu0 %v4292, 32
    %v4741 = vpop.permute.xlu0 %4740
    %4742 = vrot.lane.b32.xlu0 %v4294, 32
    %v4743 = vpop.permute.xlu0 %4742
    %4744 = vrot.lane.b32.xlu0 %v4297, 32
    %v4745 = vpop.permute.xlu0 %4744
    %4746 = vrot.lane.b32.xlu0 %v4299, 32
    %v4747 = vpop.permute.xlu0 %4746
    %4748 = vrot.lane.b32.xlu0 %v4302, 32
    %v4749 = vpop.permute.xlu0 %4748
    %4750 = vrot.lane.b32.xlu0 %v4304, 32
    %v4751 = vpop.permute.xlu0 %4750
    %4752 = vrot.lane.b32.xlu0 %v4307, 32
    %v4753 = vpop.permute.xlu0 %4752
    %4754 = vrot.lane.b32.xlu0 %v4309, 32
    %v4755 = vpop.permute.xlu0 %4754
    %4756 = vrot.lane.b32.xlu0 %v4312, 32
    %v4757 = vpop.permute.xlu0 %4756
    %4758 = vrot.lane.b32.xlu0 %v4314, 32
    %v4759 = vpop.permute.xlu0 %4758
    %4760 = vrot.lane.b32.xlu0 %v4317, 32
    %v4761 = vpop.permute.xlu0 %4760
    %4762 = vrot.lane.b32.xlu0 %v4319, 32
    %v4763 = vpop.permute.xlu0 %4762
    %4764 = vrot.lane.b32.xlu0 %v4322, 32
    %v4765 = vpop.permute.xlu0 %4764
    %4766 = vrot.lane.b32.xlu0 %v4324, 32
    %v4767 = vpop.permute.xlu0 %4766
    %4768 = vrot.lane.b32.xlu0 %v4327, 32
    %v4769 = vpop.permute.xlu0 %4768
    %4770 = vrot.lane.b32.xlu0 %v4329, 32
    %v4771 = vpop.permute.xlu0 %4770
    %4772 = vrot.lane.b32.xlu0 %v4332, 32
    %v4773 = vpop.permute.xlu0 %4772
    %4774 = vrot.lane.b32.xlu0 %v4334, 32
    %v4775 = vpop.permute.xlu0 %4774
    %4776 = vrot.lane.b32.xlu0 %v4337, 32
    %v4777 = vpop.permute.xlu0 %4776
    %4778 = vrot.lane.b32.xlu0 %v4339, 32
    %v4779 = vpop.permute.xlu0 %4778
    %4780 = vrot.lane.b32.xlu0 %v4342, 32
    %v4781 = vpop.permute.xlu0 %4780
    %4782 = vrot.lane.b32.xlu0 %v4344, 32
    %v4783 = vpop.permute.xlu0 %4782
    %4784 = vrot.lane.b32.xlu0 %v4347, 32
    %v4785 = vpop.permute.xlu0 %4784
    %4786 = vrot.lane.b32.xlu0 %v4349, 32
    %v4787 = vpop.permute.xlu0 %4786
    %4788 = vrot.lane.b32.xlu0 %v4352, 32
    %v4789 = vpop.permute.xlu0 %4788
    %4790 = vrot.lane.b32.xlu0 %v4354, 32
    %v4791 = vpop.permute.xlu0 %4790
    %4792 = vrot.lane.b32.xlu0 %v4357, 32
    %v4793 = vpop.permute.xlu0 %4792
    %4794 = vrot.lane.b32.xlu0 %v4359, 32
    %v4795 = vpop.permute.xlu0 %4794
    %4860 = vrot.lane.b32.xlu0 %v3839, 48
    %v4861 = vpop.permute.xlu0 %4860
    %4862 = vrot.lane.b32.xlu0 %v3840, 48
    %v4863 = vpop.permute.xlu0 %4862
    %4864 = vrot.lane.b32.xlu0 %v3842, 48
    %v4865 = vpop.permute.xlu0 %4864
    %4866 = vrot.lane.b32.xlu0 %v3843, 48
    %v4867 = vpop.permute.xlu0 %4866
    %4868 = vrot.lane.b32.xlu0 %v3845, 48
    %v4869 = vpop.permute.xlu0 %4868
    %4870 = vrot.lane.b32.xlu0 %v3846, 48
    %v4871 = vpop.permute.xlu0 %4870
    %4872 = vrot.lane.b32.xlu0 %v3848, 48
    %v4873 = vpop.permute.xlu0 %4872
    %4874 = vrot.lane.b32.xlu0 %v3849, 48
    %v4875 = vpop.permute.xlu0 %4874
    %4876 = vrot.lane.b32.xlu0 %v3851, 48
    %v4877 = vpop.permute.xlu0 %4876
    %4878 = vrot.lane.b32.xlu0 %v3852, 48
    %v4879 = vpop.permute.xlu0 %4878
    %4880 = vrot.lane.b32.xlu0 %v3854, 48
    %v4881 = vpop.permute.xlu0 %4880
    %4882 = vrot.lane.b32.xlu0 %v3855, 48
    %v4883 = vpop.permute.xlu0 %4882
    %4884 = vrot.lane.b32.xlu0 %v3857, 48
    %v4885 = vpop.permute.xlu0 %4884
    %4886 = vrot.lane.b32.xlu0 %v3858, 48
    %v4887 = vpop.permute.xlu0 %4886
    %4888 = vrot.lane.b32.xlu0 %v3860, 48
    %v4889 = vpop.permute.xlu0 %4888
    %4890 = vrot.lane.b32.xlu0 %v3861, 48
    %v4891 = vpop.permute.xlu0 %4890
    %4892 = vrot.lane.b32.xlu0 %v3863, 48
    %v4893 = vpop.permute.xlu0 %4892
    %4894 = vrot.lane.b32.xlu0 %v3864, 48
    %v4895 = vpop.permute.xlu0 %4894
    %4896 = vrot.lane.b32.xlu0 %v3866, 48
    %v4897 = vpop.permute.xlu0 %4896
    %4898 = vrot.lane.b32.xlu0 %v3867, 48
    %v4899 = vpop.permute.xlu0 %4898
    %4900 = vrot.lane.b32.xlu0 %v3869, 48
    %v4901 = vpop.permute.xlu0 %4900
    %4902 = vrot.lane.b32.xlu0 %v3870, 48
    %v4903 = vpop.permute.xlu0 %4902
    %4904 = vrot.lane.b32.xlu0 %v3872, 48
    %v4905 = vpop.permute.xlu0 %4904
    %4906 = vrot.lane.b32.xlu0 %v3873, 48
    %v4907 = vpop.permute.xlu0 %4906
    %4908 = vrot.lane.b32.xlu0 %v3875, 48
    %v4909 = vpop.permute.xlu0 %4908
    %4910 = vrot.lane.b32.xlu0 %v3876, 48
    %v4911 = vpop.permute.xlu0 %4910
    %4912 = vrot.lane.b32.xlu0 %v3878, 48
    %v4913 = vpop.permute.xlu0 %4912
    %4914 = vrot.lane.b32.xlu0 %v3879, 48
    %v4915 = vpop.permute.xlu0 %4914
    %4916 = vrot.lane.b32.xlu0 %v3881, 48
    %v4917 = vpop.permute.xlu0 %4916
    %4918 = vrot.lane.b32.xlu0 %v3882, 48
    %v4919 = vpop.permute.xlu0 %4918
    %4920 = vrot.lane.b32.xlu0 %v3884, 48
    %v4921 = vpop.permute.xlu0 %4920
    %4922 = vrot.lane.b32.xlu0 %v3885, 48
    %v4923 = vpop.permute.xlu0 %4922
    %4924 = vrot.lane.b32.xlu0 %v3893, 48
    %v4925 = vpop.permute.xlu0 %4924
    %4926 = vrot.lane.b32.xlu0 %v3894, 48
    %v4927 = vpop.permute.xlu0 %4926
    %4928 = vrot.lane.b32.xlu0 %v3896, 48
    %v4929 = vpop.permute.xlu0 %4928
    %4930 = vrot.lane.b32.xlu0 %v3897, 48
    %v4931 = vpop.permute.xlu0 %4930
    %4932 = vrot.lane.b32.xlu0 %v3899, 48
    %v4933 = vpop.permute.xlu0 %4932
    %4934 = vrot.lane.b32.xlu0 %v3900, 48
    %v4935 = vpop.permute.xlu0 %4934
    %4936 = vrot.lane.b32.xlu0 %v3902, 48
    %v4937 = vpop.permute.xlu0 %4936
    %4938 = vrot.lane.b32.xlu0 %v3903, 48
    %v4939 = vpop.permute.xlu0 %4938
    %4940 = vrot.lane.b32.xlu0 %v3905, 48
    %v4941 = vpop.permute.xlu0 %4940
    %4942 = vrot.lane.b32.xlu0 %v3906, 48
    %v4943 = vpop.permute.xlu0 %4942
    %4944 = vrot.lane.b32.xlu0 %v3908, 48
    %v4945 = vpop.permute.xlu0 %4944
    %4946 = vrot.lane.b32.xlu0 %v3909, 48
    %v4947 = vpop.permute.xlu0 %4946
    %4948 = vrot.lane.b32.xlu0 %v3911, 48
    %v4949 = vpop.permute.xlu0 %4948
    %4950 = vrot.lane.b32.xlu0 %v3912, 48
    %v4951 = vpop.permute.xlu0 %4950
    %4952 = vrot.lane.b32.xlu0 %v3914, 48
    %v4953 = vpop.permute.xlu0 %4952
    %4954 = vrot.lane.b32.xlu0 %v3915, 48
    %v4955 = vpop.permute.xlu0 %4954
    %4956 = vrot.lane.b32.xlu0 %v3917, 48
    %v4957 = vpop.permute.xlu0 %4956
    %4958 = vrot.lane.b32.xlu0 %v3918, 48
    %v4959 = vpop.permute.xlu0 %4958
    %4960 = vrot.lane.b32.xlu0 %v3920, 48
    %v4961 = vpop.permute.xlu0 %4960
    %4962 = vrot.lane.b32.xlu0 %v3921, 48
    %v4963 = vpop.permute.xlu0 %4962
    %4964 = vrot.lane.b32.xlu0 %v3923, 48
    %v4965 = vpop.permute.xlu0 %4964
    %4966 = vrot.lane.b32.xlu0 %v3924, 48
    %v4967 = vpop.permute.xlu0 %4966
    %4968 = vrot.lane.b32.xlu0 %v3926, 48
    %v4969 = vpop.permute.xlu0 %4968
    %4970 = vrot.lane.b32.xlu0 %v3927, 48
    %v4971 = vpop.permute.xlu0 %4970
    %4972 = vrot.lane.b32.xlu0 %v3929, 48
    %v4973 = vpop.permute.xlu0 %4972
    %4974 = vrot.lane.b32.xlu0 %v3930, 48
    %v4975 = vpop.permute.xlu0 %4974
    %4976 = vrot.lane.b32.xlu0 %v3932, 48
    %v4977 = vpop.permute.xlu0 %4976
    %4978 = vrot.lane.b32.xlu0 %v3933, 48
    %v4979 = vpop.permute.xlu0 %4978
    %4980 = vrot.lane.b32.xlu0 %v3935, 48
    %v4981 = vpop.permute.xlu0 %4980
    %4982 = vrot.lane.b32.xlu0 %v3936, 48
    %v4983 = vpop.permute.xlu0 %4982
    %4984 = vrot.lane.b32.xlu0 %v3938, 48
    %v4985 = vpop.permute.xlu0 %4984
    %4986 = vrot.lane.b32.xlu0 %v3939, 48
    %v4987 = vpop.permute.xlu0 %4986
    %5052 = vrot.lane.b32.xlu0 %v4047, 64
    %v5053 = vpop.permute.xlu0 %5052
    %5054 = vrot.lane.b32.xlu0 %v4049, 64
    %v5055 = vpop.permute.xlu0 %5054
    %5056 = vrot.lane.b32.xlu0 %v4052, 64
    %v5057 = vpop.permute.xlu0 %5056
    %5058 = vrot.lane.b32.xlu0 %v4054, 64
    %v5059 = vpop.permute.xlu0 %5058
    %5060 = vrot.lane.b32.xlu0 %v4057, 64
    %v5061 = vpop.permute.xlu0 %5060
    %5062 = vrot.lane.b32.xlu0 %v4059, 64
    %v5063 = vpop.permute.xlu0 %5062
    %5064 = vrot.lane.b32.xlu0 %v4062, 64
    %v5065 = vpop.permute.xlu0 %5064
    %5066 = vrot.lane.b32.xlu0 %v4064, 64
    %v5067 = vpop.permute.xlu0 %5066
    %5068 = vrot.lane.b32.xlu0 %v4067, 64
    %v5069 = vpop.permute.xlu0 %5068
    %5070 = vrot.lane.b32.xlu0 %v4069, 64
    %v5071 = vpop.permute.xlu0 %5070
    %5072 = vrot.lane.b32.xlu0 %v4072, 64
    %v5073 = vpop.permute.xlu0 %5072
    %5074 = vrot.lane.b32.xlu0 %v4074, 64
    %v5075 = vpop.permute.xlu0 %5074
    %5076 = vrot.lane.b32.xlu0 %v4077, 64
    %v5077 = vpop.permute.xlu0 %5076
    %5078 = vrot.lane.b32.xlu0 %v4079, 64
    %v5079 = vpop.permute.xlu0 %5078
    %5080 = vrot.lane.b32.xlu0 %v4082, 64
    %v5081 = vpop.permute.xlu0 %5080
    %5082 = vrot.lane.b32.xlu0 %v4084, 64
    %v5083 = vpop.permute.xlu0 %5082
    %5084 = vrot.lane.b32.xlu0 %v4087, 64
    %v5085 = vpop.permute.xlu0 %5084
    %5086 = vrot.lane.b32.xlu0 %v4089, 64
    %v5087 = vpop.permute.xlu0 %5086
    %5088 = vrot.lane.b32.xlu0 %v4092, 64
    %v5089 = vpop.permute.xlu0 %5088
    %5090 = vrot.lane.b32.xlu0 %v4094, 64
    %v5091 = vpop.permute.xlu0 %5090
    %5092 = vrot.lane.b32.xlu0 %v4097, 64
    %v5093 = vpop.permute.xlu0 %5092
    %5094 = vrot.lane.b32.xlu0 %v4099, 64
    %v5095 = vpop.permute.xlu0 %5094
    %5096 = vrot.lane.b32.xlu0 %v4102, 64
    %v5097 = vpop.permute.xlu0 %5096
    %5098 = vrot.lane.b32.xlu0 %v4104, 64
    %v5099 = vpop.permute.xlu0 %5098
    %5100 = vrot.lane.b32.xlu0 %v4107, 64
    %v5101 = vpop.permute.xlu0 %5100
    %5102 = vrot.lane.b32.xlu0 %v4109, 64
    %v5103 = vpop.permute.xlu0 %5102
    %5104 = vrot.lane.b32.xlu0 %v4112, 64
    %v5105 = vpop.permute.xlu0 %5104
    %5106 = vrot.lane.b32.xlu0 %v4114, 64
    %v5107 = vpop.permute.xlu0 %5106
    %5108 = vrot.lane.b32.xlu0 %v4117, 64
    %v5109 = vpop.permute.xlu0 %5108
    %5110 = vrot.lane.b32.xlu0 %v4119, 64
    %v5111 = vpop.permute.xlu0 %5110
    %5112 = vrot.lane.b32.xlu0 %v4368, 64
    %v5113 = vpop.permute.xlu0 %5112
    %5114 = vrot.lane.b32.xlu0 %v4370, 64
    %v5115 = vpop.permute.xlu0 %5114
    %5116 = vrot.lane.b32.xlu0 %v4127, 64
    %v5117 = vpop.permute.xlu0 %5116
    %5118 = vrot.lane.b32.xlu0 %v4129, 64
    %v5119 = vpop.permute.xlu0 %5118
    %5120 = vrot.lane.b32.xlu0 %v4132, 64
    %v5121 = vpop.permute.xlu0 %5120
    %5122 = vrot.lane.b32.xlu0 %v4134, 64
    %v5123 = vpop.permute.xlu0 %5122
    %5124 = vrot.lane.b32.xlu0 %v4137, 64
    %v5125 = vpop.permute.xlu0 %5124
    %5126 = vrot.lane.b32.xlu0 %v4139, 64
    %v5127 = vpop.permute.xlu0 %5126
    %5128 = vrot.lane.b32.xlu0 %v4142, 64
    %v5129 = vpop.permute.xlu0 %5128
    %5130 = vrot.lane.b32.xlu0 %v4144, 64
    %v5131 = vpop.permute.xlu0 %5130
    %5132 = vrot.lane.b32.xlu0 %v4147, 64
    %v5133 = vpop.permute.xlu0 %5132
    %5134 = vrot.lane.b32.xlu0 %v4149, 64
    %v5135 = vpop.permute.xlu0 %5134
    %5136 = vrot.lane.b32.xlu0 %v4152, 64
    %v5137 = vpop.permute.xlu0 %5136
    %5138 = vrot.lane.b32.xlu0 %v4154, 64
    %v5139 = vpop.permute.xlu0 %5138
    %5140 = vrot.lane.b32.xlu0 %v4157, 64
    %v5141 = vpop.permute.xlu0 %5140
    %5142 = vrot.lane.b32.xlu0 %v4159, 64
    %v5143 = vpop.permute.xlu0 %5142
    %5144 = vrot.lane.b32.xlu0 %v4162, 64
    %v5145 = vpop.permute.xlu0 %5144
    %5146 = vrot.lane.b32.xlu0 %v4164, 64
    %v5147 = vpop.permute.xlu0 %5146
    %5148 = vrot.lane.b32.xlu0 %v4167, 64
    %v5149 = vpop.permute.xlu0 %5148
    %5150 = vrot.lane.b32.xlu0 %v4169, 64
    %v5151 = vpop.permute.xlu0 %5150
    %5152 = vrot.lane.b32.xlu0 %v4172, 64
    %v5153 = vpop.permute.xlu0 %5152
    %5154 = vrot.lane.b32.xlu0 %v4174, 64
    %v5155 = vpop.permute.xlu0 %5154
    %5156 = vrot.lane.b32.xlu0 %v4177, 64
    %v5157 = vpop.permute.xlu0 %5156
    %5158 = vrot.lane.b32.xlu0 %v4179, 64
    %v5159 = vpop.permute.xlu0 %5158
    %5160 = vrot.lane.b32.xlu0 %v4182, 64
    %v5161 = vpop.permute.xlu0 %5160
    %5162 = vrot.lane.b32.xlu0 %v4184, 64
    %v5163 = vpop.permute.xlu0 %5162
    %5164 = vrot.lane.b32.xlu0 %v4187, 64
    %v5165 = vpop.permute.xlu0 %5164
    %5166 = vrot.lane.b32.xlu0 %v4189, 64
    %v5167 = vpop.permute.xlu0 %5166
    %5168 = vrot.lane.b32.xlu0 %v4192, 64
    %v5169 = vpop.permute.xlu0 %5168
    %5170 = vrot.lane.b32.xlu0 %v4194, 64
    %v5171 = vpop.permute.xlu0 %5170
    %5172 = vrot.lane.b32.xlu0 %v4197, 64
    %v5173 = vpop.permute.xlu0 %5172
    %5174 = vrot.lane.b32.xlu0 %v4199, 64
    %v5175 = vpop.permute.xlu0 %5174
    %5176 = vrot.lane.b32.xlu0 %v4373, 64
    %v5177 = vpop.permute.xlu0 %5176
    %5178 = vrot.lane.b32.xlu0 %v4375, 64
    %v5179 = vpop.permute.xlu0 %5178
    %5244 = vrot.lane.b32.xlu0 %v4207, 80
    %v5245 = vpop.permute.xlu0 %5244
    %5246 = vrot.lane.b32.xlu0 %v4209, 80
    %v5247 = vpop.permute.xlu0 %5246
    %5248 = vrot.lane.b32.xlu0 %v4212, 80
    %v5249 = vpop.permute.xlu0 %5248
    %5250 = vrot.lane.b32.xlu0 %v4214, 80
    %v5251 = vpop.permute.xlu0 %5250
    %5252 = vrot.lane.b32.xlu0 %v4217, 80
    %v5253 = vpop.permute.xlu0 %5252
    %5254 = vrot.lane.b32.xlu0 %v4219, 80
    %v5255 = vpop.permute.xlu0 %5254
    %5256 = vrot.lane.b32.xlu0 %v4222, 80
    %v5257 = vpop.permute.xlu0 %5256
    %5258 = vrot.lane.b32.xlu0 %v4224, 80
    %v5259 = vpop.permute.xlu0 %5258
    %5260 = vrot.lane.b32.xlu0 %v4227, 80
    %v5261 = vpop.permute.xlu0 %5260
    %5262 = vrot.lane.b32.xlu0 %v4229, 80
    %v5263 = vpop.permute.xlu0 %5262
    %5264 = vrot.lane.b32.xlu0 %v4232, 80
    %v5265 = vpop.permute.xlu0 %5264
    %5266 = vrot.lane.b32.xlu0 %v4234, 80
    %v5267 = vpop.permute.xlu0 %5266
    %5268 = vrot.lane.b32.xlu0 %v4237, 80
    %v5269 = vpop.permute.xlu0 %5268
    %5270 = vrot.lane.b32.xlu0 %v4239, 80
    %v5271 = vpop.permute.xlu0 %5270
    %5272 = vrot.lane.b32.xlu0 %v4242, 80
    %v5273 = vpop.permute.xlu0 %5272
    %5274 = vrot.lane.b32.xlu0 %v4244, 80
    %v5275 = vpop.permute.xlu0 %5274
    %5276 = vrot.lane.b32.xlu0 %v4247, 80
    %v5277 = vpop.permute.xlu0 %5276
    %5278 = vrot.lane.b32.xlu0 %v4249, 80
    %v5279 = vpop.permute.xlu0 %5278
    %5280 = vrot.lane.b32.xlu0 %v4252, 80
    %v5281 = vpop.permute.xlu0 %5280
    %5282 = vrot.lane.b32.xlu0 %v4254, 80
    %v5283 = vpop.permute.xlu0 %5282
    %5284 = vrot.lane.b32.xlu0 %v4257, 80
    %v5285 = vpop.permute.xlu0 %5284
    %5286 = vrot.lane.b32.xlu0 %v4259, 80
    %v5287 = vpop.permute.xlu0 %5286
    %5288 = vrot.lane.b32.xlu0 %v4262, 80
    %v5289 = vpop.permute.xlu0 %5288
    %5290 = vrot.lane.b32.xlu0 %v4264, 80
    %v5291 = vpop.permute.xlu0 %5290
    %5292 = vrot.lane.b32.xlu0 %v4267, 80
    %v5293 = vpop.permute.xlu0 %5292
    %5294 = vrot.lane.b32.xlu0 %v4269, 80
    %v5295 = vpop.permute.xlu0 %5294
    %5296 = vrot.lane.b32.xlu0 %v4272, 80
    %v5297 = vpop.permute.xlu0 %5296
    %5298 = vrot.lane.b32.xlu0 %v4274, 80
    %v5299 = vpop.permute.xlu0 %5298
    %5300 = vrot.lane.b32.xlu0 %v4277, 80
    %v5301 = vpop.permute.xlu0 %5300
    %5302 = vrot.lane.b32.xlu0 %v4279, 80
    %v5303 = vpop.permute.xlu0 %5302
    %5304 = vrot.lane.b32.xlu0 %v4378, 80
    %v5305 = vpop.permute.xlu0 %5304
    %5306 = vrot.lane.b32.xlu0 %v4380, 80
    %v5307 = vpop.permute.xlu0 %5306
    %5308 = vrot.lane.b32.xlu0 %v4287, 80
    %v5309 = vpop.permute.xlu0 %5308
    %5310 = vrot.lane.b32.xlu0 %v4289, 80
    %v5311 = vpop.permute.xlu0 %5310
    %5312 = vrot.lane.b32.xlu0 %v4292, 80
    %v5313 = vpop.permute.xlu0 %5312
    %5314 = vrot.lane.b32.xlu0 %v4294, 80
    %v5315 = vpop.permute.xlu0 %5314
    %5316 = vrot.lane.b32.xlu0 %v4297, 80
    %v5317 = vpop.permute.xlu0 %5316
    %5318 = vrot.lane.b32.xlu0 %v4299, 80
    %v5319 = vpop.permute.xlu0 %5318
    %5320 = vrot.lane.b32.xlu0 %v4302, 80
    %v5321 = vpop.permute.xlu0 %5320
    %5322 = vrot.lane.b32.xlu0 %v4304, 80
    %v5323 = vpop.permute.xlu0 %5322
    %5324 = vrot.lane.b32.xlu0 %v4307, 80
    %v5325 = vpop.permute.xlu0 %5324
    %5326 = vrot.lane.b32.xlu0 %v4309, 80
    %v5327 = vpop.permute.xlu0 %5326
    %5328 = vrot.lane.b32.xlu0 %v4312, 80
    %v5329 = vpop.permute.xlu0 %5328
    %5330 = vrot.lane.b32.xlu0 %v4314, 80
    %v5331 = vpop.permute.xlu0 %5330
    %5332 = vrot.lane.b32.xlu0 %v4317, 80
    %v5333 = vpop.permute.xlu0 %5332
    %5334 = vrot.lane.b32.xlu0 %v4319, 80
    %v5335 = vpop.permute.xlu0 %5334
    %5336 = vrot.lane.b32.xlu0 %v4322, 80
    %v5337 = vpop.permute.xlu0 %5336
    %5338 = vrot.lane.b32.xlu0 %v4324, 80
    %v5339 = vpop.permute.xlu0 %5338
    %5340 = vrot.lane.b32.xlu0 %v4327, 80
    %v5341 = vpop.permute.xlu0 %5340
    %5342 = vrot.lane.b32.xlu0 %v4329, 80
    %v5343 = vpop.permute.xlu0 %5342
    %5344 = vrot.lane.b32.xlu0 %v4332, 80
    %v5345 = vpop.permute.xlu0 %5344
    %5346 = vrot.lane.b32.xlu0 %v4334, 80
    %v5347 = vpop.permute.xlu0 %5346
    %5348 = vrot.lane.b32.xlu0 %v4337, 80
    %v5349 = vpop.permute.xlu0 %5348
    %5350 = vrot.lane.b32.xlu0 %v4339, 80
    %v5351 = vpop.permute.xlu0 %5350
    %5352 = vrot.lane.b32.xlu0 %v4342, 80
    %v5353 = vpop.permute.xlu0 %5352
    %5354 = vrot.lane.b32.xlu0 %v4344, 80
    %v5355 = vpop.permute.xlu0 %5354
    %5356 = vrot.lane.b32.xlu0 %v4347, 80
    %v5357 = vpop.permute.xlu0 %5356
    %5358 = vrot.lane.b32.xlu0 %v4349, 80
    %v5359 = vpop.permute.xlu0 %5358
    %5360 = vrot.lane.b32.xlu0 %v4352, 80
    %v5361 = vpop.permute.xlu0 %5360
    %5362 = vrot.lane.b32.xlu0 %v4354, 80
    %v5363 = vpop.permute.xlu0 %5362
    %5364 = vrot.lane.b32.xlu0 %v4357, 80
    %v5365 = vpop.permute.xlu0 %5364
    %5366 = vrot.lane.b32.xlu0 %v4359, 80
    %v5367 = vpop.permute.xlu0 %5366
    %5368 = vrot.lane.b32.xlu0 %v4383, 80
    %v5369 = vpop.permute.xlu0 %5368
    %5370 = vrot.lane.b32.xlu0 %v4385, 80
    %v5371 = vpop.permute.xlu0 %5370
    %5436 = vrot.lane.b32.xlu0 %v3842, 96
    %v5437 = vpop.permute.xlu0 %5436
    %5438 = vrot.lane.b32.xlu0 %v3843, 96
    %v5439 = vpop.permute.xlu0 %5438
    %5440 = vrot.lane.b32.xlu0 %v3845, 96
    %v5441 = vpop.permute.xlu0 %5440
    %5442 = vrot.lane.b32.xlu0 %v3846, 96
    %v5443 = vpop.permute.xlu0 %5442
    %5444 = vrot.lane.b32.xlu0 %v3848, 96
    %v5445 = vpop.permute.xlu0 %5444
    %5446 = vrot.lane.b32.xlu0 %v3849, 96
    %v5447 = vpop.permute.xlu0 %5446
    %5448 = vrot.lane.b32.xlu0 %v3851, 96
    %v5449 = vpop.permute.xlu0 %5448
    %5450 = vrot.lane.b32.xlu0 %v3852, 96
    %v5451 = vpop.permute.xlu0 %5450
    %5452 = vrot.lane.b32.xlu0 %v3854, 96
    %v5453 = vpop.permute.xlu0 %5452
    %5454 = vrot.lane.b32.xlu0 %v3855, 96
    %v5455 = vpop.permute.xlu0 %5454
    %5456 = vrot.lane.b32.xlu0 %v3857, 96
    %v5457 = vpop.permute.xlu0 %5456
    %5458 = vrot.lane.b32.xlu0 %v3858, 96
    %v5459 = vpop.permute.xlu0 %5458
    %5460 = vrot.lane.b32.xlu0 %v3860, 96
    %v5461 = vpop.permute.xlu0 %5460
    %5462 = vrot.lane.b32.xlu0 %v3861, 96
    %v5463 = vpop.permute.xlu0 %5462
    %5464 = vrot.lane.b32.xlu0 %v3863, 96
    %v5465 = vpop.permute.xlu0 %5464
    %5466 = vrot.lane.b32.xlu0 %v3864, 96
    %v5467 = vpop.permute.xlu0 %5466
    %5468 = vrot.lane.b32.xlu0 %v3866, 96
    %v5469 = vpop.permute.xlu0 %5468
    %5470 = vrot.lane.b32.xlu0 %v3867, 96
    %v5471 = vpop.permute.xlu0 %5470
    %5472 = vrot.lane.b32.xlu0 %v3869, 96
    %v5473 = vpop.permute.xlu0 %5472
    %5474 = vrot.lane.b32.xlu0 %v3870, 96
    %v5475 = vpop.permute.xlu0 %5474
    %5476 = vrot.lane.b32.xlu0 %v3872, 96
    %v5477 = vpop.permute.xlu0 %5476
    %5478 = vrot.lane.b32.xlu0 %v3873, 96
    %v5479 = vpop.permute.xlu0 %5478
    %5480 = vrot.lane.b32.xlu0 %v3875, 96
    %v5481 = vpop.permute.xlu0 %5480
    %5482 = vrot.lane.b32.xlu0 %v3876, 96
    %v5483 = vpop.permute.xlu0 %5482
    %5484 = vrot.lane.b32.xlu0 %v3878, 96
    %v5485 = vpop.permute.xlu0 %5484
    %5486 = vrot.lane.b32.xlu0 %v3879, 96
    %v5487 = vpop.permute.xlu0 %5486
    %5488 = vrot.lane.b32.xlu0 %v3881, 96
    %v5489 = vpop.permute.xlu0 %5488
    %5490 = vrot.lane.b32.xlu0 %v3882, 96
    %v5491 = vpop.permute.xlu0 %5490
    %5492 = vrot.lane.b32.xlu0 %v3884, 96
    %v5493 = vpop.permute.xlu0 %5492
    %5494 = vrot.lane.b32.xlu0 %v3885, 96
    %v5495 = vpop.permute.xlu0 %5494
    %5496 = vrot.lane.b32.xlu0 %v3887, 96
    %v5497 = vpop.permute.xlu0 %5496
    %5498 = vrot.lane.b32.xlu0 %v3888, 96
    %v5499 = vpop.permute.xlu0 %5498
    %5500 = vrot.lane.b32.xlu0 %v3896, 96
    %v5501 = vpop.permute.xlu0 %5500
    %5502 = vrot.lane.b32.xlu0 %v3897, 96
    %v5503 = vpop.permute.xlu0 %5502
    %5504 = vrot.lane.b32.xlu0 %v3899, 96
    %v5505 = vpop.permute.xlu0 %5504
    %5506 = vrot.lane.b32.xlu0 %v3900, 96
    %v5507 = vpop.permute.xlu0 %5506
    %5508 = vrot.lane.b32.xlu0 %v3902, 96
    %v5509 = vpop.permute.xlu0 %5508
    %5510 = vrot.lane.b32.xlu0 %v3903, 96
    %v5511 = vpop.permute.xlu0 %5510
    %5512 = vrot.lane.b32.xlu0 %v3905, 96
    %v5513 = vpop.permute.xlu0 %5512
    %5514 = vrot.lane.b32.xlu0 %v3906, 96
    %v5515 = vpop.permute.xlu0 %5514
    %5516 = vrot.lane.b32.xlu0 %v3908, 96
    %v5517 = vpop.permute.xlu0 %5516
    %5518 = vrot.lane.b32.xlu0 %v3909, 96
    %v5519 = vpop.permute.xlu0 %5518
    %5520 = vrot.lane.b32.xlu0 %v3911, 96
    %v5521 = vpop.permute.xlu0 %5520
    %5522 = vrot.lane.b32.xlu0 %v3912, 96
    %v5523 = vpop.permute.xlu0 %5522
    %5524 = vrot.lane.b32.xlu0 %v3914, 96
    %v5525 = vpop.permute.xlu0 %5524
    %5526 = vrot.lane.b32.xlu0 %v3915, 96
    %v5527 = vpop.permute.xlu0 %5526
    %5528 = vrot.lane.b32.xlu0 %v3917, 96
    %v5529 = vpop.permute.xlu0 %5528
    %5530 = vrot.lane.b32.xlu0 %v3918, 96
    %v5531 = vpop.permute.xlu0 %5530
    %5532 = vrot.lane.b32.xlu0 %v3920, 96
    %v5533 = vpop.permute.xlu0 %5532
    %5534 = vrot.lane.b32.xlu0 %v3921, 96
    %v5535 = vpop.permute.xlu0 %5534
    %5536 = vrot.lane.b32.xlu0 %v3923, 96
    %v5537 = vpop.permute.xlu0 %5536
    %5538 = vrot.lane.b32.xlu0 %v3924, 96
    %v5539 = vpop.permute.xlu0 %5538
    %5540 = vrot.lane.b32.xlu0 %v3926, 96
    %v5541 = vpop.permute.xlu0 %5540
    %5542 = vrot.lane.b32.xlu0 %v3927, 96
    %v5543 = vpop.permute.xlu0 %5542
    %5544 = vrot.lane.b32.xlu0 %v3929, 96
    %v5545 = vpop.permute.xlu0 %5544
    %5546 = vrot.lane.b32.xlu0 %v3930, 96
    %v5547 = vpop.permute.xlu0 %5546
    %5548 = vrot.lane.b32.xlu0 %v3932, 96
    %v5549 = vpop.permute.xlu0 %5548
    %5550 = vrot.lane.b32.xlu0 %v3933, 96
    %v5551 = vpop.permute.xlu0 %5550
    %5552 = vrot.lane.b32.xlu0 %v3935, 96
    %v5553 = vpop.permute.xlu0 %5552
    %5554 = vrot.lane.b32.xlu0 %v3936, 96
    %v5555 = vpop.permute.xlu0 %5554
    %5556 = vrot.lane.b32.xlu0 %v3938, 96
    %v5557 = vpop.permute.xlu0 %5556
    %5558 = vrot.lane.b32.xlu0 %v3939, 96
    %v5559 = vpop.permute.xlu0 %5558
    %5560 = vrot.lane.b32.xlu0 %v3941, 96
    %v5561 = vpop.permute.xlu0 %5560
    %5562 = vrot.lane.b32.xlu0 %v3942, 96
    %v5563 = vpop.permute.xlu0 %5562
    %5628 = vrot.lane.b32.xlu0 %v4052, 112
    %v5629 = vpop.permute.xlu0 %5628
    %5630 = vrot.lane.b32.xlu0 %v4054, 112
    %v5631 = vpop.permute.xlu0 %5630
    %5632 = vrot.lane.b32.xlu0 %v4057, 112
    %v5633 = vpop.permute.xlu0 %5632
    %5634 = vrot.lane.b32.xlu0 %v4059, 112
    %v5635 = vpop.permute.xlu0 %5634
    %5636 = vrot.lane.b32.xlu0 %v4062, 112
    %v5637 = vpop.permute.xlu0 %5636
    %5638 = vrot.lane.b32.xlu0 %v4064, 112
    %v5639 = vpop.permute.xlu0 %5638
    %5640 = vrot.lane.b32.xlu0 %v4067, 112
    %v5641 = vpop.permute.xlu0 %5640
    %5642 = vrot.lane.b32.xlu0 %v4069, 112
    %v5643 = vpop.permute.xlu0 %5642
    %5644 = vrot.lane.b32.xlu0 %v4072, 112
    %v5645 = vpop.permute.xlu0 %5644
    %5646 = vrot.lane.b32.xlu0 %v4074, 112
    %v5647 = vpop.permute.xlu0 %5646
    %5648 = vrot.lane.b32.xlu0 %v4077, 112
    %v5649 = vpop.permute.xlu0 %5648
    %5650 = vrot.lane.b32.xlu0 %v4079, 112
    %v5651 = vpop.permute.xlu0 %5650
    %5652 = vrot.lane.b32.xlu0 %v4082, 112
    %v5653 = vpop.permute.xlu0 %5652
    %5654 = vrot.lane.b32.xlu0 %v4084, 112
    %v5655 = vpop.permute.xlu0 %5654
    %5656 = vrot.lane.b32.xlu0 %v4087, 112
    %v5657 = vpop.permute.xlu0 %5656
    %5658 = vrot.lane.b32.xlu0 %v4089, 112
    %v5659 = vpop.permute.xlu0 %5658
    %5660 = vrot.lane.b32.xlu0 %v4092, 112
    %v5661 = vpop.permute.xlu0 %5660
    %5662 = vrot.lane.b32.xlu0 %v4094, 112
    %v5663 = vpop.permute.xlu0 %5662
    %5664 = vrot.lane.b32.xlu0 %v4097, 112
    %v5665 = vpop.permute.xlu0 %5664
    %5666 = vrot.lane.b32.xlu0 %v4099, 112
    %v5667 = vpop.permute.xlu0 %5666
    %5668 = vrot.lane.b32.xlu0 %v4102, 112
    %v5669 = vpop.permute.xlu0 %5668
    %5670 = vrot.lane.b32.xlu0 %v4104, 112
    %v5671 = vpop.permute.xlu0 %5670
    %5672 = vrot.lane.b32.xlu0 %v4107, 112
    %v5673 = vpop.permute.xlu0 %5672
    %5674 = vrot.lane.b32.xlu0 %v4109, 112
    %v5675 = vpop.permute.xlu0 %5674
    %5676 = vrot.lane.b32.xlu0 %v4112, 112
    %v5677 = vpop.permute.xlu0 %5676
    %5678 = vrot.lane.b32.xlu0 %v4114, 112
    %v5679 = vpop.permute.xlu0 %5678
    %5680 = vrot.lane.b32.xlu0 %v4117, 112
    %v5681 = vpop.permute.xlu0 %5680
    %5682 = vrot.lane.b32.xlu0 %v4119, 112
    %v5683 = vpop.permute.xlu0 %5682
    %5684 = vrot.lane.b32.xlu0 %v4368, 112
    %v5685 = vpop.permute.xlu0 %5684
    %5686 = vrot.lane.b32.xlu0 %v4370, 112
    %v5687 = vpop.permute.xlu0 %5686
    %5688 = vrot.lane.b32.xlu0 %v4394, 112
    %v5689 = vpop.permute.xlu0 %5688
    %5690 = vrot.lane.b32.xlu0 %v4396, 112
    %v5691 = vpop.permute.xlu0 %5690
    %5692 = vrot.lane.b32.xlu0 %v4132, 112
    %v5693 = vpop.permute.xlu0 %5692
    %5694 = vrot.lane.b32.xlu0 %v4134, 112
    %v5695 = vpop.permute.xlu0 %5694
    %5696 = vrot.lane.b32.xlu0 %v4137, 112
    %v5697 = vpop.permute.xlu0 %5696
    %5698 = vrot.lane.b32.xlu0 %v4139, 112
    %v5699 = vpop.permute.xlu0 %5698
    %5700 = vrot.lane.b32.xlu0 %v4142, 112
    %v5701 = vpop.permute.xlu0 %5700
    %5702 = vrot.lane.b32.xlu0 %v4144, 112
    %v5703 = vpop.permute.xlu0 %5702
    %5704 = vrot.lane.b32.xlu0 %v4147, 112
    %v5705 = vpop.permute.xlu0 %5704
    %5706 = vrot.lane.b32.xlu0 %v4149, 112
    %v5707 = vpop.permute.xlu0 %5706
    %5708 = vrot.lane.b32.xlu0 %v4152, 112
    %v5709 = vpop.permute.xlu0 %5708
    %5710 = vrot.lane.b32.xlu0 %v4154, 112
    %v5711 = vpop.permute.xlu0 %5710
    %5712 = vrot.lane.b32.xlu0 %v4157, 112
    %v5713 = vpop.permute.xlu0 %5712
    %5714 = vrot.lane.b32.xlu0 %v4159, 112
    %v5715 = vpop.permute.xlu0 %5714
    %5716 = vrot.lane.b32.xlu0 %v4162, 112
    %v5717 = vpop.permute.xlu0 %5716
    %5718 = vrot.lane.b32.xlu0 %v4164, 112
    %v5719 = vpop.permute.xlu0 %5718
    %5720 = vrot.lane.b32.xlu0 %v4167, 112
    %v5721 = vpop.permute.xlu0 %5720
    %5722 = vrot.lane.b32.xlu0 %v4169, 112
    %v5723 = vpop.permute.xlu0 %5722
    %5724 = vrot.lane.b32.xlu0 %v4172, 112
    %v5725 = vpop.permute.xlu0 %5724
    %5726 = vrot.lane.b32.xlu0 %v4174, 112
    %v5727 = vpop.permute.xlu0 %5726
    %5728 = vrot.lane.b32.xlu0 %v4177, 112
    %v5729 = vpop.permute.xlu0 %5728
    %5730 = vrot.lane.b32.xlu0 %v4179, 112
    %v5731 = vpop.permute.xlu0 %5730
    %5732 = vrot.lane.b32.xlu0 %v4182, 112
    %v5733 = vpop.permute.xlu0 %5732
    %5734 = vrot.lane.b32.xlu0 %v4184, 112
    %v5735 = vpop.permute.xlu0 %5734
    %5736 = vrot.lane.b32.xlu0 %v4187, 112
    %v5737 = vpop.permute.xlu0 %5736
    %5738 = vrot.lane.b32.xlu0 %v4189, 112
    %v5739 = vpop.permute.xlu0 %5738
    %5740 = vrot.lane.b32.xlu0 %v4192, 112
    %v5741 = vpop.permute.xlu0 %5740
    %5742 = vrot.lane.b32.xlu0 %v4194, 112
    %v5743 = vpop.permute.xlu0 %5742
    %5744 = vrot.lane.b32.xlu0 %v4197, 112
    %v5745 = vpop.permute.xlu0 %5744
    %5746 = vrot.lane.b32.xlu0 %v4199, 112
    %v5747 = vpop.permute.xlu0 %5746
    %5748 = vrot.lane.b32.xlu0 %v4373, 112
    %v5749 = vpop.permute.xlu0 %5748
    %5750 = vrot.lane.b32.xlu0 %v4375, 112
    %v5751 = vpop.permute.xlu0 %5750
    %5752 = vrot.lane.b32.xlu0 %v4399, 112
    %v5753 = vpop.permute.xlu0 %5752
    %5754 = vrot.lane.b32.xlu0 %v4401, 112
    %v5755 = vpop.permute.xlu0 %5754
    %v5820 = vsel %vm33, %v3836, %v4477
    %v5821 = vsel %vm33, %v3837, %v4479
    %v5822 = vsel %vm33, %v3839, %v4481
    %v5823 = vsel %vm33, %v3840, %v4483
    %v5824 = vsel %vm33, %v3842, %v4485
    %v5825 = vsel %vm33, %v3843, %v4487
    %v5826 = vsel %vm33, %v3845, %v4489
    %v5827 = vsel %vm33, %v3846, %v4491
    %v5828 = vsel %vm33, %v3848, %v4493
    %v5829 = vsel %vm33, %v3849, %v4495
    %v5830 = vsel %vm33, %v3851, %v4497
    %v5831 = vsel %vm33, %v3852, %v4499
    %v5832 = vsel %vm33, %v3854, %v4501
    %v5833 = vsel %vm33, %v3855, %v4503
    %v5834 = vsel %vm33, %v3857, %v4505
    %v5835 = vsel %vm33, %v3858, %v4507
    %v5836 = vsel %vm33, %v3860, %v4509
    %v5837 = vsel %vm33, %v3861, %v4511
    %v5838 = vsel %vm33, %v3863, %v4513
    %v5839 = vsel %vm33, %v3864, %v4515
    %v5840 = vsel %vm33, %v3866, %v4517
    %v5841 = vsel %vm33, %v3867, %v4519
    %v5842 = vsel %vm33, %v3869, %v4521
    %v5843 = vsel %vm33, %v3870, %v4523
    %v5844 = vsel %vm33, %v3872, %v4525
    %v5845 = vsel %vm33, %v3873, %v4527
    %v5846 = vsel %vm33, %v3875, %v4529
    %v5847 = vsel %vm33, %v3876, %v4531
    %v5848 = vsel %vm33, %v3878, %v4533
    %v5849 = vsel %vm33, %v3879, %v4535
    %v5850 = vsel %vm33, %v3881, %v4537
    %v5851 = vsel %vm33, %v3882, %v4539
    %v5852 = vsel %vm33, %v3890, %v4541
    %v5853 = vsel %vm33, %v3891, %v4543
    %v5854 = vsel %vm33, %v3893, %v4545
    %v5855 = vsel %vm33, %v3894, %v4547
    %v5856 = vsel %vm33, %v3896, %v4549
    %v5857 = vsel %vm33, %v3897, %v4551
    %v5858 = vsel %vm33, %v3899, %v4553
    %v5859 = vsel %vm33, %v3900, %v4555
    %v5860 = vsel %vm33, %v3902, %v4557
    %v5861 = vsel %vm33, %v3903, %v4559
    %v5862 = vsel %vm33, %v3905, %v4561
    %v5863 = vsel %vm33, %v3906, %v4563
    %v5864 = vsel %vm33, %v3908, %v4565
    %v5865 = vsel %vm33, %v3909, %v4567
    %v5866 = vsel %vm33, %v3911, %v4569
    %v5867 = vsel %vm33, %v3912, %v4571
    %v5868 = vsel %vm33, %v3914, %v4573
    %v5869 = vsel %vm33, %v3915, %v4575
    %v5870 = vsel %vm33, %v3917, %v4577
    %v5871 = vsel %vm33, %v3918, %v4579
    %v5872 = vsel %vm33, %v3920, %v4581
    %v5873 = vsel %vm33, %v3921, %v4583
    %v5874 = vsel %vm33, %v3923, %v4585
    %v5875 = vsel %vm33, %v3924, %v4587
    %v5876 = vsel %vm33, %v3926, %v4589
    %v5877 = vsel %vm33, %v3927, %v4591
    %v5878 = vsel %vm33, %v3929, %v4593
    %v5879 = vsel %vm33, %v3930, %v4595
    %v5880 = vsel %vm33, %v3932, %v4597
    %v5881 = vsel %vm33, %v3933, %v4599
    %v5882 = vsel %vm33, %v3935, %v4601
    %v5883 = vsel %vm33, %v3936, %v4603
    %v5884 = vsel %vm2337, %v5820, %v4669
    %v5885 = vsel %vm2337, %v5821, %v4671
    %v5886 = vsel %vm2337, %v5822, %v4673
    %v5887 = vsel %vm2337, %v5823, %v4675
    %v5888 = vsel %vm2337, %v5824, %v4677
    %v5889 = vsel %vm2337, %v5825, %v4679
    %v5890 = vsel %vm2337, %v5826, %v4681
    %v5891 = vsel %vm2337, %v5827, %v4683
    %v5892 = vsel %vm2337, %v5828, %v4685
    %v5893 = vsel %vm2337, %v5829, %v4687
    %v5894 = vsel %vm2337, %v5830, %v4689
    %v5895 = vsel %vm2337, %v5831, %v4691
    %v5896 = vsel %vm2337, %v5832, %v4693
    %v5897 = vsel %vm2337, %v5833, %v4695
    %v5898 = vsel %vm2337, %v5834, %v4697
    %v5899 = vsel %vm2337, %v5835, %v4699
    %v5900 = vsel %vm2337, %v5836, %v4701
    %v5901 = vsel %vm2337, %v5837, %v4703
    %v5902 = vsel %vm2337, %v5838, %v4705
    %v5903 = vsel %vm2337, %v5839, %v4707
    %v5904 = vsel %vm2337, %v5840, %v4709
    %v5905 = vsel %vm2337, %v5841, %v4711
    %v5906 = vsel %vm2337, %v5842, %v4713
    %v5907 = vsel %vm2337, %v5843, %v4715
    %v5908 = vsel %vm2337, %v5844, %v4717
    %v5909 = vsel %vm2337, %v5845, %v4719
    %v5910 = vsel %vm2337, %v5846, %v4721
    %v5911 = vsel %vm2337, %v5847, %v4723
    %v5912 = vsel %vm2337, %v5848, %v4725
    %v5913 = vsel %vm2337, %v5849, %v4727
    %v5914 = vsel %vm2337, %v5850, %v4729
    %v5915 = vsel %vm2337, %v5851, %v4731
    %v5916 = vsel %vm2337, %v5852, %v4733
    %v5917 = vsel %vm2337, %v5853, %v4735
    %v5918 = vsel %vm2337, %v5854, %v4737
    %v5919 = vsel %vm2337, %v5855, %v4739
    %v5920 = vsel %vm2337, %v5856, %v4741
    %v5921 = vsel %vm2337, %v5857, %v4743
    %v5922 = vsel %vm2337, %v5858, %v4745
    %v5923 = vsel %vm2337, %v5859, %v4747
    %v5924 = vsel %vm2337, %v5860, %v4749
    %v5925 = vsel %vm2337, %v5861, %v4751
    %v5926 = vsel %vm2337, %v5862, %v4753
    %v5927 = vsel %vm2337, %v5863, %v4755
    %v5928 = vsel %vm2337, %v5864, %v4757
    %v5929 = vsel %vm2337, %v5865, %v4759
    %v5930 = vsel %vm2337, %v5866, %v4761
    %v5931 = vsel %vm2337, %v5867, %v4763
    %v5932 = vsel %vm2337, %v5868, %v4765
    %v5933 = vsel %vm2337, %v5869, %v4767
    %v5934 = vsel %vm2337, %v5870, %v4769
    %v5935 = vsel %vm2337, %v5871, %v4771
    %v5936 = vsel %vm2337, %v5872, %v4773
    %v5937 = vsel %vm2337, %v5873, %v4775
    %v5938 = vsel %vm2337, %v5874, %v4777
    %v5939 = vsel %vm2337, %v5875, %v4779
    %v5940 = vsel %vm2337, %v5876, %v4781
    %v5941 = vsel %vm2337, %v5877, %v4783
    %v5942 = vsel %vm2337, %v5878, %v4785
    %v5943 = vsel %vm2337, %v5879, %v4787
    %v5944 = vsel %vm2337, %v5880, %v4789
    %v5945 = vsel %vm2337, %v5881, %v4791
    %v5946 = vsel %vm2337, %v5882, %v4793
    %v5947 = vsel %vm2337, %v5883, %v4795
    %v5948 = vsel %vm2402, %v5884, %v4861
    %v5949 = vsel %vm2402, %v5885, %v4863
    %v5950 = vsel %vm2402, %v5886, %v4865
    %v5951 = vsel %vm2402, %v5887, %v4867
    %v5952 = vsel %vm2402, %v5888, %v4869
    %v5953 = vsel %vm2402, %v5889, %v4871
    %v5954 = vsel %vm2402, %v5890, %v4873
    %v5955 = vsel %vm2402, %v5891, %v4875
    %v5956 = vsel %vm2402, %v5892, %v4877
    %v5957 = vsel %vm2402, %v5893, %v4879
    %v5958 = vsel %vm2402, %v5894, %v4881
    %v5959 = vsel %vm2402, %v5895, %v4883
    %v5960 = vsel %vm2402, %v5896, %v4885
    %v5961 = vsel %vm2402, %v5897, %v4887
    %v5962 = vsel %vm2402, %v5898, %v4889
    %v5963 = vsel %vm2402, %v5899, %v4891
    %v5964 = vsel %vm2402, %v5900, %v4893
    %v5965 = vsel %vm2402, %v5901, %v4895
    %v5966 = vsel %vm2402, %v5902, %v4897
    %v5967 = vsel %vm2402, %v5903, %v4899
    %v5968 = vsel %vm2402, %v5904, %v4901
    %v5969 = vsel %vm2402, %v5905, %v4903
    %v5970 = vsel %vm2402, %v5906, %v4905
    %v5971 = vsel %vm2402, %v5907, %v4907
    %v5972 = vsel %vm2402, %v5908, %v4909
    %v5973 = vsel %vm2402, %v5909, %v4911
    %v5974 = vsel %vm2402, %v5910, %v4913
    %v5975 = vsel %vm2402, %v5911, %v4915
    %v5976 = vsel %vm2402, %v5912, %v4917
    %v5977 = vsel %vm2402, %v5913, %v4919
    %v5978 = vsel %vm2402, %v5914, %v4921
    %v5979 = vsel %vm2402, %v5915, %v4923
    %v5980 = vsel %vm2402, %v5916, %v4925
    %v5981 = vsel %vm2402, %v5917, %v4927
    %v5982 = vsel %vm2402, %v5918, %v4929
    %v5983 = vsel %vm2402, %v5919, %v4931
    %v5984 = vsel %vm2402, %v5920, %v4933
    %v5985 = vsel %vm2402, %v5921, %v4935
    %v5986 = vsel %vm2402, %v5922, %v4937
    %v5987 = vsel %vm2402, %v5923, %v4939
    %v5988 = vsel %vm2402, %v5924, %v4941
    %v5989 = vsel %vm2402, %v5925, %v4943
    %v5990 = vsel %vm2402, %v5926, %v4945
    %v5991 = vsel %vm2402, %v5927, %v4947
    %v5992 = vsel %vm2402, %v5928, %v4949
    %v5993 = vsel %vm2402, %v5929, %v4951
    %v5994 = vsel %vm2402, %v5930, %v4953
    %v5995 = vsel %vm2402, %v5931, %v4955
    %v5996 = vsel %vm2402, %v5932, %v4957
    %v5997 = vsel %vm2402, %v5933, %v4959
    %v5998 = vsel %vm2402, %v5934, %v4961
    %v5999 = vsel %vm2402, %v5935, %v4963
    %v6000 = vsel %vm2402, %v5936, %v4965
    %v6001 = vsel %vm2402, %v5937, %v4967
    %v6002 = vsel %vm2402, %v5938, %v4969
    %v6003 = vsel %vm2402, %v5939, %v4971
    %v6004 = vsel %vm2402, %v5940, %v4973
    %v6005 = vsel %vm2402, %v5941, %v4975
    %v6006 = vsel %vm2402, %v5942, %v4977
    %v6007 = vsel %vm2402, %v5943, %v4979
    %v6008 = vsel %vm2402, %v5944, %v4981
    %v6009 = vsel %vm2402, %v5945, %v4983
    %v6010 = vsel %vm2402, %v5946, %v4985
    %v6011 = vsel %vm2402, %v5947, %v4987
    %v6012 = vsel %vm2467, %v5948, %v5053
    %v6013 = vsel %vm2467, %v5949, %v5055
    %v6014 = vsel %vm2467, %v5950, %v5057
    %v6015 = vsel %vm2467, %v5951, %v5059
    %v6016 = vsel %vm2467, %v5952, %v5061
    %v6017 = vsel %vm2467, %v5953, %v5063
    %v6018 = vsel %vm2467, %v5954, %v5065
    %v6019 = vsel %vm2467, %v5955, %v5067
    %v6020 = vsel %vm2467, %v5956, %v5069
    %v6021 = vsel %vm2467, %v5957, %v5071
    %v6022 = vsel %vm2467, %v5958, %v5073
    %v6023 = vsel %vm2467, %v5959, %v5075
    %v6024 = vsel %vm2467, %v5960, %v5077
    %v6025 = vsel %vm2467, %v5961, %v5079
    %v6026 = vsel %vm2467, %v5962, %v5081
    %v6027 = vsel %vm2467, %v5963, %v5083
    %v6028 = vsel %vm2467, %v5964, %v5085
    %v6029 = vsel %vm2467, %v5965, %v5087
    %v6030 = vsel %vm2467, %v5966, %v5089
    %v6031 = vsel %vm2467, %v5967, %v5091
    %v6032 = vsel %vm2467, %v5968, %v5093
    %v6033 = vsel %vm2467, %v5969, %v5095
    %v6034 = vsel %vm2467, %v5970, %v5097
    %v6035 = vsel %vm2467, %v5971, %v5099
    %v6036 = vsel %vm2467, %v5972, %v5101
    %v6037 = vsel %vm2467, %v5973, %v5103
    %v6038 = vsel %vm2467, %v5974, %v5105
    %v6039 = vsel %vm2467, %v5975, %v5107
    %v6040 = vsel %vm2467, %v5976, %v5109
    %v6041 = vsel %vm2467, %v5977, %v5111
    %v6042 = vsel %vm2467, %v5978, %v5113
    %v6043 = vsel %vm2467, %v5979, %v5115
    %v6044 = vsel %vm2467, %v5980, %v5117
    %v6045 = vsel %vm2467, %v5981, %v5119
    %v6046 = vsel %vm2467, %v5982, %v5121
    %v6047 = vsel %vm2467, %v5983, %v5123
    %v6048 = vsel %vm2467, %v5984, %v5125
    %v6049 = vsel %vm2467, %v5985, %v5127
    %v6050 = vsel %vm2467, %v5986, %v5129
    %v6051 = vsel %vm2467, %v5987, %v5131
    %v6052 = vsel %vm2467, %v5988, %v5133
    %v6053 = vsel %vm2467, %v5989, %v5135
    %v6054 = vsel %vm2467, %v5990, %v5137
    %v6055 = vsel %vm2467, %v5991, %v5139
    %v6056 = vsel %vm2467, %v5992, %v5141
    %v6057 = vsel %vm2467, %v5993, %v5143
    %v6058 = vsel %vm2467, %v5994, %v5145
    %v6059 = vsel %vm2467, %v5995, %v5147
    %v6060 = vsel %vm2467, %v5996, %v5149
    %v6061 = vsel %vm2467, %v5997, %v5151
    %v6062 = vsel %vm2467, %v5998, %v5153
    %v6063 = vsel %vm2467, %v5999, %v5155
    %v6064 = vsel %vm2467, %v6000, %v5157
    %v6065 = vsel %vm2467, %v6001, %v5159
    %v6066 = vsel %vm2467, %v6002, %v5161
    %v6067 = vsel %vm2467, %v6003, %v5163
    %v6068 = vsel %vm2467, %v6004, %v5165
    %v6069 = vsel %vm2467, %v6005, %v5167
    %v6070 = vsel %vm2467, %v6006, %v5169
    %v6071 = vsel %vm2467, %v6007, %v5171
    %v6072 = vsel %vm2467, %v6008, %v5173
    %v6073 = vsel %vm2467, %v6009, %v5175
    %v6074 = vsel %vm2467, %v6010, %v5177
    %v6075 = vsel %vm2467, %v6011, %v5179
    %v6076 = vsel %vm2532, %v6012, %v5245
    %v6077 = vsel %vm2532, %v6013, %v5247
    %v6078 = vsel %vm2532, %v6014, %v5249
    %v6079 = vsel %vm2532, %v6015, %v5251
    %v6080 = vsel %vm2532, %v6016, %v5253
    %v6081 = vsel %vm2532, %v6017, %v5255
    %v6082 = vsel %vm2532, %v6018, %v5257
    %v6083 = vsel %vm2532, %v6019, %v5259
    %v6084 = vsel %vm2532, %v6020, %v5261
    %v6085 = vsel %vm2532, %v6021, %v5263
    %v6086 = vsel %vm2532, %v6022, %v5265
    %v6087 = vsel %vm2532, %v6023, %v5267
    %v6088 = vsel %vm2532, %v6024, %v5269
    %v6089 = vsel %vm2532, %v6025, %v5271
    %v6090 = vsel %vm2532, %v6026, %v5273
    %v6091 = vsel %vm2532, %v6027, %v5275
    %v6092 = vsel %vm2532, %v6028, %v5277
    %v6093 = vsel %vm2532, %v6029, %v5279
    %v6094 = vsel %vm2532, %v6030, %v5281
    %v6095 = vsel %vm2532, %v6031, %v5283
    %v6096 = vsel %vm2532, %v6032, %v5285
    %v6097 = vsel %vm2532, %v6033, %v5287
    %v6098 = vsel %vm2532, %v6034, %v5289
    %v6099 = vsel %vm2532, %v6035, %v5291
    %v6100 = vsel %vm2532, %v6036, %v5293
    %v6101 = vsel %vm2532, %v6037, %v5295
    %v6102 = vsel %vm2532, %v6038, %v5297
    %v6103 = vsel %vm2532, %v6039, %v5299
    %v6104 = vsel %vm2532, %v6040, %v5301
    %v6105 = vsel %vm2532, %v6041, %v5303
    %v6106 = vsel %vm2532, %v6042, %v5305
    %v6107 = vsel %vm2532, %v6043, %v5307
    %v6108 = vsel %vm2532, %v6044, %v5309
    %v6109 = vsel %vm2532, %v6045, %v5311
    %v6110 = vsel %vm2532, %v6046, %v5313
    %v6111 = vsel %vm2532, %v6047, %v5315
    %v6112 = vsel %vm2532, %v6048, %v5317
    %v6113 = vsel %vm2532, %v6049, %v5319
    %v6114 = vsel %vm2532, %v6050, %v5321
    %v6115 = vsel %vm2532, %v6051, %v5323
    %v6116 = vsel %vm2532, %v6052, %v5325
    %v6117 = vsel %vm2532, %v6053, %v5327
    %v6118 = vsel %vm2532, %v6054, %v5329
    %v6119 = vsel %vm2532, %v6055, %v5331
    %v6120 = vsel %vm2532, %v6056, %v5333
    %v6121 = vsel %vm2532, %v6057, %v5335
    %v6122 = vsel %vm2532, %v6058, %v5337
    %v6123 = vsel %vm2532, %v6059, %v5339
    %v6124 = vsel %vm2532, %v6060, %v5341
    %v6125 = vsel %vm2532, %v6061, %v5343
    %v6126 = vsel %vm2532, %v6062, %v5345
    %v6127 = vsel %vm2532, %v6063, %v5347
    %v6128 = vsel %vm2532, %v6064, %v5349
    %v6129 = vsel %vm2532, %v6065, %v5351
    %v6130 = vsel %vm2532, %v6066, %v5353
    %v6131 = vsel %vm2532, %v6067, %v5355
    %v6132 = vsel %vm2532, %v6068, %v5357
    %v6133 = vsel %vm2532, %v6069, %v5359
    %v6134 = vsel %vm2532, %v6070, %v5361
    %v6135 = vsel %vm2532, %v6071, %v5363
    %v6136 = vsel %vm2532, %v6072, %v5365
    %v6137 = vsel %vm2532, %v6073, %v5367
    %v6138 = vsel %vm2532, %v6074, %v5369
    %v6139 = vsel %vm2532, %v6075, %v5371
    %v6140 = vsel %vm2597, %v6076, %v5437
    %v6141 = vsel %vm2597, %v6077, %v5439
    %v6142 = vsel %vm2597, %v6078, %v5441
    %v6143 = vsel %vm2597, %v6079, %v5443
    %v6144 = vsel %vm2597, %v6080, %v5445
    %v6145 = vsel %vm2597, %v6081, %v5447
    %v6146 = vsel %vm2597, %v6082, %v5449
    %v6147 = vsel %vm2597, %v6083, %v5451
    %v6148 = vsel %vm2597, %v6084, %v5453
    %v6149 = vsel %vm2597, %v6085, %v5455
    %v6150 = vsel %vm2597, %v6086, %v5457
    %v6151 = vsel %vm2597, %v6087, %v5459
    %v6152 = vsel %vm2597, %v6088, %v5461
    %v6153 = vsel %vm2597, %v6089, %v5463
    %v6154 = vsel %vm2597, %v6090, %v5465
    %v6155 = vsel %vm2597, %v6091, %v5467
    %v6156 = vsel %vm2597, %v6092, %v5469
    %v6157 = vsel %vm2597, %v6093, %v5471
    %v6158 = vsel %vm2597, %v6094, %v5473
    %v6159 = vsel %vm2597, %v6095, %v5475
    %v6160 = vsel %vm2597, %v6096, %v5477
    %v6161 = vsel %vm2597, %v6097, %v5479
    %v6162 = vsel %vm2597, %v6098, %v5481
    %v6163 = vsel %vm2597, %v6099, %v5483
    %v6164 = vsel %vm2597, %v6100, %v5485
    %v6165 = vsel %vm2597, %v6101, %v5487
    %v6166 = vsel %vm2597, %v6102, %v5489
    %v6167 = vsel %vm2597, %v6103, %v5491
    %v6168 = vsel %vm2597, %v6104, %v5493
    %v6169 = vsel %vm2597, %v6105, %v5495
    %v6170 = vsel %vm2597, %v6106, %v5497
    %v6171 = vsel %vm2597, %v6107, %v5499
    %v6172 = vsel %vm2597, %v6108, %v5501
    %v6173 = vsel %vm2597, %v6109, %v5503
    %v6174 = vsel %vm2597, %v6110, %v5505
    %v6175 = vsel %vm2597, %v6111, %v5507
    %v6176 = vsel %vm2597, %v6112, %v5509
    %v6177 = vsel %vm2597, %v6113, %v5511
    %v6178 = vsel %vm2597, %v6114, %v5513
    %v6179 = vsel %vm2597, %v6115, %v5515
    %v6180 = vsel %vm2597, %v6116, %v5517
    %v6181 = vsel %vm2597, %v6117, %v5519
    %v6182 = vsel %vm2597, %v6118, %v5521
    %v6183 = vsel %vm2597, %v6119, %v5523
    %v6184 = vsel %vm2597, %v6120, %v5525
    %v6185 = vsel %vm2597, %v6121, %v5527
    %v6186 = vsel %vm2597, %v6122, %v5529
    %v6187 = vsel %vm2597, %v6123, %v5531
    %v6188 = vsel %vm2597, %v6124, %v5533
    %v6189 = vsel %vm2597, %v6125, %v5535
    %v6190 = vsel %vm2597, %v6126, %v5537
    %v6191 = vsel %vm2597, %v6127, %v5539
    %v6192 = vsel %vm2597, %v6128, %v5541
    %v6193 = vsel %vm2597, %v6129, %v5543
    %v6194 = vsel %vm2597, %v6130, %v5545
    %v6195 = vsel %vm2597, %v6131, %v5547
    %v6196 = vsel %vm2597, %v6132, %v5549
    %v6197 = vsel %vm2597, %v6133, %v5551
    %v6198 = vsel %vm2597, %v6134, %v5553
    %v6199 = vsel %vm2597, %v6135, %v5555
    %v6200 = vsel %vm2597, %v6136, %v5557
    %v6201 = vsel %vm2597, %v6137, %v5559
    %v6202 = vsel %vm2597, %v6138, %v5561
    %v6203 = vsel %vm2597, %v6139, %v5563
    %v6204 = vsel %vm2662, %v6140, %v5629
    %v6205 = vsel %vm2662, %v6141, %v5631
    %v6206 = vsel %vm2662, %v6142, %v5633
    %v6207 = vsel %vm2662, %v6143, %v5635
    %v6208 = vsel %vm2662, %v6144, %v5637
    %v6209 = vsel %vm2662, %v6145, %v5639
    %v6210 = vsel %vm2662, %v6146, %v5641
    %v6211 = vsel %vm2662, %v6147, %v5643
    %v6212 = vsel %vm2662, %v6148, %v5645
    %v6213 = vsel %vm2662, %v6149, %v5647
    %v6214 = vsel %vm2662, %v6150, %v5649
    %v6215 = vsel %vm2662, %v6151, %v5651
    %v6216 = vsel %vm2662, %v6152, %v5653
    %v6217 = vsel %vm2662, %v6153, %v5655
    %v6218 = vsel %vm2662, %v6154, %v5657
    %v6219 = vsel %vm2662, %v6155, %v5659
    %v6220 = vsel %vm2662, %v6156, %v5661
    %v6221 = vsel %vm2662, %v6157, %v5663
    %v6222 = vsel %vm2662, %v6158, %v5665
    %v6223 = vsel %vm2662, %v6159, %v5667
    %v6224 = vsel %vm2662, %v6160, %v5669
    %v6225 = vsel %vm2662, %v6161, %v5671
    %v6226 = vsel %vm2662, %v6162, %v5673
    %v6227 = vsel %vm2662, %v6163, %v5675
    %v6228 = vsel %vm2662, %v6164, %v5677
    %v6229 = vsel %vm2662, %v6165, %v5679
    %v6230 = vsel %vm2662, %v6166, %v5681
    %v6231 = vsel %vm2662, %v6167, %v5683
    %v6232 = vsel %vm2662, %v6168, %v5685
    %v6233 = vsel %vm2662, %v6169, %v5687
    %v6234 = vsel %vm2662, %v6170, %v5689
    %v6235 = vsel %vm2662, %v6171, %v5691
    %v6236 = vsel %vm2662, %v6172, %v5693
    %v6237 = vsel %vm2662, %v6173, %v5695
    %v6238 = vsel %vm2662, %v6174, %v5697
    %v6239 = vsel %vm2662, %v6175, %v5699
    %v6240 = vsel %vm2662, %v6176, %v5701
    %v6241 = vsel %vm2662, %v6177, %v5703
    %v6242 = vsel %vm2662, %v6178, %v5705
    %v6243 = vsel %vm2662, %v6179, %v5707
    %v6244 = vsel %vm2662, %v6180, %v5709
    %v6245 = vsel %vm2662, %v6181, %v5711
    %v6246 = vsel %vm2662, %v6182, %v5713
    %v6247 = vsel %vm2662, %v6183, %v5715
    %v6248 = vsel %vm2662, %v6184, %v5717
    %v6249 = vsel %vm2662, %v6185, %v5719
    %v6250 = vsel %vm2662, %v6186, %v5721
    %v6251 = vsel %vm2662, %v6187, %v5723
    %v6252 = vsel %vm2662, %v6188, %v5725
    %v6253 = vsel %vm2662, %v6189, %v5727
    %v6254 = vsel %vm2662, %v6190, %v5729
    %v6255 = vsel %vm2662, %v6191, %v5731
    %v6256 = vsel %vm2662, %v6192, %v5733
    %v6257 = vsel %vm2662, %v6193, %v5735
    %v6258 = vsel %vm2662, %v6194, %v5737
    %v6259 = vsel %vm2662, %v6195, %v5739
    %v6260 = vsel %vm2662, %v6196, %v5741
    %v6261 = vsel %vm2662, %v6197, %v5743
    %v6262 = vsel %vm2662, %v6198, %v5745
    %v6263 = vsel %vm2662, %v6199, %v5747
    %v6264 = vsel %vm2662, %v6200, %v5749
    %v6265 = vsel %vm2662, %v6201, %v5751
    %v6266 = vsel %vm2662, %v6202, %v5753
    %v6267 = vsel %vm2662, %v6203, %v5755
    %v6268 = vpack.c.bf16 %v6205, %v6204
    %v6269 = vpack.c.bf16 %v4214, %v4212
    %v6270 = vpack.c.bf16 %v6207, %v6206
    %v6271 = vpack.c.bf16 %v4219, %v4217
    %v6272 = vpack.c.bf16 %v6209, %v6208
    %v6273 = vpack.c.bf16 %v4224, %v4222
    %v6274 = vpack.c.bf16 %v6211, %v6210
    %v6275 = vpack.c.bf16 %v4229, %v4227
    %v6276 = vpack.c.bf16 %v6213, %v6212
    %v6277 = vpack.c.bf16 %v4234, %v4232
    %v6278 = vpack.c.bf16 %v6215, %v6214
    %v6279 = vpack.c.bf16 %v4239, %v4237
    %v6280 = vpack.c.bf16 %v6217, %v6216
    %v6281 = vpack.c.bf16 %v4244, %v4242
    %v6282 = vpack.c.bf16 %v6219, %v6218
    %v6283 = vpack.c.bf16 %v4249, %v4247
    %v6284 = vpack.c.bf16 %v6221, %v6220
    %v6285 = vpack.c.bf16 %v4254, %v4252
    %v6286 = vpack.c.bf16 %v6223, %v6222
    %v6287 = vpack.c.bf16 %v4259, %v4257
    %v6288 = vpack.c.bf16 %v6225, %v6224
    %v6289 = vpack.c.bf16 %v4264, %v4262
    %v6290 = vpack.c.bf16 %v6227, %v6226
    %v6291 = vpack.c.bf16 %v4269, %v4267
    %v6292 = vpack.c.bf16 %v6229, %v6228
    %v6293 = vpack.c.bf16 %v4274, %v4272
    %v6294 = vpack.c.bf16 %v6231, %v6230
    %v6295 = vpack.c.bf16 %v4279, %v4277
    %v6296 = vpack.c.bf16 %v6233, %v6232
    %v6297 = vpack.c.bf16 %v4380, %v4378
    %v6298 = vpack.c.bf16 %v6235, %v6234
    %v6299 = vpack.c.bf16 %v4406, %v4404
    %v6300 = vpack.c.bf16 %v6237, %v6236
    %v6301 = vpack.c.bf16 %v4294, %v4292
    %v6302 = vpack.c.bf16 %v6239, %v6238
    %v6303 = vpack.c.bf16 %v4299, %v4297
    %v6304 = vpack.c.bf16 %v6241, %v6240
    %v6305 = vpack.c.bf16 %v4304, %v4302
    %v6306 = vpack.c.bf16 %v6243, %v6242
    %v6307 = vpack.c.bf16 %v4309, %v4307
    %v6308 = vpack.c.bf16 %v6245, %v6244
    %v6309 = vpack.c.bf16 %v4314, %v4312
    %v6310 = vpack.c.bf16 %v6247, %v6246
    %v6311 = vpack.c.bf16 %v4319, %v4317
    %v6312 = vpack.c.bf16 %v6249, %v6248
    %v6313 = vpack.c.bf16 %v4324, %v4322
    %v6314 = vpack.c.bf16 %v6251, %v6250
    %v6315 = vpack.c.bf16 %v4329, %v4327
    %v6316 = vpack.c.bf16 %v6253, %v6252
    %v6317 = vpack.c.bf16 %v4334, %v4332
    %v6318 = vpack.c.bf16 %v6255, %v6254
    %v6319 = vpack.c.bf16 %v4339, %v4337
    %v6320 = vpack.c.bf16 %v6257, %v6256
    %v6321 = vpack.c.bf16 %v4344, %v4342
    %v6322 = vpack.c.bf16 %v6259, %v6258
    %v6323 = vpack.c.bf16 %v4349, %v4347
    %v6324 = vpack.c.bf16 %v6261, %v6260
    %v6325 = vpack.c.bf16 %v4354, %v4352
    %v6326 = vpack.c.bf16 %v6263, %v6262
    %v6327 = vpack.c.bf16 %v4359, %v4357
    %v6328 = vpack.c.bf16 %v6265, %v6264
    %v6329 = vpack.c.bf16 %v4385, %v4383
    %v6330 = vpack.c.bf16 %v6267, %v6266
    %v6331 = vpack.c.bf16 %v4411, %v4409
    %v6350 = vunpack.c.l.b16 %v204
    %v6351 = vunpack.c.l.b16 %v205
    %v6352 = vunpack.c.l.b16 %v206
    %v6353 = vunpack.c.l.b16 %v207
    %v6354 = vunpack.c.l.b16 %v208
    %v6355 = vunpack.c.l.b16 %v209
    %v6356 = vunpack.c.l.b16 %v210
    %v6357 = vunpack.c.l.b16 %v211
    %v6358 = vunpack.c.l.b16 %v212
    %v6359 = vunpack.c.l.b16 %v213
    %v6360 = vunpack.c.l.b16 %v214
    %v6361 = vunpack.c.l.b16 %v215
    %v6362 = vunpack.c.l.b16 %v216
    %v6363 = vunpack.c.l.b16 %v217
    %v6364 = vunpack.c.l.b16 %v218
    %v6365 = vunpack.c.l.b16 %v219
    %v6366 = vunpack.c.l.b16 %v220
    %v6367 = vunpack.c.l.b16 %v221
    %v6368 = vpack.c.b16 %v6351, %v6350
    %v6369 = vpack.c.b16 %v6353, %v6352
    %v6370 = vpack.c.b16 %v6355, %v6354
    %v6371 = vpack.c.b16 %v6357, %v6356
    %v6372 = vpack.c.b16 %v6359, %v6358
    %v6373 = vpack.c.b16 %v6361, %v6360
    %v6374 = vpack.c.b16 %v6363, %v6362
    %v6375 = vpack.c.b16 %v6365, %v6364
    %v6376 = vpack.c.b16 %v6367, %v6366
    %v6387 = vsel %vm33, %v6269, 0
    %v6390 = vsel %vm33, %v6271, 0
    %v6393 = vsel %vm33, %v6273, 0
    %v6396 = vsel %vm33, %v6275, 0
    %v6399 = vsel %vm33, %v6277, 0
    %v6402 = vsel %vm33, %v6279, 0
    %v6405 = vsel %vm33, %v6281, 0
    %v6408 = vsel %vm33, %v6283, 0
    %v6411 = vsel %vm33, %v6285, 0
    %v6414 = vsel %vm33, %v6287, 0
    %v6417 = vsel %vm33, %v6289, 0
    %v6420 = vsel %vm33, %v6291, 0
    %v6423 = vsel %vm33, %v6293, 0
    %v6426 = vsel %vm33, %v6295, 0
    %v6429 = vsel %vm33, %v6297, 0
    %v6432 = vsel %vm33, %v6299, 0
    %v6435 = vsel %vm33, %v6301, 0
    %v6438 = vsel %vm33, %v6303, 0
    %v6441 = vsel %vm33, %v6305, 0
    %v6444 = vsel %vm33, %v6307, 0
    %v6447 = vsel %vm33, %v6309, 0
    %v6450 = vsel %vm33, %v6311, 0
    %v6453 = vsel %vm33, %v6313, 0
    %v6456 = vsel %vm33, %v6315, 0
    %v6459 = vsel %vm33, %v6317, 0
    %v6462 = vsel %vm33, %v6319, 0
    %v6465 = vsel %vm33, %v6321, 0
    %v6468 = vsel %vm33, %v6323, 0
    %v6471 = vsel %vm33, %v6325, 0
    %v6474 = vsel %vm33, %v6327, 0
    %v6477 = vsel %vm33, %v6329, 0
    %v6480 = vsel %vm33, %v6331, 0
    %6482 = vmatprep.subr.bf16.mxu0 0
    %6483 = vmatpush1.bf16.msra.mxu0 %v6368
    %6484 = vmatprep.subr.bf16.mxu0 0
    %6485 = vmatpush1.bf16.msra.mxu0 %v6369
    %6486 = vmatprep.subr.bf16.mxu0 0
    %6487 = vmatpush1.bf16.msra.mxu0 %v6370
    %6488 = vmatprep.subr.bf16.mxu0 0
    %6489 = vmatpush1.bf16.msra.mxu0 %v6371
    %6490 = vmatprep.subr.bf16.mxu0 0
    %6491 = vmatpush1.bf16.msra.mxu0 %v6372
    %6492 = vmatprep.subr.bf16.mxu0 0
    %6493 = vmatpush1.bf16.msra.mxu0 %v6373
    %6494 = vmatprep.subr.bf16.mxu0 0
    %6495 = vmatpush1.bf16.msra.mxu0 %v6374
    %6496 = vmatprep.subr.bf16.mxu0 0
    %6497 = vmatpush1.bf16.msra.mxu0 %v6375
    %6498 = vmatprep.subr.bf16.mxu0 0
    %6499 = vmatpush1.bf16.msra.mxu0 %v6376
    %6500 = vmatprep.subr.bf16.mxu0 0
    %6501 = vmatpush1.bf16.msra.mxu0 0
    %6502 = vmatprep.subr.bf16.mxu0 0
    %6503 = vmatpush1.bf16.msra.mxu0 0
    %6504 = vmatprep.subr.bf16.mxu0 0
    %6505 = vmatpush1.bf16.msra.mxu0 0
    %6506 = vmatprep.subr.bf16.mxu0 0
    %6507 = vmatpush1.bf16.msra.mxu0 0
    %6508 = vmatprep.subr.bf16.mxu0 0
    %6509 = vmatpush1.bf16.msra.mxu0 0
    %6510 = vmatprep.subr.bf16.mxu0 0
    %6511 = vmatpush1.bf16.msra.mxu0 0
    %6512 = vmatprep.subr.bf16.mxu0 0
    %6513 = vmatpush1.bf16.msra.mxu0 0
    %6514 = vmatprep.mubr.bf16.mxu0 %v6387
    %6515 = vmatmul.mubr.bf16.gmra.mrb[0].mxu0 %v6268
    %v6516 = vpop.f32.mrb[0].mxu0
    %v6517 = vadd.f32 0.0, %v6516
    %v6518 = vpop.f32.mrb[0].mxu0
    %v6519 = vpop.f32.mrb[0].mxu0
    %v6520 = vadd.f32 0.0, %v6519
    %v6521 = vpop.f32.mrb[0].mxu0
    %6522 = vmatprep.mubr.bf16.mxu0 %v6390
    %6523 = vmatmul.mubr.bf16.gmra.mrb[0].mxu0 %v6270
    %v6524 = vpop.f32.mrb[0].mxu0
    %v6525 = vadd.f32 0.0, %v6524
    %v6526 = vpop.f32.mrb[0].mxu0
    %v6527 = vpop.f32.mrb[0].mxu0
    %v6528 = vadd.f32 0.0, %v6527
    %v6529 = vpop.f32.mrb[0].mxu0
    %6530 = vmatprep.mubr.bf16.mxu0 %v6393
    %6531 = vmatmul.mubr.bf16.gmra.mrb[0].mxu0 %v6272
    %v6532 = vpop.f32.mrb[0].mxu0
    %v6533 = vadd.f32 0.0, %v6532
    %v6534 = vpop.f32.mrb[0].mxu0
    %v6535 = vpop.f32.mrb[0].mxu0
    %v6536 = vadd.f32 0.0, %v6535
    %v6537 = vpop.f32.mrb[0].mxu0
    %6538 = vmatprep.mubr.bf16.mxu0 %v6396
    %6539 = vmatmul.mubr.bf16.gmra.mrb[0].mxu0 %v6274
    %v6540 = vpop.f32.mrb[0].mxu0
    %v6541 = vadd.f32 0.0, %v6540
    %v6542 = vpop.f32.mrb[0].mxu0
    %v6543 = vpop.f32.mrb[0].mxu0
    %v6544 = vadd.f32 0.0, %v6543
    %v6545 = vpop.f32.mrb[0].mxu0
    %6546 = vmatprep.mubr.bf16.mxu0 %v6399
    %6547 = vmatmul.mubr.bf16.gmra.mrb[0].mxu0 %v6276
    %v6548 = vpop.f32.mrb[0].mxu0
    %v6549 = vadd.f32 0.0, %v6548
    %v6550 = vpop.f32.mrb[0].mxu0
    %v6551 = vpop.f32.mrb[0].mxu0
    %v6552 = vadd.f32 0.0, %v6551
    %v6553 = vpop.f32.mrb[0].mxu0
    %6554 = vmatprep.mubr.bf16.mxu0 %v6402
    %6555 = vmatmul.mubr.bf16.gmra.mrb[0].mxu0 %v6278
    %v6556 = vpop.f32.mrb[0].mxu0
    %v6557 = vadd.f32 0.0, %v6556
    %v6558 = vpop.f32.mrb[0].mxu0
    %v6559 = vpop.f32.mrb[0].mxu0
    %v6560 = vadd.f32 0.0, %v6559
    %v6561 = vpop.f32.mrb[0].mxu0
    %6562 = vmatprep.mubr.bf16.mxu0 %v6405
    %6563 = vmatmul.mubr.bf16.gmra.mrb[0].mxu0 %v6280
    %v6564 = vpop.f32.mrb[0].mxu0
    %v6565 = vadd.f32 0.0, %v6564
    %v6566 = vpop.f32.mrb[0].mxu0
    %v6567 = vpop.f32.mrb[0].mxu0
    %v6568 = vadd.f32 0.0, %v6567
    %v6569 = vpop.f32.mrb[0].mxu0
    %6570 = vmatprep.mubr.bf16.mxu0 %v6408
    %6571 = vmatmul.mubr.bf16.gmra.mrb[0].mxu0 %v6282
    %v6572 = vpop.f32.mrb[0].mxu0
    %v6573 = vadd.f32 0.0, %v6572
    %v6574 = vpop.f32.mrb[0].mxu0
    %v6575 = vpop.f32.mrb[0].mxu0
    %v6576 = vadd.f32 0.0, %v6575
    %v6577 = vpop.f32.mrb[0].mxu0
    %6578 = vmatprep.mubr.bf16.mxu0 %v6411
    %6579 = vmatmul.mubr.bf16.gmra.mrb[0].mxu0 %v6284
    %v6580 = vpop.f32.mrb[0].mxu0
    %v6581 = vadd.f32 0.0, %v6580
    %v6582 = vpop.f32.mrb[0].mxu0
    %v6583 = vpop.f32.mrb[0].mxu0
    %v6584 = vadd.f32 0.0, %v6583
    %v6585 = vpop.f32.mrb[0].mxu0
    %6586 = vmatprep.mubr.bf16.mxu0 %v6414
    %6587 = vmatmul.mubr.bf16.gmra.mrb[0].mxu0 %v6286
    %v6588 = vpop.f32.mrb[0].mxu0
    %v6589 = vadd.f32 0.0, %v6588
    %v6590 = vpop.f32.mrb[0].mxu0
    %v6591 = vpop.f32.mrb[0].mxu0
    %v6592 = vadd.f32 0.0, %v6591
    %v6593 = vpop.f32.mrb[0].mxu0
    %6594 = vmatprep.mubr.bf16.mxu0 %v6417
    %6595 = vmatmul.mubr.bf16.gmra.mrb[0].mxu0 %v6288
    %v6596 = vpop.f32.mrb[0].mxu0
    %v6597 = vadd.f32 0.0, %v6596
    %v6598 = vpop.f32.mrb[0].mxu0
    %v6599 = vpop.f32.mrb[0].mxu0
    %v6600 = vadd.f32 0.0, %v6599
    %v6601 = vpop.f32.mrb[0].mxu0
    %6602 = vmatprep.mubr.bf16.mxu0 %v6420
    %6603 = vmatmul.mubr.bf16.gmra.mrb[0].mxu0 %v6290
    %v6604 = vpop.f32.mrb[0].mxu0
    %v6605 = vadd.f32 0.0, %v6604
    %v6606 = vpop.f32.mrb[0].mxu0
    %v6607 = vpop.f32.mrb[0].mxu0
    %v6608 = vadd.f32 0.0, %v6607
    %v6609 = vpop.f32.mrb[0].mxu0
    %6610 = vmatprep.mubr.bf16.mxu0 %v6423
    %6611 = vmatmul.mubr.bf16.gmra.mrb[0].mxu0 %v6292
    %v6612 = vpop.f32.mrb[0].mxu0
    %v6613 = vadd.f32 0.0, %v6612
    %v6614 = vpop.f32.mrb[0].mxu0
    %v6615 = vpop.f32.mrb[0].mxu0
    %v6616 = vadd.f32 0.0, %v6615
    %v6617 = vpop.f32.mrb[0].mxu0
    %6618 = vmatprep.mubr.bf16.mxu0 %v6426
    %6619 = vmatmul.mubr.bf16.gmra.mrb[0].mxu0 %v6294
    %v6620 = vpop.f32.mrb[0].mxu0
    %v6621 = vadd.f32 0.0, %v6620
    %v6622 = vpop.f32.mrb[0].mxu0
    %v6623 = vpop.f32.mrb[0].mxu0
    %v6624 = vadd.f32 0.0, %v6623
    %v6625 = vpop.f32.mrb[0].mxu0
    %6626 = vmatprep.mubr.bf16.mxu0 %v6429
    %6627 = vmatmul.mubr.bf16.gmra.mrb[0].mxu0 %v6296
    %v6628 = vpop.f32.mrb[0].mxu0
    %v6629 = vadd.f32 0.0, %v6628
    %v6630 = vpop.f32.mrb[0].mxu0
    %v6631 = vpop.f32.mrb[0].mxu0
    %v6632 = vadd.f32 0.0, %v6631
    %v6633 = vpop.f32.mrb[0].mxu0
    %6634 = vmatprep.mubr.bf16.mxu0 %v6432
    %6635 = vmatmul.mubr.bf16.gmra.mrb[0].mxu0 %v6298
    %v6636 = vpop.f32.mrb[0].mxu0
    %v6637 = vadd.f32 0.0, %v6636
    %v6638 = vpop.f32.mrb[0].mxu0
    %v6639 = vpop.f32.mrb[0].mxu0
    %v6640 = vadd.f32 0.0, %v6639
    %v6641 = vpop.f32.mrb[0].mxu0
    %6642 = vmatprep.mubr.bf16.mxu0 %v6435
    %6643 = vmatmul.mubr.bf16.gmra.mrb[0].mxu0 %v6300
    %v6644 = vpop.f32.mrb[0].mxu0
    %v6645 = vadd.f32 0.0, %v6644
    %v6646 = vpop.f32.mrb[0].mxu0
    %v6647 = vpop.f32.mrb[0].mxu0
    %v6648 = vadd.f32 0.0, %v6647
    %v6649 = vpop.f32.mrb[0].mxu0
    %6650 = vmatprep.mubr.bf16.mxu0 %v6438
    %6651 = vmatmul.mubr.bf16.gmra.mrb[0].mxu0 %v6302
    %v6652 = vpop.f32.mrb[0].mxu0
    %v6653 = vadd.f32 0.0, %v6652
    %v6654 = vpop.f32.mrb[0].mxu0
    %v6655 = vpop.f32.mrb[0].mxu0
    %v6656 = vadd.f32 0.0, %v6655
    %v6657 = vpop.f32.mrb[0].mxu0
    %6658 = vmatprep.mubr.bf16.mxu0 %v6441
    %6659 = vmatmul.mubr.bf16.gmra.mrb[0].mxu0 %v6304
    %v6660 = vpop.f32.mrb[0].mxu0
    %v6661 = vadd.f32 0.0, %v6660
    %v6662 = vpop.f32.mrb[0].mxu0
    %v6663 = vpop.f32.mrb[0].mxu0
    %v6664 = vadd.f32 0.0, %v6663
    %v6665 = vpop.f32.mrb[0].mxu0
    %6666 = vmatprep.mubr.bf16.mxu0 %v6444
    %6667 = vmatmul.mubr.bf16.gmra.mrb[0].mxu0 %v6306
    %v6668 = vpop.f32.mrb[0].mxu0
    %v6669 = vadd.f32 0.0, %v6668
    %v6670 = vpop.f32.mrb[0].mxu0
    %v6671 = vpop.f32.mrb[0].mxu0
    %v6672 = vadd.f32 0.0, %v6671
    %v6673 = vpop.f32.mrb[0].mxu0
    %6674 = vmatprep.mubr.bf16.mxu0 %v6447
    %6675 = vmatmul.mubr.bf16.gmra.mrb[0].mxu0 %v6308
    %v6676 = vpop.f32.mrb[0].mxu0
    %v6677 = vadd.f32 0.0, %v6676
    %v6678 = vpop.f32.mrb[0].mxu0
    %v6679 = vpop.f32.mrb[0].mxu0
    %v6680 = vadd.f32 0.0, %v6679
    %v6681 = vpop.f32.mrb[0].mxu0
    %6682 = vmatprep.mubr.bf16.mxu0 %v6450
    %6683 = vmatmul.mubr.bf16.gmra.mrb[0].mxu0 %v6310
    %v6684 = vpop.f32.mrb[0].mxu0
    %v6685 = vadd.f32 0.0, %v6684
    %v6686 = vpop.f32.mrb[0].mxu0
    %v6687 = vpop.f32.mrb[0].mxu0
    %v6688 = vadd.f32 0.0, %v6687
    %v6689 = vpop.f32.mrb[0].mxu0
    %6690 = vmatprep.mubr.bf16.mxu0 %v6453
    %6691 = vmatmul.mubr.bf16.gmra.mrb[0].mxu0 %v6312
    %v6692 = vpop.f32.mrb[0].mxu0
    %v6693 = vadd.f32 0.0, %v6692
    %v6694 = vpop.f32.mrb[0].mxu0
    %v6695 = vpop.f32.mrb[0].mxu0
    %v6696 = vadd.f32 0.0, %v6695
    %v6697 = vpop.f32.mrb[0].mxu0
    %6698 = vmatprep.mubr.bf16.mxu0 %v6456
    %6699 = vmatmul.mubr.bf16.gmra.mrb[0].mxu0 %v6314
    %v6700 = vpop.f32.mrb[0].mxu0
    %v6701 = vadd.f32 0.0, %v6700
    %v6702 = vpop.f32.mrb[0].mxu0
    %v6703 = vpop.f32.mrb[0].mxu0
    %v6704 = vadd.f32 0.0, %v6703
    %v6705 = vpop.f32.mrb[0].mxu0
    %6706 = vmatprep.mubr.bf16.mxu0 %v6459
    %6707 = vmatmul.mubr.bf16.gmra.mrb[0].mxu0 %v6316
    %v6708 = vpop.f32.mrb[0].mxu0
    %v6709 = vadd.f32 0.0, %v6708
    %v6710 = vpop.f32.mrb[0].mxu0
    %v6711 = vpop.f32.mrb[0].mxu0
    %v6712 = vadd.f32 0.0, %v6711
    %v6713 = vpop.f32.mrb[0].mxu0
    %6714 = vmatprep.mubr.bf16.mxu0 %v6462
    %6715 = vmatmul.mubr.bf16.gmra.mrb[0].mxu0 %v6318
    %v6716 = vpop.f32.mrb[0].mxu0
    %v6717 = vadd.f32 0.0, %v6716
    %v6718 = vpop.f32.mrb[0].mxu0
    %v6719 = vpop.f32.mrb[0].mxu0
    %v6720 = vadd.f32 0.0, %v6719
    %v6721 = vpop.f32.mrb[0].mxu0
    %6722 = vmatprep.mubr.bf16.mxu0 %v6465
    %6723 = vmatmul.mubr.bf16.gmra.mrb[0].mxu0 %v6320
    %v6724 = vpop.f32.mrb[0].mxu0
    %v6725 = vadd.f32 0.0, %v6724
    %v6726 = vpop.f32.mrb[0].mxu0
    %v6727 = vpop.f32.mrb[0].mxu0
    %v6728 = vadd.f32 0.0, %v6727
    %v6729 = vpop.f32.mrb[0].mxu0
    %6730 = vmatprep.mubr.bf16.mxu0 %v6468
    %6731 = vmatmul.mubr.bf16.gmra.mrb[0].mxu0 %v6322
    %v6732 = vpop.f32.mrb[0].mxu0
    %v6733 = vadd.f32 0.0, %v6732
    %v6734 = vpop.f32.mrb[0].mxu0
    %v6735 = vpop.f32.mrb[0].mxu0
    %v6736 = vadd.f32 0.0, %v6735
    %v6737 = vpop.f32.mrb[0].mxu0
    %6738 = vmatprep.mubr.bf16.mxu0 %v6471
    %6739 = vmatmul.mubr.bf16.gmra.mrb[0].mxu0 %v6324
    %v6740 = vpop.f32.mrb[0].mxu0
    %v6741 = vadd.f32 0.0, %v6740
    %v6742 = vpop.f32.mrb[0].mxu0
    %v6743 = vpop.f32.mrb[0].mxu0
    %v6744 = vadd.f32 0.0, %v6743
    %v6745 = vpop.f32.mrb[0].mxu0
    %6746 = vmatprep.mubr.bf16.mxu0 %v6474
    %6747 = vmatmul.mubr.bf16.gmra.mrb[0].mxu0 %v6326
    %v6748 = vpop.f32.mrb[0].mxu0
    %v6749 = vadd.f32 0.0, %v6748
    %v6750 = vpop.f32.mrb[0].mxu0
    %v6751 = vpop.f32.mrb[0].mxu0
    %v6752 = vadd.f32 0.0, %v6751
    %v6753 = vpop.f32.mrb[0].mxu0
    %6754 = vmatprep.mubr.bf16.mxu0 %v6477
    %6755 = vmatmul.mubr.bf16.gmra.mrb[0].mxu0 %v6328
    %v6756 = vpop.f32.mrb[0].mxu0
    %v6757 = vadd.f32 0.0, %v6756
    %v6758 = vpop.f32.mrb[0].mxu0
    %v6759 = vpop.f32.mrb[0].mxu0
    %v6760 = vadd.f32 0.0, %v6759
    %v6761 = vpop.f32.mrb[0].mxu0
    %6762 = vmatprep.mubr.bf16.mxu0 %v6480
    %6763 = vmatmul.mubr.bf16.gmra.mrb[0].mxu0 %v6330
    %v6764 = vpop.f32.mrb[0].mxu0
    %v6765 = vadd.f32 0.0, %v6764
    %v6766 = vpop.f32.mrb[0].mxu0
    %v6767 = vpop.f32.mrb[0].mxu0
    %v6768 = vadd.f32 0.0, %v6767
    %v6769 = vpop.f32.mrb[0].mxu0
    %6770 = vdwg.mxu0
    %v6771 = vsel %vm33, %v6517, 0.0
    %v6772 = vsel %vm33, %v6520, 0.0
    %v6773 = vadd.f32 %v6771, %v6772
    %v6774 = vsel %vm33, %v6525, 0.0
    %v6775 = vadd.f32 %v6773, %v6774
    %v6776 = vsel %vm33, %v6528, 0.0
    %v6777 = vadd.f32 %v6775, %v6776
    %v6778 = vsel %vm33, %v6533, 0.0
    %v6779 = vadd.f32 %v6777, %v6778
    %v6780 = vsel %vm33, %v6536, 0.0
    %v6781 = vadd.f32 %v6779, %v6780
    %v6782 = vsel %vm33, %v6541, 0.0
    %v6783 = vadd.f32 %v6781, %v6782
    %v6784 = vsel %vm33, %v6544, 0.0
    %v6785 = vadd.f32 %v6783, %v6784
    %v6786 = vsel %vm33, %v6549, 0.0
    %v6787 = vadd.f32 %v6785, %v6786
    %v6788 = vsel %vm33, %v6552, 0.0
    %v6789 = vadd.f32 %v6787, %v6788
    %v6790 = vsel %vm33, %v6557, 0.0
    %v6791 = vadd.f32 %v6789, %v6790
    %v6792 = vsel %vm33, %v6560, 0.0
    %v6793 = vadd.f32 %v6791, %v6792
    %v6794 = vsel %vm33, %v6565, 0.0
    %v6795 = vadd.f32 %v6793, %v6794
    %v6796 = vsel %vm33, %v6568, 0.0
    %v6797 = vadd.f32 %v6795, %v6796
    %v6798 = vsel %vm33, %v6573, 0.0
    %v6799 = vadd.f32 %v6797, %v6798
    %v6800 = vsel %vm33, %v6576, 0.0
    %v6801 = vadd.f32 %v6799, %v6800
    %v6802 = vsel %vm33, %v6581, 0.0
    %v6803 = vadd.f32 %v6801, %v6802
    %v6804 = vsel %vm33, %v6584, 0.0
    %v6805 = vadd.f32 %v6803, %v6804
    %v6806 = vsel %vm33, %v6589, 0.0
    %v6807 = vadd.f32 %v6805, %v6806
    %v6808 = vsel %vm33, %v6592, 0.0
    %v6809 = vadd.f32 %v6807, %v6808
    %v6810 = vsel %vm33, %v6597, 0.0
    %v6811 = vadd.f32 %v6809, %v6810
    %v6812 = vsel %vm33, %v6600, 0.0
    %v6813 = vadd.f32 %v6811, %v6812
    %v6814 = vsel %vm33, %v6605, 0.0
    %v6815 = vadd.f32 %v6813, %v6814
    %v6816 = vsel %vm33, %v6608, 0.0
    %v6817 = vadd.f32 %v6815, %v6816
    %v6818 = vsel %vm33, %v6613, 0.0
    %v6819 = vadd.f32 %v6817, %v6818
    %v6820 = vsel %vm33, %v6616, 0.0
    %v6821 = vadd.f32 %v6819, %v6820
    %v6822 = vsel %vm33, %v6621, 0.0
    %v6823 = vadd.f32 %v6821, %v6822
    %v6824 = vsel %vm33, %v6624, 0.0
    %v6825 = vadd.f32 %v6823, %v6824
    %v6826 = vsel %vm33, %v6629, 0.0
    %v6827 = vadd.f32 %v6825, %v6826
    %v6828 = vsel %vm33, %v6632, 0.0
    %v6829 = vadd.f32 %v6827, %v6828
    %v6830 = vsel %vm33, %v6637, 0.0
    %v6831 = vadd.f32 %v6829, %v6830
    %v6832 = vsel %vm33, %v6640, 0.0
    %v6833 = vadd.f32 %v6831, %v6832
    %v6834 = vsel %vm33, %v6645, 0.0
    %v6835 = vadd.f32 %v6833, %v6834
    %v6836 = vsel %vm33, %v6648, 0.0
    %v6837 = vadd.f32 %v6835, %v6836
    %v6838 = vsel %vm33, %v6653, 0.0
    %v6839 = vadd.f32 %v6837, %v6838
    %v6840 = vsel %vm33, %v6656, 0.0
    %v6841 = vadd.f32 %v6839, %v6840
    %v6842 = vsel %vm33, %v6661, 0.0
    %v6843 = vadd.f32 %v6841, %v6842
    %v6844 = vsel %vm33, %v6664, 0.0
    %v6845 = vadd.f32 %v6843, %v6844
    %v6846 = vsel %vm33, %v6669, 0.0
    %v6847 = vadd.f32 %v6845, %v6846
    %v6848 = vsel %vm33, %v6672, 0.0
    %v6849 = vadd.f32 %v6847, %v6848
    %v6850 = vsel %vm33, %v6677, 0.0
    %v6851 = vadd.f32 %v6849, %v6850
    %v6852 = vsel %vm33, %v6680, 0.0
    %v6853 = vadd.f32 %v6851, %v6852
    %v6854 = vsel %vm33, %v6685, 0.0
    %v6855 = vadd.f32 %v6853, %v6854
    %v6856 = vsel %vm33, %v6688, 0.0
    %v6857 = vadd.f32 %v6855, %v6856
    %v6858 = vsel %vm33, %v6693, 0.0
    %v6859 = vadd.f32 %v6857, %v6858
    %v6860 = vsel %vm33, %v6696, 0.0
    %v6861 = vadd.f32 %v6859, %v6860
    %v6862 = vsel %vm33, %v6701, 0.0
    %v6863 = vadd.f32 %v6861, %v6862
    %v6864 = vsel %vm33, %v6704, 0.0
    %v6865 = vadd.f32 %v6863, %v6864
    %v6866 = vsel %vm33, %v6709, 0.0
    %v6867 = vadd.f32 %v6865, %v6866
    %v6868 = vsel %vm33, %v6712, 0.0
    %v6869 = vadd.f32 %v6867, %v6868
    %v6870 = vsel %vm33, %v6717, 0.0
    %v6871 = vadd.f32 %v6869, %v6870
    %v6872 = vsel %vm33, %v6720, 0.0
    %v6873 = vadd.f32 %v6871, %v6872
    %v6874 = vsel %vm33, %v6725, 0.0
    %v6875 = vadd.f32 %v6873, %v6874
    %v6876 = vsel %vm33, %v6728, 0.0
    %v6877 = vadd.f32 %v6875, %v6876
    %v6878 = vsel %vm33, %v6733, 0.0
    %v6879 = vadd.f32 %v6877, %v6878
    %v6880 = vsel %vm33, %v6736, 0.0
    %v6881 = vadd.f32 %v6879, %v6880
    %v6882 = vsel %vm33, %v6741, 0.0
    %v6883 = vadd.f32 %v6881, %v6882
    %v6884 = vsel %vm33, %v6744, 0.0
    %v6885 = vadd.f32 %v6883, %v6884
    %v6886 = vsel %vm33, %v6749, 0.0
    %v6887 = vadd.f32 %v6885, %v6886
    %v6888 = vsel %vm33, %v6752, 0.0
    %v6889 = vadd.f32 %v6887, %v6888
    %v6890 = vsel %vm33, %v6757, 0.0
    %v6891 = vadd.f32 %v6889, %v6890
    %v6892 = vsel %vm33, %v6760, 0.0
    %v6893 = vadd.f32 %v6891, %v6892
    %v6894 = vsel %vm33, %v6765, 0.0
    %v6895 = vadd.f32 %v6893, %v6894
    %v6896 = vsel %vm33, %v6768, 0.0
    %v6897 = vadd.f32 %v6895, %v6896
    %v6898 = vrot.slane %v6897, 4
    %v6899 = vadd.f32 %v6897, %v6898
    %v6900 = vrot.slane %v6899, 2
    %v6901 = vadd.f32 %v6899, %v6900
    %v6902 = vrot.slane %v6901, 1
    %v6903 = vadd.f32 %v6901, %v6902
    %v6904 = vmul.f32 %v6517, %v6517
    %v6905 = vmul.f32 %v6520, %v6520
    %v6906 = vmul.f32 %v6525, %v6525
    %v6907 = vmul.f32 %v6528, %v6528
    %v6908 = vmul.f32 %v6533, %v6533
    %v6909 = vmul.f32 %v6536, %v6536
    %v6910 = vmul.f32 %v6541, %v6541
    %v6911 = vmul.f32 %v6544, %v6544
    %v6912 = vmul.f32 %v6549, %v6549
    %v6913 = vmul.f32 %v6552, %v6552
    %v6914 = vmul.f32 %v6557, %v6557
    %v6915 = vmul.f32 %v6560, %v6560
    %v6916 = vmul.f32 %v6565, %v6565
    %v6917 = vmul.f32 %v6568, %v6568
    %v6918 = vmul.f32 %v6573, %v6573
    %v6919 = vmul.f32 %v6576, %v6576
    %v6920 = vmul.f32 %v6581, %v6581
    %v6921 = vmul.f32 %v6584, %v6584
    %v6922 = vmul.f32 %v6589, %v6589
    %v6923 = vmul.f32 %v6592, %v6592
    %v6924 = vmul.f32 %v6597, %v6597
    %v6925 = vmul.f32 %v6600, %v6600
    %v6926 = vmul.f32 %v6605, %v6605
    %v6927 = vmul.f32 %v6608, %v6608
    %v6928 = vmul.f32 %v6613, %v6613
    %v6929 = vmul.f32 %v6616, %v6616
    %v6930 = vmul.f32 %v6621, %v6621
    %v6931 = vmul.f32 %v6624, %v6624
    %v6932 = vmul.f32 %v6629, %v6629
    %v6933 = vmul.f32 %v6632, %v6632
    %v6934 = vmul.f32 %v6637, %v6637
    %v6935 = vmul.f32 %v6640, %v6640
    %v6936 = vmul.f32 %v6645, %v6645
    %v6937 = vmul.f32 %v6648, %v6648
    %v6938 = vmul.f32 %v6653, %v6653
    %v6939 = vmul.f32 %v6656, %v6656
    %v6940 = vmul.f32 %v6661, %v6661
    %v6941 = vmul.f32 %v6664, %v6664
    %v6942 = vmul.f32 %v6669, %v6669
    %v6943 = vmul.f32 %v6672, %v6672
    %v6944 = vmul.f32 %v6677, %v6677
    %v6945 = vmul.f32 %v6680, %v6680
    %v6946 = vmul.f32 %v6685, %v6685
    %v6947 = vmul.f32 %v6688, %v6688
    %v6948 = vmul.f32 %v6693, %v6693
    %v6949 = vmul.f32 %v6696, %v6696
    %v6950 = vmul.f32 %v6701, %v6701
    %v6951 = vmul.f32 %v6704, %v6704
    %v6952 = vmul.f32 %v6709, %v6709
    %v6953 = vmul.f32 %v6712, %v6712
    %v6954 = vmul.f32 %v6717, %v6717
    %v6955 = vmul.f32 %v6720, %v6720
    %v6956 = vmul.f32 %v6725, %v6725
    %v6957 = vmul.f32 %v6728, %v6728
    %v6958 = vmul.f32 %v6733, %v6733
    %v6959 = vmul.f32 %v6736, %v6736
    %v6960 = vmul.f32 %v6741, %v6741
    %v6961 = vmul.f32 %v6744, %v6744
    %v6962 = vmul.f32 %v6749, %v6749
    %v6963 = vmul.f32 %v6752, %v6752
    %v6964 = vmul.f32 %v6757, %v6757
    %v6965 = vmul.f32 %v6760, %v6760
    %v6966 = vmul.f32 %v6765, %v6765
    %v6967 = vmul.f32 %v6768, %v6768
    %v6968 = vsel %vm33, %v6904, 0.0
    %v6969 = vsel %vm33, %v6905, 0.0
    %v6970 = vadd.f32 %v6968, %v6969
    %v6971 = vsel %vm33, %v6906, 0.0
    %v6972 = vadd.f32 %v6970, %v6971
    %v6973 = vsel %vm33, %v6907, 0.0
    %v6974 = vadd.f32 %v6972, %v6973
    %v6975 = vsel %vm33, %v6908, 0.0
    %v6976 = vadd.f32 %v6974, %v6975
    %v6977 = vsel %vm33, %v6909, 0.0
    %v6978 = vadd.f32 %v6976, %v6977
    %v6979 = vsel %vm33, %v6910, 0.0
    %v6980 = vadd.f32 %v6978, %v6979
    %v6981 = vsel %vm33, %v6911, 0.0
    %v6982 = vadd.f32 %v6980, %v6981
    %v6983 = vsel %vm33, %v6912, 0.0
    %v6984 = vadd.f32 %v6982, %v6983
    %v6985 = vsel %vm33, %v6913, 0.0
    %v6986 = vadd.f32 %v6984, %v6985
    %v6987 = vsel %vm33, %v6914, 0.0
    %v6988 = vadd.f32 %v6986, %v6987
    %v6989 = vsel %vm33, %v6915, 0.0
    %v6990 = vadd.f32 %v6988, %v6989
    %v6991 = vsel %vm33, %v6916, 0.0
    %v6992 = vadd.f32 %v6990, %v6991
    %v6993 = vsel %vm33, %v6917, 0.0
    %v6994 = vadd.f32 %v6992, %v6993
    %v6995 = vsel %vm33, %v6918, 0.0
    %v6996 = vadd.f32 %v6994, %v6995
    %v6997 = vsel %vm33, %v6919, 0.0
    %v6998 = vadd.f32 %v6996, %v6997
    %v6999 = vsel %vm33, %v6920, 0.0
    %v7000 = vadd.f32 %v6998, %v6999
    %v7001 = vsel %vm33, %v6921, 0.0
    %v7002 = vadd.f32 %v7000, %v7001
    %v7003 = vsel %vm33, %v6922, 0.0
    %v7004 = vadd.f32 %v7002, %v7003
    %v7005 = vsel %vm33, %v6923, 0.0
    %v7006 = vadd.f32 %v7004, %v7005
    %v7007 = vsel %vm33, %v6924, 0.0
    %v7008 = vadd.f32 %v7006, %v7007
    %v7009 = vsel %vm33, %v6925, 0.0
    %v7010 = vadd.f32 %v7008, %v7009
    %v7011 = vsel %vm33, %v6926, 0.0
    %v7012 = vadd.f32 %v7010, %v7011
    %v7013 = vsel %vm33, %v6927, 0.0
    %v7014 = vadd.f32 %v7012, %v7013
    %v7015 = vsel %vm33, %v6928, 0.0
    %v7016 = vadd.f32 %v7014, %v7015
    %v7017 = vsel %vm33, %v6929, 0.0
    %v7018 = vadd.f32 %v7016, %v7017
    %v7019 = vsel %vm33, %v6930, 0.0
    %v7020 = vadd.f32 %v7018, %v7019
    %v7021 = vsel %vm33, %v6931, 0.0
    %v7022 = vadd.f32 %v7020, %v7021
    %v7023 = vsel %vm33, %v6932, 0.0
    %v7024 = vadd.f32 %v7022, %v7023
    %v7025 = vsel %vm33, %v6933, 0.0
    %v7026 = vadd.f32 %v7024, %v7025
    %v7027 = vsel %vm33, %v6934, 0.0
    %v7028 = vadd.f32 %v7026, %v7027
    %v7029 = vsel %vm33, %v6935, 0.0
    %v7030 = vadd.f32 %v7028, %v7029
    %v7031 = vsel %vm33, %v6936, 0.0
    %v7032 = vadd.f32 %v7030, %v7031
    %v7033 = vsel %vm33, %v6937, 0.0
    %v7034 = vadd.f32 %v7032, %v7033
    %v7035 = vsel %vm33, %v6938, 0.0
    %v7036 = vadd.f32 %v7034, %v7035
    %v7037 = vsel %vm33, %v6939, 0.0
    %v7038 = vadd.f32 %v7036, %v7037
    %v7039 = vsel %vm33, %v6940, 0.0
    %v7040 = vadd.f32 %v7038, %v7039
    %v7041 = vsel %vm33, %v6941, 0.0
    %v7042 = vadd.f32 %v7040, %v7041
    %v7043 = vsel %vm33, %v6942, 0.0
    %v7044 = vadd.f32 %v7042, %v7043
    %v7045 = vsel %vm33, %v6943, 0.0
    %v7046 = vadd.f32 %v7044, %v7045
    %v7047 = vsel %vm33, %v6944, 0.0
    %v7048 = vadd.f32 %v7046, %v7047
    %v7049 = vsel %vm33, %v6945, 0.0
    %v7050 = vadd.f32 %v7048, %v7049
    %v7051 = vsel %vm33, %v6946, 0.0
    %v7052 = vadd.f32 %v7050, %v7051
    %v7053 = vsel %vm33, %v6947, 0.0
    %v7054 = vadd.f32 %v7052, %v7053
    %v7055 = vsel %vm33, %v6948, 0.0
    %v7056 = vadd.f32 %v7054, %v7055
    %v7057 = vsel %vm33, %v6949, 0.0
    %v7058 = vadd.f32 %v7056, %v7057
    %v7059 = vsel %vm33, %v6950, 0.0
    %v7060 = vadd.f32 %v7058, %v7059
    %v7061 = vsel %vm33, %v6951, 0.0
    %v7062 = vadd.f32 %v7060, %v7061
    %v7063 = vsel %vm33, %v6952, 0.0
    %v7064 = vadd.f32 %v7062, %v7063
    %v7065 = vsel %vm33, %v6953, 0.0
    %v7066 = vadd.f32 %v7064, %v7065
    %v7067 = vsel %vm33, %v6954, 0.0
    %v7068 = vadd.f32 %v7066, %v7067
    %v7069 = vsel %vm33, %v6955, 0.0
    %v7070 = vadd.f32 %v7068, %v7069
    %v7071 = vsel %vm33, %v6956, 0.0
    %v7072 = vadd.f32 %v7070, %v7071
    %v7073 = vsel %vm33, %v6957, 0.0
    %v7074 = vadd.f32 %v7072, %v7073
    %v7075 = vsel %vm33, %v6958, 0.0
    %v7076 = vadd.f32 %v7074, %v7075
    %v7077 = vsel %vm33, %v6959, 0.0
    %v7078 = vadd.f32 %v7076, %v7077
    %v7079 = vsel %vm33, %v6960, 0.0
    %v7080 = vadd.f32 %v7078, %v7079
    %v7081 = vsel %vm33, %v6961, 0.0
    %v7082 = vadd.f32 %v7080, %v7081
    %v7083 = vsel %vm33, %v6962, 0.0
    %v7084 = vadd.f32 %v7082, %v7083
    %v7085 = vsel %vm33, %v6963, 0.0
    %v7086 = vadd.f32 %v7084, %v7085
    %v7087 = vsel %vm33, %v6964, 0.0
    %v7088 = vadd.f32 %v7086, %v7087
    %v7089 = vsel %vm33, %v6965, 0.0
    %v7090 = vadd.f32 %v7088, %v7089
    %v7091 = vsel %vm33, %v6966, 0.0
    %v7092 = vadd.f32 %v7090, %v7091
    %v7093 = vsel %vm33, %v6967, 0.0
    %v7094 = vadd.f32 %v7092, %v7093
    %v7095 = vrot.slane %v7094, 4
    %v7096 = vadd.f32 %v7094, %v7095
    %v7097 = vrot.slane %v7096, 2
    %v7098 = vadd.f32 %v7096, %v7097
    %v7099 = vrot.slane %v7098, 1
    %v7100 = vadd.f32 %v7098, %v7099
    %v7101 = vmul.f32 %v6903, 0.001953125
    %v7102 = vmul.f32 %v7100, 0.001953125
    %v7103 = vmul.f32 %v7101, %v7101
    %v7104 = vsub.f32 %v7102, %v7103
    %v7105 = vadd.f32 %v7104, 1e-05
    %v7106 = vrsqrt.pop %v7105
    %v7107 = vmul.f32 %v121, %v7106
    %v7108 = vmul.f32 %v7101, %v7107
    %v7110 = vrot.slane %v7108, 7
    %v7112 = vsub.f32 %v121, %v7110
    %v7113 = vlaneseq
    %v7114 = vshrl.u32 %v7113, 7
    %v7115 = vsub.s32 2, %v7114
    %v7116 = vrot.slane %v7107, %v7115
    %v7117 = vmul.f32 %v6517, %v7116
    %v7118 = vmul.f32 %v6520, %v7116
    %v7119 = vmul.f32 %v6525, %v7116
    %v7120 = vmul.f32 %v6528, %v7116
    %v7121 = vmul.f32 %v6533, %v7116
    %v7122 = vmul.f32 %v6536, %v7116
    %v7123 = vmul.f32 %v6541, %v7116
    %v7124 = vmul.f32 %v6544, %v7116
    %v7125 = vmul.f32 %v6549, %v7116
    %v7126 = vmul.f32 %v6552, %v7116
    %v7127 = vmul.f32 %v6557, %v7116
    %v7128 = vmul.f32 %v6560, %v7116
    %v7129 = vmul.f32 %v6565, %v7116
    %v7130 = vmul.f32 %v6568, %v7116
    %v7131 = vmul.f32 %v6573, %v7116
    %v7132 = vmul.f32 %v6576, %v7116
    %v7133 = vmul.f32 %v6581, %v7116
    %v7134 = vmul.f32 %v6584, %v7116
    %v7135 = vmul.f32 %v6589, %v7116
    %v7136 = vmul.f32 %v6592, %v7116
    %v7137 = vmul.f32 %v6597, %v7116
    %v7138 = vmul.f32 %v6600, %v7116
    %v7139 = vmul.f32 %v6605, %v7116
    %v7140 = vmul.f32 %v6608, %v7116
    %v7141 = vmul.f32 %v6613, %v7116
    %v7142 = vmul.f32 %v6616, %v7116
    %v7143 = vmul.f32 %v6621, %v7116
    %v7144 = vmul.f32 %v6624, %v7116
    %v7145 = vmul.f32 %v6629, %v7116
    %v7146 = vmul.f32 %v6632, %v7116
    %v7147 = vmul.f32 %v6637, %v7116
    %v7148 = vmul.f32 %v6640, %v7116
    %v7149 = vmul.f32 %v6645, %v7116
    %v7150 = vmul.f32 %v6648, %v7116
    %v7151 = vmul.f32 %v6653, %v7116
    %v7152 = vmul.f32 %v6656, %v7116
    %v7153 = vmul.f32 %v6661, %v7116
    %v7154 = vmul.f32 %v6664, %v7116
    %v7155 = vmul.f32 %v6669, %v7116
    %v7156 = vmul.f32 %v6672, %v7116
    %v7157 = vmul.f32 %v6677, %v7116
    %v7158 = vmul.f32 %v6680, %v7116
    %v7159 = vmul.f32 %v6685, %v7116
    %v7160 = vmul.f32 %v6688, %v7116
    %v7161 = vmul.f32 %v6693, %v7116
    %v7162 = vmul.f32 %v6696, %v7116
    %v7163 = vmul.f32 %v6701, %v7116
    %v7164 = vmul.f32 %v6704, %v7116
    %v7165 = vmul.f32 %v6709, %v7116
    %v7166 = vmul.f32 %v6712, %v7116
    %v7167 = vmul.f32 %v6717, %v7116
    %v7168 = vmul.f32 %v6720, %v7116
    %v7169 = vmul.f32 %v6725, %v7116
    %v7170 = vmul.f32 %v6728, %v7116
    %v7171 = vmul.f32 %v6733, %v7116
    %v7172 = vmul.f32 %v6736, %v7116
    %v7173 = vmul.f32 %v6741, %v7116
    %v7174 = vmul.f32 %v6744, %v7116
    %v7175 = vmul.f32 %v6749, %v7116
    %v7176 = vmul.f32 %v6752, %v7116
    %v7177 = vmul.f32 %v6757, %v7116
    %v7178 = vmul.f32 %v6760, %v7116
    %v7179 = vmul.f32 %v6765, %v7116
    %v7180 = vmul.f32 %v6768, %v7116
    %v7181 = vlaneseq
    %v7182 = vshrl.u32 %v7181, 7
    %v7183 = vsub.s32 3, %v7182
    %v7184 = vrot.slane %v7112, %v7183
    %v7185 = vadd.f32 %v7117, %v7184
    %v7186 = vadd.f32 %v7118, %v7184
    %v7187 = vadd.f32 %v7119, %v7184
    %v7188 = vadd.f32 %v7120, %v7184
    %v7189 = vadd.f32 %v7121, %v7184
    %v7190 = vadd.f32 %v7122, %v7184
    %v7191 = vadd.f32 %v7123, %v7184
    %v7192 = vadd.f32 %v7124, %v7184
    %v7193 = vadd.f32 %v7125, %v7184
    %v7194 = vadd.f32 %v7126, %v7184
    %v7195 = vadd.f32 %v7127, %v7184
    %v7196 = vadd.f32 %v7128, %v7184
    %v7197 = vadd.f32 %v7129, %v7184
    %v7198 = vadd.f32 %v7130, %v7184
    %v7199 = vadd.f32 %v7131, %v7184
    %v7200 = vadd.f32 %v7132, %v7184
    %v7201 = vadd.f32 %v7133, %v7184
    %v7202 = vadd.f32 %v7134, %v7184
    %v7203 = vadd.f32 %v7135, %v7184
    %v7204 = vadd.f32 %v7136, %v7184
    %v7205 = vadd.f32 %v7137, %v7184
    %v7206 = vadd.f32 %v7138, %v7184
    %v7207 = vadd.f32 %v7139, %v7184
    %v7208 = vadd.f32 %v7140, %v7184
    %v7209 = vadd.f32 %v7141, %v7184
    %v7210 = vadd.f32 %v7142, %v7184
    %v7211 = vadd.f32 %v7143, %v7184
    %v7212 = vadd.f32 %v7144, %v7184
    %v7213 = vadd.f32 %v7145, %v7184
    %v7214 = vadd.f32 %v7146, %v7184
    %v7215 = vadd.f32 %v7147, %v7184
    %v7216 = vadd.f32 %v7148, %v7184
    %v7217 = vadd.f32 %v7149, %v7184
    %v7218 = vadd.f32 %v7150, %v7184
    %v7219 = vadd.f32 %v7151, %v7184
    %v7220 = vadd.f32 %v7152, %v7184
    %v7221 = vadd.f32 %v7153, %v7184
    %v7222 = vadd.f32 %v7154, %v7184
    %v7223 = vadd.f32 %v7155, %v7184
    %v7224 = vadd.f32 %v7156, %v7184
    %v7225 = vadd.f32 %v7157, %v7184
    %v7226 = vadd.f32 %v7158, %v7184
    %v7227 = vadd.f32 %v7159, %v7184
    %v7228 = vadd.f32 %v7160, %v7184
    %v7229 = vadd.f32 %v7161, %v7184
    %v7230 = vadd.f32 %v7162, %v7184
    %v7231 = vadd.f32 %v7163, %v7184
    %v7232 = vadd.f32 %v7164, %v7184
    %v7233 = vadd.f32 %v7165, %v7184
    %v7234 = vadd.f32 %v7166, %v7184
    %v7235 = vadd.f32 %v7167, %v7184
    %v7236 = vadd.f32 %v7168, %v7184
    %v7237 = vadd.f32 %v7169, %v7184
    %v7238 = vadd.f32 %v7170, %v7184
    %v7239 = vadd.f32 %v7171, %v7184
    %v7240 = vadd.f32 %v7172, %v7184
    %v7241 = vadd.f32 %v7173, %v7184
    %v7242 = vadd.f32 %v7174, %v7184
    %v7243 = vadd.f32 %v7175, %v7184
    %v7244 = vadd.f32 %v7176, %v7184
    %v7245 = vadd.f32 %v7177, %v7184
    %v7246 = vadd.f32 %v7178, %v7184
    %v7247 = vadd.f32 %v7179, %v7184
    %v7248 = vadd.f32 %v7180, %v7184
    %v7249 = vadd.f32 %v7185, %v122
    %v7250 = vadd.f32 %v7186, %v123
    %v7251 = vadd.f32 %v7187, %v124
    %v7252 = vadd.f32 %v7188, %v125
    %v7253 = vadd.f32 %v7189, %v126
    %v7254 = vadd.f32 %v7190, %v127
    %v7255 = vadd.f32 %v7191, %v128
    %v7256 = vadd.f32 %v7192, %v129
    %v7257 = vadd.f32 %v7193, %v130
    %v7258 = vadd.f32 %v7194, %v131
    %v7259 = vadd.f32 %v7195, %v132
    %v7260 = vadd.f32 %v7196, %v133
    %v7261 = vadd.f32 %v7197, %v134
    %v7262 = vadd.f32 %v7198, %v135
    %v7263 = vadd.f32 %v7199, %v136
    %v7264 = vadd.f32 %v7200, %v137
    %v7265 = vadd.f32 %v7201, %v138
    %v7266 = vadd.f32 %v7202, %v139
    %v7267 = vadd.f32 %v7203, %v140
    %v7268 = vadd.f32 %v7204, %v141
    %v7269 = vadd.f32 %v7205, %v142
    %v7270 = vadd.f32 %v7206, %v143
    %v7271 = vadd.f32 %v7207, %v144
    %v7272 = vadd.f32 %v7208, %v145
    %v7273 = vadd.f32 %v7209, %v146
    %v7274 = vadd.f32 %v7210, %v147
    %v7275 = vadd.f32 %v7211, %v148
    %v7276 = vadd.f32 %v7212, %v149
    %v7277 = vadd.f32 %v7213, %v150
    %v7278 = vadd.f32 %v7214, %v151
    %v7279 = vadd.f32 %v7215, %v152
    %v7280 = vadd.f32 %v7216, %v153
    %v7281 = vadd.f32 %v7217, %v154
    %v7282 = vadd.f32 %v7218, %v155
    %v7283 = vadd.f32 %v7219, %v156
    %v7284 = vadd.f32 %v7220, %v157
    %v7285 = vadd.f32 %v7221, %v158
    %v7286 = vadd.f32 %v7222, %v159
    %v7287 = vadd.f32 %v7223, %v160
    %v7288 = vadd.f32 %v7224, %v161
    %v7289 = vadd.f32 %v7225, %v162
    %v7290 = vadd.f32 %v7226, %v163
    %v7291 = vadd.f32 %v7227, %v164
    %v7292 = vadd.f32 %v7228, %v165
    %v7293 = vadd.f32 %v7229, %v166
    %v7294 = vadd.f32 %v7230, %v167
    %v7295 = vadd.f32 %v7231, %v168
    %v7296 = vadd.f32 %v7232, %v169
    %v7297 = vadd.f32 %v7233, %v170
    %v7298 = vadd.f32 %v7234, %v171
    %v7299 = vadd.f32 %v7235, %v172
    %v7300 = vadd.f32 %v7236, %v173
    %v7301 = vadd.f32 %v7237, %v174
    %v7302 = vadd.f32 %v7238, %v175
    %v7303 = vadd.f32 %v7239, %v176
    %v7304 = vadd.f32 %v7240, %v177
    %v7305 = vadd.f32 %v7241, %v178
    %v7306 = vadd.f32 %v7242, %v179
    %v7307 = vadd.f32 %v7243, %v180
    %v7308 = vadd.f32 %v7244, %v181
    %v7309 = vadd.f32 %v7245, %v182
    %v7310 = vadd.f32 %v7246, %v183
    %v7311 = vadd.f32 %v7247, %v184
    %v7312 = vadd.f32 %v7248, %v185
    %v7313 = vmax.f32 %v7249, 0.0
    %v7314 = vmax.f32 %v7250, 0.0
    %v7315 = vmax.f32 %v7251, 0.0
    %v7316 = vmax.f32 %v7252, 0.0
    %v7317 = vmax.f32 %v7253, 0.0
    %v7318 = vmax.f32 %v7254, 0.0
    %v7319 = vmax.f32 %v7255, 0.0
    %v7320 = vmax.f32 %v7256, 0.0
    %v7321 = vmax.f32 %v7257, 0.0
    %v7322 = vmax.f32 %v7258, 0.0
    %v7323 = vmax.f32 %v7259, 0.0
    %v7324 = vmax.f32 %v7260, 0.0
    %v7325 = vmax.f32 %v7261, 0.0
    %v7326 = vmax.f32 %v7262, 0.0
    %v7327 = vmax.f32 %v7263, 0.0
    %v7328 = vmax.f32 %v7264, 0.0
    %v7329 = vmax.f32 %v7265, 0.0
    %v7330 = vmax.f32 %v7266, 0.0
    %v7331 = vmax.f32 %v7267, 0.0
    %v7332 = vmax.f32 %v7268, 0.0
    %v7333 = vmax.f32 %v7269, 0.0
    %v7334 = vmax.f32 %v7270, 0.0
    %v7335 = vmax.f32 %v7271, 0.0
    %v7336 = vmax.f32 %v7272, 0.0
    %v7337 = vmax.f32 %v7273, 0.0
    %v7338 = vmax.f32 %v7274, 0.0
    %v7339 = vmax.f32 %v7275, 0.0
    %v7340 = vmax.f32 %v7276, 0.0
    %v7341 = vmax.f32 %v7277, 0.0
    %v7342 = vmax.f32 %v7278, 0.0
    %v7343 = vmax.f32 %v7279, 0.0
    %v7344 = vmax.f32 %v7280, 0.0
    %v7345 = vmax.f32 %v7281, 0.0
    %v7346 = vmax.f32 %v7282, 0.0
    %v7347 = vmax.f32 %v7283, 0.0
    %v7348 = vmax.f32 %v7284, 0.0
    %v7349 = vmax.f32 %v7285, 0.0
    %v7350 = vmax.f32 %v7286, 0.0
    %v7351 = vmax.f32 %v7287, 0.0
    %v7352 = vmax.f32 %v7288, 0.0
    %v7353 = vmax.f32 %v7289, 0.0
    %v7354 = vmax.f32 %v7290, 0.0
    %v7355 = vmax.f32 %v7291, 0.0
    %v7356 = vmax.f32 %v7292, 0.0
    %v7357 = vmax.f32 %v7293, 0.0
    %v7358 = vmax.f32 %v7294, 0.0
    %v7359 = vmax.f32 %v7295, 0.0
    %v7360 = vmax.f32 %v7296, 0.0
    %v7361 = vmax.f32 %v7297, 0.0
    %v7362 = vmax.f32 %v7298, 0.0
    %v7363 = vmax.f32 %v7299, 0.0
    %v7364 = vmax.f32 %v7300, 0.0
    %v7365 = vmax.f32 %v7301, 0.0
    %v7366 = vmax.f32 %v7302, 0.0
    %v7367 = vmax.f32 %v7303, 0.0
    %v7368 = vmax.f32 %v7304, 0.0
    %v7369 = vmax.f32 %v7305, 0.0
    %v7370 = vmax.f32 %v7306, 0.0
    %v7371 = vmax.f32 %v7307, 0.0
    %v7372 = vmax.f32 %v7308, 0.0
    %v7373 = vmax.f32 %v7309, 0.0
    %v7374 = vmax.f32 %v7310, 0.0
    %v7375 = vmax.f32 %v7311, 0.0
    %v7376 = vmax.f32 %v7312, 0.0
    %7377 = vst.msk [vmem:[#allocation6] sm:$0xff] %vm33, %v7313
    %7378 = vst.msk [vmem:[#allocation6 + $0x8] sm:$0xff] %vm33, %v7314
    %7379 = vst.msk [vmem:[#allocation6 + $0x10] sm:$0xff] %vm33, %v7315
    %7380 = vst.msk [vmem:[#allocation6 + $0x18] sm:$0xff] %vm33, %v7316
    %7381 = vst.msk [vmem:[#allocation6 + $0x20] sm:$0xff] %vm33, %v7317
    %7382 = vst.msk [vmem:[#allocation6 + $0x28] sm:$0xff] %vm33, %v7318
    %7383 = vst.msk [vmem:[#allocation6 + $0x30] sm:$0xff] %vm33, %v7319
    %7384 = vst.msk [vmem:[#allocation6 + $0x38] sm:$0xff] %vm33, %v7320
    %7385 = vst.msk [vmem:[#allocation6 + $0x40] sm:$0xff] %vm33, %v7321
    %7386 = vst.msk [vmem:[#allocation6 + $0x48] sm:$0xff] %vm33, %v7322
    %7387 = vst.msk [vmem:[#allocation6 + $0x50] sm:$0xff] %vm33, %v7323
    %7388 = vst.msk [vmem:[#allocation6 + $0x58] sm:$0xff] %vm33, %v7324
    %7389 = vst.msk [vmem:[#allocation6 + $0x60] sm:$0xff] %vm33, %v7325
    %7390 = vst.msk [vmem:[#allocation6 + $0x68] sm:$0xff] %vm33, %v7326
    %7391 = vst.msk [vmem:[#allocation6 + $0x70] sm:$0xff] %vm33, %v7327
    %7392 = vst.msk [vmem:[#allocation6 + $0x78] sm:$0xff] %vm33, %v7328
    %7393 = vst.msk [vmem:[#allocation6 + $0x80] sm:$0xff] %vm33, %v7329
    %7394 = vst.msk [vmem:[#allocation6 + $0x88] sm:$0xff] %vm33, %v7330
    %7395 = vst.msk [vmem:[#allocation6 + $0x90] sm:$0xff] %vm33, %v7331
    %7396 = vst.msk [vmem:[#allocation6 + $0x98] sm:$0xff] %vm33, %v7332
    %7397 = vst.msk [vmem:[#allocation6 + $0xa0] sm:$0xff] %vm33, %v7333
    %7398 = vst.msk [vmem:[#allocation6 + $0xa8] sm:$0xff] %vm33, %v7334
    %7399 = vst.msk [vmem:[#allocation6 + $0xb0] sm:$0xff] %vm33, %v7335
    %7400 = vst.msk [vmem:[#allocation6 + $0xb8] sm:$0xff] %vm33, %v7336
    %7401 = vst.msk [vmem:[#allocation6 + $0xc0] sm:$0xff] %vm33, %v7337
    %7402 = vst.msk [vmem:[#allocation6 + $0xc8] sm:$0xff] %vm33, %v7338
    %7403 = vst.msk [vmem:[#allocation6 + $0xd0] sm:$0xff] %vm33, %v7339
    %7404 = vst.msk [vmem:[#allocation6 + $0xd8] sm:$0xff] %vm33, %v7340
    %7405 = vst.msk [vmem:[#allocation6 + $0xe0] sm:$0xff] %vm33, %v7341
    %7406 = vst.msk [vmem:[#allocation6 + $0xe8] sm:$0xff] %vm33, %v7342
    %7407 = vst.msk [vmem:[#allocation6 + $0xf0] sm:$0xff] %vm33, %v7343
    %7408 = vst.msk [vmem:[#allocation6 + $0xf8] sm:$0xff] %vm33, %v7344
    %7409 = vst.msk [vmem:[#allocation6 + $0x100] sm:$0xff] %vm33, %v7345
    %7410 = vst.msk [vmem:[#allocation6 + $0x108] sm:$0xff] %vm33, %v7346
    %7411 = vst.msk [vmem:[#allocation6 + $0x110] sm:$0xff] %vm33, %v7347
    %7412 = vst.msk [vmem:[#allocation6 + $0x118] sm:$0xff] %vm33, %v7348
    %7413 = vst.msk [vmem:[#allocation6 + $0x120] sm:$0xff] %vm33, %v7349
    %7414 = vst.msk [vmem:[#allocation6 + $0x128] sm:$0xff] %vm33, %v7350
    %7415 = vst.msk [vmem:[#allocation6 + $0x130] sm:$0xff] %vm33, %v7351
    %7416 = vst.msk [vmem:[#allocation6 + $0x138] sm:$0xff] %vm33, %v7352
    %7417 = vst.msk [vmem:[#allocation6 + $0x140] sm:$0xff] %vm33, %v7353
    %7418 = vst.msk [vmem:[#allocation6 + $0x148] sm:$0xff] %vm33, %v7354
    %7419 = vst.msk [vmem:[#allocation6 + $0x150] sm:$0xff] %vm33, %v7355
    %7420 = vst.msk [vmem:[#allocation6 + $0x158] sm:$0xff] %vm33, %v7356
    %7421 = vst.msk [vmem:[#allocation6 + $0x160] sm:$0xff] %vm33, %v7357
    %7422 = vst.msk [vmem:[#allocation6 + $0x168] sm:$0xff] %vm33, %v7358
    %7423 = vst.msk [vmem:[#allocation6 + $0x170] sm:$0xff] %vm33, %v7359
    %7424 = vst.msk [vmem:[#allocation6 + $0x178] sm:$0xff] %vm33, %v7360
    %7425 = vst.msk [vmem:[#allocation6 + $0x180] sm:$0xff] %vm33, %v7361
    %7426 = vst.msk [vmem:[#allocation6 + $0x188] sm:$0xff] %vm33, %v7362
    %7427 = vst.msk [vmem:[#allocation6 + $0x190] sm:$0xff] %vm33, %v7363
    %7428 = vst.msk [vmem:[#allocation6 + $0x198] sm:$0xff] %vm33, %v7364
    %7429 = vst.msk [vmem:[#allocation6 + $0x1a0] sm:$0xff] %vm33, %v7365
    %7430 = vst.msk [vmem:[#allocation6 + $0x1a8] sm:$0xff] %vm33, %v7366
    %7431 = vst.msk [vmem:[#allocation6 + $0x1b0] sm:$0xff] %vm33, %v7367
    %7432 = vst.msk [vmem:[#allocation6 + $0x1b8] sm:$0xff] %vm33, %v7368
    %7433 = vst.msk [vmem:[#allocation6 + $0x1c0] sm:$0xff] %vm33, %v7369
    %7434 = vst.msk [vmem:[#allocation6 + $0x1c8] sm:$0xff] %vm33, %v7370
    %7435 = vst.msk [vmem:[#allocation6 + $0x1d0] sm:$0xff] %vm33, %v7371
    %7436 = vst.msk [vmem:[#allocation6 + $0x1d8] sm:$0xff] %vm33, %v7372
    %7437 = vst.msk [vmem:[#allocation6 + $0x1e0] sm:$0xff] %vm33, %v7373
    %7438 = vst.msk [vmem:[#allocation6 + $0x1e8] sm:$0xff] %vm33, %v7374
    %7439 = vst.msk [vmem:[#allocation6 + $0x1f0] sm:$0xff] %vm33, %v7375
    %7440 = vst.msk [vmem:[#allocation6 + $0x1f8] sm:$0xff] %vm33, %v7376
    // Predicated region
    $region22: #{tpu_custom_call.1} parent=1 // pred_check
      _
    $region23: #{tpu_custom_call.1} parent=1 // pred_check_branch
      %7442 = sbr.rel (0) target = $region25
    $region24: #{tpu_custom_call.1} parent=1 // pred_region
      %s7444 = ssub.s32 8192, 8192
      %7445 = vsyncadd [#allocation5], %s7444
      %s7446 = sshll.u32 [#allocation6], 4
      %s7447 = int_to_ptr.vmem [resolvable:$true] %s7446
      %7452 = dma.vmem_to_hbm [thread:$0]  %s7447, 8192, %s4, [#allocation5], 128, 128, 8
    $region25: #{tpu_custom_call.1} parent=1 // pred_fallthru
      _
    // Predicated region
    $region26: #{tpu_custom_call.1} parent=1 // pred_check
      _
    $region27: #{tpu_custom_call.1} parent=1 // pred_check_branch
      %7454 = sbr.rel (0) target = $region29
    $region28: #{tpu_custom_call.1} parent=1 // pred_region
      %7455 = dma.done [#allocation5], 8192
    $region29: #{tpu_custom_call.1} parent=1 // pred_fallthru
      _
    %7456 = vsyncpa [#allocation4], 1
    %7457 = vsyncpa [#allocation5], 1

</llo_original>
